<compile_context>
chip_gen: v7x
topology: tpu7x:2x2x1
jax: 0.10.0
libtpu: 0.0.40
codegen_flags: <defaults>
</compile_context>

<pallas_src>
import functools

import jax
import jax.numpy as jnp
from jax.experimental import pallas as pl
from jax.experimental.pallas import tpu as pltpu

# ----------------------------- config (small, deterministic) ----------------
N_VOCAB = 100
N_SPEAKER = 8
ENC_HIDDEN = 32          # config.model.encoder_n_hidden
DEC_HIDDEN = 32          # config.model.decoder_n_hidden (decoder stand-in = identity)
BERT_EMB = 16            # config.model.bert_embedding
N_MELS = 16              # config.n_mels
VAR_KSIZE = 3            # config.model.variance_embed_kernel_size (odd)
T_PAD = 512              # fixed engine sequence length in the original model
DEC_T_PAD = 2048         # fixed decoder sequence length in the original model
GAUSS_DELTA = 0.1        # GaussianUpsampling default delta
UPSAMPLE_BLOCK_Q = 512   # output-frame tile  -> grid axis 0 = 4 (even, v7x megacore)
UPSAMPLE_BLOCK_T = 128   # token tile          -> grid axis 1 = 4 (innermost, skippable)


# ----------------------------- Pallas kernels -------------------------------
def variance_adaptor_kernel(len_ref, enc_ref, wtok_ref, brow_ref,
                            predw_ref, predb_ref, convw_ref, convb_ref,
                            melw_ref, hsmel_ref, dur_ref):
    """Fused variance adaptor on a full [T_PAD, *] block (everything VMEM-resident).

    len_ref   : SMEM (1,) int32      valid token length T
    enc_ref   : [T_PAD, H]           encoder output (identity stand-in of token emb)
    wtok_ref  : [H, H]               token part of embed_projection1 weight
    brow_ref  : [1, H]               concat(spk,sty,con) @ W_bcast + proj_b (precomputed)
    predw/b   : [H, 3], [1, 3]       pitch | energy | duration heads (stand-ins)
    convw     : [6, H]               rows 0..2 pitch taps (t-1,t,t+1), rows 3..5 energy taps
    convb     : [1, H]               pitch_conv_b + energy_conv_b
    melw_ref  : [H, N_MELS]          to_mel weight (fused while decoder is identity)
    hsmel_ref : [T_PAD, N_MELS]      (x_proj + pitch_emb + energy_emb) @ to_mel_w
    dur_ref   : [T_PAD, 1]           clamp(round(exp(d)-1), 0), rows >= T zeroed
    """
    t_pad = enc_ref.shape[0]
    t_len = len_ref[0]

    row = jax.lax.broadcasted_iota(jnp.int32, (t_pad, 1), 0)
    valid = (row < t_len).astype(jnp.float32)                         # [T_PAD, 1]

    # --- embed_projection1 (token part only; broadcast part folded into brow) ---
    x_proj = (jnp.dot(enc_ref[...], wtok_ref[...],
                      preferred_element_type=jnp.float32) + brow_ref[...])
    x512 = x_proj * valid                                             # [T_PAD, H]

    # --- pitch / energy / duration predictor stand-ins: one [H,3] matmul ---
    preds = (jnp.dot(x512, predw_ref[...],
                     preferred_element_type=jnp.float32) + predb_ref[...])   # [T_PAD, 3]
    p_col = preds[:, 0:1] * valid
    e_col = preds[:, 1:2] * valid
    # NOTE: dur is lane-width 1 (masked vst) but only 2 KiB total; negligible.
    dur_ref[...] = jnp.maximum(jnp.round(jnp.exp(preds[:, 2:3]) - 1.0), 0.0) * valid

    # --- variance Conv1d(1->H, K=3, zero padding); both convs fused ---
    # (nn.Dropout after each conv is a no-op at inference.)
    # TODO(synk): padded rows are zeroed before the conv (pad-after-proj), so the
    # t = T-1 output sees a zero t+1 tap; confirm vs the torch engine's padding.
    cw = convw_ref[...]                                               # [6, H]
    c_prev = p_col * cw[0:1, :] + e_col * cw[3:4, :]                  # tap on x[t-1]
    c_mid = p_col * cw[1:2, :] + e_col * cw[4:5, :]                   # tap on x[t]
    c_next = p_col * cw[2:3, :] + e_col * cw[5:6, :]                  # tap on x[t+1]

    # +/-1 neighbour taps via sublane rolls on the XLU (exact zero padding at the
    # sequence boundary via the row masks).
    not_first = (row >= 1).astype(jnp.float32)
    not_last = (row < t_pad - 1).astype(jnp.float32)
    conv_sum = c_mid + convb_ref[...]
    conv_sum = conv_sum + pltpu.roll(c_prev, shift=1, axis=0) * not_first
    conv_sum = conv_sum + pltpu.roll(c_next, shift=t_pad - 1, axis=0) * not_last

    x_sum = (x512 + conv_sum) * valid                                 # [T_PAD, H]

    # --- fused to_mel projection (valid only while the decoder stand-in is identity) ---
    # TODO(synk): when the real decoder .bmodel engine is plugged in, emit x_sum
    # here instead and move the to_mel projection after the decoder.
    hsmel_ref[...] = jnp.dot(x_sum, melw_ref[...],
                             preferred_element_type=jnp.float32)


def gauss_upsample_kernel(len_ref, c_ref, m_ref, hs_ref, melb_ref, o_ref,
                          m_sc, l_sc, acc_sc, *, delta, block_t):
    """Length-aware GaussianUpsampling with online softmax over token blocks.

    Grid: (frames // TQ, tokens // block_t); token axis innermost ('arbitrary').
    len_ref : scalar-prefetch SMEM (1,) int32  valid token length
    c_ref   : [1, block_t]   duration centers
    m_ref   : [1, block_t]   valid-token mask (1 = valid)
    hs_ref  : [block_t, N]   mel-projected hidden states
    melb_ref: [1, N]         to_mel bias (added at finalize)
    o_ref   : [TQ, N]        output mel frames
    """
    qi = pl.program_id(0)
    ki = pl.program_id(1)
    nk = pl.num_programs(1)
    tq = o_ref.shape[0]

    @pl.when(ki == 0)
    def _():
        m_sc[...] = jnp.full_like(m_sc, -1e30)
        l_sc[...] = jnp.zeros_like(l_sc)
        acc_sc[...] = jnp.zeros_like(acc_sc)

    # Skip token blocks entirely past the valid length (EUP/VPU/MXU work saved).
    @pl.when(ki * block_t < len_ref[0])
    def _():
        frame = (qi * tq + jax.lax.broadcasted_iota(jnp.int32, (tq, 1), 0)
                 ).astype(jnp.float32)                                # [TQ, 1]
        energy = -delta * (frame - c_ref[...]) ** 2                   # [TQ, block_t]
        energy = jnp.where(m_ref[...] > 0.5, energy, -1e30)
        m_new = jnp.maximum(m_sc[...], jnp.max(energy, axis=-1, keepdims=True))
        alpha = jnp.exp(m_sc[...] - m_new)
        p = jnp.exp(energy - m_new)
        l_sc[...] = alpha * l_sc[...] + jnp.sum(p, axis=-1, keepdims=True)
        acc_sc[...] = alpha * acc_sc[...] + jnp.dot(p, hs_ref[...],
                                                    preferred_element_type=jnp.float32)
        m_sc[...] = m_new

    @pl.when(ki == nk - 1)
    def _():
        denom = jnp.maximum(l_sc[...], 1e-20)                         # guard length==0
        o_ref[...] = (acc_sc[...] * pl.reciprocal(denom, approx=True)
                      + melb_ref[...])


# ----------------------------- Pallas wrappers -------------------------------
def pallas_variance_adaptor(length, enc, bias_row, packed):
    t_pad, h = enc.shape
    n_mels = packed["to_mel_w"].shape[1]
    vmem = pl.BlockSpec(memory_space=pltpu.MemorySpace.VMEM)
    smem = pl.BlockSpec(memory_space=pltpu.MemorySpace.SMEM)
    return pl.pallas_call(
        variance_adaptor_kernel,
        out_shape=(jax.ShapeDtypeStruct((t_pad, n_mels), jnp.float32),
                   jax.ShapeDtypeStruct((t_pad, 1), jnp.float32)),
        in_specs=[smem, vmem, vmem, vmem, vmem, vmem, vmem, vmem, vmem],
        out_specs=(vmem, vmem),
    )(length, enc, packed["proj_w_tok"], bias_row,
      packed["pred_w"], packed["pred_b"],
      packed["conv_w"], packed["conv_b"],
      packed["to_mel_w"])


def pallas_gaussian_upsample(hs, c, mask, length, mel_b, t_out, delta=GAUSS_DELTA,
                             block_q=UPSAMPLE_BLOCK_Q, block_t=UPSAMPLE_BLOCK_T):
    t_in, n = hs.shape
    assert t_out % block_q == 0 and t_in % block_t == 0
    grid = (t_out // block_q, t_in // block_t)
    return pl.pallas_call(
        functools.partial(gauss_upsample_kernel, delta=delta, block_t=block_t),
        out_shape=jax.ShapeDtypeStruct((t_out, n), jnp.float32),
        grid_spec=pltpu.PrefetchScalarGridSpec(
            num_scalar_prefetch=1,
            grid=grid,
            in_specs=[pl.BlockSpec((1, block_t), lambda qi, ki, ln: (0, ki)),
                      pl.BlockSpec((1, block_t), lambda qi, ki, ln: (0, ki)),
                      pl.BlockSpec((block_t, n), lambda qi, ki, ln: (ki, 0)),
                      pl.BlockSpec((1, n), lambda qi, ki, ln: (0, 0))],
            out_specs=pl.BlockSpec((block_q, n), lambda qi, ki, ln: (qi, 0)),
            scratch_shapes=[pltpu.VMEM((block_q, 1), jnp.float32),
                            pltpu.VMEM((block_q, 1), jnp.float32),
                            pltpu.VMEM((block_q, n), jnp.float32)]),
        compiler_params=pltpu.CompilerParams(
            dimension_semantics=("parallel", "arbitrary")),
    )(length, c.reshape(1, t_in), mask.reshape(1, t_in), hs, mel_b)


# ----------------------------- parameters ------------------------------------
def init_params(key):
    """Torch-layout parameters (Conv1d weights as [out, in=1, K], Linear as [in, out])."""
    ks = jax.random.split(key, 12)
    p = {}
    p["src_word_emb"] = 0.1 * jax.random.normal(ks[0], (N_VOCAB, ENC_HIDDEN), jnp.float32)
    p["spk_tokenizer"] = 0.1 * jax.random.normal(ks[1], (N_SPEAKER, ENC_HIDDEN), jnp.float32)
    proj_in = ENC_HIDDEN * 2 + BERT_EMB * 2
    p["proj_w"] = 0.05 * jax.random.normal(ks[2], (proj_in, ENC_HIDDEN), jnp.float32)
    p["proj_b"] = jnp.zeros((ENC_HIDDEN,), jnp.float32)
    p["pitch_conv_w"] = 0.1 * jax.random.normal(ks[3], (ENC_HIDDEN, 1, VAR_KSIZE), jnp.float32)
    p["pitch_conv_b"] = jnp.zeros((ENC_HIDDEN,), jnp.float32)
    p["energy_conv_w"] = 0.1 * jax.random.normal(ks[4], (ENC_HIDDEN, 1, VAR_KSIZE), jnp.float32)
    p["energy_conv_b"] = jnp.zeros((ENC_HIDDEN,), jnp.float32)
    # TODO(synk): pitch/energy/duration predictors are external .bmodel engines;
    # deterministic Linear(H -> 1) stand-ins are used instead.
    p["pitch_pred_w"] = 0.05 * jax.random.normal(ks[5], (ENC_HIDDEN, 1), jnp.float32)
    p["pitch_pred_b"] = jnp.zeros((1,), jnp.float32)
    p["energy_pred_w"] = 0.05 * jax.random.normal(ks[6], (ENC_HIDDEN, 1), jnp.float32)
    p["energy_pred_b"] = jnp.zeros((1,), jnp.float32)
    p["dur_pred_w"] = 0.05 * jax.random.normal(ks[7], (ENC_HIDDEN, 1), jnp.float32)
    p["dur_pred_b"] = jnp.full((1,), 1.0, jnp.float32)   # keeps durations ~2
    p["to_mel_w"] = 0.05 * jax.random.normal(ks[8], (DEC_HIDDEN, N_MELS), jnp.float32)
    p["to_mel_b"] = jnp.zeros((N_MELS,), jnp.float32)
    return p


def pack_params(p):
    """One-time repack into kernel-friendly layouts (done once, outside jit)."""
    q = {}
    q["src_word_emb"] = p["src_word_emb"]
    q["spk_tokenizer"] = p["spk_tokenizer"]
    # embed_projection1 split: rows 0..H-1 act on the encoder tokens; the remaining
    # rows act on the per-utterance broadcast vector and are folded into a bias row.
    q["proj_w_tok"] = p["proj_w"][:ENC_HIDDEN, :]                     # [H, H]
    q["proj_w_bcast"] = p["proj_w"][ENC_HIDDEN:, :]                   # [H+2*Db, H]
    q["proj_b"] = p["proj_b"].reshape(1, -1)
    # predictor heads fused into a single [H, 3] matmul (pitch | energy | duration)
    q["pred_w"] = jnp.concatenate(
        [p["pitch_pred_w"], p["energy_pred_w"], p["dur_pred_w"]], axis=1)
    q["pred_b"] = jnp.concatenate(
        [p["pitch_pred_b"], p["energy_pred_b"], p["dur_pred_b"]]).reshape(1, 3)
    # conv taps as [K, H]; rows 0..2 pitch, 3..5 energy; biases summed (both add into x)
    q["conv_w"] = jnp.concatenate(
        [jnp.transpose(p["pitch_conv_w"][:, 0, :]),
         jnp.transpose(p["energy_conv_w"][:, 0, :])], axis=0)
    q["conv_b"] = (p["pitch_conv_b"] + p["energy_conv_b"]).reshape(1, -1)
    q["to_mel_w"] = p["to_mel_w"]
    q["to_mel_b"] = p["to_mel_b"].reshape(1, -1)
    return q


# ----------------------------- forward ---------------------------------------
@jax.jit
def _forward_static(packed, ling_pad, input_lengths, inputs_speaker,
                    inputs_style_embedding, inputs_content_embedding):
    """Static-shape forward: [1, T_PAD] token ids -> ([1, DEC_T_PAD, n_mels], n_frames)."""
    lengths_i32 = input_lengths.astype(jnp.int32)

    token_embed = jnp.take(packed["src_word_emb"], ling_pad[0], axis=0)       # [512, H]
    # TODO(synk): encoder is an external precompiled .bmodel engine; identity stand-in.
    enc = token_embed

    # --- broadcast (speaker/style/content) part of embed_projection1: one [1,H] row ---
    spk = jnp.take(packed["spk_tokenizer"], inputs_speaker, axis=0)           # [1, H]
    bvec = jnp.concatenate([spk, inputs_style_embedding, inputs_content_embedding],
                           axis=-1)                                           # [1, H+2Db]
    bias_row = jnp.dot(bvec, packed["proj_w_bcast"]) + packed["proj_b"]       # [1, H]

    # --- fused variance adaptor (single gridless Pallas kernel) ---
    hs_mel, dur = pallas_variance_adaptor(lengths_i32, enc, bias_row, packed)
    d = dur[:, 0]                                                             # [512] floats
    centers = jnp.cumsum(d) - 0.5 * d                                         # [512]
    d_mask = (jnp.arange(T_PAD) < input_lengths[0]).astype(jnp.float32)       # [512]
    t_feats = jnp.clip(jnp.sum(d), 1.0, float(DEC_T_PAD)).astype(jnp.int32)   # clamp to decoder pad

    # --- Gaussian length regulation fused with to_mel (decoder stand-in = identity) ---
    # TODO(synk): decoder is an external precompiled .bmodel engine; when a real
    # decoder is plugged in, upsample x_sum instead and run to_mel after it.
    mel = pallas_gaussian_upsample(hs_mel, centers, d_mask, lengths_i32,
                                   packed["to_mel_b"], DEC_T_PAD)             # [2048, n_mels]
    return mel[None], t_feats


def prompt_tts_forward(packed, inputs_ling, input_lengths, inputs_speaker,
                       inputs_style_embedding, inputs_content_embedding):
    """Mirrors PromptTTS.forward for B == 1 (as the original code assumes)."""
    b, t = inputs_ling.shape
    assert b == 1 and t <= T_PAD
    ling_pad = jnp.pad(inputs_ling, ((0, 0), (0, T_PAD - t)))                 # one-time pad
    mel_full, t_feats = _forward_static(packed, ling_pad, input_lengths,
                                        inputs_speaker, inputs_style_embedding,
                                        inputs_content_embedding)
    # Single host sync for the data-dependent frame count (matches torch slicing).
    # TODO(synk): return (mel_full, t_feats) instead if the caller can consume masks.
    n_frames = int(t_feats)
    return mel_full[:, :n_frames, :]                                          # [1, Tf, n_mels]


# ----------------------------- main -------------------------------------------
if __name__ == "__main__":
    key = jax.random.PRNGKey(0)
    k_par, k_ling, k_spk, k_sty, k_con = jax.random.split(key, 5)

    params = init_params(k_par)
    packed = pack_params(params)

    T = 8
    inputs_ling = jax.random.randint(k_ling, (1, T), 1, N_VOCAB, dtype=jnp.int32)
    input_lengths = jnp.array([T], dtype=jnp.int32)
    inputs_speaker = jax.random.randint(k_spk, (1,), 0, N_SPEAKER, dtype=jnp.int32)
    inputs_style_embedding = 0.1 * jax.random.normal(k_sty, (1, BERT_EMB), jnp.float32)
    inputs_content_embedding = 0.1 * jax.random.normal(k_con, (1, BERT_EMB), jnp.float32)

    mel = prompt_tts_forward(packed, inputs_ling, input_lengths, inputs_speaker,
                             inputs_style_embedding, inputs_content_embedding)
    jax.block_until_ready(mel)
    assert mel.ndim == 3 and mel.shape[0] == 1 and mel.shape[2] == N_MELS
    assert mel.shape[1] >= 1
    assert bool(jnp.all(jnp.isfinite(mel)))
    print("KERNEL_OK")
</pallas_src>

<mosaic_0001>
module attributes {stable_mosaic.version = 11 : i64} {
  func.func @variance_adaptor_kernel(%arg0: memref<1xi32, #tpu.memory_space<smem>>, %arg1: memref<512x32xf32, #tpu.memory_space<vmem>>, %arg2: memref<32x32xf32, #tpu.memory_space<vmem>>, %arg3: memref<1x32xf32, #tpu.memory_space<vmem>>, %arg4: memref<32x3xf32, #tpu.memory_space<vmem>>, %arg5: memref<1x3xf32, #tpu.memory_space<vmem>>, %arg6: memref<6x32xf32, #tpu.memory_space<vmem>>, %arg7: memref<1x32xf32, #tpu.memory_space<vmem>>, %arg8: memref<32x16xf32, #tpu.memory_space<vmem>>, %arg9: memref<512x16xf32, #tpu.memory_space<vmem>>, %arg10: memref<512x1xf32, #tpu.memory_space<vmem>>) attributes {dimension_semantics = [], scalar_prefetch = 0 : i64, scratch_operands = 0 : i64, tpu.core_type = #tpu.core_type<tc>} {
    %c0 = arith.constant 0 : index
    %0 = memref.load %arg0[%c0] : memref<1xi32, #tpu.memory_space<smem>>
    %1 = tpu.iota {dimensions = array<i32: 0>} : vector<512x1xi32>
    %2 = vector.broadcast %0 : i32 to vector<512x1xi32>
    %3 = arith.cmpi slt, %1, %2 : vector<512x1xi32>
    %4 = arith.extui %3 : vector<512x1xi1> to vector<512x1xi32>
    %5 = arith.sitofp %4 : vector<512x1xi32> to vector<512x1xf32>
    %c0_0 = arith.constant 0 : index
    %c0_1 = arith.constant 0 : index
    %6 = vector.load %arg1[%c0_0, %c0_1] : memref<512x32xf32, #tpu.memory_space<vmem>>, vector<512x32xf32>
    %c0_2 = arith.constant 0 : index
    %c0_3 = arith.constant 0 : index
    %7 = vector.load %arg2[%c0_2, %c0_3] : memref<32x32xf32, #tpu.memory_space<vmem>>, vector<32x32xf32>
    %cst = arith.constant dense<0.000000e+00> : vector<512x32xf32>
    %8 = tpu.matmul %6, %7, %cst {dimension_numbers = #tpu.dot_dimension_numbers<[1], [0], [0], [1], [0, 0, 1, 1], [], []>} : vector<512x32xf32>, vector<32x32xf32>, vector<512x32xf32> -> vector<512x32xf32>
    %c0_4 = arith.constant 0 : index
    %c0_5 = arith.constant 0 : index
    %9 = vector.load %arg3[%c0_4, %c0_5] : memref<1x32xf32, #tpu.memory_space<vmem>>, vector<1x32xf32>
    %10 = vector.broadcast %9 : vector<1x32xf32> to vector<512x32xf32>
    %11 = arith.addf %8, %10 : vector<512x32xf32>
    %12 = vector.broadcast %5 : vector<512x1xf32> to vector<512x32xf32>
    %13 = arith.mulf %11, %12 : vector<512x32xf32>
    %c0_6 = arith.constant 0 : index
    %c0_7 = arith.constant 0 : index
    %14 = vector.load %arg4[%c0_6, %c0_7] : memref<32x3xf32, #tpu.memory_space<vmem>>, vector<32x3xf32>
    %cst_8 = arith.constant dense<0.000000e+00> : vector<512x3xf32>
    %15 = tpu.matmul %13, %14, %cst_8 {dimension_numbers = #tpu.dot_dimension_numbers<[1], [0], [0], [1], [0, 0, 1, 1], [], []>} : vector<512x32xf32>, vector<32x3xf32>, vector<512x3xf32> -> vector<512x3xf32>
    %c0_9 = arith.constant 0 : index
    %c0_10 = arith.constant 0 : index
    %16 = vector.load %arg5[%c0_9, %c0_10] : memref<1x3xf32, #tpu.memory_space<vmem>>, vector<1x3xf32>
    %17 = vector.broadcast %16 : vector<1x3xf32> to vector<512x3xf32>
    %18 = arith.addf %15, %17 : vector<512x3xf32>
    %19 = vector.extract_strided_slice %18 {offsets = [0, 0], sizes = [512, 1], strides = [1, 1]} : vector<512x3xf32> to vector<512x1xf32>
    %20 = arith.mulf %19, %5 : vector<512x1xf32>
    %21 = vector.extract_strided_slice %18 {offsets = [0, 1], sizes = [512, 1], strides = [1, 1]} : vector<512x3xf32> to vector<512x1xf32>
    %22 = arith.mulf %21, %5 : vector<512x1xf32>
    %23 = vector.extract_strided_slice %18 {offsets = [0, 2], sizes = [512, 1], strides = [1, 1]} : vector<512x3xf32> to vector<512x1xf32>
    %24 = math.exp %23 : vector<512x1xf32>
    %cst_11 = arith.constant 1.000000e+00 : f32
    %25 = vector.broadcast %cst_11 : f32 to vector<512x1xf32>
    %26 = arith.subf %24, %25 : vector<512x1xf32>
    %27 = math.roundeven %26 : vector<512x1xf32>
    %cst_12 = arith.constant 0.000000e+00 : f32
    %28 = vector.broadcast %cst_12 : f32 to vector<512x1xf32>
    %29 = arith.maximumf %27, %28 : vector<512x1xf32>
    %30 = arith.mulf %29, %5 : vector<512x1xf32>
    %c0_13 = arith.constant 0 : index
    %c0_14 = arith.constant 0 : index
    %31 = vector.load %arg10[%c0_13, %c0_14] : memref<512x1xf32, #tpu.memory_space<vmem>>, vector<512x1xf32>
    tpu.vector_store %arg10[%c0_13, %c0_14], %30 {strides = array<i32>} : memref<512x1xf32, #tpu.memory_space<vmem>>, vector<512x1xf32>,
    %c0_15 = arith.constant 0 : index
    %c0_16 = arith.constant 0 : index
    %32 = vector.load %arg6[%c0_15, %c0_16] : memref<6x32xf32, #tpu.memory_space<vmem>>, vector<6x32xf32>
    %33 = vector.extract_strided_slice %32 {offsets = [0, 0], sizes = [1, 32], strides = [1, 1]} : vector<6x32xf32> to vector<1x32xf32>
    %34 = vector.broadcast %20 : vector<512x1xf32> to vector<512x32xf32>
    %35 = vector.broadcast %33 : vector<1x32xf32> to vector<512x32xf32>
    %36 = arith.mulf %34, %35 : vector<512x32xf32>
    %37 = vector.extract_strided_slice %32 {offsets = [3, 0], sizes = [1, 32], strides = [1, 1]} : vector<6x32xf32> to vector<1x32xf32>
    %38 = vector.broadcast %22 : vector<512x1xf32> to vector<512x32xf32>
    %39 = vector.broadcast %37 : vector<1x32xf32> to vector<512x32xf32>
    %40 = arith.mulf %38, %39 : vector<512x32xf32>
    %41 = arith.addf %36, %40 : vector<512x32xf32>
    %42 = vector.extract_strided_slice %32 {offsets = [1, 0], sizes = [1, 32], strides = [1, 1]} : vector<6x32xf32> to vector<1x32xf32>
    %43 = vector.broadcast %20 : vector<512x1xf32> to vector<512x32xf32>
    %44 = vector.broadcast %42 : vector<1x32xf32> to vector<512x32xf32>
    %45 = arith.mulf %43, %44 : vector<512x32xf32>
    %46 = vector.extract_strided_slice %32 {offsets = [4, 0], sizes = [1, 32], strides = [1, 1]} : vector<6x32xf32> to vector<1x32xf32>
    %47 = vector.broadcast %22 : vector<512x1xf32> to vector<512x32xf32>
    %48 = vector.broadcast %46 : vector<1x32xf32> to vector<512x32xf32>
    %49 = arith.mulf %47, %48 : vector<512x32xf32>
    %50 = arith.addf %45, %49 : vector<512x32xf32>
    %51 = vector.extract_strided_slice %32 {offsets = [2, 0], sizes = [1, 32], strides = [1, 1]} : vector<6x32xf32> to vector<1x32xf32>
    %52 = vector.broadcast %20 : vector<512x1xf32> to vector<512x32xf32>
    %53 = vector.broadcast %51 : vector<1x32xf32> to vector<512x32xf32>
    %54 = arith.mulf %52, %53 : vector<512x32xf32>
    %55 = vector.extract_strided_slice %32 {offsets = [5, 0], sizes = [1, 32], strides = [1, 1]} : vector<6x32xf32> to vector<1x32xf32>
    %56 = vector.broadcast %22 : vector<512x1xf32> to vector<512x32xf32>
    %57 = vector.broadcast %55 : vector<1x32xf32> to vector<512x32xf32>
    %58 = arith.mulf %56, %57 : vector<512x32xf32>
    %59 = arith.addf %54, %58 : vector<512x32xf32>
    %c1_i32 = arith.constant 1 : i32
    %60 = vector.broadcast %c1_i32 : i32 to vector<512x1xi32>
    %61 = arith.cmpi sge, %1, %60 : vector<512x1xi32>
    %62 = arith.extui %61 : vector<512x1xi1> to vector<512x1xi32>
    %63 = arith.sitofp %62 : vector<512x1xi32> to vector<512x1xf32>
    %c511_i32 = arith.constant 511 : i32
    %64 = vector.broadcast %c511_i32 : i32 to vector<512x1xi32>
    %65 = arith.cmpi slt, %1, %64 : vector<512x1xi32>
    %66 = arith.extui %65 : vector<512x1xi1> to vector<512x1xi32>
    %67 = arith.sitofp %66 : vector<512x1xi32> to vector<512x1xf32>
    %c0_17 = arith.constant 0 : index
    %c0_18 = arith.constant 0 : index
    %68 = vector.load %arg7[%c0_17, %c0_18] : memref<1x32xf32, #tpu.memory_space<vmem>>, vector<1x32xf32>
    %69 = vector.broadcast %68 : vector<1x32xf32> to vector<512x32xf32>
    %70 = arith.addf %50, %69 : vector<512x32xf32>
    %c1_i32_19 = arith.constant 1 : i32
    %71 = tpu.dynamic_rotate %41 by %c1_i32_19 dim 0 : vector<512x32xf32>, i32 -> vector<512x32xf32>
    %72 = vector.broadcast %63 : vector<512x1xf32> to vector<512x32xf32>
    %73 = arith.mulf %71, %72 : vector<512x32xf32>
    %74 = arith.addf %70, %73 : vector<512x32xf32>
    %c511_i32_20 = arith.constant 511 : i32
    %75 = tpu.dynamic_rotate %59 by %c511_i32_20 dim 0 : vector<512x32xf32>, i32 -> vector<512x32xf32>
    %76 = vector.broadcast %67 : vector<512x1xf32> to vector<512x32xf32>
    %77 = arith.mulf %75, %76 : vector<512x32xf32>
    %78 = arith.addf %74, %77 : vector<512x32xf32>
    %79 = arith.addf %13, %78 : vector<512x32xf32>
    %80 = vector.broadcast %5 : vector<512x1xf32> to vector<512x32xf32>
    %81 = arith.mulf %79, %80 : vector<512x32xf32>
    %c0_21 = arith.constant 0 : index
    %c0_22 = arith.constant 0 : index
    %82 = vector.load %arg8[%c0_21, %c0_22] : memref<32x16xf32, #tpu.memory_space<vmem>>, vector<32x16xf32>
    %cst_23 = arith.constant dense<0.000000e+00> : vector<512x16xf32>
    %83 = tpu.matmul %81, %82, %cst_23 {dimension_numbers = #tpu.dot_dimension_numbers<[1], [0], [0], [1], [0, 0, 1, 1], [], []>} : vector<512x32xf32>, vector<32x16xf32>, vector<512x16xf32> -> vector<512x16xf32>
    %c0_24 = arith.constant 0 : index
    %c0_25 = arith.constant 0 : index
    %84 = vector.load %arg9[%c0_24, %c0_25] : memref<512x16xf32, #tpu.memory_space<vmem>>, vector<512x16xf32>
    tpu.vector_store %arg9[%c0_24, %c0_25], %83 {strides = array<i32>} : memref<512x16xf32, #tpu.memory_space<vmem>>, vector<512x16xf32>,
    return
  }
}

module attributes {stable_mosaic.version = 11 : i64} {
  func.func @gauss_upsample_kernel(%arg0: i32, %arg1: i32, %arg2: memref<1xi32, #tpu.memory_space<smem>>, %arg3: memref<1x128xf32, #tpu.memory_space<vmem>>, %arg4: memref<1x128xf32, #tpu.memory_space<vmem>>, %arg5: memref<128x16xf32, #tpu.memory_space<vmem>>, %arg6: memref<1x16xf32, #tpu.memory_space<vmem>>, %arg7: memref<512x16xf32, #tpu.memory_space<vmem>>, %arg8: memref<512x1xf32, #tpu.memory_space<vmem>>, %arg9: memref<512x1xf32, #tpu.memory_space<vmem>>, %arg10: memref<512x16xf32, #tpu.memory_space<vmem>>) attributes {dimension_semantics = [#tpu.dimension_semantics<parallel>, #tpu.dimension_semantics<arbitrary>], iteration_bounds = array<i64: 4, 4>, scalar_prefetch = 1 : i64, scratch_operands = 3 : i64, tpu.core_type = #tpu.core_type<tc>, window_params = [{transform_indices = @transform_0, window_bounds = array<i64: 1, 128>}, {transform_indices = @transform_1, window_bounds = array<i64: 1, 128>}, {transform_indices = @transform_2, window_bounds = array<i64: 128, 16>}, {pipeline_mode = #tpu.pipeline_mode<synchronous>, transform_indices = @transform_3, window_bounds = array<i64: 1, 16>}, {transform_indices = @transform_4, window_bounds = array<i64: 512, 16>}]} {
    %c0_i32 = arith.constant 0 : i32
    %0 = arith.cmpi eq, %arg1, %c0_i32 : i32
    %1 = arith.extui %0 : i1 to i32
    %c0_i32_0 = arith.constant 0 : i32
    %2 = arith.cmpi ne, %1, %c0_i32_0 : i32
    scf.if %2 {
      %cst = arith.constant -1.000000e+30 : f32
      %11 = vector.broadcast %cst : f32 to vector<512x1xf32>
      %c0_3 = arith.constant 0 : index
      %c0_4 = arith.constant 0 : index
      %12 = vector.load %arg8[%c0_3, %c0_4] : memref<512x1xf32, #tpu.memory_space<vmem>>, vector<512x1xf32>
      tpu.vector_store %arg8[%c0_3, %c0_4], %11 {strides = array<i32>} : memref<512x1xf32, #tpu.memory_space<vmem>>, vector<512x1xf32>,
      %cst_5 = arith.constant 0.000000e+00 : f32
      %13 = vector.broadcast %cst_5 : f32 to vector<512x1xf32>
      %c0_6 = arith.constant 0 : index
      %c0_7 = arith.constant 0 : index
      %14 = vector.load %arg9[%c0_6, %c0_7] : memref<512x1xf32, #tpu.memory_space<vmem>>, vector<512x1xf32>
      tpu.vector_store %arg9[%c0_6, %c0_7], %13 {strides = array<i32>} : memref<512x1xf32, #tpu.memory_space<vmem>>, vector<512x1xf32>,
      %cst_8 = arith.constant 0.000000e+00 : f32
      %15 = vector.broadcast %cst_8 : f32 to vector<512x16xf32>
      %c0_9 = arith.constant 0 : index
      %c0_10 = arith.constant 0 : index
      %16 = vector.load %arg10[%c0_9, %c0_10] : memref<512x16xf32, #tpu.memory_space<vmem>>, vector<512x16xf32>
      tpu.vector_store %arg10[%c0_9, %c0_10], %15 {strides = array<i32>} : memref<512x16xf32, #tpu.memory_space<vmem>>, vector<512x16xf32>,
    } else {
    }
    %c128_i32 = arith.constant 128 : i32
    %3 = arith.muli %arg1, %c128_i32 : i32
    %c0 = arith.constant 0 : index
    %4 = memref.load %arg2[%c0] : memref<1xi32, #tpu.memory_space<smem>>
    %5 = arith.cmpi slt, %3, %4 : i32
    %6 = arith.extui %5 : i1 to i32
    %c0_i32_1 = arith.constant 0 : i32
    %7 = arith.cmpi ne, %6, %c0_i32_1 : i32
    scf.if %7 {
      %c512_i32 = arith.constant 512 : i32
      %11 = arith.muli %arg0, %c512_i32 : i32
      %12 = tpu.iota {dimensions = array<i32: 0>} : vector<512x1xi32>
      %13 = vector.broadcast %11 : i32 to vector<512x1xi32>
      %14 = arith.addi %13, %12 : vector<512x1xi32>
      %15 = arith.sitofp %14 : vector<512x1xi32> to vector<512x1xf32>
      %c0_3 = arith.constant 0 : index
      %c0_4 = arith.constant 0 : index
      %16 = vector.load %arg3[%c0_3, %c0_4] : memref<1x128xf32, #tpu.memory_space<vmem>>, vector<1x128xf32>
      %17 = vector.broadcast %15 : vector<512x1xf32> to vector<512x128xf32>
      %18 = vector.broadcast %16 : vector<1x128xf32> to vector<512x128xf32>
      %19 = arith.subf %17, %18 : vector<512x128xf32>
      %20 = arith.mulf %19, %19 : vector<512x128xf32>
      %cst = arith.constant -1.000000e-01 : f32
      %21 = vector.broadcast %cst : f32 to vector<512x128xf32>
      %22 = arith.mulf %21, %20 : vector<512x128xf32>
      %c0_5 = arith.constant 0 : index
      %c0_6 = arith.constant 0 : index
      %23 = vector.load %arg4[%c0_5, %c0_6] : memref<1x128xf32, #tpu.memory_space<vmem>>, vector<1x128xf32>
      %cst_7 = arith.constant 5.000000e-01 : f32
      %24 = vector.broadcast %cst_7 : f32 to vector<1x128xf32>
      %25 = arith.cmpf ogt, %23, %24 : vector<1x128xf32>
      %cst_8 = arith.constant -1.000000e+30 : f32
      %26 = vector.shape_cast %25 : vector<1x128xi1> to vector<1x128xi1>
      %27 = vector.broadcast %26 : vector<1x128xi1> to vector<512x128xi1>
      %28 = vector.broadcast %cst_8 : f32 to vector<512x128xf32>
      %29 = arith.select %27, %22, %28 : vector<512x128xi1>, vector<512x128xf32>
      %c0_9 = arith.constant 0 : index
      %c0_10 = arith.constant 0 : index
      %30 = vector.load %arg8[%c0_9, %c0_10] : memref<512x1xf32, #tpu.memory_space<vmem>>, vector<512x1xf32>
      %cst_11 = arith.constant dense<0xFF800000> : vector<512xf32>
      %31 = vector.multi_reduction <maximumf>, %29, %cst_11 [1] : vector<512x128xf32> to vector<512xf32>
      %32 = vector.shape_cast %31 : vector<512xf32> to vector<512x1xf32>
      %33 = arith.maximumf %30, %32 : vector<512x1xf32>
      %c0_12 = arith.constant 0 : index
      %c0_13 = arith.constant 0 : index
      %34 = vector.load %arg8[%c0_12, %c0_13] : memref<512x1xf32, #tpu.memory_space<vmem>>, vector<512x1xf32>
      %35 = arith.subf %34, %33 : vector<512x1xf32>
      %36 = math.exp %35 : vector<512x1xf32>
      %37 = vector.broadcast %33 : vector<512x1xf32> to vector<512x128xf32>
      %38 = arith.subf %29, %37 : vector<512x128xf32>
      %39 = math.exp %38 : vector<512x128xf32>
      %c0_14 = arith.constant 0 : index
      %c0_15 = arith.constant 0 : index
      %40 = vector.load %arg9[%c0_14, %c0_15] : memref<512x1xf32, #tpu.memory_space<vmem>>, vector<512x1xf32>
      %41 = arith.mulf %36, %40 : vector<512x1xf32>
      %cst_16 = arith.constant dense<0.000000e+00> : vector<512xf32>
      %42 = vector.multi_reduction <add>, %39, %cst_16 [1] : vector<512x128xf32> to vector<512xf32>
      %43 = vector.shape_cast %42 : vector<512xf32> to vector<512x1xf32>
      %44 = arith.addf %41, %43 : vector<512x1xf32>
      %c0_17 = arith.constant 0 : index
      %c0_18 = arith.constant 0 : index
      %45 = vector.load %arg9[%c0_17, %c0_18] : memref<512x1xf32, #tpu.memory_space<vmem>>, vector<512x1xf32>
      tpu.vector_store %arg9[%c0_17, %c0_18], %44 {strides = array<i32>} : memref<512x1xf32, #tpu.memory_space<vmem>>, vector<512x1xf32>,
      %c0_19 = arith.constant 0 : index
      %c0_20 = arith.constant 0 : index
      %46 = vector.load %arg10[%c0_19, %c0_20] : memref<512x16xf32, #tpu.memory_space<vmem>>, vector<512x16xf32>
      %47 = vector.broadcast %36 : vector<512x1xf32> to vector<512x16xf32>
      %48 = arith.mulf %47, %46 : vector<512x16xf32>
      %c0_21 = arith.constant 0 : index
      %c0_22 = arith.constant 0 : index
      %49 = vector.load %arg5[%c0_21, %c0_22] : memref<128x16xf32, #tpu.memory_space<vmem>>, vector<128x16xf32>
      %cst_23 = arith.constant dense<0.000000e+00> : vector<512x16xf32>
      %50 = tpu.matmul %39, %49, %cst_23 {dimension_numbers = #tpu.dot_dimension_numbers<[1], [0], [0], [1], [0, 0, 1, 1], [], []>} : vector<512x128xf32>, vector<128x16xf32>, vector<512x16xf32> -> vector<512x16xf32>
      %51 = arith.addf %48, %50 : vector<512x16xf32>
      %c0_24 = arith.constant 0 : index
      %c0_25 = arith.constant 0 : index
      %52 = vector.load %arg10[%c0_24, %c0_25] : memref<512x16xf32, #tpu.memory_space<vmem>>, vector<512x16xf32>
      tpu.vector_store %arg10[%c0_24, %c0_25], %51 {strides = array<i32>} : memref<512x16xf32, #tpu.memory_space<vmem>>, vector<512x16xf32>,
      %c0_26 = arith.constant 0 : index
      %c0_27 = arith.constant 0 : index
      %53 = vector.load %arg8[%c0_26, %c0_27] : memref<512x1xf32, #tpu.memory_space<vmem>>, vector<512x1xf32>
      tpu.vector_store %arg8[%c0_26, %c0_27], %33 {strides = array<i32>} : memref<512x1xf32, #tpu.memory_space<vmem>>, vector<512x1xf32>,
    } else {
    }
    %c3_i32 = arith.constant 3 : i32
    %8 = arith.cmpi eq, %arg1, %c3_i32 : i32
    %9 = arith.extui %8 : i1 to i32
    %c0_i32_2 = arith.constant 0 : i32
    %10 = arith.cmpi ne, %9, %c0_i32_2 : i32
    scf.if %10 {
      %c0_3 = arith.constant 0 : index
      %c0_4 = arith.constant 0 : index
      %11 = vector.load %arg9[%c0_3, %c0_4] : memref<512x1xf32, #tpu.memory_space<vmem>>, vector<512x1xf32>
      %cst = arith.constant 9.99999968E-21 : f32
      %12 = vector.broadcast %cst : f32 to vector<512x1xf32>
      %13 = arith.maximumf %11, %12 : vector<512x1xf32>
      %c0_5 = arith.constant 0 : index
      %c0_6 = arith.constant 0 : index
      %14 = vector.load %arg10[%c0_5, %c0_6] : memref<512x16xf32, #tpu.memory_space<vmem>>, vector<512x16xf32>
      %15 = tpu.reciprocal %13 {approx = true} : vector<512x1xf32> -> vector<512x1xf32>
      %16 = vector.broadcast %15 : vector<512x1xf32> to vector<512x16xf32>
      %17 = arith.mulf %14, %16 : vector<512x16xf32>
      %c0_7 = arith.constant 0 : index
      %c0_8 = arith.constant 0 : index
      %18 = vector.load %arg6[%c0_7, %c0_8] : memref<1x16xf32, #tpu.memory_space<vmem>>, vector<1x16xf32>
      %19 = vector.broadcast %18 : vector<1x16xf32> to vector<512x16xf32>
      %20 = arith.addf %17, %19 : vector<512x16xf32>
      %c0_9 = arith.constant 0 : index
      %c0_10 = arith.constant 0 : index
      %21 = vector.load %arg7[%c0_9, %c0_10] : memref<512x16xf32, #tpu.memory_space<vmem>>, vector<512x16xf32>
      tpu.vector_store %arg7[%c0_9, %c0_10], %20 {strides = array<i32>} : memref<512x16xf32, #tpu.memory_space<vmem>>, vector<512x16xf32>,
    } else {
    }
    return
  }
  func.func @transform_0(%arg0: i32, %arg1: i32, %arg2: memref<1xi32, #tpu.memory_space<smem>>) -> (i32, i32) {
    %c0_i32 = arith.constant 0 : i32
    %c0_i32_0 = arith.constant 0 : i32
    return %c0_i32, %arg1 : i32, i32
  }
  func.func @transform_1(%arg0: i32, %arg1: i32, %arg2: memref<1xi32, #tpu.memory_space<smem>>) -> (i32, i32) {
    %c0_i32 = arith.constant 0 : i32
    %c0_i32_0 = arith.constant 0 : i32
    return %c0_i32, %arg1 : i32, i32
  }
  func.func @transform_2(%arg0: i32, %arg1: i32, %arg2: memref<1xi32, #tpu.memory_space<smem>>) -> (i32, i32) {
    %c0_i32 = arith.constant 0 : i32
    %c0_i32_0 = arith.constant 0 : i32
    return %arg1, %c0_i32 : i32, i32
  }
  func.func @transform_3(%arg0: i32, %arg1: i32, %arg2: memref<1xi32, #tpu.memory_space<smem>>) -> (i32, i32) {
    %c0_i32 = arith.constant 0 : i32
    %c0_i32_0 = arith.constant 0 : i32
    %c0_i32_1 = arith.constant 0 : i32
    return %c0_i32, %c0_i32_0 : i32, i32
  }
  func.func @transform_4(%arg0: i32, %arg1: i32, %arg2: memref<1xi32, #tpu.memory_space<smem>>) -> (i32, i32) {
    %c0_i32 = arith.constant 0 : i32
    %c0_i32_0 = arith.constant 0 : i32
    return %arg0, %c0_i32 : i32, i32
  }
}

</mosaic_0001>

<llo_original>
// kernel: sub.7
$region0: #{sub.7}
  #allocation0 [shape = 's32[1]{0}', space=sflag, size = 0x4, scoped, tag = 'scoped memory for sub.7']
  %s0 = inlined_call_operand.vmem [shape: f32[1,512], index: 0, kind: input, shape index: {}]
  %s1 = inlined_call_operand.vmem [shape: f32[1,512], index: 1, kind: input, shape index: {}]
  %s2 = inlined_call_operand.vmem [shape: f32[1,512], index: 2, kind: output, shape index: {}]
  %v3 = vld [vmem:[%s0] sm:$0x1]
  %v4 = vld [vmem:[%s1] sm:$0x1]
  %5 = xla_tuple %v3, %v4
  %6 = xla_tuple %5
  %v7 = vsub.f32 %v3, %v4
  %8 = xla_tuple %v7
  %9 = vst [vmem:[%s2] sm:$0x1] %v7
  %s10 = scalar_lea.vmem %s0, 1
  %v11 = vld [vmem:[%s10] sm:$0x1]
  %s12 = scalar_lea.vmem %s1, 1
  %v13 = vld [vmem:[%s12] sm:$0x1]
  %14 = xla_tuple %v11, %v13
  %15 = xla_tuple %14
  %v16 = vsub.f32 %v11, %v13
  %17 = xla_tuple %v16
  %s18 = scalar_lea.vmem %s2, 1
  %19 = vst [vmem:[%s18] sm:$0x1] %v16
  %s20 = scalar_lea.vmem %s0, 2
  %v21 = vld [vmem:[%s20] sm:$0x1]
  %s22 = scalar_lea.vmem %s1, 2
  %v23 = vld [vmem:[%s22] sm:$0x1]
  %24 = xla_tuple %v21, %v23
  %25 = xla_tuple %24
  %v26 = vsub.f32 %v21, %v23
  %27 = xla_tuple %v26
  %s28 = scalar_lea.vmem %s2, 2
  %29 = vst [vmem:[%s28] sm:$0x1] %v26
  %s30 = scalar_lea.vmem %s0, 3
  %v31 = vld [vmem:[%s30] sm:$0x1]
  %s32 = scalar_lea.vmem %s1, 3
  %v33 = vld [vmem:[%s32] sm:$0x1]
  %34 = xla_tuple %v31, %v33
  %35 = xla_tuple %34
  %v36 = vsub.f32 %v31, %v33
  %37 = xla_tuple %v36
  %s38 = scalar_lea.vmem %s2, 3
  %39 = vst [vmem:[%s38] sm:$0x1] %v36

// kernel: _forward_static.2
$region0: #{_forward_static.2}
  #allocation0 [shape = 'u32[]', space=smem, size = 0x4, offset = 0x4, fixed_abs, tag = 'smem constant byte address 0x4 - core index']
  #allocation1 [shape = 'u32[144,128]{1,0:T(1,128)}', space=vmem, size = 0x12000, scoped, tag = 'internal scratch']
  #allocation2 [shape = 's32[1]{0:T(128)S(6)}', space=smem, size = 0x200, scoped, tag = 'scoped memory for _forward_static.2']
  %s0 = inlined_call_operand.<no memory space> [shape: s32[1], index: 0, kind: input, shape index: {}]
  %s1 = inlined_call_operand.vmem [shape: f32[512,32], index: 1, kind: input, shape index: {}]
  %s2 = inlined_call_operand.vmem [shape: f32[32,32], index: 2, kind: input, shape index: {}]
  %s3 = inlined_call_operand.vmem [shape: f32[1,32], index: 3, kind: input, shape index: {}]
  %s4 = inlined_call_operand.vmem [shape: f32[32,3], index: 4, kind: input, shape index: {}]
  %s5 = inlined_call_operand.vmem [shape: f32[1,3], index: 5, kind: input, shape index: {}]
  %s6 = inlined_call_operand.vmem [shape: f32[6,32], index: 6, kind: input, shape index: {}]
  %s7 = inlined_call_operand.vmem [shape: f32[1,32], index: 7, kind: input, shape index: {}]
  %s8 = inlined_call_operand.vmem [shape: f32[32,16], index: 8, kind: input, shape index: {}]
  %s9 = inlined_call_operand.vmem [shape: f32[512,16], index: 9, kind: output, shape index: {0}]
  %s10 = inlined_call_operand.vmem [shape: f32[512,1], index: 10, kind: output, shape index: {1}]
  %11 = xla_tuple %s9, %s10
  %s12 = sld [smem:[#allocation0]]
  $region54: #{_forward_static.2} parent=0
    _
  %s14 = ssub.s32 1, %s12
  %s15 = scalar_select 0, %s14, %s12
  %16 = sst [smem:[#allocation2]] %s0
  // Predicated region
  $region2: #{_forward_static.2} parent=0 // pred_check
    _
  $region3: #{_forward_static.2} parent=0 // pred_check_branch
    %18 = sbr.rel (0) target = $region5
  $region4: #{_forward_static.2} parent=0 // pred_region
    _
  $region5: #{_forward_static.2} parent=0 // pred_fallthru
    _
  // Predicated region
  $region6: #{_forward_static.2} parent=0 // pred_check
    _
  $region7: #{_forward_static.2} parent=0 // pred_check_branch
    %20 = sbr.rel (0) target = $region9
  $region8: #{_forward_static.2} parent=0 // pred_region
    _
  $region9: #{_forward_static.2} parent=0 // pred_fallthru
    _
  // Predicated region
  $region10: #{_forward_static.2} parent=0 // pred_check
    _
  $region11: #{_forward_static.2} parent=0 // pred_check_branch
    %22 = sbr.rel (0) target = $region13
  $region12: #{_forward_static.2} parent=0 // pred_region
    _
  $region13: #{_forward_static.2} parent=0 // pred_fallthru
    _
  // Predicated region
  $region14: #{_forward_static.2} parent=0 // pred_check
    _
  $region15: #{_forward_static.2} parent=0 // pred_check_branch
    %24 = sbr.rel (0) target = $region17
  $region16: #{_forward_static.2} parent=0 // pred_region
    _
  $region17: #{_forward_static.2} parent=0 // pred_fallthru
    _
  // Predicated region
  $region18: #{_forward_static.2} parent=0 // pred_check
    _
  $region19: #{_forward_static.2} parent=0 // pred_check_branch
    %26 = sbr.rel (0) target = $region21
  $region20: #{_forward_static.2} parent=0 // pred_region
    _
  $region21: #{_forward_static.2} parent=0 // pred_fallthru
    _
  // Predicated region
  $region22: #{_forward_static.2} parent=0 // pred_check
    _
  $region23: #{_forward_static.2} parent=0 // pred_check_branch
    %28 = sbr.rel (0) target = $region25
  $region24: #{_forward_static.2} parent=0 // pred_region
    _
  $region25: #{_forward_static.2} parent=0 // pred_fallthru
    _
  // Predicated region
  $region26: #{_forward_static.2} parent=0 // pred_check
    _
  $region27: #{_forward_static.2} parent=0 // pred_check_branch
    %30 = sbr.rel (0) target = $region29
  $region28: #{_forward_static.2} parent=0 // pred_region
    _
  $region29: #{_forward_static.2} parent=0 // pred_fallthru
    _
  // Predicated region
  $region30: #{_forward_static.2} parent=0 // pred_check
    _
  $region31: #{_forward_static.2} parent=0 // pred_check_branch
    %32 = sbr.rel (0) target = $region33
  $region32: #{_forward_static.2} parent=0 // pred_region
    _
  $region33: #{_forward_static.2} parent=0 // pred_fallthru
    _
  // Predicated region
  $region34: #{_forward_static.2} parent=0 // pred_check
    _
  $region35: #{_forward_static.2} parent=0 // pred_check_branch
    %34 = sbr.rel (0) target = $region37
  $region36: #{_forward_static.2} parent=0 // pred_region
    _
  $region37: #{_forward_static.2} parent=0 // pred_fallthru
    _
  %s35 = sld [smem:[#allocation2]]
  %v36 = vlaneseq
  %v37 = vshrl.u32 %v36, 7
  %v38 = vadd.s32 %v37, 8
  %v39 = vadd.s32 %v37, 16
  %v40 = vadd.s32 %v37, 24
  %v41 = vadd.s32 %v37, 32
  %v42 = vadd.s32 %v37, 40
  %v43 = vadd.s32 %v37, 48
  %v44 = vadd.s32 %v37, 56
  %v45 = vadd.s32 %v37, 64
  %v46 = vadd.s32 %v37, 72
  %v47 = vadd.s32 %v37, 80
  %v48 = vadd.s32 %v37, 88
  %v49 = vadd.s32 %v37, 96
  %v50 = vadd.s32 %v37, 104
  %v51 = vadd.s32 %v37, 112
  %v52 = vadd.s32 %v37, 120
  %v53 = vadd.s32 %v37, 128
  %v54 = vadd.s32 %v37, 136
  %v55 = vadd.s32 %v37, 144
  %v56 = vadd.s32 %v37, 152
  %v57 = vadd.s32 %v37, 160
  %v58 = vadd.s32 %v37, 168
  %v59 = vadd.s32 %v37, 176
  %v60 = vadd.s32 %v37, 184
  %v61 = vadd.s32 %v37, 192
  %v62 = vadd.s32 %v37, 200
  %v63 = vadd.s32 %v37, 208
  %v64 = vadd.s32 %v37, 216
  %v65 = vadd.s32 %v37, 224
  %v66 = vadd.s32 %v37, 232
  %v67 = vadd.s32 %v37, 240
  %v68 = vadd.s32 %v37, 248
  %v69 = vadd.s32 %v37, 256
  %v70 = vadd.s32 %v37, 264
  %v71 = vadd.s32 %v37, 272
  %v72 = vadd.s32 %v37, 280
  %v73 = vadd.s32 %v37, 288
  %v74 = vadd.s32 %v37, 296
  %v75 = vadd.s32 %v37, 304
  %v76 = vadd.s32 %v37, 312
  %v77 = vadd.s32 %v37, 320
  %v78 = vadd.s32 %v37, 328
  %v79 = vadd.s32 %v37, 336
  %v80 = vadd.s32 %v37, 344
  %v81 = vadd.s32 %v37, 352
  %v82 = vadd.s32 %v37, 360
  %v83 = vadd.s32 %v37, 368
  %v84 = vadd.s32 %v37, 376
  %v85 = vadd.s32 %v37, 384
  %v86 = vadd.s32 %v37, 392
  %v87 = vadd.s32 %v37, 400
  %v88 = vadd.s32 %v37, 408
  %v89 = vadd.s32 %v37, 416
  %v90 = vadd.s32 %v37, 424
  %v91 = vadd.s32 %v37, 432
  %v92 = vadd.s32 %v37, 440
  %v93 = vadd.s32 %v37, 448
  %v94 = vadd.s32 %v37, 456
  %v95 = vadd.s32 %v37, 464
  %v96 = vadd.s32 %v37, 472
  %v97 = vadd.s32 %v37, 480
  %v98 = vadd.s32 %v37, 488
  %v99 = vadd.s32 %v37, 496
  %v100 = vadd.s32 %v37, 504
  %v101 = vstv %s35
  %vm102 = vcmp.lt.s32.totalorder %v37, %v101
  %vm103 = vcmp.lt.s32.totalorder %v38, %v101
  %vm104 = vcmp.lt.s32.totalorder %v39, %v101
  %vm105 = vcmp.lt.s32.totalorder %v40, %v101
  %vm106 = vcmp.lt.s32.totalorder %v41, %v101
  %vm107 = vcmp.lt.s32.totalorder %v42, %v101
  %vm108 = vcmp.lt.s32.totalorder %v43, %v101
  %vm109 = vcmp.lt.s32.totalorder %v44, %v101
  %vm110 = vcmp.lt.s32.totalorder %v45, %v101
  %vm111 = vcmp.lt.s32.totalorder %v46, %v101
  %vm112 = vcmp.lt.s32.totalorder %v47, %v101
  %vm113 = vcmp.lt.s32.totalorder %v48, %v101
  %vm114 = vcmp.lt.s32.totalorder %v49, %v101
  %vm115 = vcmp.lt.s32.totalorder %v50, %v101
  %vm116 = vcmp.lt.s32.totalorder %v51, %v101
  %vm117 = vcmp.lt.s32.totalorder %v52, %v101
  %vm118 = vcmp.lt.s32.totalorder %v53, %v101
  %vm119 = vcmp.lt.s32.totalorder %v54, %v101
  %vm120 = vcmp.lt.s32.totalorder %v55, %v101
  %vm121 = vcmp.lt.s32.totalorder %v56, %v101
  %vm122 = vcmp.lt.s32.totalorder %v57, %v101
  %vm123 = vcmp.lt.s32.totalorder %v58, %v101
  %vm124 = vcmp.lt.s32.totalorder %v59, %v101
  %vm125 = vcmp.lt.s32.totalorder %v60, %v101
  %vm126 = vcmp.lt.s32.totalorder %v61, %v101
  %vm127 = vcmp.lt.s32.totalorder %v62, %v101
  %vm128 = vcmp.lt.s32.totalorder %v63, %v101
  %vm129 = vcmp.lt.s32.totalorder %v64, %v101
  %vm130 = vcmp.lt.s32.totalorder %v65, %v101
  %vm131 = vcmp.lt.s32.totalorder %v66, %v101
  %vm132 = vcmp.lt.s32.totalorder %v67, %v101
  %vm133 = vcmp.lt.s32.totalorder %v68, %v101
  %vm134 = vcmp.lt.s32.totalorder %v69, %v101
  %vm135 = vcmp.lt.s32.totalorder %v70, %v101
  %vm136 = vcmp.lt.s32.totalorder %v71, %v101
  %vm137 = vcmp.lt.s32.totalorder %v72, %v101
  %vm138 = vcmp.lt.s32.totalorder %v73, %v101
  %vm139 = vcmp.lt.s32.totalorder %v74, %v101
  %vm140 = vcmp.lt.s32.totalorder %v75, %v101
  %vm141 = vcmp.lt.s32.totalorder %v76, %v101
  %vm142 = vcmp.lt.s32.totalorder %v77, %v101
  %vm143 = vcmp.lt.s32.totalorder %v78, %v101
  %vm144 = vcmp.lt.s32.totalorder %v79, %v101
  %vm145 = vcmp.lt.s32.totalorder %v80, %v101
  %vm146 = vcmp.lt.s32.totalorder %v81, %v101
  %vm147 = vcmp.lt.s32.totalorder %v82, %v101
  %vm148 = vcmp.lt.s32.totalorder %v83, %v101
  %vm149 = vcmp.lt.s32.totalorder %v84, %v101
  %vm150 = vcmp.lt.s32.totalorder %v85, %v101
  %vm151 = vcmp.lt.s32.totalorder %v86, %v101
  %vm152 = vcmp.lt.s32.totalorder %v87, %v101
  %vm153 = vcmp.lt.s32.totalorder %v88, %v101
  %vm154 = vcmp.lt.s32.totalorder %v89, %v101
  %vm155 = vcmp.lt.s32.totalorder %v90, %v101
  %vm156 = vcmp.lt.s32.totalorder %v91, %v101
  %vm157 = vcmp.lt.s32.totalorder %v92, %v101
  %vm158 = vcmp.lt.s32.totalorder %v93, %v101
  %vm159 = vcmp.lt.s32.totalorder %v94, %v101
  %vm160 = vcmp.lt.s32.totalorder %v95, %v101
  %vm161 = vcmp.lt.s32.totalorder %v96, %v101
  %vm162 = vcmp.lt.s32.totalorder %v97, %v101
  %vm163 = vcmp.lt.s32.totalorder %v98, %v101
  %vm164 = vcmp.lt.s32.totalorder %v99, %v101
  %vm165 = vcmp.lt.s32.totalorder %v100, %v101
  %v166 = vsel %vm102, 1, 0
  %v167 = vsel %vm103, 1, 0
  %v168 = vsel %vm104, 1, 0
  %v169 = vsel %vm105, 1, 0
  %v170 = vsel %vm106, 1, 0
  %v171 = vsel %vm107, 1, 0
  %v172 = vsel %vm108, 1, 0
  %v173 = vsel %vm109, 1, 0
  %v174 = vsel %vm110, 1, 0
  %v175 = vsel %vm111, 1, 0
  %v176 = vsel %vm112, 1, 0
  %v177 = vsel %vm113, 1, 0
  %v178 = vsel %vm114, 1, 0
  %v179 = vsel %vm115, 1, 0
  %v180 = vsel %vm116, 1, 0
  %v181 = vsel %vm117, 1, 0
  %v182 = vsel %vm118, 1, 0
  %v183 = vsel %vm119, 1, 0
  %v184 = vsel %vm120, 1, 0
  %v185 = vsel %vm121, 1, 0
  %v186 = vsel %vm122, 1, 0
  %v187 = vsel %vm123, 1, 0
  %v188 = vsel %vm124, 1, 0
  %v189 = vsel %vm125, 1, 0
  %v190 = vsel %vm126, 1, 0
  %v191 = vsel %vm127, 1, 0
  %v192 = vsel %vm128, 1, 0
  %v193 = vsel %vm129, 1, 0
  %v194 = vsel %vm130, 1, 0
  %v195 = vsel %vm131, 1, 0
  %v196 = vsel %vm132, 1, 0
  %v197 = vsel %vm133, 1, 0
  %v198 = vsel %vm134, 1, 0
  %v199 = vsel %vm135, 1, 0
  %v200 = vsel %vm136, 1, 0
  %v201 = vsel %vm137, 1, 0
  %v202 = vsel %vm138, 1, 0
  %v203 = vsel %vm139, 1, 0
  %v204 = vsel %vm140, 1, 0
  %v205 = vsel %vm141, 1, 0
  %v206 = vsel %vm142, 1, 0
  %v207 = vsel %vm143, 1, 0
  %v208 = vsel %vm144, 1, 0
  %v209 = vsel %vm145, 1, 0
  %v210 = vsel %vm146, 1, 0
  %v211 = vsel %vm147, 1, 0
  %v212 = vsel %vm148, 1, 0
  %v213 = vsel %vm149, 1, 0
  %v214 = vsel %vm150, 1, 0
  %v215 = vsel %vm151, 1, 0
  %v216 = vsel %vm152, 1, 0
  %v217 = vsel %vm153, 1, 0
  %v218 = vsel %vm154, 1, 0
  %v219 = vsel %vm155, 1, 0
  %v220 = vsel %vm156, 1, 0
  %v221 = vsel %vm157, 1, 0
  %v222 = vsel %vm158, 1, 0
  %v223 = vsel %vm159, 1, 0
  %v224 = vsel %vm160, 1, 0
  %v225 = vsel %vm161, 1, 0
  %v226 = vsel %vm162, 1, 0
  %v227 = vsel %vm163, 1, 0
  %v228 = vsel %vm164, 1, 0
  %v229 = vsel %vm165, 1, 0
  %v230 = vcvt.s32.f32 %v166
  %v231 = vcvt.s32.f32 %v167
  %v232 = vcvt.s32.f32 %v168
  %v233 = vcvt.s32.f32 %v169
  %v234 = vcvt.s32.f32 %v170
  %v235 = vcvt.s32.f32 %v171
  %v236 = vcvt.s32.f32 %v172
  %v237 = vcvt.s32.f32 %v173
  %v238 = vcvt.s32.f32 %v174
  %v239 = vcvt.s32.f32 %v175
  %v240 = vcvt.s32.f32 %v176
  %v241 = vcvt.s32.f32 %v177
  %v242 = vcvt.s32.f32 %v178
  %v243 = vcvt.s32.f32 %v179
  %v244 = vcvt.s32.f32 %v180
  %v245 = vcvt.s32.f32 %v181
  %v246 = vcvt.s32.f32 %v182
  %v247 = vcvt.s32.f32 %v183
  %v248 = vcvt.s32.f32 %v184
  %v249 = vcvt.s32.f32 %v185
  %v250 = vcvt.s32.f32 %v186
  %v251 = vcvt.s32.f32 %v187
  %v252 = vcvt.s32.f32 %v188
  %v253 = vcvt.s32.f32 %v189
  %v254 = vcvt.s32.f32 %v190
  %v255 = vcvt.s32.f32 %v191
  %v256 = vcvt.s32.f32 %v192
  %v257 = vcvt.s32.f32 %v193
  %v258 = vcvt.s32.f32 %v194
  %v259 = vcvt.s32.f32 %v195
  %v260 = vcvt.s32.f32 %v196
  %v261 = vcvt.s32.f32 %v197
  %v262 = vcvt.s32.f32 %v198
  %v263 = vcvt.s32.f32 %v199
  %v264 = vcvt.s32.f32 %v200
  %v265 = vcvt.s32.f32 %v201
  %v266 = vcvt.s32.f32 %v202
  %v267 = vcvt.s32.f32 %v203
  %v268 = vcvt.s32.f32 %v204
  %v269 = vcvt.s32.f32 %v205
  %v270 = vcvt.s32.f32 %v206
  %v271 = vcvt.s32.f32 %v207
  %v272 = vcvt.s32.f32 %v208
  %v273 = vcvt.s32.f32 %v209
  %v274 = vcvt.s32.f32 %v210
  %v275 = vcvt.s32.f32 %v211
  %v276 = vcvt.s32.f32 %v212
  %v277 = vcvt.s32.f32 %v213
  %v278 = vcvt.s32.f32 %v214
  %v279 = vcvt.s32.f32 %v215
  %v280 = vcvt.s32.f32 %v216
  %v281 = vcvt.s32.f32 %v217
  %v282 = vcvt.s32.f32 %v218
  %v283 = vcvt.s32.f32 %v219
  %v284 = vcvt.s32.f32 %v220
  %v285 = vcvt.s32.f32 %v221
  %v286 = vcvt.s32.f32 %v222
  %v287 = vcvt.s32.f32 %v223
  %v288 = vcvt.s32.f32 %v224
  %v289 = vcvt.s32.f32 %v225
  %v290 = vcvt.s32.f32 %v226
  %v291 = vcvt.s32.f32 %v227
  %v292 = vcvt.s32.f32 %v228
  %v293 = vcvt.s32.f32 %v229
  %v294 = vld [vmem:[%s1] sm:$0xff]
  %v295 = vld [vmem:[%s1 + $0x8] sm:$0xff]
  %v296 = vld [vmem:[%s1 + $0x10] sm:$0xff]
  %v297 = vld [vmem:[%s1 + $0x18] sm:$0xff]
  %v298 = vld [vmem:[%s1 + $0x20] sm:$0xff]
  %v299 = vld [vmem:[%s1 + $0x28] sm:$0xff]
  %v300 = vld [vmem:[%s1 + $0x30] sm:$0xff]
  %v301 = vld [vmem:[%s1 + $0x38] sm:$0xff]
  %v302 = vld [vmem:[%s1 + $0x40] sm:$0xff]
  %v303 = vld [vmem:[%s1 + $0x48] sm:$0xff]
  %v304 = vld [vmem:[%s1 + $0x50] sm:$0xff]
  %v305 = vld [vmem:[%s1 + $0x58] sm:$0xff]
  %v306 = vld [vmem:[%s1 + $0x60] sm:$0xff]
  %v307 = vld [vmem:[%s1 + $0x68] sm:$0xff]
  %v308 = vld [vmem:[%s1 + $0x70] sm:$0xff]
  %v309 = vld [vmem:[%s1 + $0x78] sm:$0xff]
  %v310 = vld [vmem:[%s1 + $0x80] sm:$0xff]
  %v311 = vld [vmem:[%s1 + $0x88] sm:$0xff]
  %v312 = vld [vmem:[%s1 + $0x90] sm:$0xff]
  %v313 = vld [vmem:[%s1 + $0x98] sm:$0xff]
  %v314 = vld [vmem:[%s1 + $0xa0] sm:$0xff]
  %v315 = vld [vmem:[%s1 + $0xa8] sm:$0xff]
  %v316 = vld [vmem:[%s1 + $0xb0] sm:$0xff]
  %v317 = vld [vmem:[%s1 + $0xb8] sm:$0xff]
  %v318 = vld [vmem:[%s1 + $0xc0] sm:$0xff]
  %v319 = vld [vmem:[%s1 + $0xc8] sm:$0xff]
  %v320 = vld [vmem:[%s1 + $0xd0] sm:$0xff]
  %v321 = vld [vmem:[%s1 + $0xd8] sm:$0xff]
  %v322 = vld [vmem:[%s1 + $0xe0] sm:$0xff]
  %v323 = vld [vmem:[%s1 + $0xe8] sm:$0xff]
  %v324 = vld [vmem:[%s1 + $0xf0] sm:$0xff]
  %v325 = vld [vmem:[%s1 + $0xf8] sm:$0xff]
  %v326 = vld [vmem:[%s1 + $0x100] sm:$0xff]
  %v327 = vld [vmem:[%s1 + $0x108] sm:$0xff]
  %v328 = vld [vmem:[%s1 + $0x110] sm:$0xff]
  %v329 = vld [vmem:[%s1 + $0x118] sm:$0xff]
  %v330 = vld [vmem:[%s1 + $0x120] sm:$0xff]
  %v331 = vld [vmem:[%s1 + $0x128] sm:$0xff]
  %v332 = vld [vmem:[%s1 + $0x130] sm:$0xff]
  %v333 = vld [vmem:[%s1 + $0x138] sm:$0xff]
  %v334 = vld [vmem:[%s1 + $0x140] sm:$0xff]
  %v335 = vld [vmem:[%s1 + $0x148] sm:$0xff]
  %v336 = vld [vmem:[%s1 + $0x150] sm:$0xff]
  %v337 = vld [vmem:[%s1 + $0x158] sm:$0xff]
  %v338 = vld [vmem:[%s1 + $0x160] sm:$0xff]
  %v339 = vld [vmem:[%s1 + $0x168] sm:$0xff]
  %v340 = vld [vmem:[%s1 + $0x170] sm:$0xff]
  %v341 = vld [vmem:[%s1 + $0x178] sm:$0xff]
  %v342 = vld [vmem:[%s1 + $0x180] sm:$0xff]
  %v343 = vld [vmem:[%s1 + $0x188] sm:$0xff]
  %v344 = vld [vmem:[%s1 + $0x190] sm:$0xff]
  %v345 = vld [vmem:[%s1 + $0x198] sm:$0xff]
  %v346 = vld [vmem:[%s1 + $0x1a0] sm:$0xff]
  %v347 = vld [vmem:[%s1 + $0x1a8] sm:$0xff]
  %v348 = vld [vmem:[%s1 + $0x1b0] sm:$0xff]
  %v349 = vld [vmem:[%s1 + $0x1b8] sm:$0xff]
  %v350 = vld [vmem:[%s1 + $0x1c0] sm:$0xff]
  %v351 = vld [vmem:[%s1 + $0x1c8] sm:$0xff]
  %v352 = vld [vmem:[%s1 + $0x1d0] sm:$0xff]
  %v353 = vld [vmem:[%s1 + $0x1d8] sm:$0xff]
  %v354 = vld [vmem:[%s1 + $0x1e0] sm:$0xff]
  %v355 = vld [vmem:[%s1 + $0x1e8] sm:$0xff]
  %v356 = vld [vmem:[%s1 + $0x1f0] sm:$0xff]
  %v357 = vld [vmem:[%s1 + $0x1f8] sm:$0xff]
  %v358 = vld [vmem:[%s2] sm:$0xff]
  %v359 = vld [vmem:[%s2 + $0x8] sm:$0xff]
  %v360 = vld [vmem:[%s2 + $0x10] sm:$0xff]
  %v361 = vld [vmem:[%s2 + $0x18] sm:$0xff]
  %v362 = vld [vmem:[%s3] sm:$0x1]
  %v364 = vlaneseq
  %v365 = vshrl.u32 %v364, 7
  %v366 = vsub.s32 0, %v365
  %v367 = vrot.slane %v362, %v366
  %vm369 = vcmask 261120
  %v371 = vsel %vm369, %v294, 0
  %v374 = vsel %vm369, %v295, 0
  %v377 = vsel %vm369, %v296, 0
  %v380 = vsel %vm369, %v297, 0
  %v383 = vsel %vm369, %v298, 0
  %v386 = vsel %vm369, %v299, 0
  %v389 = vsel %vm369, %v300, 0
  %v392 = vsel %vm369, %v301, 0
  %v395 = vsel %vm369, %v302, 0
  %v398 = vsel %vm369, %v303, 0
  %v401 = vsel %vm369, %v304, 0
  %v404 = vsel %vm369, %v305, 0
  %v407 = vsel %vm369, %v306, 0
  %v410 = vsel %vm369, %v307, 0
  %v413 = vsel %vm369, %v308, 0
  %v416 = vsel %vm369, %v309, 0
  %v419 = vsel %vm369, %v310, 0
  %v422 = vsel %vm369, %v311, 0
  %v425 = vsel %vm369, %v312, 0
  %v428 = vsel %vm369, %v313, 0
  %v431 = vsel %vm369, %v314, 0
  %v434 = vsel %vm369, %v315, 0
  %v437 = vsel %vm369, %v316, 0
  %v440 = vsel %vm369, %v317, 0
  %v443 = vsel %vm369, %v318, 0
  %v446 = vsel %vm369, %v319, 0
  %v449 = vsel %vm369, %v320, 0
  %v452 = vsel %vm369, %v321, 0
  %v455 = vsel %vm369, %v322, 0
  %v458 = vsel %vm369, %v323, 0
  %v461 = vsel %vm369, %v324, 0
  %v464 = vsel %vm369, %v325, 0
  %v467 = vsel %vm369, %v326, 0
  %v470 = vsel %vm369, %v327, 0
  %v473 = vsel %vm369, %v328, 0
  %v476 = vsel %vm369, %v329, 0
  %v479 = vsel %vm369, %v330, 0
  %v482 = vsel %vm369, %v331, 0
  %v485 = vsel %vm369, %v332, 0
  %v488 = vsel %vm369, %v333, 0
  %v491 = vsel %vm369, %v334, 0
  %v494 = vsel %vm369, %v335, 0
  %v497 = vsel %vm369, %v336, 0
  %v500 = vsel %vm369, %v337, 0
  %v503 = vsel %vm369, %v338, 0
  %v506 = vsel %vm369, %v339, 0
  %v509 = vsel %vm369, %v340, 0
  %v512 = vsel %vm369, %v341, 0
  %v515 = vsel %vm369, %v342, 0
  %v518 = vsel %vm369, %v343, 0
  %v521 = vsel %vm369, %v344, 0
  %v524 = vsel %vm369, %v345, 0
  %v527 = vsel %vm369, %v346, 0
  %v530 = vsel %vm369, %v347, 0
  %v533 = vsel %vm369, %v348, 0
  %v536 = vsel %vm369, %v349, 0
  %v539 = vsel %vm369, %v350, 0
  %v542 = vsel %vm369, %v351, 0
  %v545 = vsel %vm369, %v352, 0
  %v548 = vsel %vm369, %v353, 0
  %v551 = vsel %vm369, %v354, 0
  %v554 = vsel %vm369, %v355, 0
  %v557 = vsel %vm369, %v356, 0
  %v560 = vsel %vm369, %v357, 0
  %562 = vmatprep.subr.mxu0 0.0
  %563 = vmatpush1.msra.mxu0 %v358
  %564 = vmatprep.subr.mxu0 0.0
  %565 = vmatpush1.msra.mxu0 %v359
  %566 = vmatprep.subr.mxu0 0.0
  %567 = vmatpush1.msra.mxu0 %v360
  %568 = vmatprep.subr.mxu0 0.0
  %569 = vmatpush1.msra.mxu0 %v361
  %570 = vmatprep.subr.mxu0 0.0
  %571 = vmatpush1.msra.mxu0 0.0
  %572 = vmatprep.subr.mxu0 0.0
  %573 = vmatpush1.msra.mxu0 0.0
  %574 = vmatprep.subr.mxu0 0.0
  %575 = vmatpush1.msra.mxu0 0.0
  %576 = vmatprep.subr.mxu0 0.0
  %577 = vmatpush1.msra.mxu0 0.0
  %578 = vmatprep.subr.mxu0 0.0
  %579 = vmatpush1.msra.mxu0 0.0
  %580 = vmatprep.subr.mxu0 0.0
  %581 = vmatpush1.msra.mxu0 0.0
  %582 = vmatprep.subr.mxu0 0.0
  %583 = vmatpush1.msra.mxu0 0.0
  %584 = vmatprep.subr.mxu0 0.0
  %585 = vmatpush1.msra.mxu0 0.0
  %586 = vmatprep.subr.mxu0 0.0
  %587 = vmatpush1.msra.mxu0 0.0
  %588 = vmatprep.subr.mxu0 0.0
  %589 = vmatpush1.msra.mxu0 0.0
  %590 = vmatprep.subr.mxu0 0.0
  %591 = vmatpush1.msra.mxu0 0.0
  %592 = vmatprep.subr.mxu0 0.0
  %593 = vmatpush1.msra.mxu0 0.0
  %594 = vmatprep.subr.mxu0 0.0
  %595 = vmatpush1.msra.mxu0 0.0
  %596 = vmatprep.subr.mxu0 0.0
  %597 = vmatpush1.msra.mxu0 0.0
  %598 = vmatprep.subr.mxu0 0.0
  %599 = vmatpush1.msra.mxu0 0.0
  %600 = vmatprep.subr.mxu0 0.0
  %601 = vmatpush1.msra.mxu0 0.0
  %602 = vmatprep.subr.mxu0 0.0
  %603 = vmatpush1.msra.mxu0 0.0
  %604 = vmatprep.subr.mxu0 0.0
  %605 = vmatpush1.msra.mxu0 0.0
  %606 = vmatprep.subr.mxu0 0.0
  %607 = vmatpush1.msra.mxu0 0.0
  %608 = vmatprep.subr.mxu0 0.0
  %609 = vmatpush1.msra.mxu0 0.0
  %610 = vmatprep.subr.mxu0 0.0
  %611 = vmatpush1.msra.mxu0 0.0
  %612 = vmatprep.subr.mxu0 0.0
  %613 = vmatpush1.msra.mxu0 0.0
  %614 = vmatprep.subr.mxu0 0.0
  %615 = vmatpush1.msra.mxu0 0.0
  %616 = vmatprep.subr.mxu0 0.0
  %617 = vmatpush1.msra.mxu0 0.0
  %618 = vmatprep.subr.mxu0 0.0
  %619 = vmatpush1.msra.mxu0 0.0
  %620 = vmatprep.subr.mxu0 0.0
  %621 = vmatpush1.msra.mxu0 0.0
  %622 = vmatprep.subr.mxu0 0.0
  %623 = vmatpush1.msra.mxu0 0.0
  %624 = vmatprep.subr.mxu0 0.0
  %625 = vmatpush1.msra.mxu0 0.0
  %626 = vmatprep.mubr.f32.mxu0 0.0
  %627 = vmatmul.mubr.f32.gmra.mrb[0].mxu0 %v371
  %v628 = vpop.f32.mrb[0].mxu0
  %v629 = vadd.f32 %v367, %v628
  %v630 = vpop.f32.mrb[0].mxu0
  %631 = vmatprep.mubr.f32.mxu0 0.0
  %632 = vmatmul.mubr.f32.gmra.mrb[0].mxu0 %v374
  %v633 = vpop.f32.mrb[0].mxu0
  %v634 = vadd.f32 %v367, %v633
  %v635 = vpop.f32.mrb[0].mxu0
  %636 = vmatprep.mubr.f32.mxu0 0.0
  %637 = vmatmul.mubr.f32.gmra.mrb[0].mxu0 %v377
  %v638 = vpop.f32.mrb[0].mxu0
  %v639 = vadd.f32 %v367, %v638
  %v640 = vpop.f32.mrb[0].mxu0
  %641 = vmatprep.mubr.f32.mxu0 0.0
  %642 = vmatmul.mubr.f32.gmra.mrb[0].mxu0 %v380
  %v643 = vpop.f32.mrb[0].mxu0
  %v644 = vadd.f32 %v367, %v643
  %v645 = vpop.f32.mrb[0].mxu0
  %646 = vmatprep.mubr.f32.mxu0 0.0
  %647 = vmatmul.mubr.f32.gmra.mrb[0].mxu0 %v383
  %v648 = vpop.f32.mrb[0].mxu0
  %v649 = vadd.f32 %v367, %v648
  %v650 = vpop.f32.mrb[0].mxu0
  %651 = vmatprep.mubr.f32.mxu0 0.0
  %652 = vmatmul.mubr.f32.gmra.mrb[0].mxu0 %v386
  %v653 = vpop.f32.mrb[0].mxu0
  %v654 = vadd.f32 %v367, %v653
  %v655 = vpop.f32.mrb[0].mxu0
  %656 = vmatprep.mubr.f32.mxu0 0.0
  %657 = vmatmul.mubr.f32.gmra.mrb[0].mxu0 %v389
  %v658 = vpop.f32.mrb[0].mxu0
  %v659 = vadd.f32 %v367, %v658
  %v660 = vpop.f32.mrb[0].mxu0
  %661 = vmatprep.mubr.f32.mxu0 0.0
  %662 = vmatmul.mubr.f32.gmra.mrb[0].mxu0 %v392
  %v663 = vpop.f32.mrb[0].mxu0
  %v664 = vadd.f32 %v367, %v663
  %v665 = vpop.f32.mrb[0].mxu0
  %666 = vmatprep.mubr.f32.mxu0 0.0
  %667 = vmatmul.mubr.f32.gmra.mrb[0].mxu0 %v395
  %v668 = vpop.f32.mrb[0].mxu0
  %v669 = vadd.f32 %v367, %v668
  %v670 = vpop.f32.mrb[0].mxu0
  %671 = vmatprep.mubr.f32.mxu0 0.0
  %672 = vmatmul.mubr.f32.gmra.mrb[0].mxu0 %v398
  %v673 = vpop.f32.mrb[0].mxu0
  %v674 = vadd.f32 %v367, %v673
  %v675 = vpop.f32.mrb[0].mxu0
  %676 = vmatprep.mubr.f32.mxu0 0.0
  %677 = vmatmul.mubr.f32.gmra.mrb[0].mxu0 %v401
  %v678 = vpop.f32.mrb[0].mxu0
  %v679 = vadd.f32 %v367, %v678
  %v680 = vpop.f32.mrb[0].mxu0
  %681 = vmatprep.mubr.f32.mxu0 0.0
  %682 = vmatmul.mubr.f32.gmra.mrb[0].mxu0 %v404
  %v683 = vpop.f32.mrb[0].mxu0
  %v684 = vadd.f32 %v367, %v683
  %v685 = vpop.f32.mrb[0].mxu0
  %686 = vmatprep.mubr.f32.mxu0 0.0
  %687 = vmatmul.mubr.f32.gmra.mrb[0].mxu0 %v407
  %v688 = vpop.f32.mrb[0].mxu0
  %v689 = vadd.f32 %v367, %v688
  %v690 = vpop.f32.mrb[0].mxu0
  %691 = vmatprep.mubr.f32.mxu0 0.0
  %692 = vmatmul.mubr.f32.gmra.mrb[0].mxu0 %v410
  %v693 = vpop.f32.mrb[0].mxu0
  %v694 = vadd.f32 %v367, %v693
  %v695 = vpop.f32.mrb[0].mxu0
  %696 = vmatprep.mubr.f32.mxu0 0.0
  %697 = vmatmul.mubr.f32.gmra.mrb[0].mxu0 %v413
  %v698 = vpop.f32.mrb[0].mxu0
  %v699 = vadd.f32 %v367, %v698
  %v700 = vpop.f32.mrb[0].mxu0
  %701 = vmatprep.mubr.f32.mxu0 0.0
  %702 = vmatmul.mubr.f32.gmra.mrb[0].mxu0 %v416
  %v703 = vpop.f32.mrb[0].mxu0
  %v704 = vadd.f32 %v367, %v703
  %v705 = vpop.f32.mrb[0].mxu0
  %706 = vmatprep.mubr.f32.mxu0 0.0
  %707 = vmatmul.mubr.f32.gmra.mrb[0].mxu0 %v419
  %v708 = vpop.f32.mrb[0].mxu0
  %v709 = vadd.f32 %v367, %v708
  %v710 = vpop.f32.mrb[0].mxu0
  %711 = vmatprep.mubr.f32.mxu0 0.0
  %712 = vmatmul.mubr.f32.gmra.mrb[0].mxu0 %v422
  %v713 = vpop.f32.mrb[0].mxu0
  %v714 = vadd.f32 %v367, %v713
  %v715 = vpop.f32.mrb[0].mxu0
  %716 = vmatprep.mubr.f32.mxu0 0.0
  %717 = vmatmul.mubr.f32.gmra.mrb[0].mxu0 %v425
  %v718 = vpop.f32.mrb[0].mxu0
  %v719 = vadd.f32 %v367, %v718
  %v720 = vpop.f32.mrb[0].mxu0
  %721 = vmatprep.mubr.f32.mxu0 0.0
  %722 = vmatmul.mubr.f32.gmra.mrb[0].mxu0 %v428
  %v723 = vpop.f32.mrb[0].mxu0
  %v724 = vadd.f32 %v367, %v723
  %v725 = vpop.f32.mrb[0].mxu0
  %726 = vmatprep.mubr.f32.mxu0 0.0
  %727 = vmatmul.mubr.f32.gmra.mrb[0].mxu0 %v431
  %v728 = vpop.f32.mrb[0].mxu0
  %v729 = vadd.f32 %v367, %v728
  %v730 = vpop.f32.mrb[0].mxu0
  %731 = vmatprep.mubr.f32.mxu0 0.0
  %732 = vmatmul.mubr.f32.gmra.mrb[0].mxu0 %v434
  %v733 = vpop.f32.mrb[0].mxu0
  %v734 = vadd.f32 %v367, %v733
  %v735 = vpop.f32.mrb[0].mxu0
  %736 = vmatprep.mubr.f32.mxu0 0.0
  %737 = vmatmul.mubr.f32.gmra.mrb[0].mxu0 %v437
  %v738 = vpop.f32.mrb[0].mxu0
  %v739 = vadd.f32 %v367, %v738
  %v740 = vpop.f32.mrb[0].mxu0
  %741 = vmatprep.mubr.f32.mxu0 0.0
  %742 = vmatmul.mubr.f32.gmra.mrb[0].mxu0 %v440
  %v743 = vpop.f32.mrb[0].mxu0
  %v744 = vadd.f32 %v367, %v743
  %v745 = vpop.f32.mrb[0].mxu0
  %746 = vmatprep.mubr.f32.mxu0 0.0
  %747 = vmatmul.mubr.f32.gmra.mrb[0].mxu0 %v443
  %v748 = vpop.f32.mrb[0].mxu0
  %v749 = vadd.f32 %v367, %v748
  %v750 = vpop.f32.mrb[0].mxu0
  %751 = vmatprep.mubr.f32.mxu0 0.0
  %752 = vmatmul.mubr.f32.gmra.mrb[0].mxu0 %v446
  %v753 = vpop.f32.mrb[0].mxu0
  %v754 = vadd.f32 %v367, %v753
  %v755 = vpop.f32.mrb[0].mxu0
  %756 = vmatprep.mubr.f32.mxu0 0.0
  %757 = vmatmul.mubr.f32.gmra.mrb[0].mxu0 %v449
  %v758 = vpop.f32.mrb[0].mxu0
  %v759 = vadd.f32 %v367, %v758
  %v760 = vpop.f32.mrb[0].mxu0
  %761 = vmatprep.mubr.f32.mxu0 0.0
  %762 = vmatmul.mubr.f32.gmra.mrb[0].mxu0 %v452
  %v763 = vpop.f32.mrb[0].mxu0
  %v764 = vadd.f32 %v367, %v763
  %v765 = vpop.f32.mrb[0].mxu0
  %766 = vmatprep.mubr.f32.mxu0 0.0
  %767 = vmatmul.mubr.f32.gmra.mrb[0].mxu0 %v455
  %v768 = vpop.f32.mrb[0].mxu0
  %v769 = vadd.f32 %v367, %v768
  %v770 = vpop.f32.mrb[0].mxu0
  %771 = vmatprep.mubr.f32.mxu0 0.0
  %772 = vmatmul.mubr.f32.gmra.mrb[0].mxu0 %v458
  %v773 = vpop.f32.mrb[0].mxu0
  %v774 = vadd.f32 %v367, %v773
  %v775 = vpop.f32.mrb[0].mxu0
  %776 = vmatprep.mubr.f32.mxu0 0.0
  %777 = vmatmul.mubr.f32.gmra.mrb[0].mxu0 %v461
  %v778 = vpop.f32.mrb[0].mxu0
  %v779 = vadd.f32 %v367, %v778
  %v780 = vpop.f32.mrb[0].mxu0
  %781 = vmatprep.mubr.f32.mxu0 0.0
  %782 = vmatmul.mubr.f32.gmra.mrb[0].mxu0 %v464
  %v783 = vpop.f32.mrb[0].mxu0
  %v784 = vadd.f32 %v367, %v783
  %v785 = vpop.f32.mrb[0].mxu0
  %786 = vmatprep.mubr.f32.mxu0 0.0
  %787 = vmatmul.mubr.f32.gmra.mrb[0].mxu0 %v467
  %v788 = vpop.f32.mrb[0].mxu0
  %v789 = vadd.f32 %v367, %v788
  %v790 = vpop.f32.mrb[0].mxu0
  %791 = vmatprep.mubr.f32.mxu0 0.0
  %792 = vmatmul.mubr.f32.gmra.mrb[0].mxu0 %v470
  %v793 = vpop.f32.mrb[0].mxu0
  %v794 = vadd.f32 %v367, %v793
  %v795 = vpop.f32.mrb[0].mxu0
  %796 = vmatprep.mubr.f32.mxu0 0.0
  %797 = vmatmul.mubr.f32.gmra.mrb[0].mxu0 %v473
  %v798 = vpop.f32.mrb[0].mxu0
  %v799 = vadd.f32 %v367, %v798
  %v800 = vpop.f32.mrb[0].mxu0
  %801 = vmatprep.mubr.f32.mxu0 0.0
  %802 = vmatmul.mubr.f32.gmra.mrb[0].mxu0 %v476
  %v803 = vpop.f32.mrb[0].mxu0
  %v804 = vadd.f32 %v367, %v803
  %v805 = vpop.f32.mrb[0].mxu0
  %806 = vmatprep.mubr.f32.mxu0 0.0
  %807 = vmatmul.mubr.f32.gmra.mrb[0].mxu0 %v479
  %v808 = vpop.f32.mrb[0].mxu0
  %v809 = vadd.f32 %v367, %v808
  %v810 = vpop.f32.mrb[0].mxu0
  %811 = vmatprep.mubr.f32.mxu0 0.0
  %812 = vmatmul.mubr.f32.gmra.mrb[0].mxu0 %v482
  %v813 = vpop.f32.mrb[0].mxu0
  %v814 = vadd.f32 %v367, %v813
  %v815 = vpop.f32.mrb[0].mxu0
  %816 = vmatprep.mubr.f32.mxu0 0.0
  %817 = vmatmul.mubr.f32.gmra.mrb[0].mxu0 %v485
  %v818 = vpop.f32.mrb[0].mxu0
  %v819 = vadd.f32 %v367, %v818
  %v820 = vpop.f32.mrb[0].mxu0
  %821 = vmatprep.mubr.f32.mxu0 0.0
  %822 = vmatmul.mubr.f32.gmra.mrb[0].mxu0 %v488
  %v823 = vpop.f32.mrb[0].mxu0
  %v824 = vadd.f32 %v367, %v823
  %v825 = vpop.f32.mrb[0].mxu0
  %826 = vmatprep.mubr.f32.mxu0 0.0
  %827 = vmatmul.mubr.f32.gmra.mrb[0].mxu0 %v491
  %v828 = vpop.f32.mrb[0].mxu0
  %v829 = vadd.f32 %v367, %v828
  %v830 = vpop.f32.mrb[0].mxu0
  %831 = vmatprep.mubr.f32.mxu0 0.0
  %832 = vmatmul.mubr.f32.gmra.mrb[0].mxu0 %v494
  %v833 = vpop.f32.mrb[0].mxu0
  %v834 = vadd.f32 %v367, %v833
  %v835 = vpop.f32.mrb[0].mxu0
  %836 = vmatprep.mubr.f32.mxu0 0.0
  %837 = vmatmul.mubr.f32.gmra.mrb[0].mxu0 %v497
  %v838 = vpop.f32.mrb[0].mxu0
  %v839 = vadd.f32 %v367, %v838
  %v840 = vpop.f32.mrb[0].mxu0
  %841 = vmatprep.mubr.f32.mxu0 0.0
  %842 = vmatmul.mubr.f32.gmra.mrb[0].mxu0 %v500
  %v843 = vpop.f32.mrb[0].mxu0
  %v844 = vadd.f32 %v367, %v843
  %v845 = vpop.f32.mrb[0].mxu0
  %846 = vmatprep.mubr.f32.mxu0 0.0
  %847 = vmatmul.mubr.f32.gmra.mrb[0].mxu0 %v503
  %v848 = vpop.f32.mrb[0].mxu0
  %v849 = vadd.f32 %v367, %v848
  %v850 = vpop.f32.mrb[0].mxu0
  %851 = vmatprep.mubr.f32.mxu0 0.0
  %852 = vmatmul.mubr.f32.gmra.mrb[0].mxu0 %v506
  %v853 = vpop.f32.mrb[0].mxu0
  %v854 = vadd.f32 %v367, %v853
  %v855 = vpop.f32.mrb[0].mxu0
  %856 = vmatprep.mubr.f32.mxu0 0.0
  %857 = vmatmul.mubr.f32.gmra.mrb[0].mxu0 %v509
  %v858 = vpop.f32.mrb[0].mxu0
  %v859 = vadd.f32 %v367, %v858
  %v860 = vpop.f32.mrb[0].mxu0
  %861 = vmatprep.mubr.f32.mxu0 0.0
  %862 = vmatmul.mubr.f32.gmra.mrb[0].mxu0 %v512
  %v863 = vpop.f32.mrb[0].mxu0
  %v864 = vadd.f32 %v367, %v863
  %v865 = vpop.f32.mrb[0].mxu0
  %866 = vmatprep.mubr.f32.mxu0 0.0
  %867 = vmatmul.mubr.f32.gmra.mrb[0].mxu0 %v515
  %v868 = vpop.f32.mrb[0].mxu0
  %v869 = vadd.f32 %v367, %v868
  %v870 = vpop.f32.mrb[0].mxu0
  %871 = vmatprep.mubr.f32.mxu0 0.0
  %872 = vmatmul.mubr.f32.gmra.mrb[0].mxu0 %v518
  %v873 = vpop.f32.mrb[0].mxu0
  %v874 = vadd.f32 %v367, %v873
  %v875 = vpop.f32.mrb[0].mxu0
  %876 = vmatprep.mubr.f32.mxu0 0.0
  %877 = vmatmul.mubr.f32.gmra.mrb[0].mxu0 %v521
  %v878 = vpop.f32.mrb[0].mxu0
  %v879 = vadd.f32 %v367, %v878
  %v880 = vpop.f32.mrb[0].mxu0
  %881 = vmatprep.mubr.f32.mxu0 0.0
  %882 = vmatmul.mubr.f32.gmra.mrb[0].mxu0 %v524
  %v883 = vpop.f32.mrb[0].mxu0
  %v884 = vadd.f32 %v367, %v883
  %v885 = vpop.f32.mrb[0].mxu0
  %886 = vmatprep.mubr.f32.mxu0 0.0
  %887 = vmatmul.mubr.f32.gmra.mrb[0].mxu0 %v527
  %v888 = vpop.f32.mrb[0].mxu0
  %v889 = vadd.f32 %v367, %v888
  %v890 = vpop.f32.mrb[0].mxu0
  %891 = vmatprep.mubr.f32.mxu0 0.0
  %892 = vmatmul.mubr.f32.gmra.mrb[0].mxu0 %v530
  %v893 = vpop.f32.mrb[0].mxu0
  %v894 = vadd.f32 %v367, %v893
  %v895 = vpop.f32.mrb[0].mxu0
  %896 = vmatprep.mubr.f32.mxu0 0.0
  %897 = vmatmul.mubr.f32.gmra.mrb[0].mxu0 %v533
  %v898 = vpop.f32.mrb[0].mxu0
  %v899 = vadd.f32 %v367, %v898
  %v900 = vpop.f32.mrb[0].mxu0
  %901 = vmatprep.mubr.f32.mxu0 0.0
  %902 = vmatmul.mubr.f32.gmra.mrb[0].mxu0 %v536
  %v903 = vpop.f32.mrb[0].mxu0
  %v904 = vadd.f32 %v367, %v903
  %v905 = vpop.f32.mrb[0].mxu0
  %906 = vmatprep.mubr.f32.mxu0 0.0
  %907 = vmatmul.mubr.f32.gmra.mrb[0].mxu0 %v539
  %v908 = vpop.f32.mrb[0].mxu0
  %v909 = vadd.f32 %v367, %v908
  %v910 = vpop.f32.mrb[0].mxu0
  %911 = vmatprep.mubr.f32.mxu0 0.0
  %912 = vmatmul.mubr.f32.gmra.mrb[0].mxu0 %v542
  %v913 = vpop.f32.mrb[0].mxu0
  %v914 = vadd.f32 %v367, %v913
  %v915 = vpop.f32.mrb[0].mxu0
  %916 = vmatprep.mubr.f32.mxu0 0.0
  %917 = vmatmul.mubr.f32.gmra.mrb[0].mxu0 %v545
  %v918 = vpop.f32.mrb[0].mxu0
  %v919 = vadd.f32 %v367, %v918
  %v920 = vpop.f32.mrb[0].mxu0
  %921 = vmatprep.mubr.f32.mxu0 0.0
  %922 = vmatmul.mubr.f32.gmra.mrb[0].mxu0 %v548
  %v923 = vpop.f32.mrb[0].mxu0
  %v924 = vadd.f32 %v367, %v923
  %v925 = vpop.f32.mrb[0].mxu0
  %926 = vmatprep.mubr.f32.mxu0 0.0
  %927 = vmatmul.mubr.f32.gmra.mrb[0].mxu0 %v551
  %v928 = vpop.f32.mrb[0].mxu0
  %v929 = vadd.f32 %v367, %v928
  %v930 = vpop.f32.mrb[0].mxu0
  %931 = vmatprep.mubr.f32.mxu0 0.0
  %932 = vmatmul.mubr.f32.gmra.mrb[0].mxu0 %v554
  %v933 = vpop.f32.mrb[0].mxu0
  %v934 = vadd.f32 %v367, %v933
  %v935 = vpop.f32.mrb[0].mxu0
  %936 = vmatprep.mubr.f32.mxu0 0.0
  %937 = vmatmul.mubr.f32.gmra.mrb[0].mxu0 %v557
  %v938 = vpop.f32.mrb[0].mxu0
  %v939 = vadd.f32 %v367, %v938
  %v940 = vpop.f32.mrb[0].mxu0
  %941 = vmatprep.mubr.f32.mxu0 0.0
  %942 = vmatmul.mubr.f32.gmra.mrb[0].mxu0 %v560
  %v943 = vpop.f32.mrb[0].mxu0
  %v944 = vadd.f32 %v367, %v943
  %v945 = vpop.f32.mrb[0].mxu0
  %946 = vdwg.mxu0
  %v947 = vmul.f32 %v629, %v230
  %v948 = vmul.f32 %v634, %v231
  %v949 = vmul.f32 %v639, %v232
  %v950 = vmul.f32 %v644, %v233
  %v951 = vmul.f32 %v649, %v234
  %v952 = vmul.f32 %v654, %v235
  %v953 = vmul.f32 %v659, %v236
  %v954 = vmul.f32 %v664, %v237
  %v955 = vmul.f32 %v669, %v238
  %v956 = vmul.f32 %v674, %v239
  %v957 = vmul.f32 %v679, %v240
  %v958 = vmul.f32 %v684, %v241
  %v959 = vmul.f32 %v689, %v242
  %v960 = vmul.f32 %v694, %v243
  %v961 = vmul.f32 %v699, %v244
  %v962 = vmul.f32 %v704, %v245
  %v963 = vmul.f32 %v709, %v246
  %v964 = vmul.f32 %v714, %v247
  %v965 = vmul.f32 %v719, %v248
  %v966 = vmul.f32 %v724, %v249
  %v967 = vmul.f32 %v729, %v250
  %v968 = vmul.f32 %v734, %v251
  %v969 = vmul.f32 %v739, %v252
  %v970 = vmul.f32 %v744, %v253
  %v971 = vmul.f32 %v749, %v254
  %v972 = vmul.f32 %v754, %v255
  %v973 = vmul.f32 %v759, %v256
  %v974 = vmul.f32 %v764, %v257
  %v975 = vmul.f32 %v769, %v258
  %v976 = vmul.f32 %v774, %v259
  %v977 = vmul.f32 %v779, %v260
  %v978 = vmul.f32 %v784, %v261
  %v979 = vmul.f32 %v789, %v262
  %v980 = vmul.f32 %v794, %v263
  %v981 = vmul.f32 %v799, %v264
  %v982 = vmul.f32 %v804, %v265
  %v983 = vmul.f32 %v809, %v266
  %v984 = vmul.f32 %v814, %v267
  %v985 = vmul.f32 %v819, %v268
  %v986 = vmul.f32 %v824, %v269
  %v987 = vmul.f32 %v829, %v270
  %v988 = vmul.f32 %v834, %v271
  %v989 = vmul.f32 %v839, %v272
  %v990 = vmul.f32 %v844, %v273
  %v991 = vmul.f32 %v849, %v274
  %v992 = vmul.f32 %v854, %v275
  %v993 = vmul.f32 %v859, %v276
  %v994 = vmul.f32 %v864, %v277
  %v995 = vmul.f32 %v869, %v278
  %v996 = vmul.f32 %v874, %v279
  %v997 = vmul.f32 %v879, %v280
  %v998 = vmul.f32 %v884, %v281
  %v999 = vmul.f32 %v889, %v282
  %v1000 = vmul.f32 %v894, %v283
  %v1001 = vmul.f32 %v899, %v284
  %v1002 = vmul.f32 %v904, %v285
  %v1003 = vmul.f32 %v909, %v286
  %v1004 = vmul.f32 %v914, %v287
  %v1005 = vmul.f32 %v919, %v288
  %v1006 = vmul.f32 %v924, %v289
  %v1007 = vmul.f32 %v929, %v290
  %v1008 = vmul.f32 %v934, %v291
  %v1009 = vmul.f32 %v939, %v292
  %v1010 = vmul.f32 %v944, %v293
  %v1011 = vld [vmem:[%s4] sm:$0xff]
  %v1012 = vld [vmem:[%s4 + $0x8] sm:$0xff]
  %v1013 = vld [vmem:[%s4 + $0x10] sm:$0xff]
  %v1014 = vld [vmem:[%s4 + $0x18] sm:$0xff]
  %v1015 = vld [vmem:[%s5] sm:$0x1]
  %v1017 = vlaneseq
  %v1018 = vshrl.u32 %v1017, 7
  %v1019 = vsub.s32 0, %v1018
  %v1020 = vrot.slane %v1015, %v1019
  %v1023 = vsel %vm369, %v947, 0
  %v1026 = vsel %vm369, %v948, 0
  %v1029 = vsel %vm369, %v949, 0
  %v1032 = vsel %vm369, %v950, 0
  %v1035 = vsel %vm369, %v951, 0
  %v1038 = vsel %vm369, %v952, 0
  %v1041 = vsel %vm369, %v953, 0
  %v1044 = vsel %vm369, %v954, 0
  %v1047 = vsel %vm369, %v955, 0
  %v1050 = vsel %vm369, %v956, 0
  %v1053 = vsel %vm369, %v957, 0
  %v1056 = vsel %vm369, %v958, 0
  %v1059 = vsel %vm369, %v959, 0
  %v1062 = vsel %vm369, %v960, 0
  %v1065 = vsel %vm369, %v961, 0
  %v1068 = vsel %vm369, %v962, 0
  %v1071 = vsel %vm369, %v963, 0
  %v1074 = vsel %vm369, %v964, 0
  %v1077 = vsel %vm369, %v965, 0
  %v1080 = vsel %vm369, %v966, 0
  %v1083 = vsel %vm369, %v967, 0
  %v1086 = vsel %vm369, %v968, 0
  %v1089 = vsel %vm369, %v969, 0
  %v1092 = vsel %vm369, %v970, 0
  %v1095 = vsel %vm369, %v971, 0
  %v1098 = vsel %vm369, %v972, 0
  %v1101 = vsel %vm369, %v973, 0
  %v1104 = vsel %vm369, %v974, 0
  %v1107 = vsel %vm369, %v975, 0
  %v1110 = vsel %vm369, %v976, 0
  %v1113 = vsel %vm369, %v977, 0
  %v1116 = vsel %vm369, %v978, 0
  %v1119 = vsel %vm369, %v979, 0
  %v1122 = vsel %vm369, %v980, 0
  %v1125 = vsel %vm369, %v981, 0
  %v1128 = vsel %vm369, %v982, 0
  %v1131 = vsel %vm369, %v983, 0
  %v1134 = vsel %vm369, %v984, 0
  %v1137 = vsel %vm369, %v985, 0
  %v1140 = vsel %vm369, %v986, 0
  %v1143 = vsel %vm369, %v987, 0
  %v1146 = vsel %vm369, %v988, 0
  %v1149 = vsel %vm369, %v989, 0
  %v1152 = vsel %vm369, %v990, 0
  %v1155 = vsel %vm369, %v991, 0
  %v1158 = vsel %vm369, %v992, 0
  %v1161 = vsel %vm369, %v993, 0
  %v1164 = vsel %vm369, %v994, 0
  %v1167 = vsel %vm369, %v995, 0
  %v1170 = vsel %vm369, %v996, 0
  %v1173 = vsel %vm369, %v997, 0
  %v1176 = vsel %vm369, %v998, 0
  %v1179 = vsel %vm369, %v999, 0
  %v1182 = vsel %vm369, %v1000, 0
  %v1185 = vsel %vm369, %v1001, 0
  %v1188 = vsel %vm369, %v1002, 0
  %v1191 = vsel %vm369, %v1003, 0
  %v1194 = vsel %vm369, %v1004, 0
  %v1197 = vsel %vm369, %v1005, 0
  %v1200 = vsel %vm369, %v1006, 0
  %v1203 = vsel %vm369, %v1007, 0
  %v1206 = vsel %vm369, %v1008, 0
  %v1209 = vsel %vm369, %v1009, 0
  %v1212 = vsel %vm369, %v1010, 0
  %1214 = vmatprep.subr.mxu0 0.0
  %1215 = vmatpush1.msra.mxu0 %v1011
  %1216 = vmatprep.subr.mxu0 0.0
  %1217 = vmatpush1.msra.mxu0 %v1012
  %1218 = vmatprep.subr.mxu0 0.0
  %1219 = vmatpush1.msra.mxu0 %v1013
  %1220 = vmatprep.subr.mxu0 0.0
  %1221 = vmatpush1.msra.mxu0 %v1014
  %1222 = vmatprep.subr.mxu0 0.0
  %1223 = vmatpush1.msra.mxu0 0.0
  %1224 = vmatprep.subr.mxu0 0.0
  %1225 = vmatpush1.msra.mxu0 0.0
  %1226 = vmatprep.subr.mxu0 0.0
  %1227 = vmatpush1.msra.mxu0 0.0
  %1228 = vmatprep.subr.mxu0 0.0
  %1229 = vmatpush1.msra.mxu0 0.0
  %1230 = vmatprep.subr.mxu0 0.0
  %1231 = vmatpush1.msra.mxu0 0.0
  %1232 = vmatprep.subr.mxu0 0.0
  %1233 = vmatpush1.msra.mxu0 0.0
  %1234 = vmatprep.subr.mxu0 0.0
  %1235 = vmatpush1.msra.mxu0 0.0
  %1236 = vmatprep.subr.mxu0 0.0
  %1237 = vmatpush1.msra.mxu0 0.0
  %1238 = vmatprep.subr.mxu0 0.0
  %1239 = vmatpush1.msra.mxu0 0.0
  %1240 = vmatprep.subr.mxu0 0.0
  %1241 = vmatpush1.msra.mxu0 0.0
  %1242 = vmatprep.subr.mxu0 0.0
  %1243 = vmatpush1.msra.mxu0 0.0
  %1244 = vmatprep.subr.mxu0 0.0
  %1245 = vmatpush1.msra.mxu0 0.0
  %1246 = vmatprep.subr.mxu0 0.0
  %1247 = vmatpush1.msra.mxu0 0.0
  %1248 = vmatprep.subr.mxu0 0.0
  %1249 = vmatpush1.msra.mxu0 0.0
  %1250 = vmatprep.subr.mxu0 0.0
  %1251 = vmatpush1.msra.mxu0 0.0
  %1252 = vmatprep.subr.mxu0 0.0
  %1253 = vmatpush1.msra.mxu0 0.0
  %1254 = vmatprep.subr.mxu0 0.0
  %1255 = vmatpush1.msra.mxu0 0.0
  %1256 = vmatprep.subr.mxu0 0.0
  %1257 = vmatpush1.msra.mxu0 0.0
  %1258 = vmatprep.subr.mxu0 0.0
  %1259 = vmatpush1.msra.mxu0 0.0
  %1260 = vmatprep.subr.mxu0 0.0
  %1261 = vmatpush1.msra.mxu0 0.0
  %1262 = vmatprep.subr.mxu0 0.0
  %1263 = vmatpush1.msra.mxu0 0.0
  %1264 = vmatprep.subr.mxu0 0.0
  %1265 = vmatpush1.msra.mxu0 0.0
  %1266 = vmatprep.subr.mxu0 0.0
  %1267 = vmatpush1.msra.mxu0 0.0
  %1268 = vmatprep.subr.mxu0 0.0
  %1269 = vmatpush1.msra.mxu0 0.0
  %1270 = vmatprep.subr.mxu0 0.0
  %1271 = vmatpush1.msra.mxu0 0.0
  %1272 = vmatprep.subr.mxu0 0.0
  %1273 = vmatpush1.msra.mxu0 0.0
  %1274 = vmatprep.subr.mxu0 0.0
  %1275 = vmatpush1.msra.mxu0 0.0
  %1276 = vmatprep.subr.mxu0 0.0
  %1277 = vmatpush1.msra.mxu0 0.0
  %1278 = vmatprep.mubr.f32.mxu0 0.0
  %1279 = vmatmul.mubr.f32.gmra.mrb[0].mxu0 %v1023
  %v1280 = vpop.f32.mrb[0].mxu0
  %v1281 = vadd.f32 %v1020, %v1280
  %v1282 = vpop.f32.mrb[0].mxu0
  %1283 = vmatprep.mubr.f32.mxu0 0.0
  %1284 = vmatmul.mubr.f32.gmra.mrb[0].mxu0 %v1026
  %v1285 = vpop.f32.mrb[0].mxu0
  %v1286 = vadd.f32 %v1020, %v1285
  %v1287 = vpop.f32.mrb[0].mxu0
  %1288 = vmatprep.mubr.f32.mxu0 0.0
  %1289 = vmatmul.mubr.f32.gmra.mrb[0].mxu0 %v1029
  %v1290 = vpop.f32.mrb[0].mxu0
  %v1291 = vadd.f32 %v1020, %v1290
  %v1292 = vpop.f32.mrb[0].mxu0
  %1293 = vmatprep.mubr.f32.mxu0 0.0
  %1294 = vmatmul.mubr.f32.gmra.mrb[0].mxu0 %v1032
  %v1295 = vpop.f32.mrb[0].mxu0
  %v1296 = vadd.f32 %v1020, %v1295
  %v1297 = vpop.f32.mrb[0].mxu0
  %1298 = vmatprep.mubr.f32.mxu0 0.0
  %1299 = vmatmul.mubr.f32.gmra.mrb[0].mxu0 %v1035
  %v1300 = vpop.f32.mrb[0].mxu0
  %v1301 = vadd.f32 %v1020, %v1300
  %v1302 = vpop.f32.mrb[0].mxu0
  %1303 = vmatprep.mubr.f32.mxu0 0.0
  %1304 = vmatmul.mubr.f32.gmra.mrb[0].mxu0 %v1038
  %v1305 = vpop.f32.mrb[0].mxu0
  %v1306 = vadd.f32 %v1020, %v1305
  %v1307 = vpop.f32.mrb[0].mxu0
  %1308 = vmatprep.mubr.f32.mxu0 0.0
  %1309 = vmatmul.mubr.f32.gmra.mrb[0].mxu0 %v1041
  %v1310 = vpop.f32.mrb[0].mxu0
  %v1311 = vadd.f32 %v1020, %v1310
  %v1312 = vpop.f32.mrb[0].mxu0
  %1313 = vmatprep.mubr.f32.mxu0 0.0
  %1314 = vmatmul.mubr.f32.gmra.mrb[0].mxu0 %v1044
  %v1315 = vpop.f32.mrb[0].mxu0
  %v1316 = vadd.f32 %v1020, %v1315
  %v1317 = vpop.f32.mrb[0].mxu0
  %1318 = vmatprep.mubr.f32.mxu0 0.0
  %1319 = vmatmul.mubr.f32.gmra.mrb[0].mxu0 %v1047
  %v1320 = vpop.f32.mrb[0].mxu0
  %v1321 = vadd.f32 %v1020, %v1320
  %v1322 = vpop.f32.mrb[0].mxu0
  %1323 = vmatprep.mubr.f32.mxu0 0.0
  %1324 = vmatmul.mubr.f32.gmra.mrb[0].mxu0 %v1050
  %v1325 = vpop.f32.mrb[0].mxu0
  %v1326 = vadd.f32 %v1020, %v1325
  %v1327 = vpop.f32.mrb[0].mxu0
  %1328 = vmatprep.mubr.f32.mxu0 0.0
  %1329 = vmatmul.mubr.f32.gmra.mrb[0].mxu0 %v1053
  %v1330 = vpop.f32.mrb[0].mxu0
  %v1331 = vadd.f32 %v1020, %v1330
  %v1332 = vpop.f32.mrb[0].mxu0
  %1333 = vmatprep.mubr.f32.mxu0 0.0
  %1334 = vmatmul.mubr.f32.gmra.mrb[0].mxu0 %v1056
  %v1335 = vpop.f32.mrb[0].mxu0
  %v1336 = vadd.f32 %v1020, %v1335
  %v1337 = vpop.f32.mrb[0].mxu0
  %1338 = vmatprep.mubr.f32.mxu0 0.0
  %1339 = vmatmul.mubr.f32.gmra.mrb[0].mxu0 %v1059
  %v1340 = vpop.f32.mrb[0].mxu0
  %v1341 = vadd.f32 %v1020, %v1340
  %v1342 = vpop.f32.mrb[0].mxu0
  %1343 = vmatprep.mubr.f32.mxu0 0.0
  %1344 = vmatmul.mubr.f32.gmra.mrb[0].mxu0 %v1062
  %v1345 = vpop.f32.mrb[0].mxu0
  %v1346 = vadd.f32 %v1020, %v1345
  %v1347 = vpop.f32.mrb[0].mxu0
  %1348 = vmatprep.mubr.f32.mxu0 0.0
  %1349 = vmatmul.mubr.f32.gmra.mrb[0].mxu0 %v1065
  %v1350 = vpop.f32.mrb[0].mxu0
  %v1351 = vadd.f32 %v1020, %v1350
  %v1352 = vpop.f32.mrb[0].mxu0
  %1353 = vmatprep.mubr.f32.mxu0 0.0
  %1354 = vmatmul.mubr.f32.gmra.mrb[0].mxu0 %v1068
  %v1355 = vpop.f32.mrb[0].mxu0
  %v1356 = vadd.f32 %v1020, %v1355
  %v1357 = vpop.f32.mrb[0].mxu0
  %1358 = vmatprep.mubr.f32.mxu0 0.0
  %1359 = vmatmul.mubr.f32.gmra.mrb[0].mxu0 %v1071
  %v1360 = vpop.f32.mrb[0].mxu0
  %v1361 = vadd.f32 %v1020, %v1360
  %v1362 = vpop.f32.mrb[0].mxu0
  %1363 = vmatprep.mubr.f32.mxu0 0.0
  %1364 = vmatmul.mubr.f32.gmra.mrb[0].mxu0 %v1074
  %v1365 = vpop.f32.mrb[0].mxu0
  %v1366 = vadd.f32 %v1020, %v1365
  %v1367 = vpop.f32.mrb[0].mxu0
  %1368 = vmatprep.mubr.f32.mxu0 0.0
  %1369 = vmatmul.mubr.f32.gmra.mrb[0].mxu0 %v1077
  %v1370 = vpop.f32.mrb[0].mxu0
  %v1371 = vadd.f32 %v1020, %v1370
  %v1372 = vpop.f32.mrb[0].mxu0
  %1373 = vmatprep.mubr.f32.mxu0 0.0
  %1374 = vmatmul.mubr.f32.gmra.mrb[0].mxu0 %v1080
  %v1375 = vpop.f32.mrb[0].mxu0
  %v1376 = vadd.f32 %v1020, %v1375
  %v1377 = vpop.f32.mrb[0].mxu0
  %1378 = vmatprep.mubr.f32.mxu0 0.0
  %1379 = vmatmul.mubr.f32.gmra.mrb[0].mxu0 %v1083
  %v1380 = vpop.f32.mrb[0].mxu0
  %v1381 = vadd.f32 %v1020, %v1380
  %v1382 = vpop.f32.mrb[0].mxu0
  %1383 = vmatprep.mubr.f32.mxu0 0.0
  %1384 = vmatmul.mubr.f32.gmra.mrb[0].mxu0 %v1086
  %v1385 = vpop.f32.mrb[0].mxu0
  %v1386 = vadd.f32 %v1020, %v1385
  %v1387 = vpop.f32.mrb[0].mxu0
  %1388 = vmatprep.mubr.f32.mxu0 0.0
  %1389 = vmatmul.mubr.f32.gmra.mrb[0].mxu0 %v1089
  %v1390 = vpop.f32.mrb[0].mxu0
  %v1391 = vadd.f32 %v1020, %v1390
  %v1392 = vpop.f32.mrb[0].mxu0
  %1393 = vmatprep.mubr.f32.mxu0 0.0
  %1394 = vmatmul.mubr.f32.gmra.mrb[0].mxu0 %v1092
  %v1395 = vpop.f32.mrb[0].mxu0
  %v1396 = vadd.f32 %v1020, %v1395
  %v1397 = vpop.f32.mrb[0].mxu0
  %1398 = vmatprep.mubr.f32.mxu0 0.0
  %1399 = vmatmul.mubr.f32.gmra.mrb[0].mxu0 %v1095
  %v1400 = vpop.f32.mrb[0].mxu0
  %v1401 = vadd.f32 %v1020, %v1400
  %v1402 = vpop.f32.mrb[0].mxu0
  %1403 = vmatprep.mubr.f32.mxu0 0.0
  %1404 = vmatmul.mubr.f32.gmra.mrb[0].mxu0 %v1098
  %v1405 = vpop.f32.mrb[0].mxu0
  %v1406 = vadd.f32 %v1020, %v1405
  %v1407 = vpop.f32.mrb[0].mxu0
  %1408 = vmatprep.mubr.f32.mxu0 0.0
  %1409 = vmatmul.mubr.f32.gmra.mrb[0].mxu0 %v1101
  %v1410 = vpop.f32.mrb[0].mxu0
  %v1411 = vadd.f32 %v1020, %v1410
  %v1412 = vpop.f32.mrb[0].mxu0
  %1413 = vmatprep.mubr.f32.mxu0 0.0
  %1414 = vmatmul.mubr.f32.gmra.mrb[0].mxu0 %v1104
  %v1415 = vpop.f32.mrb[0].mxu0
  %v1416 = vadd.f32 %v1020, %v1415
  %v1417 = vpop.f32.mrb[0].mxu0
  %1418 = vmatprep.mubr.f32.mxu0 0.0
  %1419 = vmatmul.mubr.f32.gmra.mrb[0].mxu0 %v1107
  %v1420 = vpop.f32.mrb[0].mxu0
  %v1421 = vadd.f32 %v1020, %v1420
  %v1422 = vpop.f32.mrb[0].mxu0
  %1423 = vmatprep.mubr.f32.mxu0 0.0
  %1424 = vmatmul.mubr.f32.gmra.mrb[0].mxu0 %v1110
  %v1425 = vpop.f32.mrb[0].mxu0
  %v1426 = vadd.f32 %v1020, %v1425
  %v1427 = vpop.f32.mrb[0].mxu0
  %1428 = vmatprep.mubr.f32.mxu0 0.0
  %1429 = vmatmul.mubr.f32.gmra.mrb[0].mxu0 %v1113
  %v1430 = vpop.f32.mrb[0].mxu0
  %v1431 = vadd.f32 %v1020, %v1430
  %v1432 = vpop.f32.mrb[0].mxu0
  %1433 = vmatprep.mubr.f32.mxu0 0.0
  %1434 = vmatmul.mubr.f32.gmra.mrb[0].mxu0 %v1116
  %v1435 = vpop.f32.mrb[0].mxu0
  %v1436 = vadd.f32 %v1020, %v1435
  %v1437 = vpop.f32.mrb[0].mxu0
  %1438 = vmatprep.mubr.f32.mxu0 0.0
  %1439 = vmatmul.mubr.f32.gmra.mrb[0].mxu0 %v1119
  %v1440 = vpop.f32.mrb[0].mxu0
  %v1441 = vadd.f32 %v1020, %v1440
  %v1442 = vpop.f32.mrb[0].mxu0
  %1443 = vmatprep.mubr.f32.mxu0 0.0
  %1444 = vmatmul.mubr.f32.gmra.mrb[0].mxu0 %v1122
  %v1445 = vpop.f32.mrb[0].mxu0
  %v1446 = vadd.f32 %v1020, %v1445
  %v1447 = vpop.f32.mrb[0].mxu0
  %1448 = vmatprep.mubr.f32.mxu0 0.0
  %1449 = vmatmul.mubr.f32.gmra.mrb[0].mxu0 %v1125
  %v1450 = vpop.f32.mrb[0].mxu0
  %v1451 = vadd.f32 %v1020, %v1450
  %v1452 = vpop.f32.mrb[0].mxu0
  %1453 = vmatprep.mubr.f32.mxu0 0.0
  %1454 = vmatmul.mubr.f32.gmra.mrb[0].mxu0 %v1128
  %v1455 = vpop.f32.mrb[0].mxu0
  %v1456 = vadd.f32 %v1020, %v1455
  %v1457 = vpop.f32.mrb[0].mxu0
  %1458 = vmatprep.mubr.f32.mxu0 0.0
  %1459 = vmatmul.mubr.f32.gmra.mrb[0].mxu0 %v1131
  %v1460 = vpop.f32.mrb[0].mxu0
  %v1461 = vadd.f32 %v1020, %v1460
  %v1462 = vpop.f32.mrb[0].mxu0
  %1463 = vmatprep.mubr.f32.mxu0 0.0
  %1464 = vmatmul.mubr.f32.gmra.mrb[0].mxu0 %v1134
  %v1465 = vpop.f32.mrb[0].mxu0
  %v1466 = vadd.f32 %v1020, %v1465
  %v1467 = vpop.f32.mrb[0].mxu0
  %1468 = vmatprep.mubr.f32.mxu0 0.0
  %1469 = vmatmul.mubr.f32.gmra.mrb[0].mxu0 %v1137
  %v1470 = vpop.f32.mrb[0].mxu0
  %v1471 = vadd.f32 %v1020, %v1470
  %v1472 = vpop.f32.mrb[0].mxu0
  %1473 = vmatprep.mubr.f32.mxu0 0.0
  %1474 = vmatmul.mubr.f32.gmra.mrb[0].mxu0 %v1140
  %v1475 = vpop.f32.mrb[0].mxu0
  %v1476 = vadd.f32 %v1020, %v1475
  %v1477 = vpop.f32.mrb[0].mxu0
  %1478 = vmatprep.mubr.f32.mxu0 0.0
  %1479 = vmatmul.mubr.f32.gmra.mrb[0].mxu0 %v1143
  %v1480 = vpop.f32.mrb[0].mxu0
  %v1481 = vadd.f32 %v1020, %v1480
  %v1482 = vpop.f32.mrb[0].mxu0
  %1483 = vmatprep.mubr.f32.mxu0 0.0
  %1484 = vmatmul.mubr.f32.gmra.mrb[0].mxu0 %v1146
  %v1485 = vpop.f32.mrb[0].mxu0
  %v1486 = vadd.f32 %v1020, %v1485
  %v1487 = vpop.f32.mrb[0].mxu0
  %1488 = vmatprep.mubr.f32.mxu0 0.0
  %1489 = vmatmul.mubr.f32.gmra.mrb[0].mxu0 %v1149
  %v1490 = vpop.f32.mrb[0].mxu0
  %v1491 = vadd.f32 %v1020, %v1490
  %v1492 = vpop.f32.mrb[0].mxu0
  %1493 = vmatprep.mubr.f32.mxu0 0.0
  %1494 = vmatmul.mubr.f32.gmra.mrb[0].mxu0 %v1152
  %v1495 = vpop.f32.mrb[0].mxu0
  %v1496 = vadd.f32 %v1020, %v1495
  %v1497 = vpop.f32.mrb[0].mxu0
  %1498 = vmatprep.mubr.f32.mxu0 0.0
  %1499 = vmatmul.mubr.f32.gmra.mrb[0].mxu0 %v1155
  %v1500 = vpop.f32.mrb[0].mxu0
  %v1501 = vadd.f32 %v1020, %v1500
  %v1502 = vpop.f32.mrb[0].mxu0
  %1503 = vmatprep.mubr.f32.mxu0 0.0
  %1504 = vmatmul.mubr.f32.gmra.mrb[0].mxu0 %v1158
  %v1505 = vpop.f32.mrb[0].mxu0
  %v1506 = vadd.f32 %v1020, %v1505
  %v1507 = vpop.f32.mrb[0].mxu0
  %1508 = vmatprep.mubr.f32.mxu0 0.0
  %1509 = vmatmul.mubr.f32.gmra.mrb[0].mxu0 %v1161
  %v1510 = vpop.f32.mrb[0].mxu0
  %v1511 = vadd.f32 %v1020, %v1510
  %v1512 = vpop.f32.mrb[0].mxu0
  %1513 = vmatprep.mubr.f32.mxu0 0.0
  %1514 = vmatmul.mubr.f32.gmra.mrb[0].mxu0 %v1164
  %v1515 = vpop.f32.mrb[0].mxu0
  %v1516 = vadd.f32 %v1020, %v1515
  %v1517 = vpop.f32.mrb[0].mxu0
  %1518 = vmatprep.mubr.f32.mxu0 0.0
  %1519 = vmatmul.mubr.f32.gmra.mrb[0].mxu0 %v1167
  %v1520 = vpop.f32.mrb[0].mxu0
  %v1521 = vadd.f32 %v1020, %v1520
  %v1522 = vpop.f32.mrb[0].mxu0
  %1523 = vmatprep.mubr.f32.mxu0 0.0
  %1524 = vmatmul.mubr.f32.gmra.mrb[0].mxu0 %v1170
  %v1525 = vpop.f32.mrb[0].mxu0
  %v1526 = vadd.f32 %v1020, %v1525
  %v1527 = vpop.f32.mrb[0].mxu0
  %1528 = vmatprep.mubr.f32.mxu0 0.0
  %1529 = vmatmul.mubr.f32.gmra.mrb[0].mxu0 %v1173
  %v1530 = vpop.f32.mrb[0].mxu0
  %v1531 = vadd.f32 %v1020, %v1530
  %v1532 = vpop.f32.mrb[0].mxu0
  %1533 = vmatprep.mubr.f32.mxu0 0.0
  %1534 = vmatmul.mubr.f32.gmra.mrb[0].mxu0 %v1176
  %v1535 = vpop.f32.mrb[0].mxu0
  %v1536 = vadd.f32 %v1020, %v1535
  %v1537 = vpop.f32.mrb[0].mxu0
  %1538 = vmatprep.mubr.f32.mxu0 0.0
  %1539 = vmatmul.mubr.f32.gmra.mrb[0].mxu0 %v1179
  %v1540 = vpop.f32.mrb[0].mxu0
  %v1541 = vadd.f32 %v1020, %v1540
  %v1542 = vpop.f32.mrb[0].mxu0
  %1543 = vmatprep.mubr.f32.mxu0 0.0
  %1544 = vmatmul.mubr.f32.gmra.mrb[0].mxu0 %v1182
  %v1545 = vpop.f32.mrb[0].mxu0
  %v1546 = vadd.f32 %v1020, %v1545
  %v1547 = vpop.f32.mrb[0].mxu0
  %1548 = vmatprep.mubr.f32.mxu0 0.0
  %1549 = vmatmul.mubr.f32.gmra.mrb[0].mxu0 %v1185
  %v1550 = vpop.f32.mrb[0].mxu0
  %v1551 = vadd.f32 %v1020, %v1550
  %v1552 = vpop.f32.mrb[0].mxu0
  %1553 = vmatprep.mubr.f32.mxu0 0.0
  %1554 = vmatmul.mubr.f32.gmra.mrb[0].mxu0 %v1188
  %v1555 = vpop.f32.mrb[0].mxu0
  %v1556 = vadd.f32 %v1020, %v1555
  %v1557 = vpop.f32.mrb[0].mxu0
  %1558 = vmatprep.mubr.f32.mxu0 0.0
  %1559 = vmatmul.mubr.f32.gmra.mrb[0].mxu0 %v1191
  %v1560 = vpop.f32.mrb[0].mxu0
  %v1561 = vadd.f32 %v1020, %v1560
  %v1562 = vpop.f32.mrb[0].mxu0
  %1563 = vmatprep.mubr.f32.mxu0 0.0
  %1564 = vmatmul.mubr.f32.gmra.mrb[0].mxu0 %v1194
  %v1565 = vpop.f32.mrb[0].mxu0
  %v1566 = vadd.f32 %v1020, %v1565
  %v1567 = vpop.f32.mrb[0].mxu0
  %1568 = vmatprep.mubr.f32.mxu0 0.0
  %1569 = vmatmul.mubr.f32.gmra.mrb[0].mxu0 %v1197
  %v1570 = vpop.f32.mrb[0].mxu0
  %v1571 = vadd.f32 %v1020, %v1570
  %v1572 = vpop.f32.mrb[0].mxu0
  %1573 = vmatprep.mubr.f32.mxu0 0.0
  %1574 = vmatmul.mubr.f32.gmra.mrb[0].mxu0 %v1200
  %v1575 = vpop.f32.mrb[0].mxu0
  %v1576 = vadd.f32 %v1020, %v1575
  %v1577 = vpop.f32.mrb[0].mxu0
  %1578 = vmatprep.mubr.f32.mxu0 0.0
  %1579 = vmatmul.mubr.f32.gmra.mrb[0].mxu0 %v1203
  %v1580 = vpop.f32.mrb[0].mxu0
  %v1581 = vadd.f32 %v1020, %v1580
  %v1582 = vpop.f32.mrb[0].mxu0
  %1583 = vmatprep.mubr.f32.mxu0 0.0
  %1584 = vmatmul.mubr.f32.gmra.mrb[0].mxu0 %v1206
  %v1585 = vpop.f32.mrb[0].mxu0
  %v1586 = vadd.f32 %v1020, %v1585
  %v1587 = vpop.f32.mrb[0].mxu0
  %1588 = vmatprep.mubr.f32.mxu0 0.0
  %1589 = vmatmul.mubr.f32.gmra.mrb[0].mxu0 %v1209
  %v1590 = vpop.f32.mrb[0].mxu0
  %v1591 = vadd.f32 %v1020, %v1590
  %v1592 = vpop.f32.mrb[0].mxu0
  %1593 = vmatprep.mubr.f32.mxu0 0.0
  %1594 = vmatmul.mubr.f32.gmra.mrb[0].mxu0 %v1212
  %v1595 = vpop.f32.mrb[0].mxu0
  %v1596 = vadd.f32 %v1020, %v1595
  %v1597 = vpop.f32.mrb[0].mxu0
  %1598 = vdwg.mxu0
  %v1599 = vmul.f32 %v1281, %v230
  %v1600 = vmul.f32 %v1286, %v231
  %v1601 = vmul.f32 %v1291, %v232
  %v1602 = vmul.f32 %v1296, %v233
  %v1603 = vmul.f32 %v1301, %v234
  %v1604 = vmul.f32 %v1306, %v235
  %v1605 = vmul.f32 %v1311, %v236
  %v1606 = vmul.f32 %v1316, %v237
  %v1607 = vmul.f32 %v1321, %v238
  %v1608 = vmul.f32 %v1326, %v239
  %v1609 = vmul.f32 %v1331, %v240
  %v1610 = vmul.f32 %v1336, %v241
  %v1611 = vmul.f32 %v1341, %v242
  %v1612 = vmul.f32 %v1346, %v243
  %v1613 = vmul.f32 %v1351, %v244
  %v1614 = vmul.f32 %v1356, %v245
  %v1615 = vmul.f32 %v1361, %v246
  %v1616 = vmul.f32 %v1366, %v247
  %v1617 = vmul.f32 %v1371, %v248
  %v1618 = vmul.f32 %v1376, %v249
  %v1619 = vmul.f32 %v1381, %v250
  %v1620 = vmul.f32 %v1386, %v251
  %v1621 = vmul.f32 %v1391, %v252
  %v1622 = vmul.f32 %v1396, %v253
  %v1623 = vmul.f32 %v1401, %v254
  %v1624 = vmul.f32 %v1406, %v255
  %v1625 = vmul.f32 %v1411, %v256
  %v1626 = vmul.f32 %v1416, %v257
  %v1627 = vmul.f32 %v1421, %v258
  %v1628 = vmul.f32 %v1426, %v259
  %v1629 = vmul.f32 %v1431, %v260
  %v1630 = vmul.f32 %v1436, %v261
  %v1631 = vmul.f32 %v1441, %v262
  %v1632 = vmul.f32 %v1446, %v263
  %v1633 = vmul.f32 %v1451, %v264
  %v1634 = vmul.f32 %v1456, %v265
  %v1635 = vmul.f32 %v1461, %v266
  %v1636 = vmul.f32 %v1466, %v267
  %v1637 = vmul.f32 %v1471, %v268
  %v1638 = vmul.f32 %v1476, %v269
  %v1639 = vmul.f32 %v1481, %v270
  %v1640 = vmul.f32 %v1486, %v271
  %v1641 = vmul.f32 %v1491, %v272
  %v1642 = vmul.f32 %v1496, %v273
  %v1643 = vmul.f32 %v1501, %v274
  %v1644 = vmul.f32 %v1506, %v275
  %v1645 = vmul.f32 %v1511, %v276
  %v1646 = vmul.f32 %v1516, %v277
  %v1647 = vmul.f32 %v1521, %v278
  %v1648 = vmul.f32 %v1526, %v279
  %v1649 = vmul.f32 %v1531, %v280
  %v1650 = vmul.f32 %v1536, %v281
  %v1651 = vmul.f32 %v1541, %v282
  %v1652 = vmul.f32 %v1546, %v283
  %v1653 = vmul.f32 %v1551, %v284
  %v1654 = vmul.f32 %v1556, %v285
  %v1655 = vmul.f32 %v1561, %v286
  %v1656 = vmul.f32 %v1566, %v287
  %v1657 = vmul.f32 %v1571, %v288
  %v1658 = vmul.f32 %v1576, %v289
  %v1659 = vmul.f32 %v1581, %v290
  %v1660 = vmul.f32 %v1586, %v291
  %v1661 = vmul.f32 %v1591, %v292
  %v1662 = vmul.f32 %v1596, %v293
  %v1663 = vmul.f32 %v1281, 1.442695
  %v1664 = vpow.pop %v1663
  %v1665 = vmul.f32 %v1286, 1.442695
  %v1666 = vpow.pop %v1665
  %v1667 = vmul.f32 %v1291, 1.442695
  %v1668 = vpow.pop %v1667
  %v1669 = vmul.f32 %v1296, 1.442695
  %v1670 = vpow.pop %v1669
  %v1671 = vmul.f32 %v1301, 1.442695
  %v1672 = vpow.pop %v1671
  %v1673 = vmul.f32 %v1306, 1.442695
  %v1674 = vpow.pop %v1673
  %v1675 = vmul.f32 %v1311, 1.442695
  %v1676 = vpow.pop %v1675
  %v1677 = vmul.f32 %v1316, 1.442695
  %v1678 = vpow.pop %v1677
  %v1679 = vmul.f32 %v1321, 1.442695
  %v1680 = vpow.pop %v1679
  %v1681 = vmul.f32 %v1326, 1.442695
  %v1682 = vpow.pop %v1681
  %v1683 = vmul.f32 %v1331, 1.442695
  %v1684 = vpow.pop %v1683
  %v1685 = vmul.f32 %v1336, 1.442695
  %v1686 = vpow.pop %v1685
  %v1687 = vmul.f32 %v1341, 1.442695
  %v1688 = vpow.pop %v1687
  %v1689 = vmul.f32 %v1346, 1.442695
  %v1690 = vpow.pop %v1689
  %v1691 = vmul.f32 %v1351, 1.442695
  %v1692 = vpow.pop %v1691
  %v1693 = vmul.f32 %v1356, 1.442695
  %v1694 = vpow.pop %v1693
  %v1695 = vmul.f32 %v1361, 1.442695
  %v1696 = vpow.pop %v1695
  %v1697 = vmul.f32 %v1366, 1.442695
  %v1698 = vpow.pop %v1697
  %v1699 = vmul.f32 %v1371, 1.442695
  %v1700 = vpow.pop %v1699
  %v1701 = vmul.f32 %v1376, 1.442695
  %v1702 = vpow.pop %v1701
  %v1703 = vmul.f32 %v1381, 1.442695
  %v1704 = vpow.pop %v1703
  %v1705 = vmul.f32 %v1386, 1.442695
  %v1706 = vpow.pop %v1705
  %v1707 = vmul.f32 %v1391, 1.442695
  %v1708 = vpow.pop %v1707
  %v1709 = vmul.f32 %v1396, 1.442695
  %v1710 = vpow.pop %v1709
  %v1711 = vmul.f32 %v1401, 1.442695
  %v1712 = vpow.pop %v1711
  %v1713 = vmul.f32 %v1406, 1.442695
  %v1714 = vpow.pop %v1713
  %v1715 = vmul.f32 %v1411, 1.442695
  %v1716 = vpow.pop %v1715
  %v1717 = vmul.f32 %v1416, 1.442695
  %v1718 = vpow.pop %v1717
  %v1719 = vmul.f32 %v1421, 1.442695
  %v1720 = vpow.pop %v1719
  %v1721 = vmul.f32 %v1426, 1.442695
  %v1722 = vpow.pop %v1721
  %v1723 = vmul.f32 %v1431, 1.442695
  %v1724 = vpow.pop %v1723
  %v1725 = vmul.f32 %v1436, 1.442695
  %v1726 = vpow.pop %v1725
  %v1727 = vmul.f32 %v1441, 1.442695
  %v1728 = vpow.pop %v1727
  %v1729 = vmul.f32 %v1446, 1.442695
  %v1730 = vpow.pop %v1729
  %v1731 = vmul.f32 %v1451, 1.442695
  %v1732 = vpow.pop %v1731
  %v1733 = vmul.f32 %v1456, 1.442695
  %v1734 = vpow.pop %v1733
  %v1735 = vmul.f32 %v1461, 1.442695
  %v1736 = vpow.pop %v1735
  %v1737 = vmul.f32 %v1466, 1.442695
  %v1738 = vpow.pop %v1737
  %v1739 = vmul.f32 %v1471, 1.442695
  %v1740 = vpow.pop %v1739
  %v1741 = vmul.f32 %v1476, 1.442695
  %v1742 = vpow.pop %v1741
  %v1743 = vmul.f32 %v1481, 1.442695
  %v1744 = vpow.pop %v1743
  %v1745 = vmul.f32 %v1486, 1.442695
  %v1746 = vpow.pop %v1745
  %v1747 = vmul.f32 %v1491, 1.442695
  %v1748 = vpow.pop %v1747
  %v1749 = vmul.f32 %v1496, 1.442695
  %v1750 = vpow.pop %v1749
  %v1751 = vmul.f32 %v1501, 1.442695
  %v1752 = vpow.pop %v1751
  %v1753 = vmul.f32 %v1506, 1.442695
  %v1754 = vpow.pop %v1753
  %v1755 = vmul.f32 %v1511, 1.442695
  %v1756 = vpow.pop %v1755
  %v1757 = vmul.f32 %v1516, 1.442695
  %v1758 = vpow.pop %v1757
  %v1759 = vmul.f32 %v1521, 1.442695
  %v1760 = vpow.pop %v1759
  %v1761 = vmul.f32 %v1526, 1.442695
  %v1762 = vpow.pop %v1761
  %v1763 = vmul.f32 %v1531, 1.442695
  %v1764 = vpow.pop %v1763
  %v1765 = vmul.f32 %v1536, 1.442695
  %v1766 = vpow.pop %v1765
  %v1767 = vmul.f32 %v1541, 1.442695
  %v1768 = vpow.pop %v1767
  %v1769 = vmul.f32 %v1546, 1.442695
  %v1770 = vpow.pop %v1769
  %v1771 = vmul.f32 %v1551, 1.442695
  %v1772 = vpow.pop %v1771
  %v1773 = vmul.f32 %v1556, 1.442695
  %v1774 = vpow.pop %v1773
  %v1775 = vmul.f32 %v1561, 1.442695
  %v1776 = vpow.pop %v1775
  %v1777 = vmul.f32 %v1566, 1.442695
  %v1778 = vpow.pop %v1777
  %v1779 = vmul.f32 %v1571, 1.442695
  %v1780 = vpow.pop %v1779
  %v1781 = vmul.f32 %v1576, 1.442695
  %v1782 = vpow.pop %v1781
  %v1783 = vmul.f32 %v1581, 1.442695
  %v1784 = vpow.pop %v1783
  %v1785 = vmul.f32 %v1586, 1.442695
  %v1786 = vpow.pop %v1785
  %v1787 = vmul.f32 %v1591, 1.442695
  %v1788 = vpow.pop %v1787
  %v1789 = vmul.f32 %v1596, 1.442695
  %v1790 = vpow.pop %v1789
  %v1791 = vsub.f32 %v1664, 1.0
  %v1792 = vsub.f32 %v1666, 1.0
  %v1793 = vsub.f32 %v1668, 1.0
  %v1794 = vsub.f32 %v1670, 1.0
  %v1795 = vsub.f32 %v1672, 1.0
  %v1796 = vsub.f32 %v1674, 1.0
  %v1797 = vsub.f32 %v1676, 1.0
  %v1798 = vsub.f32 %v1678, 1.0
  %v1799 = vsub.f32 %v1680, 1.0
  %v1800 = vsub.f32 %v1682, 1.0
  %v1801 = vsub.f32 %v1684, 1.0
  %v1802 = vsub.f32 %v1686, 1.0
  %v1803 = vsub.f32 %v1688, 1.0
  %v1804 = vsub.f32 %v1690, 1.0
  %v1805 = vsub.f32 %v1692, 1.0
  %v1806 = vsub.f32 %v1694, 1.0
  %v1807 = vsub.f32 %v1696, 1.0
  %v1808 = vsub.f32 %v1698, 1.0
  %v1809 = vsub.f32 %v1700, 1.0
  %v1810 = vsub.f32 %v1702, 1.0
  %v1811 = vsub.f32 %v1704, 1.0
  %v1812 = vsub.f32 %v1706, 1.0
  %v1813 = vsub.f32 %v1708, 1.0
  %v1814 = vsub.f32 %v1710, 1.0
  %v1815 = vsub.f32 %v1712, 1.0
  %v1816 = vsub.f32 %v1714, 1.0
  %v1817 = vsub.f32 %v1716, 1.0
  %v1818 = vsub.f32 %v1718, 1.0
  %v1819 = vsub.f32 %v1720, 1.0
  %v1820 = vsub.f32 %v1722, 1.0
  %v1821 = vsub.f32 %v1724, 1.0
  %v1822 = vsub.f32 %v1726, 1.0
  %v1823 = vsub.f32 %v1728, 1.0
  %v1824 = vsub.f32 %v1730, 1.0
  %v1825 = vsub.f32 %v1732, 1.0
  %v1826 = vsub.f32 %v1734, 1.0
  %v1827 = vsub.f32 %v1736, 1.0
  %v1828 = vsub.f32 %v1738, 1.0
  %v1829 = vsub.f32 %v1740, 1.0
  %v1830 = vsub.f32 %v1742, 1.0
  %v1831 = vsub.f32 %v1744, 1.0
  %v1832 = vsub.f32 %v1746, 1.0
  %v1833 = vsub.f32 %v1748, 1.0
  %v1834 = vsub.f32 %v1750, 1.0
  %v1835 = vsub.f32 %v1752, 1.0
  %v1836 = vsub.f32 %v1754, 1.0
  %v1837 = vsub.f32 %v1756, 1.0
  %v1838 = vsub.f32 %v1758, 1.0
  %v1839 = vsub.f32 %v1760, 1.0
  %v1840 = vsub.f32 %v1762, 1.0
  %v1841 = vsub.f32 %v1764, 1.0
  %v1842 = vsub.f32 %v1766, 1.0
  %v1843 = vsub.f32 %v1768, 1.0
  %v1844 = vsub.f32 %v1770, 1.0
  %v1845 = vsub.f32 %v1772, 1.0
  %v1846 = vsub.f32 %v1774, 1.0
  %v1847 = vsub.f32 %v1776, 1.0
  %v1848 = vsub.f32 %v1778, 1.0
  %v1849 = vsub.f32 %v1780, 1.0
  %v1850 = vsub.f32 %v1782, 1.0
  %v1851 = vsub.f32 %v1784, 1.0
  %v1852 = vsub.f32 %v1786, 1.0
  %v1853 = vsub.f32 %v1788, 1.0
  %v1854 = vsub.f32 %v1790, 1.0
  %v1855 = vround.ne.pseudo %v1791
  %v1856 = vround.ne.pseudo %v1792
  %v1857 = vround.ne.pseudo %v1793
  %v1858 = vround.ne.pseudo %v1794
  %v1859 = vround.ne.pseudo %v1795
  %v1860 = vround.ne.pseudo %v1796
  %v1861 = vround.ne.pseudo %v1797
  %v1862 = vround.ne.pseudo %v1798
  %v1863 = vround.ne.pseudo %v1799
  %v1864 = vround.ne.pseudo %v1800
  %v1865 = vround.ne.pseudo %v1801
  %v1866 = vround.ne.pseudo %v1802
  %v1867 = vround.ne.pseudo %v1803
  %v1868 = vround.ne.pseudo %v1804
  %v1869 = vround.ne.pseudo %v1805
  %v1870 = vround.ne.pseudo %v1806
  %v1871 = vround.ne.pseudo %v1807
  %v1872 = vround.ne.pseudo %v1808
  %v1873 = vround.ne.pseudo %v1809
  %v1874 = vround.ne.pseudo %v1810
  %v1875 = vround.ne.pseudo %v1811
  %v1876 = vround.ne.pseudo %v1812
  %v1877 = vround.ne.pseudo %v1813
  %v1878 = vround.ne.pseudo %v1814
  %v1879 = vround.ne.pseudo %v1815
  %v1880 = vround.ne.pseudo %v1816
  %v1881 = vround.ne.pseudo %v1817
  %v1882 = vround.ne.pseudo %v1818
  %v1883 = vround.ne.pseudo %v1819
  %v1884 = vround.ne.pseudo %v1820
  %v1885 = vround.ne.pseudo %v1821
  %v1886 = vround.ne.pseudo %v1822
  %v1887 = vround.ne.pseudo %v1823
  %v1888 = vround.ne.pseudo %v1824
  %v1889 = vround.ne.pseudo %v1825
  %v1890 = vround.ne.pseudo %v1826
  %v1891 = vround.ne.pseudo %v1827
  %v1892 = vround.ne.pseudo %v1828
  %v1893 = vround.ne.pseudo %v1829
  %v1894 = vround.ne.pseudo %v1830
  %v1895 = vround.ne.pseudo %v1831
  %v1896 = vround.ne.pseudo %v1832
  %v1897 = vround.ne.pseudo %v1833
  %v1898 = vround.ne.pseudo %v1834
  %v1899 = vround.ne.pseudo %v1835
  %v1900 = vround.ne.pseudo %v1836
  %v1901 = vround.ne.pseudo %v1837
  %v1902 = vround.ne.pseudo %v1838
  %v1903 = vround.ne.pseudo %v1839
  %v1904 = vround.ne.pseudo %v1840
  %v1905 = vround.ne.pseudo %v1841
  %v1906 = vround.ne.pseudo %v1842
  %v1907 = vround.ne.pseudo %v1843
  %v1908 = vround.ne.pseudo %v1844
  %v1909 = vround.ne.pseudo %v1845
  %v1910 = vround.ne.pseudo %v1846
  %v1911 = vround.ne.pseudo %v1847
  %v1912 = vround.ne.pseudo %v1848
  %v1913 = vround.ne.pseudo %v1849
  %v1914 = vround.ne.pseudo %v1850
  %v1915 = vround.ne.pseudo %v1851
  %v1916 = vround.ne.pseudo %v1852
  %v1917 = vround.ne.pseudo %v1853
  %v1918 = vround.ne.pseudo %v1854
  %v1919 = vmax.f32 %v1855, 0.0
  %v1920 = vmax.f32 %v1856, 0.0
  %v1921 = vmax.f32 %v1857, 0.0
  %v1922 = vmax.f32 %v1858, 0.0
  %v1923 = vmax.f32 %v1859, 0.0
  %v1924 = vmax.f32 %v1860, 0.0
  %v1925 = vmax.f32 %v1861, 0.0
  %v1926 = vmax.f32 %v1862, 0.0
  %v1927 = vmax.f32 %v1863, 0.0
  %v1928 = vmax.f32 %v1864, 0.0
  %v1929 = vmax.f32 %v1865, 0.0
  %v1930 = vmax.f32 %v1866, 0.0
  %v1931 = vmax.f32 %v1867, 0.0
  %v1932 = vmax.f32 %v1868, 0.0
  %v1933 = vmax.f32 %v1869, 0.0
  %v1934 = vmax.f32 %v1870, 0.0
  %v1935 = vmax.f32 %v1871, 0.0
  %v1936 = vmax.f32 %v1872, 0.0
  %v1937 = vmax.f32 %v1873, 0.0
  %v1938 = vmax.f32 %v1874, 0.0
  %v1939 = vmax.f32 %v1875, 0.0
  %v1940 = vmax.f32 %v1876, 0.0
  %v1941 = vmax.f32 %v1877, 0.0
  %v1942 = vmax.f32 %v1878, 0.0
  %v1943 = vmax.f32 %v1879, 0.0
  %v1944 = vmax.f32 %v1880, 0.0
  %v1945 = vmax.f32 %v1881, 0.0
  %v1946 = vmax.f32 %v1882, 0.0
  %v1947 = vmax.f32 %v1883, 0.0
  %v1948 = vmax.f32 %v1884, 0.0
  %v1949 = vmax.f32 %v1885, 0.0
  %v1950 = vmax.f32 %v1886, 0.0
  %v1951 = vmax.f32 %v1887, 0.0
  %v1952 = vmax.f32 %v1888, 0.0
  %v1953 = vmax.f32 %v1889, 0.0
  %v1954 = vmax.f32 %v1890, 0.0
  %v1955 = vmax.f32 %v1891, 0.0
  %v1956 = vmax.f32 %v1892, 0.0
  %v1957 = vmax.f32 %v1893, 0.0
  %v1958 = vmax.f32 %v1894, 0.0
  %v1959 = vmax.f32 %v1895, 0.0
  %v1960 = vmax.f32 %v1896, 0.0
  %v1961 = vmax.f32 %v1897, 0.0
  %v1962 = vmax.f32 %v1898, 0.0
  %v1963 = vmax.f32 %v1899, 0.0
  %v1964 = vmax.f32 %v1900, 0.0
  %v1965 = vmax.f32 %v1901, 0.0
  %v1966 = vmax.f32 %v1902, 0.0
  %v1967 = vmax.f32 %v1903, 0.0
  %v1968 = vmax.f32 %v1904, 0.0
  %v1969 = vmax.f32 %v1905, 0.0
  %v1970 = vmax.f32 %v1906, 0.0
  %v1971 = vmax.f32 %v1907, 0.0
  %v1972 = vmax.f32 %v1908, 0.0
  %v1973 = vmax.f32 %v1909, 0.0
  %v1974 = vmax.f32 %v1910, 0.0
  %v1975 = vmax.f32 %v1911, 0.0
  %v1976 = vmax.f32 %v1912, 0.0
  %v1977 = vmax.f32 %v1913, 0.0
  %v1978 = vmax.f32 %v1914, 0.0
  %v1979 = vmax.f32 %v1915, 0.0
  %v1980 = vmax.f32 %v1916, 0.0
  %v1981 = vmax.f32 %v1917, 0.0
  %v1982 = vmax.f32 %v1918, 0.0
  %v1983 = vmul.f32 %v1919, %v230
  %v1984 = vmul.f32 %v1920, %v231
  %v1985 = vmul.f32 %v1921, %v232
  %v1986 = vmul.f32 %v1922, %v233
  %v1987 = vmul.f32 %v1923, %v234
  %v1988 = vmul.f32 %v1924, %v235
  %v1989 = vmul.f32 %v1925, %v236
  %v1990 = vmul.f32 %v1926, %v237
  %v1991 = vmul.f32 %v1927, %v238
  %v1992 = vmul.f32 %v1928, %v239
  %v1993 = vmul.f32 %v1929, %v240
  %v1994 = vmul.f32 %v1930, %v241
  %v1995 = vmul.f32 %v1931, %v242
  %v1996 = vmul.f32 %v1932, %v243
  %v1997 = vmul.f32 %v1933, %v244
  %v1998 = vmul.f32 %v1934, %v245
  %v1999 = vmul.f32 %v1935, %v246
  %v2000 = vmul.f32 %v1936, %v247
  %v2001 = vmul.f32 %v1937, %v248
  %v2002 = vmul.f32 %v1938, %v249
  %v2003 = vmul.f32 %v1939, %v250
  %v2004 = vmul.f32 %v1940, %v251
  %v2005 = vmul.f32 %v1941, %v252
  %v2006 = vmul.f32 %v1942, %v253
  %v2007 = vmul.f32 %v1943, %v254
  %v2008 = vmul.f32 %v1944, %v255
  %v2009 = vmul.f32 %v1945, %v256
  %v2010 = vmul.f32 %v1946, %v257
  %v2011 = vmul.f32 %v1947, %v258
  %v2012 = vmul.f32 %v1948, %v259
  %v2013 = vmul.f32 %v1949, %v260
  %v2014 = vmul.f32 %v1950, %v261
  %v2015 = vmul.f32 %v1951, %v262
  %v2016 = vmul.f32 %v1952, %v263
  %v2017 = vmul.f32 %v1953, %v264
  %v2018 = vmul.f32 %v1954, %v265
  %v2019 = vmul.f32 %v1955, %v266
  %v2020 = vmul.f32 %v1956, %v267
  %v2021 = vmul.f32 %v1957, %v268
  %v2022 = vmul.f32 %v1958, %v269
  %v2023 = vmul.f32 %v1959, %v270
  %v2024 = vmul.f32 %v1960, %v271
  %v2025 = vmul.f32 %v1961, %v272
  %v2026 = vmul.f32 %v1962, %v273
  %v2027 = vmul.f32 %v1963, %v274
  %v2028 = vmul.f32 %v1964, %v275
  %v2029 = vmul.f32 %v1965, %v276
  %v2030 = vmul.f32 %v1966, %v277
  %v2031 = vmul.f32 %v1967, %v278
  %v2032 = vmul.f32 %v1968, %v279
  %v2033 = vmul.f32 %v1969, %v280
  %v2034 = vmul.f32 %v1970, %v281
  %v2035 = vmul.f32 %v1971, %v282
  %v2036 = vmul.f32 %v1972, %v283
  %v2037 = vmul.f32 %v1973, %v284
  %v2038 = vmul.f32 %v1974, %v285
  %v2039 = vmul.f32 %v1975, %v286
  %v2040 = vmul.f32 %v1976, %v287
  %v2041 = vmul.f32 %v1977, %v288
  %v2042 = vmul.f32 %v1978, %v289
  %v2043 = vmul.f32 %v1979, %v290
  %v2044 = vmul.f32 %v1980, %v291
  %v2045 = vmul.f32 %v1981, %v292
  %v2046 = vmul.f32 %v1982, %v293
  %2111 = vrot.lane.b32.xlu0 %v1983, 126
  %v2112 = vpop.permute.xlu0 %2111
  %2113 = vrot.lane.b32.xlu0 %v1984, 126
  %v2114 = vpop.permute.xlu0 %2113
  %2115 = vrot.lane.b32.xlu0 %v1985, 126
  %v2116 = vpop.permute.xlu0 %2115
  %2117 = vrot.lane.b32.xlu0 %v1986, 126
  %v2118 = vpop.permute.xlu0 %2117
  %2119 = vrot.lane.b32.xlu0 %v1987, 126
  %v2120 = vpop.permute.xlu0 %2119
  %2121 = vrot.lane.b32.xlu0 %v1988, 126
  %v2122 = vpop.permute.xlu0 %2121
  %2123 = vrot.lane.b32.xlu0 %v1989, 126
  %v2124 = vpop.permute.xlu0 %2123
  %2125 = vrot.lane.b32.xlu0 %v1990, 126
  %v2126 = vpop.permute.xlu0 %2125
  %2127 = vrot.lane.b32.xlu0 %v1991, 126
  %v2128 = vpop.permute.xlu0 %2127
  %2129 = vrot.lane.b32.xlu0 %v1992, 126
  %v2130 = vpop.permute.xlu0 %2129
  %2131 = vrot.lane.b32.xlu0 %v1993, 126
  %v2132 = vpop.permute.xlu0 %2131
  %2133 = vrot.lane.b32.xlu0 %v1994, 126
  %v2134 = vpop.permute.xlu0 %2133
  %2135 = vrot.lane.b32.xlu0 %v1995, 126
  %v2136 = vpop.permute.xlu0 %2135
  %2137 = vrot.lane.b32.xlu0 %v1996, 126
  %v2138 = vpop.permute.xlu0 %2137
  %2139 = vrot.lane.b32.xlu0 %v1997, 126
  %v2140 = vpop.permute.xlu0 %2139
  %2141 = vrot.lane.b32.xlu0 %v1998, 126
  %v2142 = vpop.permute.xlu0 %2141
  %2143 = vrot.lane.b32.xlu0 %v1999, 126
  %v2144 = vpop.permute.xlu0 %2143
  %2145 = vrot.lane.b32.xlu0 %v2000, 126
  %v2146 = vpop.permute.xlu0 %2145
  %2147 = vrot.lane.b32.xlu0 %v2001, 126
  %v2148 = vpop.permute.xlu0 %2147
  %2149 = vrot.lane.b32.xlu0 %v2002, 126
  %v2150 = vpop.permute.xlu0 %2149
  %2151 = vrot.lane.b32.xlu0 %v2003, 126
  %v2152 = vpop.permute.xlu0 %2151
  %2153 = vrot.lane.b32.xlu0 %v2004, 126
  %v2154 = vpop.permute.xlu0 %2153
  %2155 = vrot.lane.b32.xlu0 %v2005, 126
  %v2156 = vpop.permute.xlu0 %2155
  %2157 = vrot.lane.b32.xlu0 %v2006, 126
  %v2158 = vpop.permute.xlu0 %2157
  %2159 = vrot.lane.b32.xlu0 %v2007, 126
  %v2160 = vpop.permute.xlu0 %2159
  %2161 = vrot.lane.b32.xlu0 %v2008, 126
  %v2162 = vpop.permute.xlu0 %2161
  %2163 = vrot.lane.b32.xlu0 %v2009, 126
  %v2164 = vpop.permute.xlu0 %2163
  %2165 = vrot.lane.b32.xlu0 %v2010, 126
  %v2166 = vpop.permute.xlu0 %2165
  %2167 = vrot.lane.b32.xlu0 %v2011, 126
  %v2168 = vpop.permute.xlu0 %2167
  %2169 = vrot.lane.b32.xlu0 %v2012, 126
  %v2170 = vpop.permute.xlu0 %2169
  %2171 = vrot.lane.b32.xlu0 %v2013, 126
  %v2172 = vpop.permute.xlu0 %2171
  %2173 = vrot.lane.b32.xlu0 %v2014, 126
  %v2174 = vpop.permute.xlu0 %2173
  %2175 = vrot.lane.b32.xlu0 %v2015, 126
  %v2176 = vpop.permute.xlu0 %2175
  %2177 = vrot.lane.b32.xlu0 %v2016, 126
  %v2178 = vpop.permute.xlu0 %2177
  %2179 = vrot.lane.b32.xlu0 %v2017, 126
  %v2180 = vpop.permute.xlu0 %2179
  %2181 = vrot.lane.b32.xlu0 %v2018, 126
  %v2182 = vpop.permute.xlu0 %2181
  %2183 = vrot.lane.b32.xlu0 %v2019, 126
  %v2184 = vpop.permute.xlu0 %2183
  %2185 = vrot.lane.b32.xlu0 %v2020, 126
  %v2186 = vpop.permute.xlu0 %2185
  %2187 = vrot.lane.b32.xlu0 %v2021, 126
  %v2188 = vpop.permute.xlu0 %2187
  %2189 = vrot.lane.b32.xlu0 %v2022, 126
  %v2190 = vpop.permute.xlu0 %2189
  %2191 = vrot.lane.b32.xlu0 %v2023, 126
  %v2192 = vpop.permute.xlu0 %2191
  %2193 = vrot.lane.b32.xlu0 %v2024, 126
  %v2194 = vpop.permute.xlu0 %2193
  %2195 = vrot.lane.b32.xlu0 %v2025, 126
  %v2196 = vpop.permute.xlu0 %2195
  %2197 = vrot.lane.b32.xlu0 %v2026, 126
  %v2198 = vpop.permute.xlu0 %2197
  %2199 = vrot.lane.b32.xlu0 %v2027, 126
  %v2200 = vpop.permute.xlu0 %2199
  %2201 = vrot.lane.b32.xlu0 %v2028, 126
  %v2202 = vpop.permute.xlu0 %2201
  %2203 = vrot.lane.b32.xlu0 %v2029, 126
  %v2204 = vpop.permute.xlu0 %2203
  %2205 = vrot.lane.b32.xlu0 %v2030, 126
  %v2206 = vpop.permute.xlu0 %2205
  %2207 = vrot.lane.b32.xlu0 %v2031, 126
  %v2208 = vpop.permute.xlu0 %2207
  %2209 = vrot.lane.b32.xlu0 %v2032, 126
  %v2210 = vpop.permute.xlu0 %2209
  %2211 = vrot.lane.b32.xlu0 %v2033, 126
  %v2212 = vpop.permute.xlu0 %2211
  %2213 = vrot.lane.b32.xlu0 %v2034, 126
  %v2214 = vpop.permute.xlu0 %2213
  %2215 = vrot.lane.b32.xlu0 %v2035, 126
  %v2216 = vpop.permute.xlu0 %2215
  %2217 = vrot.lane.b32.xlu0 %v2036, 126
  %v2218 = vpop.permute.xlu0 %2217
  %2219 = vrot.lane.b32.xlu0 %v2037, 126
  %v2220 = vpop.permute.xlu0 %2219
  %2221 = vrot.lane.b32.xlu0 %v2038, 126
  %v2222 = vpop.permute.xlu0 %2221
  %2223 = vrot.lane.b32.xlu0 %v2039, 126
  %v2224 = vpop.permute.xlu0 %2223
  %2225 = vrot.lane.b32.xlu0 %v2040, 126
  %v2226 = vpop.permute.xlu0 %2225
  %2227 = vrot.lane.b32.xlu0 %v2041, 126
  %v2228 = vpop.permute.xlu0 %2227
  %2229 = vrot.lane.b32.xlu0 %v2042, 126
  %v2230 = vpop.permute.xlu0 %2229
  %2231 = vrot.lane.b32.xlu0 %v2043, 126
  %v2232 = vpop.permute.xlu0 %2231
  %2233 = vrot.lane.b32.xlu0 %v2044, 126
  %v2234 = vpop.permute.xlu0 %2233
  %2235 = vrot.lane.b32.xlu0 %v2045, 126
  %v2236 = vpop.permute.xlu0 %2235
  %2237 = vrot.lane.b32.xlu0 %v2046, 126
  %v2238 = vpop.permute.xlu0 %2237
  %vm2303 = vcmask 7168
  %2304 = vst.msk [vmem:[%s10] sm:$0xff] %vm2303, %v2112
  %2305 = vst.msk [vmem:[%s10 + $0x8] sm:$0xff] %vm2303, %v2114
  %2306 = vst.msk [vmem:[%s10 + $0x10] sm:$0xff] %vm2303, %v2116
  %2307 = vst.msk [vmem:[%s10 + $0x18] sm:$0xff] %vm2303, %v2118
  %2308 = vst.msk [vmem:[%s10 + $0x20] sm:$0xff] %vm2303, %v2120
  %2309 = vst.msk [vmem:[%s10 + $0x28] sm:$0xff] %vm2303, %v2122
  %2310 = vst.msk [vmem:[%s10 + $0x30] sm:$0xff] %vm2303, %v2124
  %2311 = vst.msk [vmem:[%s10 + $0x38] sm:$0xff] %vm2303, %v2126
  %2312 = vst.msk [vmem:[%s10 + $0x40] sm:$0xff] %vm2303, %v2128
  %2313 = vst.msk [vmem:[%s10 + $0x48] sm:$0xff] %vm2303, %v2130
  %2314 = vst.msk [vmem:[%s10 + $0x50] sm:$0xff] %vm2303, %v2132
  %2315 = vst.msk [vmem:[%s10 + $0x58] sm:$0xff] %vm2303, %v2134
  %2316 = vst.msk [vmem:[%s10 + $0x60] sm:$0xff] %vm2303, %v2136
  %2317 = vst.msk [vmem:[%s10 + $0x68] sm:$0xff] %vm2303, %v2138
  %2318 = vst.msk [vmem:[%s10 + $0x70] sm:$0xff] %vm2303, %v2140
  %2319 = vst.msk [vmem:[%s10 + $0x78] sm:$0xff] %vm2303, %v2142
  %2320 = vst.msk [vmem:[%s10 + $0x80] sm:$0xff] %vm2303, %v2144
  %2321 = vst.msk [vmem:[%s10 + $0x88] sm:$0xff] %vm2303, %v2146
  %2322 = vst.msk [vmem:[%s10 + $0x90] sm:$0xff] %vm2303, %v2148
  %2323 = vst.msk [vmem:[%s10 + $0x98] sm:$0xff] %vm2303, %v2150
  %2324 = vst.msk [vmem:[%s10 + $0xa0] sm:$0xff] %vm2303, %v2152
  %2325 = vst.msk [vmem:[%s10 + $0xa8] sm:$0xff] %vm2303, %v2154
  %2326 = vst.msk [vmem:[%s10 + $0xb0] sm:$0xff] %vm2303, %v2156
  %2327 = vst.msk [vmem:[%s10 + $0xb8] sm:$0xff] %vm2303, %v2158
  %2328 = vst.msk [vmem:[%s10 + $0xc0] sm:$0xff] %vm2303, %v2160
  %2329 = vst.msk [vmem:[%s10 + $0xc8] sm:$0xff] %vm2303, %v2162
  %2330 = vst.msk [vmem:[%s10 + $0xd0] sm:$0xff] %vm2303, %v2164
  %2331 = vst.msk [vmem:[%s10 + $0xd8] sm:$0xff] %vm2303, %v2166
  %2332 = vst.msk [vmem:[%s10 + $0xe0] sm:$0xff] %vm2303, %v2168
  %2333 = vst.msk [vmem:[%s10 + $0xe8] sm:$0xff] %vm2303, %v2170
  %2334 = vst.msk [vmem:[%s10 + $0xf0] sm:$0xff] %vm2303, %v2172
  %2335 = vst.msk [vmem:[%s10 + $0xf8] sm:$0xff] %vm2303, %v2174
  %2336 = vst.msk [vmem:[%s10 + $0x100] sm:$0xff] %vm2303, %v2176
  %2337 = vst.msk [vmem:[%s10 + $0x108] sm:$0xff] %vm2303, %v2178
  %2338 = vst.msk [vmem:[%s10 + $0x110] sm:$0xff] %vm2303, %v2180
  %2339 = vst.msk [vmem:[%s10 + $0x118] sm:$0xff] %vm2303, %v2182
  %2340 = vst.msk [vmem:[%s10 + $0x120] sm:$0xff] %vm2303, %v2184
  %2341 = vst.msk [vmem:[%s10 + $0x128] sm:$0xff] %vm2303, %v2186
  %2342 = vst.msk [vmem:[%s10 + $0x130] sm:$0xff] %vm2303, %v2188
  %2343 = vst.msk [vmem:[%s10 + $0x138] sm:$0xff] %vm2303, %v2190
  %2344 = vst.msk [vmem:[%s10 + $0x140] sm:$0xff] %vm2303, %v2192
  %2345 = vst.msk [vmem:[%s10 + $0x148] sm:$0xff] %vm2303, %v2194
  %2346 = vst.msk [vmem:[%s10 + $0x150] sm:$0xff] %vm2303, %v2196
  %2347 = vst.msk [vmem:[%s10 + $0x158] sm:$0xff] %vm2303, %v2198
  %2348 = vst.msk [vmem:[%s10 + $0x160] sm:$0xff] %vm2303, %v2200
  %2349 = vst.msk [vmem:[%s10 + $0x168] sm:$0xff] %vm2303, %v2202
  %2350 = vst.msk [vmem:[%s10 + $0x170] sm:$0xff] %vm2303, %v2204
  %2351 = vst.msk [vmem:[%s10 + $0x178] sm:$0xff] %vm2303, %v2206
  %2352 = vst.msk [vmem:[%s10 + $0x180] sm:$0xff] %vm2303, %v2208
  %2353 = vst.msk [vmem:[%s10 + $0x188] sm:$0xff] %vm2303, %v2210
  %2354 = vst.msk [vmem:[%s10 + $0x190] sm:$0xff] %vm2303, %v2212
  %2355 = vst.msk [vmem:[%s10 + $0x198] sm:$0xff] %vm2303, %v2214
  %2356 = vst.msk [vmem:[%s10 + $0x1a0] sm:$0xff] %vm2303, %v2216
  %2357 = vst.msk [vmem:[%s10 + $0x1a8] sm:$0xff] %vm2303, %v2218
  %2358 = vst.msk [vmem:[%s10 + $0x1b0] sm:$0xff] %vm2303, %v2220
  %2359 = vst.msk [vmem:[%s10 + $0x1b8] sm:$0xff] %vm2303, %v2222
  %2360 = vst.msk [vmem:[%s10 + $0x1c0] sm:$0xff] %vm2303, %v2224
  %2361 = vst.msk [vmem:[%s10 + $0x1c8] sm:$0xff] %vm2303, %v2226
  %2362 = vst.msk [vmem:[%s10 + $0x1d0] sm:$0xff] %vm2303, %v2228
  %2363 = vst.msk [vmem:[%s10 + $0x1d8] sm:$0xff] %vm2303, %v2230
  %2364 = vst.msk [vmem:[%s10 + $0x1e0] sm:$0xff] %vm2303, %v2232
  %2365 = vst.msk [vmem:[%s10 + $0x1e8] sm:$0xff] %vm2303, %v2234
  %2366 = vst.msk [vmem:[%s10 + $0x1f0] sm:$0xff] %vm2303, %v2236
  %2367 = vst.msk [vmem:[%s10 + $0x1f8] sm:$0xff] %vm2303, %v2238
  %v2368 = vld [vmem:[%s6] sm:$0x3f]
  %2370 = vset.pattern.permute.xlu0 0
  %2371 = vperm.xlu0 %2370, %v1599
  %v2372 = vpop.permute.xlu0 %2371
  %2375 = vset.pattern.permute.xlu0 0
  %2376 = vperm.xlu0 %2375, %v1600
  %v2377 = vpop.permute.xlu0 %2376
  %2380 = vset.pattern.permute.xlu0 0
  %2381 = vperm.xlu0 %2380, %v1601
  %v2382 = vpop.permute.xlu0 %2381
  %2385 = vset.pattern.permute.xlu0 0
  %2386 = vperm.xlu0 %2385, %v1602
  %v2387 = vpop.permute.xlu0 %2386
  %2390 = vset.pattern.permute.xlu0 0
  %2391 = vperm.xlu0 %2390, %v1603
  %v2392 = vpop.permute.xlu0 %2391
  %2395 = vset.pattern.permute.xlu0 0
  %2396 = vperm.xlu0 %2395, %v1604
  %v2397 = vpop.permute.xlu0 %2396
  %2400 = vset.pattern.permute.xlu0 0
  %2401 = vperm.xlu0 %2400, %v1605
  %v2402 = vpop.permute.xlu0 %2401
  %2405 = vset.pattern.permute.xlu0 0
  %2406 = vperm.xlu0 %2405, %v1606
  %v2407 = vpop.permute.xlu0 %2406
  %2410 = vset.pattern.permute.xlu0 0
  %2411 = vperm.xlu0 %2410, %v1607
  %v2412 = vpop.permute.xlu0 %2411
  %2415 = vset.pattern.permute.xlu0 0
  %2416 = vperm.xlu0 %2415, %v1608
  %v2417 = vpop.permute.xlu0 %2416
  %2420 = vset.pattern.permute.xlu0 0
  %2421 = vperm.xlu0 %2420, %v1609
  %v2422 = vpop.permute.xlu0 %2421
  %2425 = vset.pattern.permute.xlu0 0
  %2426 = vperm.xlu0 %2425, %v1610
  %v2427 = vpop.permute.xlu0 %2426
  %2430 = vset.pattern.permute.xlu0 0
  %2431 = vperm.xlu0 %2430, %v1611
  %v2432 = vpop.permute.xlu0 %2431
  %2435 = vset.pattern.permute.xlu0 0
  %2436 = vperm.xlu0 %2435, %v1612
  %v2437 = vpop.permute.xlu0 %2436
  %2440 = vset.pattern.permute.xlu0 0
  %2441 = vperm.xlu0 %2440, %v1613
  %v2442 = vpop.permute.xlu0 %2441
  %2445 = vset.pattern.permute.xlu0 0
  %2446 = vperm.xlu0 %2445, %v1614
  %v2447 = vpop.permute.xlu0 %2446
  %2450 = vset.pattern.permute.xlu0 0
  %2451 = vperm.xlu0 %2450, %v1615
  %v2452 = vpop.permute.xlu0 %2451
  %2455 = vset.pattern.permute.xlu0 0
  %2456 = vperm.xlu0 %2455, %v1616
  %v2457 = vpop.permute.xlu0 %2456
  %2460 = vset.pattern.permute.xlu0 0
  %2461 = vperm.xlu0 %2460, %v1617
  %v2462 = vpop.permute.xlu0 %2461
  %2465 = vset.pattern.permute.xlu0 0
  %2466 = vperm.xlu0 %2465, %v1618
  %v2467 = vpop.permute.xlu0 %2466
  %2470 = vset.pattern.permute.xlu0 0
  %2471 = vperm.xlu0 %2470, %v1619
  %v2472 = vpop.permute.xlu0 %2471
  %2475 = vset.pattern.permute.xlu0 0
  %2476 = vperm.xlu0 %2475, %v1620
  %v2477 = vpop.permute.xlu0 %2476
  %2480 = vset.pattern.permute.xlu0 0
  %2481 = vperm.xlu0 %2480, %v1621
  %v2482 = vpop.permute.xlu0 %2481
  %2485 = vset.pattern.permute.xlu0 0
  %2486 = vperm.xlu0 %2485, %v1622
  %v2487 = vpop.permute.xlu0 %2486
  %2490 = vset.pattern.permute.xlu0 0
  %2491 = vperm.xlu0 %2490, %v1623
  %v2492 = vpop.permute.xlu0 %2491
  %2495 = vset.pattern.permute.xlu0 0
  %2496 = vperm.xlu0 %2495, %v1624
  %v2497 = vpop.permute.xlu0 %2496
  %2500 = vset.pattern.permute.xlu0 0
  %2501 = vperm.xlu0 %2500, %v1625
  %v2502 = vpop.permute.xlu0 %2501
  %2505 = vset.pattern.permute.xlu0 0
  %2506 = vperm.xlu0 %2505, %v1626
  %v2507 = vpop.permute.xlu0 %2506
  %2510 = vset.pattern.permute.xlu0 0
  %2511 = vperm.xlu0 %2510, %v1627
  %v2512 = vpop.permute.xlu0 %2511
  %2515 = vset.pattern.permute.xlu0 0
  %2516 = vperm.xlu0 %2515, %v1628
  %v2517 = vpop.permute.xlu0 %2516
  %2520 = vset.pattern.permute.xlu0 0
  %2521 = vperm.xlu0 %2520, %v1629
  %v2522 = vpop.permute.xlu0 %2521
  %2525 = vset.pattern.permute.xlu0 0
  %2526 = vperm.xlu0 %2525, %v1630
  %v2527 = vpop.permute.xlu0 %2526
  %2530 = vset.pattern.permute.xlu0 0
  %2531 = vperm.xlu0 %2530, %v1631
  %v2532 = vpop.permute.xlu0 %2531
  %2535 = vset.pattern.permute.xlu0 0
  %2536 = vperm.xlu0 %2535, %v1632
  %v2537 = vpop.permute.xlu0 %2536
  %2540 = vset.pattern.permute.xlu0 0
  %2541 = vperm.xlu0 %2540, %v1633
  %v2542 = vpop.permute.xlu0 %2541
  %2545 = vset.pattern.permute.xlu0 0
  %2546 = vperm.xlu0 %2545, %v1634
  %v2547 = vpop.permute.xlu0 %2546
  %2550 = vset.pattern.permute.xlu0 0
  %2551 = vperm.xlu0 %2550, %v1635
  %v2552 = vpop.permute.xlu0 %2551
  %2555 = vset.pattern.permute.xlu0 0
  %2556 = vperm.xlu0 %2555, %v1636
  %v2557 = vpop.permute.xlu0 %2556
  %2560 = vset.pattern.permute.xlu0 0
  %2561 = vperm.xlu0 %2560, %v1637
  %v2562 = vpop.permute.xlu0 %2561
  %2565 = vset.pattern.permute.xlu0 0
  %2566 = vperm.xlu0 %2565, %v1638
  %v2567 = vpop.permute.xlu0 %2566
  %2570 = vset.pattern.permute.xlu0 0
  %2571 = vperm.xlu0 %2570, %v1639
  %v2572 = vpop.permute.xlu0 %2571
  %2575 = vset.pattern.permute.xlu0 0
  %2576 = vperm.xlu0 %2575, %v1640
  %v2577 = vpop.permute.xlu0 %2576
  %2580 = vset.pattern.permute.xlu0 0
  %2581 = vperm.xlu0 %2580, %v1641
  %v2582 = vpop.permute.xlu0 %2581
  %2585 = vset.pattern.permute.xlu0 0
  %2586 = vperm.xlu0 %2585, %v1642
  %v2587 = vpop.permute.xlu0 %2586
  %2590 = vset.pattern.permute.xlu0 0
  %2591 = vperm.xlu0 %2590, %v1643
  %v2592 = vpop.permute.xlu0 %2591
  %2595 = vset.pattern.permute.xlu0 0
  %2596 = vperm.xlu0 %2595, %v1644
  %v2597 = vpop.permute.xlu0 %2596
  %2600 = vset.pattern.permute.xlu0 0
  %2601 = vperm.xlu0 %2600, %v1645
  %v2602 = vpop.permute.xlu0 %2601
  %2605 = vset.pattern.permute.xlu0 0
  %2606 = vperm.xlu0 %2605, %v1646
  %v2607 = vpop.permute.xlu0 %2606
  %2610 = vset.pattern.permute.xlu0 0
  %2611 = vperm.xlu0 %2610, %v1647
  %v2612 = vpop.permute.xlu0 %2611
  %2615 = vset.pattern.permute.xlu0 0
  %2616 = vperm.xlu0 %2615, %v1648
  %v2617 = vpop.permute.xlu0 %2616
  %2620 = vset.pattern.permute.xlu0 0
  %2621 = vperm.xlu0 %2620, %v1649
  %v2622 = vpop.permute.xlu0 %2621
  %2625 = vset.pattern.permute.xlu0 0
  %2626 = vperm.xlu0 %2625, %v1650
  %v2627 = vpop.permute.xlu0 %2626
  %2630 = vset.pattern.permute.xlu0 0
  %2631 = vperm.xlu0 %2630, %v1651
  %v2632 = vpop.permute.xlu0 %2631
  %2635 = vset.pattern.permute.xlu0 0
  %2636 = vperm.xlu0 %2635, %v1652
  %v2637 = vpop.permute.xlu0 %2636
  %2640 = vset.pattern.permute.xlu0 0
  %2641 = vperm.xlu0 %2640, %v1653
  %v2642 = vpop.permute.xlu0 %2641
  %2645 = vset.pattern.permute.xlu0 0
  %2646 = vperm.xlu0 %2645, %v1654
  %v2647 = vpop.permute.xlu0 %2646
  %2650 = vset.pattern.permute.xlu0 0
  %2651 = vperm.xlu0 %2650, %v1655
  %v2652 = vpop.permute.xlu0 %2651
  %2655 = vset.pattern.permute.xlu0 0
  %2656 = vperm.xlu0 %2655, %v1656
  %v2657 = vpop.permute.xlu0 %2656
  %2660 = vset.pattern.permute.xlu0 0
  %2661 = vperm.xlu0 %2660, %v1657
  %v2662 = vpop.permute.xlu0 %2661
  %2665 = vset.pattern.permute.xlu0 0
  %2666 = vperm.xlu0 %2665, %v1658
  %v2667 = vpop.permute.xlu0 %2666
  %2670 = vset.pattern.permute.xlu0 0
  %2671 = vperm.xlu0 %2670, %v1659
  %v2672 = vpop.permute.xlu0 %2671
  %2675 = vset.pattern.permute.xlu0 0
  %2676 = vperm.xlu0 %2675, %v1660
  %v2677 = vpop.permute.xlu0 %2676
  %2680 = vset.pattern.permute.xlu0 0
  %2681 = vperm.xlu0 %2680, %v1661
  %v2682 = vpop.permute.xlu0 %2681
  %2685 = vset.pattern.permute.xlu0 0
  %2686 = vperm.xlu0 %2685, %v1662
  %v2687 = vpop.permute.xlu0 %2686
  %v2689 = vlaneseq
  %v2690 = vshrl.u32 %v2689, 7
  %v2691 = vsub.s32 0, %v2690
  %v2692 = vrot.slane %v2368, %v2691
  %v2693 = vmul.f32 %v2372, %v2692
  %v2694 = vmul.f32 %v2377, %v2692
  %v2695 = vmul.f32 %v2382, %v2692
  %v2696 = vmul.f32 %v2387, %v2692
  %v2697 = vmul.f32 %v2392, %v2692
  %v2698 = vmul.f32 %v2397, %v2692
  %v2699 = vmul.f32 %v2402, %v2692
  %v2700 = vmul.f32 %v2407, %v2692
  %v2701 = vmul.f32 %v2412, %v2692
  %v2702 = vmul.f32 %v2417, %v2692
  %v2703 = vmul.f32 %v2422, %v2692
  %v2704 = vmul.f32 %v2427, %v2692
  %v2705 = vmul.f32 %v2432, %v2692
  %v2706 = vmul.f32 %v2437, %v2692
  %v2707 = vmul.f32 %v2442, %v2692
  %v2708 = vmul.f32 %v2447, %v2692
  %v2709 = vmul.f32 %v2452, %v2692
  %v2710 = vmul.f32 %v2457, %v2692
  %v2711 = vmul.f32 %v2462, %v2692
  %v2712 = vmul.f32 %v2467, %v2692
  %v2713 = vmul.f32 %v2472, %v2692
  %v2714 = vmul.f32 %v2477, %v2692
  %v2715 = vmul.f32 %v2482, %v2692
  %v2716 = vmul.f32 %v2487, %v2692
  %v2717 = vmul.f32 %v2492, %v2692
  %v2718 = vmul.f32 %v2497, %v2692
  %v2719 = vmul.f32 %v2502, %v2692
  %v2720 = vmul.f32 %v2507, %v2692
  %v2721 = vmul.f32 %v2512, %v2692
  %v2722 = vmul.f32 %v2517, %v2692
  %v2723 = vmul.f32 %v2522, %v2692
  %v2724 = vmul.f32 %v2527, %v2692
  %v2725 = vmul.f32 %v2532, %v2692
  %v2726 = vmul.f32 %v2537, %v2692
  %v2727 = vmul.f32 %v2542, %v2692
  %v2728 = vmul.f32 %v2547, %v2692
  %v2729 = vmul.f32 %v2552, %v2692
  %v2730 = vmul.f32 %v2557, %v2692
  %v2731 = vmul.f32 %v2562, %v2692
  %v2732 = vmul.f32 %v2567, %v2692
  %v2733 = vmul.f32 %v2572, %v2692
  %v2734 = vmul.f32 %v2577, %v2692
  %v2735 = vmul.f32 %v2582, %v2692
  %v2736 = vmul.f32 %v2587, %v2692
  %v2737 = vmul.f32 %v2592, %v2692
  %v2738 = vmul.f32 %v2597, %v2692
  %v2739 = vmul.f32 %v2602, %v2692
  %v2740 = vmul.f32 %v2607, %v2692
  %v2741 = vmul.f32 %v2612, %v2692
  %v2742 = vmul.f32 %v2617, %v2692
  %v2743 = vmul.f32 %v2622, %v2692
  %v2744 = vmul.f32 %v2627, %v2692
  %v2745 = vmul.f32 %v2632, %v2692
  %v2746 = vmul.f32 %v2637, %v2692
  %v2747 = vmul.f32 %v2642, %v2692
  %v2748 = vmul.f32 %v2647, %v2692
  %v2749 = vmul.f32 %v2652, %v2692
  %v2750 = vmul.f32 %v2657, %v2692
  %v2751 = vmul.f32 %v2662, %v2692
  %v2752 = vmul.f32 %v2667, %v2692
  %v2753 = vmul.f32 %v2672, %v2692
  %v2754 = vmul.f32 %v2677, %v2692
  %v2755 = vmul.f32 %v2682, %v2692
  %v2756 = vmul.f32 %v2687, %v2692
  %2757 = vset.pattern.permute.xlu0 1
  %2758 = vperm.xlu0 %2757, %v1599
  %v2759 = vpop.permute.xlu0 %2758
  %2761 = vset.pattern.permute.xlu0 1
  %2762 = vperm.xlu0 %2761, %v1600
  %v2763 = vpop.permute.xlu0 %2762
  %2765 = vset.pattern.permute.xlu0 1
  %2766 = vperm.xlu0 %2765, %v1601
  %v2767 = vpop.permute.xlu0 %2766
  %2769 = vset.pattern.permute.xlu0 1
  %2770 = vperm.xlu0 %2769, %v1602
  %v2771 = vpop.permute.xlu0 %2770
  %2773 = vset.pattern.permute.xlu0 1
  %2774 = vperm.xlu0 %2773, %v1603
  %v2775 = vpop.permute.xlu0 %2774
  %2777 = vset.pattern.permute.xlu0 1
  %2778 = vperm.xlu0 %2777, %v1604
  %v2779 = vpop.permute.xlu0 %2778
  %2781 = vset.pattern.permute.xlu0 1
  %2782 = vperm.xlu0 %2781, %v1605
  %v2783 = vpop.permute.xlu0 %2782
  %2785 = vset.pattern.permute.xlu0 1
  %2786 = vperm.xlu0 %2785, %v1606
  %v2787 = vpop.permute.xlu0 %2786
  %2789 = vset.pattern.permute.xlu0 1
  %2790 = vperm.xlu0 %2789, %v1607
  %v2791 = vpop.permute.xlu0 %2790
  %2793 = vset.pattern.permute.xlu0 1
  %2794 = vperm.xlu0 %2793, %v1608
  %v2795 = vpop.permute.xlu0 %2794
  %2797 = vset.pattern.permute.xlu0 1
  %2798 = vperm.xlu0 %2797, %v1609
  %v2799 = vpop.permute.xlu0 %2798
  %2801 = vset.pattern.permute.xlu0 1
  %2802 = vperm.xlu0 %2801, %v1610
  %v2803 = vpop.permute.xlu0 %2802
  %2805 = vset.pattern.permute.xlu0 1
  %2806 = vperm.xlu0 %2805, %v1611
  %v2807 = vpop.permute.xlu0 %2806
  %2809 = vset.pattern.permute.xlu0 1
  %2810 = vperm.xlu0 %2809, %v1612
  %v2811 = vpop.permute.xlu0 %2810
  %2813 = vset.pattern.permute.xlu0 1
  %2814 = vperm.xlu0 %2813, %v1613
  %v2815 = vpop.permute.xlu0 %2814
  %2817 = vset.pattern.permute.xlu0 1
  %2818 = vperm.xlu0 %2817, %v1614
  %v2819 = vpop.permute.xlu0 %2818
  %2821 = vset.pattern.permute.xlu0 1
  %2822 = vperm.xlu0 %2821, %v1615
  %v2823 = vpop.permute.xlu0 %2822
  %2825 = vset.pattern.permute.xlu0 1
  %2826 = vperm.xlu0 %2825, %v1616
  %v2827 = vpop.permute.xlu0 %2826
  %2829 = vset.pattern.permute.xlu0 1
  %2830 = vperm.xlu0 %2829, %v1617
  %v2831 = vpop.permute.xlu0 %2830
  %2833 = vset.pattern.permute.xlu0 1
  %2834 = vperm.xlu0 %2833, %v1618
  %v2835 = vpop.permute.xlu0 %2834
  %2837 = vset.pattern.permute.xlu0 1
  %2838 = vperm.xlu0 %2837, %v1619
  %v2839 = vpop.permute.xlu0 %2838
  %2841 = vset.pattern.permute.xlu0 1
  %2842 = vperm.xlu0 %2841, %v1620
  %v2843 = vpop.permute.xlu0 %2842
  %2845 = vset.pattern.permute.xlu0 1
  %2846 = vperm.xlu0 %2845, %v1621
  %v2847 = vpop.permute.xlu0 %2846
  %2849 = vset.pattern.permute.xlu0 1
  %2850 = vperm.xlu0 %2849, %v1622
  %v2851 = vpop.permute.xlu0 %2850
  %2853 = vset.pattern.permute.xlu0 1
  %2854 = vperm.xlu0 %2853, %v1623
  %v2855 = vpop.permute.xlu0 %2854
  %2857 = vset.pattern.permute.xlu0 1
  %2858 = vperm.xlu0 %2857, %v1624
  %v2859 = vpop.permute.xlu0 %2858
  %2861 = vset.pattern.permute.xlu0 1
  %2862 = vperm.xlu0 %2861, %v1625
  %v2863 = vpop.permute.xlu0 %2862
  %2865 = vset.pattern.permute.xlu0 1
  %2866 = vperm.xlu0 %2865, %v1626
  %v2867 = vpop.permute.xlu0 %2866
  %2869 = vset.pattern.permute.xlu0 1
  %2870 = vperm.xlu0 %2869, %v1627
  %v2871 = vpop.permute.xlu0 %2870
  %2873 = vset.pattern.permute.xlu0 1
  %2874 = vperm.xlu0 %2873, %v1628
  %v2875 = vpop.permute.xlu0 %2874
  %2877 = vset.pattern.permute.xlu0 1
  %2878 = vperm.xlu0 %2877, %v1629
  %v2879 = vpop.permute.xlu0 %2878
  %2881 = vset.pattern.permute.xlu0 1
  %2882 = vperm.xlu0 %2881, %v1630
  %v2883 = vpop.permute.xlu0 %2882
  %2885 = vset.pattern.permute.xlu0 1
  %2886 = vperm.xlu0 %2885, %v1631
  %v2887 = vpop.permute.xlu0 %2886
  %2889 = vset.pattern.permute.xlu0 1
  %2890 = vperm.xlu0 %2889, %v1632
  %v2891 = vpop.permute.xlu0 %2890
  %2893 = vset.pattern.permute.xlu0 1
  %2894 = vperm.xlu0 %2893, %v1633
  %v2895 = vpop.permute.xlu0 %2894
  %2897 = vset.pattern.permute.xlu0 1
  %2898 = vperm.xlu0 %2897, %v1634
  %v2899 = vpop.permute.xlu0 %2898
  %2901 = vset.pattern.permute.xlu0 1
  %2902 = vperm.xlu0 %2901, %v1635
  %v2903 = vpop.permute.xlu0 %2902
  %2905 = vset.pattern.permute.xlu0 1
  %2906 = vperm.xlu0 %2905, %v1636
  %v2907 = vpop.permute.xlu0 %2906
  %2909 = vset.pattern.permute.xlu0 1
  %2910 = vperm.xlu0 %2909, %v1637
  %v2911 = vpop.permute.xlu0 %2910
  %2913 = vset.pattern.permute.xlu0 1
  %2914 = vperm.xlu0 %2913, %v1638
  %v2915 = vpop.permute.xlu0 %2914
  %2917 = vset.pattern.permute.xlu0 1
  %2918 = vperm.xlu0 %2917, %v1639
  %v2919 = vpop.permute.xlu0 %2918
  %2921 = vset.pattern.permute.xlu0 1
  %2922 = vperm.xlu0 %2921, %v1640
  %v2923 = vpop.permute.xlu0 %2922
  %2925 = vset.pattern.permute.xlu0 1
  %2926 = vperm.xlu0 %2925, %v1641
  %v2927 = vpop.permute.xlu0 %2926
  %2929 = vset.pattern.permute.xlu0 1
  %2930 = vperm.xlu0 %2929, %v1642
  %v2931 = vpop.permute.xlu0 %2930
  %2933 = vset.pattern.permute.xlu0 1
  %2934 = vperm.xlu0 %2933, %v1643
  %v2935 = vpop.permute.xlu0 %2934
  %2937 = vset.pattern.permute.xlu0 1
  %2938 = vperm.xlu0 %2937, %v1644
  %v2939 = vpop.permute.xlu0 %2938
  %2941 = vset.pattern.permute.xlu0 1
  %2942 = vperm.xlu0 %2941, %v1645
  %v2943 = vpop.permute.xlu0 %2942
  %2945 = vset.pattern.permute.xlu0 1
  %2946 = vperm.xlu0 %2945, %v1646
  %v2947 = vpop.permute.xlu0 %2946
  %2949 = vset.pattern.permute.xlu0 1
  %2950 = vperm.xlu0 %2949, %v1647
  %v2951 = vpop.permute.xlu0 %2950
  %2953 = vset.pattern.permute.xlu0 1
  %2954 = vperm.xlu0 %2953, %v1648
  %v2955 = vpop.permute.xlu0 %2954
  %2957 = vset.pattern.permute.xlu0 1
  %2958 = vperm.xlu0 %2957, %v1649
  %v2959 = vpop.permute.xlu0 %2958
  %2961 = vset.pattern.permute.xlu0 1
  %2962 = vperm.xlu0 %2961, %v1650
  %v2963 = vpop.permute.xlu0 %2962
  %2965 = vset.pattern.permute.xlu0 1
  %2966 = vperm.xlu0 %2965, %v1651
  %v2967 = vpop.permute.xlu0 %2966
  %2969 = vset.pattern.permute.xlu0 1
  %2970 = vperm.xlu0 %2969, %v1652
  %v2971 = vpop.permute.xlu0 %2970
  %2973 = vset.pattern.permute.xlu0 1
  %2974 = vperm.xlu0 %2973, %v1653
  %v2975 = vpop.permute.xlu0 %2974
  %2977 = vset.pattern.permute.xlu0 1
  %2978 = vperm.xlu0 %2977, %v1654
  %v2979 = vpop.permute.xlu0 %2978
  %2981 = vset.pattern.permute.xlu0 1
  %2982 = vperm.xlu0 %2981, %v1655
  %v2983 = vpop.permute.xlu0 %2982
  %2985 = vset.pattern.permute.xlu0 1
  %2986 = vperm.xlu0 %2985, %v1656
  %v2987 = vpop.permute.xlu0 %2986
  %2989 = vset.pattern.permute.xlu0 1
  %2990 = vperm.xlu0 %2989, %v1657
  %v2991 = vpop.permute.xlu0 %2990
  %2993 = vset.pattern.permute.xlu0 1
  %2994 = vperm.xlu0 %2993, %v1658
  %v2995 = vpop.permute.xlu0 %2994
  %2997 = vset.pattern.permute.xlu0 1
  %2998 = vperm.xlu0 %2997, %v1659
  %v2999 = vpop.permute.xlu0 %2998
  %3001 = vset.pattern.permute.xlu0 1
  %3002 = vperm.xlu0 %3001, %v1660
  %v3003 = vpop.permute.xlu0 %3002
  %3005 = vset.pattern.permute.xlu0 1
  %3006 = vperm.xlu0 %3005, %v1661
  %v3007 = vpop.permute.xlu0 %3006
  %3009 = vset.pattern.permute.xlu0 1
  %3010 = vperm.xlu0 %3009, %v1662
  %v3011 = vpop.permute.xlu0 %3010
  %v3013 = vlaneseq
  %v3014 = vshrl.u32 %v3013, 7
  %v3015 = vsub.s32 3, %v3014
  %v3016 = vrot.slane %v2368, %v3015
  %v3017 = vmul.f32 %v2759, %v3016
  %v3018 = vmul.f32 %v2763, %v3016
  %v3019 = vmul.f32 %v2767, %v3016
  %v3020 = vmul.f32 %v2771, %v3016
  %v3021 = vmul.f32 %v2775, %v3016
  %v3022 = vmul.f32 %v2779, %v3016
  %v3023 = vmul.f32 %v2783, %v3016
  %v3024 = vmul.f32 %v2787, %v3016
  %v3025 = vmul.f32 %v2791, %v3016
  %v3026 = vmul.f32 %v2795, %v3016
  %v3027 = vmul.f32 %v2799, %v3016
  %v3028 = vmul.f32 %v2803, %v3016
  %v3029 = vmul.f32 %v2807, %v3016
  %v3030 = vmul.f32 %v2811, %v3016
  %v3031 = vmul.f32 %v2815, %v3016
  %v3032 = vmul.f32 %v2819, %v3016
  %v3033 = vmul.f32 %v2823, %v3016
  %v3034 = vmul.f32 %v2827, %v3016
  %v3035 = vmul.f32 %v2831, %v3016
  %v3036 = vmul.f32 %v2835, %v3016
  %v3037 = vmul.f32 %v2839, %v3016
  %v3038 = vmul.f32 %v2843, %v3016
  %v3039 = vmul.f32 %v2847, %v3016
  %v3040 = vmul.f32 %v2851, %v3016
  %v3041 = vmul.f32 %v2855, %v3016
  %v3042 = vmul.f32 %v2859, %v3016
  %v3043 = vmul.f32 %v2863, %v3016
  %v3044 = vmul.f32 %v2867, %v3016
  %v3045 = vmul.f32 %v2871, %v3016
  %v3046 = vmul.f32 %v2875, %v3016
  %v3047 = vmul.f32 %v2879, %v3016
  %v3048 = vmul.f32 %v2883, %v3016
  %v3049 = vmul.f32 %v2887, %v3016
  %v3050 = vmul.f32 %v2891, %v3016
  %v3051 = vmul.f32 %v2895, %v3016
  %v3052 = vmul.f32 %v2899, %v3016
  %v3053 = vmul.f32 %v2903, %v3016
  %v3054 = vmul.f32 %v2907, %v3016
  %v3055 = vmul.f32 %v2911, %v3016
  %v3056 = vmul.f32 %v2915, %v3016
  %v3057 = vmul.f32 %v2919, %v3016
  %v3058 = vmul.f32 %v2923, %v3016
  %v3059 = vmul.f32 %v2927, %v3016
  %v3060 = vmul.f32 %v2931, %v3016
  %v3061 = vmul.f32 %v2935, %v3016
  %v3062 = vmul.f32 %v2939, %v3016
  %v3063 = vmul.f32 %v2943, %v3016
  %v3064 = vmul.f32 %v2947, %v3016
  %v3065 = vmul.f32 %v2951, %v3016
  %v3066 = vmul.f32 %v2955, %v3016
  %v3067 = vmul.f32 %v2959, %v3016
  %v3068 = vmul.f32 %v2963, %v3016
  %v3069 = vmul.f32 %v2967, %v3016
  %v3070 = vmul.f32 %v2971, %v3016
  %v3071 = vmul.f32 %v2975, %v3016
  %v3072 = vmul.f32 %v2979, %v3016
  %v3073 = vmul.f32 %v2983, %v3016
  %v3074 = vmul.f32 %v2987, %v3016
  %v3075 = vmul.f32 %v2991, %v3016
  %v3076 = vmul.f32 %v2995, %v3016
  %v3077 = vmul.f32 %v2999, %v3016
  %v3078 = vmul.f32 %v3003, %v3016
  %v3079 = vmul.f32 %v3007, %v3016
  %v3080 = vmul.f32 %v3011, %v3016
  %v3081 = vadd.f32 %v2693, %v3017
  %v3082 = vadd.f32 %v2694, %v3018
  %v3083 = vadd.f32 %v2695, %v3019
  %v3084 = vadd.f32 %v2696, %v3020
  %v3085 = vadd.f32 %v2697, %v3021
  %v3086 = vadd.f32 %v2698, %v3022
  %v3087 = vadd.f32 %v2699, %v3023
  %v3088 = vadd.f32 %v2700, %v3024
  %v3089 = vadd.f32 %v2701, %v3025
  %v3090 = vadd.f32 %v2702, %v3026
  %v3091 = vadd.f32 %v2703, %v3027
  %v3092 = vadd.f32 %v2704, %v3028
  %v3093 = vadd.f32 %v2705, %v3029
  %v3094 = vadd.f32 %v2706, %v3030
  %v3095 = vadd.f32 %v2707, %v3031
  %v3096 = vadd.f32 %v2708, %v3032
  %v3097 = vadd.f32 %v2709, %v3033
  %v3098 = vadd.f32 %v2710, %v3034
  %v3099 = vadd.f32 %v2711, %v3035
  %v3100 = vadd.f32 %v2712, %v3036
  %v3101 = vadd.f32 %v2713, %v3037
  %v3102 = vadd.f32 %v2714, %v3038
  %v3103 = vadd.f32 %v2715, %v3039
  %v3104 = vadd.f32 %v2716, %v3040
  %v3105 = vadd.f32 %v2717, %v3041
  %v3106 = vadd.f32 %v2718, %v3042
  %v3107 = vadd.f32 %v2719, %v3043
  %v3108 = vadd.f32 %v2720, %v3044
  %v3109 = vadd.f32 %v2721, %v3045
  %v3110 = vadd.f32 %v2722, %v3046
  %v3111 = vadd.f32 %v2723, %v3047
  %v3112 = vadd.f32 %v2724, %v3048
  %v3113 = vadd.f32 %v2725, %v3049
  %v3114 = vadd.f32 %v2726, %v3050
  %v3115 = vadd.f32 %v2727, %v3051
  %v3116 = vadd.f32 %v2728, %v3052
  %v3117 = vadd.f32 %v2729, %v3053
  %v3118 = vadd.f32 %v2730, %v3054
  %v3119 = vadd.f32 %v2731, %v3055
  %v3120 = vadd.f32 %v2732, %v3056
  %v3121 = vadd.f32 %v2733, %v3057
  %v3122 = vadd.f32 %v2734, %v3058
  %v3123 = vadd.f32 %v2735, %v3059
  %v3124 = vadd.f32 %v2736, %v3060
  %v3125 = vadd.f32 %v2737, %v3061
  %v3126 = vadd.f32 %v2738, %v3062
  %v3127 = vadd.f32 %v2739, %v3063
  %v3128 = vadd.f32 %v2740, %v3064
  %v3129 = vadd.f32 %v2741, %v3065
  %v3130 = vadd.f32 %v2742, %v3066
  %v3131 = vadd.f32 %v2743, %v3067
  %v3132 = vadd.f32 %v2744, %v3068
  %v3133 = vadd.f32 %v2745, %v3069
  %v3134 = vadd.f32 %v2746, %v3070
  %v3135 = vadd.f32 %v2747, %v3071
  %v3136 = vadd.f32 %v2748, %v3072
  %v3137 = vadd.f32 %v2749, %v3073
  %v3138 = vadd.f32 %v2750, %v3074
  %v3139 = vadd.f32 %v2751, %v3075
  %v3140 = vadd.f32 %v2752, %v3076
  %v3141 = vadd.f32 %v2753, %v3077
  %v3142 = vadd.f32 %v2754, %v3078
  %v3143 = vadd.f32 %v2755, %v3079
  %v3144 = vadd.f32 %v2756, %v3080
  %v3145 = vlaneseq
  %v3146 = vshrl.u32 %v3145, 7
  %v3147 = vsub.s32 1, %v3146
  %v3148 = vrot.slane %v2368, %v3147
  %v3149 = vmul.f32 %v2372, %v3148
  %v3150 = vmul.f32 %v2377, %v3148
  %v3151 = vmul.f32 %v2382, %v3148
  %v3152 = vmul.f32 %v2387, %v3148
  %v3153 = vmul.f32 %v2392, %v3148
  %v3154 = vmul.f32 %v2397, %v3148
  %v3155 = vmul.f32 %v2402, %v3148
  %v3156 = vmul.f32 %v2407, %v3148
  %v3157 = vmul.f32 %v2412, %v3148
  %v3158 = vmul.f32 %v2417, %v3148
  %v3159 = vmul.f32 %v2422, %v3148
  %v3160 = vmul.f32 %v2427, %v3148
  %v3161 = vmul.f32 %v2432, %v3148
  %v3162 = vmul.f32 %v2437, %v3148
  %v3163 = vmul.f32 %v2442, %v3148
  %v3164 = vmul.f32 %v2447, %v3148
  %v3165 = vmul.f32 %v2452, %v3148
  %v3166 = vmul.f32 %v2457, %v3148
  %v3167 = vmul.f32 %v2462, %v3148
  %v3168 = vmul.f32 %v2467, %v3148
  %v3169 = vmul.f32 %v2472, %v3148
  %v3170 = vmul.f32 %v2477, %v3148
  %v3171 = vmul.f32 %v2482, %v3148
  %v3172 = vmul.f32 %v2487, %v3148
  %v3173 = vmul.f32 %v2492, %v3148
  %v3174 = vmul.f32 %v2497, %v3148
  %v3175 = vmul.f32 %v2502, %v3148
  %v3176 = vmul.f32 %v2507, %v3148
  %v3177 = vmul.f32 %v2512, %v3148
  %v3178 = vmul.f32 %v2517, %v3148
  %v3179 = vmul.f32 %v2522, %v3148
  %v3180 = vmul.f32 %v2527, %v3148
  %v3181 = vmul.f32 %v2532, %v3148
  %v3182 = vmul.f32 %v2537, %v3148
  %v3183 = vmul.f32 %v2542, %v3148
  %v3184 = vmul.f32 %v2547, %v3148
  %v3185 = vmul.f32 %v2552, %v3148
  %v3186 = vmul.f32 %v2557, %v3148
  %v3187 = vmul.f32 %v2562, %v3148
  %v3188 = vmul.f32 %v2567, %v3148
  %v3189 = vmul.f32 %v2572, %v3148
  %v3190 = vmul.f32 %v2577, %v3148
  %v3191 = vmul.f32 %v2582, %v3148
  %v3192 = vmul.f32 %v2587, %v3148
  %v3193 = vmul.f32 %v2592, %v3148
  %v3194 = vmul.f32 %v2597, %v3148
  %v3195 = vmul.f32 %v2602, %v3148
  %v3196 = vmul.f32 %v2607, %v3148
  %v3197 = vmul.f32 %v2612, %v3148
  %v3198 = vmul.f32 %v2617, %v3148
  %v3199 = vmul.f32 %v2622, %v3148
  %v3200 = vmul.f32 %v2627, %v3148
  %v3201 = vmul.f32 %v2632, %v3148
  %v3202 = vmul.f32 %v2637, %v3148
  %v3203 = vmul.f32 %v2642, %v3148
  %v3204 = vmul.f32 %v2647, %v3148
  %v3205 = vmul.f32 %v2652, %v3148
  %v3206 = vmul.f32 %v2657, %v3148
  %v3207 = vmul.f32 %v2662, %v3148
  %v3208 = vmul.f32 %v2667, %v3148
  %v3209 = vmul.f32 %v2672, %v3148
  %v3210 = vmul.f32 %v2677, %v3148
  %v3211 = vmul.f32 %v2682, %v3148
  %v3212 = vmul.f32 %v2687, %v3148
  %v3213 = vlaneseq
  %v3214 = vshrl.u32 %v3213, 7
  %v3215 = vsub.s32 4, %v3214
  %v3216 = vrot.slane %v2368, %v3215
  %v3217 = vmul.f32 %v2759, %v3216
  %v3218 = vmul.f32 %v2763, %v3216
  %v3219 = vmul.f32 %v2767, %v3216
  %v3220 = vmul.f32 %v2771, %v3216
  %v3221 = vmul.f32 %v2775, %v3216
  %v3222 = vmul.f32 %v2779, %v3216
  %v3223 = vmul.f32 %v2783, %v3216
  %v3224 = vmul.f32 %v2787, %v3216
  %v3225 = vmul.f32 %v2791, %v3216
  %v3226 = vmul.f32 %v2795, %v3216
  %v3227 = vmul.f32 %v2799, %v3216
  %v3228 = vmul.f32 %v2803, %v3216
  %v3229 = vmul.f32 %v2807, %v3216
  %v3230 = vmul.f32 %v2811, %v3216
  %v3231 = vmul.f32 %v2815, %v3216
  %v3232 = vmul.f32 %v2819, %v3216
  %v3233 = vmul.f32 %v2823, %v3216
  %v3234 = vmul.f32 %v2827, %v3216
  %v3235 = vmul.f32 %v2831, %v3216
  %v3236 = vmul.f32 %v2835, %v3216
  %v3237 = vmul.f32 %v2839, %v3216
  %v3238 = vmul.f32 %v2843, %v3216
  %v3239 = vmul.f32 %v2847, %v3216
  %v3240 = vmul.f32 %v2851, %v3216
  %v3241 = vmul.f32 %v2855, %v3216
  %v3242 = vmul.f32 %v2859, %v3216
  %v3243 = vmul.f32 %v2863, %v3216
  %v3244 = vmul.f32 %v2867, %v3216
  %v3245 = vmul.f32 %v2871, %v3216
  %v3246 = vmul.f32 %v2875, %v3216
  %v3247 = vmul.f32 %v2879, %v3216
  %v3248 = vmul.f32 %v2883, %v3216
  %v3249 = vmul.f32 %v2887, %v3216
  %v3250 = vmul.f32 %v2891, %v3216
  %v3251 = vmul.f32 %v2895, %v3216
  %v3252 = vmul.f32 %v2899, %v3216
  %v3253 = vmul.f32 %v2903, %v3216
  %v3254 = vmul.f32 %v2907, %v3216
  %v3255 = vmul.f32 %v2911, %v3216
  %v3256 = vmul.f32 %v2915, %v3216
  %v3257 = vmul.f32 %v2919, %v3216
  %v3258 = vmul.f32 %v2923, %v3216
  %v3259 = vmul.f32 %v2927, %v3216
  %v3260 = vmul.f32 %v2931, %v3216
  %v3261 = vmul.f32 %v2935, %v3216
  %v3262 = vmul.f32 %v2939, %v3216
  %v3263 = vmul.f32 %v2943, %v3216
  %v3264 = vmul.f32 %v2947, %v3216
  %v3265 = vmul.f32 %v2951, %v3216
  %v3266 = vmul.f32 %v2955, %v3216
  %v3267 = vmul.f32 %v2959, %v3216
  %v3268 = vmul.f32 %v2963, %v3216
  %v3269 = vmul.f32 %v2967, %v3216
  %v3270 = vmul.f32 %v2971, %v3216
  %v3271 = vmul.f32 %v2975, %v3216
  %v3272 = vmul.f32 %v2979, %v3216
  %v3273 = vmul.f32 %v2983, %v3216
  %v3274 = vmul.f32 %v2987, %v3216
  %v3275 = vmul.f32 %v2991, %v3216
  %v3276 = vmul.f32 %v2995, %v3216
  %v3277 = vmul.f32 %v2999, %v3216
  %v3278 = vmul.f32 %v3003, %v3216
  %v3279 = vmul.f32 %v3007, %v3216
  %v3280 = vmul.f32 %v3011, %v3216
  %v3281 = vadd.f32 %v3149, %v3217
  %v3282 = vadd.f32 %v3150, %v3218
  %v3283 = vadd.f32 %v3151, %v3219
  %v3284 = vadd.f32 %v3152, %v3220
  %v3285 = vadd.f32 %v3153, %v3221
  %v3286 = vadd.f32 %v3154, %v3222
  %v3287 = vadd.f32 %v3155, %v3223
  %v3288 = vadd.f32 %v3156, %v3224
  %v3289 = vadd.f32 %v3157, %v3225
  %v3290 = vadd.f32 %v3158, %v3226
  %v3291 = vadd.f32 %v3159, %v3227
  %v3292 = vadd.f32 %v3160, %v3228
  %v3293 = vadd.f32 %v3161, %v3229
  %v3294 = vadd.f32 %v3162, %v3230
  %v3295 = vadd.f32 %v3163, %v3231
  %v3296 = vadd.f32 %v3164, %v3232
  %v3297 = vadd.f32 %v3165, %v3233
  %v3298 = vadd.f32 %v3166, %v3234
  %v3299 = vadd.f32 %v3167, %v3235
  %v3300 = vadd.f32 %v3168, %v3236
  %v3301 = vadd.f32 %v3169, %v3237
  %v3302 = vadd.f32 %v3170, %v3238
  %v3303 = vadd.f32 %v3171, %v3239
  %v3304 = vadd.f32 %v3172, %v3240
  %v3305 = vadd.f32 %v3173, %v3241
  %v3306 = vadd.f32 %v3174, %v3242
  %v3307 = vadd.f32 %v3175, %v3243
  %v3308 = vadd.f32 %v3176, %v3244
  %v3309 = vadd.f32 %v3177, %v3245
  %v3310 = vadd.f32 %v3178, %v3246
  %v3311 = vadd.f32 %v3179, %v3247
  %v3312 = vadd.f32 %v3180, %v3248
  %v3313 = vadd.f32 %v3181, %v3249
  %v3314 = vadd.f32 %v3182, %v3250
  %v3315 = vadd.f32 %v3183, %v3251
  %v3316 = vadd.f32 %v3184, %v3252
  %v3317 = vadd.f32 %v3185, %v3253
  %v3318 = vadd.f32 %v3186, %v3254
  %v3319 = vadd.f32 %v3187, %v3255
  %v3320 = vadd.f32 %v3188, %v3256
  %v3321 = vadd.f32 %v3189, %v3257
  %v3322 = vadd.f32 %v3190, %v3258
  %v3323 = vadd.f32 %v3191, %v3259
  %v3324 = vadd.f32 %v3192, %v3260
  %v3325 = vadd.f32 %v3193, %v3261
  %v3326 = vadd.f32 %v3194, %v3262
  %v3327 = vadd.f32 %v3195, %v3263
  %v3328 = vadd.f32 %v3196, %v3264
  %v3329 = vadd.f32 %v3197, %v3265
  %v3330 = vadd.f32 %v3198, %v3266
  %v3331 = vadd.f32 %v3199, %v3267
  %v3332 = vadd.f32 %v3200, %v3268
  %v3333 = vadd.f32 %v3201, %v3269
  %v3334 = vadd.f32 %v3202, %v3270
  %v3335 = vadd.f32 %v3203, %v3271
  %v3336 = vadd.f32 %v3204, %v3272
  %v3337 = vadd.f32 %v3205, %v3273
  %v3338 = vadd.f32 %v3206, %v3274
  %v3339 = vadd.f32 %v3207, %v3275
  %v3340 = vadd.f32 %v3208, %v3276
  %v3341 = vadd.f32 %v3209, %v3277
  %v3342 = vadd.f32 %v3210, %v3278
  %v3343 = vadd.f32 %v3211, %v3279
  %v3344 = vadd.f32 %v3212, %v3280
  %v3345 = vlaneseq
  %v3346 = vshrl.u32 %v3345, 7
  %v3347 = vsub.s32 2, %v3346
  %v3348 = vrot.slane %v2368, %v3347
  %v3349 = vmul.f32 %v2372, %v3348
  %v3350 = vmul.f32 %v2377, %v3348
  %v3351 = vmul.f32 %v2382, %v3348
  %v3352 = vmul.f32 %v2387, %v3348
  %v3353 = vmul.f32 %v2392, %v3348
  %v3354 = vmul.f32 %v2397, %v3348
  %v3355 = vmul.f32 %v2402, %v3348
  %v3356 = vmul.f32 %v2407, %v3348
  %v3357 = vmul.f32 %v2412, %v3348
  %v3358 = vmul.f32 %v2417, %v3348
  %v3359 = vmul.f32 %v2422, %v3348
  %v3360 = vmul.f32 %v2427, %v3348
  %v3361 = vmul.f32 %v2432, %v3348
  %v3362 = vmul.f32 %v2437, %v3348
  %v3363 = vmul.f32 %v2442, %v3348
  %v3364 = vmul.f32 %v2447, %v3348
  %v3365 = vmul.f32 %v2452, %v3348
  %v3366 = vmul.f32 %v2457, %v3348
  %v3367 = vmul.f32 %v2462, %v3348
  %v3368 = vmul.f32 %v2467, %v3348
  %v3369 = vmul.f32 %v2472, %v3348
  %v3370 = vmul.f32 %v2477, %v3348
  %v3371 = vmul.f32 %v2482, %v3348
  %v3372 = vmul.f32 %v2487, %v3348
  %v3373 = vmul.f32 %v2492, %v3348
  %v3374 = vmul.f32 %v2497, %v3348
  %v3375 = vmul.f32 %v2502, %v3348
  %v3376 = vmul.f32 %v2507, %v3348
  %v3377 = vmul.f32 %v2512, %v3348
  %v3378 = vmul.f32 %v2517, %v3348
  %v3379 = vmul.f32 %v2522, %v3348
  %v3380 = vmul.f32 %v2527, %v3348
  %v3381 = vmul.f32 %v2532, %v3348
  %v3382 = vmul.f32 %v2537, %v3348
  %v3383 = vmul.f32 %v2542, %v3348
  %v3384 = vmul.f32 %v2547, %v3348
  %v3385 = vmul.f32 %v2552, %v3348
  %v3386 = vmul.f32 %v2557, %v3348
  %v3387 = vmul.f32 %v2562, %v3348
  %v3388 = vmul.f32 %v2567, %v3348
  %v3389 = vmul.f32 %v2572, %v3348
  %v3390 = vmul.f32 %v2577, %v3348
  %v3391 = vmul.f32 %v2582, %v3348
  %v3392 = vmul.f32 %v2587, %v3348
  %v3393 = vmul.f32 %v2592, %v3348
  %v3394 = vmul.f32 %v2597, %v3348
  %v3395 = vmul.f32 %v2602, %v3348
  %v3396 = vmul.f32 %v2607, %v3348
  %v3397 = vmul.f32 %v2612, %v3348
  %v3398 = vmul.f32 %v2617, %v3348
  %v3399 = vmul.f32 %v2622, %v3348
  %v3400 = vmul.f32 %v2627, %v3348
  %v3401 = vmul.f32 %v2632, %v3348
  %v3402 = vmul.f32 %v2637, %v3348
  %v3403 = vmul.f32 %v2642, %v3348
  %v3404 = vmul.f32 %v2647, %v3348
  %v3405 = vmul.f32 %v2652, %v3348
  %v3406 = vmul.f32 %v2657, %v3348
  %v3407 = vmul.f32 %v2662, %v3348
  %v3408 = vmul.f32 %v2667, %v3348
  %v3409 = vmul.f32 %v2672, %v3348
  %v3410 = vmul.f32 %v2677, %v3348
  %v3411 = vmul.f32 %v2682, %v3348
  %v3412 = vmul.f32 %v2687, %v3348
  %v3413 = vlaneseq
  %v3414 = vshrl.u32 %v3413, 7
  %v3415 = vsub.s32 5, %v3414
  %v3416 = vrot.slane %v2368, %v3415
  %v3417 = vmul.f32 %v2759, %v3416
  %v3418 = vmul.f32 %v2763, %v3416
  %v3419 = vmul.f32 %v2767, %v3416
  %v3420 = vmul.f32 %v2771, %v3416
  %v3421 = vmul.f32 %v2775, %v3416
  %v3422 = vmul.f32 %v2779, %v3416
  %v3423 = vmul.f32 %v2783, %v3416
  %v3424 = vmul.f32 %v2787, %v3416
  %v3425 = vmul.f32 %v2791, %v3416
  %v3426 = vmul.f32 %v2795, %v3416
  %v3427 = vmul.f32 %v2799, %v3416
  %v3428 = vmul.f32 %v2803, %v3416
  %v3429 = vmul.f32 %v2807, %v3416
  %v3430 = vmul.f32 %v2811, %v3416
  %v3431 = vmul.f32 %v2815, %v3416
  %v3432 = vmul.f32 %v2819, %v3416
  %v3433 = vmul.f32 %v2823, %v3416
  %v3434 = vmul.f32 %v2827, %v3416
  %v3435 = vmul.f32 %v2831, %v3416
  %v3436 = vmul.f32 %v2835, %v3416
  %v3437 = vmul.f32 %v2839, %v3416
  %v3438 = vmul.f32 %v2843, %v3416
  %v3439 = vmul.f32 %v2847, %v3416
  %v3440 = vmul.f32 %v2851, %v3416
  %v3441 = vmul.f32 %v2855, %v3416
  %v3442 = vmul.f32 %v2859, %v3416
  %v3443 = vmul.f32 %v2863, %v3416
  %v3444 = vmul.f32 %v2867, %v3416
  %v3445 = vmul.f32 %v2871, %v3416
  %v3446 = vmul.f32 %v2875, %v3416
  %v3447 = vmul.f32 %v2879, %v3416
  %v3448 = vmul.f32 %v2883, %v3416
  %v3449 = vmul.f32 %v2887, %v3416
  %v3450 = vmul.f32 %v2891, %v3416
  %v3451 = vmul.f32 %v2895, %v3416
  %v3452 = vmul.f32 %v2899, %v3416
  %v3453 = vmul.f32 %v2903, %v3416
  %v3454 = vmul.f32 %v2907, %v3416
  %v3455 = vmul.f32 %v2911, %v3416
  %v3456 = vmul.f32 %v2915, %v3416
  %v3457 = vmul.f32 %v2919, %v3416
  %v3458 = vmul.f32 %v2923, %v3416
  %v3459 = vmul.f32 %v2927, %v3416
  %v3460 = vmul.f32 %v2931, %v3416
  %v3461 = vmul.f32 %v2935, %v3416
  %v3462 = vmul.f32 %v2939, %v3416
  %v3463 = vmul.f32 %v2943, %v3416
  %v3464 = vmul.f32 %v2947, %v3416
  %v3465 = vmul.f32 %v2951, %v3416
  %v3466 = vmul.f32 %v2955, %v3416
  %v3467 = vmul.f32 %v2959, %v3416
  %v3468 = vmul.f32 %v2963, %v3416
  %v3469 = vmul.f32 %v2967, %v3416
  %v3470 = vmul.f32 %v2971, %v3416
  %v3471 = vmul.f32 %v2975, %v3416
  %v3472 = vmul.f32 %v2979, %v3416
  %v3473 = vmul.f32 %v2983, %v3416
  %v3474 = vmul.f32 %v2987, %v3416
  %v3475 = vmul.f32 %v2991, %v3416
  %v3476 = vmul.f32 %v2995, %v3416
  %v3477 = vmul.f32 %v2999, %v3416
  %v3478 = vmul.f32 %v3003, %v3416
  %v3479 = vmul.f32 %v3007, %v3416
  %v3480 = vmul.f32 %v3011, %v3416
  %v3481 = vadd.f32 %v3349, %v3417
  %v3482 = vadd.f32 %v3350, %v3418
  %v3483 = vadd.f32 %v3351, %v3419
  %v3484 = vadd.f32 %v3352, %v3420
  %v3485 = vadd.f32 %v3353, %v3421
  %v3486 = vadd.f32 %v3354, %v3422
  %v3487 = vadd.f32 %v3355, %v3423
  %v3488 = vadd.f32 %v3356, %v3424
  %v3489 = vadd.f32 %v3357, %v3425
  %v3490 = vadd.f32 %v3358, %v3426
  %v3491 = vadd.f32 %v3359, %v3427
  %v3492 = vadd.f32 %v3360, %v3428
  %v3493 = vadd.f32 %v3361, %v3429
  %v3494 = vadd.f32 %v3362, %v3430
  %v3495 = vadd.f32 %v3363, %v3431
  %v3496 = vadd.f32 %v3364, %v3432
  %v3497 = vadd.f32 %v3365, %v3433
  %v3498 = vadd.f32 %v3366, %v3434
  %v3499 = vadd.f32 %v3367, %v3435
  %v3500 = vadd.f32 %v3368, %v3436
  %v3501 = vadd.f32 %v3369, %v3437
  %v3502 = vadd.f32 %v3370, %v3438
  %v3503 = vadd.f32 %v3371, %v3439
  %v3504 = vadd.f32 %v3372, %v3440
  %v3505 = vadd.f32 %v3373, %v3441
  %v3506 = vadd.f32 %v3374, %v3442
  %v3507 = vadd.f32 %v3375, %v3443
  %v3508 = vadd.f32 %v3376, %v3444
  %v3509 = vadd.f32 %v3377, %v3445
  %v3510 = vadd.f32 %v3378, %v3446
  %v3511 = vadd.f32 %v3379, %v3447
  %v3512 = vadd.f32 %v3380, %v3448
  %v3513 = vadd.f32 %v3381, %v3449
  %v3514 = vadd.f32 %v3382, %v3450
  %v3515 = vadd.f32 %v3383, %v3451
  %v3516 = vadd.f32 %v3384, %v3452
  %v3517 = vadd.f32 %v3385, %v3453
  %v3518 = vadd.f32 %v3386, %v3454
  %v3519 = vadd.f32 %v3387, %v3455
  %v3520 = vadd.f32 %v3388, %v3456
  %v3521 = vadd.f32 %v3389, %v3457
  %v3522 = vadd.f32 %v3390, %v3458
  %v3523 = vadd.f32 %v3391, %v3459
  %v3524 = vadd.f32 %v3392, %v3460
  %v3525 = vadd.f32 %v3393, %v3461
  %v3526 = vadd.f32 %v3394, %v3462
  %v3527 = vadd.f32 %v3395, %v3463
  %v3528 = vadd.f32 %v3396, %v3464
  %v3529 = vadd.f32 %v3397, %v3465
  %v3530 = vadd.f32 %v3398, %v3466
  %v3531 = vadd.f32 %v3399, %v3467
  %v3532 = vadd.f32 %v3400, %v3468
  %v3533 = vadd.f32 %v3401, %v3469
  %v3534 = vadd.f32 %v3402, %v3470
  %v3535 = vadd.f32 %v3403, %v3471
  %v3536 = vadd.f32 %v3404, %v3472
  %v3537 = vadd.f32 %v3405, %v3473
  %v3538 = vadd.f32 %v3406, %v3474
  %v3539 = vadd.f32 %v3407, %v3475
  %v3540 = vadd.f32 %v3408, %v3476
  %v3541 = vadd.f32 %v3409, %v3477
  %v3542 = vadd.f32 %v3410, %v3478
  %v3543 = vadd.f32 %v3411, %v3479
  %v3544 = vadd.f32 %v3412, %v3480
  %vm3545 = vcmp.ge.s32.totalorder %v37, 1
  %vm3546 = vcmp.ge.s32.totalorder %v38, 1
  %vm3547 = vcmp.ge.s32.totalorder %v39, 1
  %vm3548 = vcmp.ge.s32.totalorder %v40, 1
  %vm3549 = vcmp.ge.s32.totalorder %v41, 1
  %vm3550 = vcmp.ge.s32.totalorder %v42, 1
  %vm3551 = vcmp.ge.s32.totalorder %v43, 1
  %vm3552 = vcmp.ge.s32.totalorder %v44, 1
  %vm3553 = vcmp.ge.s32.totalorder %v45, 1
  %vm3554 = vcmp.ge.s32.totalorder %v46, 1
  %vm3555 = vcmp.ge.s32.totalorder %v47, 1
  %vm3556 = vcmp.ge.s32.totalorder %v48, 1
  %vm3557 = vcmp.ge.s32.totalorder %v49, 1
  %vm3558 = vcmp.ge.s32.totalorder %v50, 1
  %vm3559 = vcmp.ge.s32.totalorder %v51, 1
  %vm3560 = vcmp.ge.s32.totalorder %v52, 1
  %vm3561 = vcmp.ge.s32.totalorder %v53, 1
  %vm3562 = vcmp.ge.s32.totalorder %v54, 1
  %vm3563 = vcmp.ge.s32.totalorder %v55, 1
  %vm3564 = vcmp.ge.s32.totalorder %v56, 1
  %vm3565 = vcmp.ge.s32.totalorder %v57, 1
  %vm3566 = vcmp.ge.s32.totalorder %v58, 1
  %vm3567 = vcmp.ge.s32.totalorder %v59, 1
  %vm3568 = vcmp.ge.s32.totalorder %v60, 1
  %vm3569 = vcmp.ge.s32.totalorder %v61, 1
  %vm3570 = vcmp.ge.s32.totalorder %v62, 1
  %vm3571 = vcmp.ge.s32.totalorder %v63, 1
  %vm3572 = vcmp.ge.s32.totalorder %v64, 1
  %vm3573 = vcmp.ge.s32.totalorder %v65, 1
  %vm3574 = vcmp.ge.s32.totalorder %v66, 1
  %vm3575 = vcmp.ge.s32.totalorder %v67, 1
  %vm3576 = vcmp.ge.s32.totalorder %v68, 1
  %vm3577 = vcmp.ge.s32.totalorder %v69, 1
  %vm3578 = vcmp.ge.s32.totalorder %v70, 1
  %vm3579 = vcmp.ge.s32.totalorder %v71, 1
  %vm3580 = vcmp.ge.s32.totalorder %v72, 1
  %vm3581 = vcmp.ge.s32.totalorder %v73, 1
  %vm3582 = vcmp.ge.s32.totalorder %v74, 1
  %vm3583 = vcmp.ge.s32.totalorder %v75, 1
  %vm3584 = vcmp.ge.s32.totalorder %v76, 1
  %vm3585 = vcmp.ge.s32.totalorder %v77, 1
  %vm3586 = vcmp.ge.s32.totalorder %v78, 1
  %vm3587 = vcmp.ge.s32.totalorder %v79, 1
  %vm3588 = vcmp.ge.s32.totalorder %v80, 1
  %vm3589 = vcmp.ge.s32.totalorder %v81, 1
  %vm3590 = vcmp.ge.s32.totalorder %v82, 1
  %vm3591 = vcmp.ge.s32.totalorder %v83, 1
  %vm3592 = vcmp.ge.s32.totalorder %v84, 1
  %vm3593 = vcmp.ge.s32.totalorder %v85, 1
  %vm3594 = vcmp.ge.s32.totalorder %v86, 1
  %vm3595 = vcmp.ge.s32.totalorder %v87, 1
  %vm3596 = vcmp.ge.s32.totalorder %v88, 1
  %vm3597 = vcmp.ge.s32.totalorder %v89, 1
  %vm3598 = vcmp.ge.s32.totalorder %v90, 1
  %vm3599 = vcmp.ge.s32.totalorder %v91, 1
  %vm3600 = vcmp.ge.s32.totalorder %v92, 1
  %vm3601 = vcmp.ge.s32.totalorder %v93, 1
  %vm3602 = vcmp.ge.s32.totalorder %v94, 1
  %vm3603 = vcmp.ge.s32.totalorder %v95, 1
  %vm3604 = vcmp.ge.s32.totalorder %v96, 1
  %vm3605 = vcmp.ge.s32.totalorder %v97, 1
  %vm3606 = vcmp.ge.s32.totalorder %v98, 1
  %vm3607 = vcmp.ge.s32.totalorder %v99, 1
  %vm3608 = vcmp.ge.s32.totalorder %v100, 1
  %v3609 = vsel %vm3545, 1, 0
  %v3610 = vsel %vm3546, 1, 0
  %v3611 = vsel %vm3547, 1, 0
  %v3612 = vsel %vm3548, 1, 0
  %v3613 = vsel %vm3549, 1, 0
  %v3614 = vsel %vm3550, 1, 0
  %v3615 = vsel %vm3551, 1, 0
  %v3616 = vsel %vm3552, 1, 0
  %v3617 = vsel %vm3553, 1, 0
  %v3618 = vsel %vm3554, 1, 0
  %v3619 = vsel %vm3555, 1, 0
  %v3620 = vsel %vm3556, 1, 0
  %v3621 = vsel %vm3557, 1, 0
  %v3622 = vsel %vm3558, 1, 0
  %v3623 = vsel %vm3559, 1, 0
  %v3624 = vsel %vm3560, 1, 0
  %v3625 = vsel %vm3561, 1, 0
  %v3626 = vsel %vm3562, 1, 0
  %v3627 = vsel %vm3563, 1, 0
  %v3628 = vsel %vm3564, 1, 0
  %v3629 = vsel %vm3565, 1, 0
  %v3630 = vsel %vm3566, 1, 0
  %v3631 = vsel %vm3567, 1, 0
  %v3632 = vsel %vm3568, 1, 0
  %v3633 = vsel %vm3569, 1, 0
  %v3634 = vsel %vm3570, 1, 0
  %v3635 = vsel %vm3571, 1, 0
  %v3636 = vsel %vm3572, 1, 0
  %v3637 = vsel %vm3573, 1, 0
  %v3638 = vsel %vm3574, 1, 0
  %v3639 = vsel %vm3575, 1, 0
  %v3640 = vsel %vm3576, 1, 0
  %v3641 = vsel %vm3577, 1, 0
  %v3642 = vsel %vm3578, 1, 0
  %v3643 = vsel %vm3579, 1, 0
  %v3644 = vsel %vm3580, 1, 0
  %v3645 = vsel %vm3581, 1, 0
  %v3646 = vsel %vm3582, 1, 0
  %v3647 = vsel %vm3583, 1, 0
  %v3648 = vsel %vm3584, 1, 0
  %v3649 = vsel %vm3585, 1, 0
  %v3650 = vsel %vm3586, 1, 0
  %v3651 = vsel %vm3587, 1, 0
  %v3652 = vsel %vm3588, 1, 0
  %v3653 = vsel %vm3589, 1, 0
  %v3654 = vsel %vm3590, 1, 0
  %v3655 = vsel %vm3591, 1, 0
  %v3656 = vsel %vm3592, 1, 0
  %v3657 = vsel %vm3593, 1, 0
  %v3658 = vsel %vm3594, 1, 0
  %v3659 = vsel %vm3595, 1, 0
  %v3660 = vsel %vm3596, 1, 0
  %v3661 = vsel %vm3597, 1, 0
  %v3662 = vsel %vm3598, 1, 0
  %v3663 = vsel %vm3599, 1, 0
  %v3664 = vsel %vm3600, 1, 0
  %v3665 = vsel %vm3601, 1, 0
  %v3666 = vsel %vm3602, 1, 0
  %v3667 = vsel %vm3603, 1, 0
  %v3668 = vsel %vm3604, 1, 0
  %v3669 = vsel %vm3605, 1, 0
  %v3670 = vsel %vm3606, 1, 0
  %v3671 = vsel %vm3607, 1, 0
  %v3672 = vsel %vm3608, 1, 0
  %v3673 = vcvt.s32.f32 %v3609
  %v3674 = vcvt.s32.f32 %v3610
  %v3675 = vcvt.s32.f32 %v3611
  %v3676 = vcvt.s32.f32 %v3612
  %v3677 = vcvt.s32.f32 %v3613
  %v3678 = vcvt.s32.f32 %v3614
  %v3679 = vcvt.s32.f32 %v3615
  %v3680 = vcvt.s32.f32 %v3616
  %v3681 = vcvt.s32.f32 %v3617
  %v3682 = vcvt.s32.f32 %v3618
  %v3683 = vcvt.s32.f32 %v3619
  %v3684 = vcvt.s32.f32 %v3620
  %v3685 = vcvt.s32.f32 %v3621
  %v3686 = vcvt.s32.f32 %v3622
  %v3687 = vcvt.s32.f32 %v3623
  %v3688 = vcvt.s32.f32 %v3624
  %v3689 = vcvt.s32.f32 %v3625
  %v3690 = vcvt.s32.f32 %v3626
  %v3691 = vcvt.s32.f32 %v3627
  %v3692 = vcvt.s32.f32 %v3628
  %v3693 = vcvt.s32.f32 %v3629
  %v3694 = vcvt.s32.f32 %v3630
  %v3695 = vcvt.s32.f32 %v3631
  %v3696 = vcvt.s32.f32 %v3632
  %v3697 = vcvt.s32.f32 %v3633
  %v3698 = vcvt.s32.f32 %v3634
  %v3699 = vcvt.s32.f32 %v3635
  %v3700 = vcvt.s32.f32 %v3636
  %v3701 = vcvt.s32.f32 %v3637
  %v3702 = vcvt.s32.f32 %v3638
  %v3703 = vcvt.s32.f32 %v3639
  %v3704 = vcvt.s32.f32 %v3640
  %v3705 = vcvt.s32.f32 %v3641
  %v3706 = vcvt.s32.f32 %v3642
  %v3707 = vcvt.s32.f32 %v3643
  %v3708 = vcvt.s32.f32 %v3644
  %v3709 = vcvt.s32.f32 %v3645
  %v3710 = vcvt.s32.f32 %v3646
  %v3711 = vcvt.s32.f32 %v3647
  %v3712 = vcvt.s32.f32 %v3648
  %v3713 = vcvt.s32.f32 %v3649
  %v3714 = vcvt.s32.f32 %v3650
  %v3715 = vcvt.s32.f32 %v3651
  %v3716 = vcvt.s32.f32 %v3652
  %v3717 = vcvt.s32.f32 %v3653
  %v3718 = vcvt.s32.f32 %v3654
  %v3719 = vcvt.s32.f32 %v3655
  %v3720 = vcvt.s32.f32 %v3656
  %v3721 = vcvt.s32.f32 %v3657
  %v3722 = vcvt.s32.f32 %v3658
  %v3723 = vcvt.s32.f32 %v3659
  %v3724 = vcvt.s32.f32 %v3660
  %v3725 = vcvt.s32.f32 %v3661
  %v3726 = vcvt.s32.f32 %v3662
  %v3727 = vcvt.s32.f32 %v3663
  %v3728 = vcvt.s32.f32 %v3664
  %v3729 = vcvt.s32.f32 %v3665
  %v3730 = vcvt.s32.f32 %v3666
  %v3731 = vcvt.s32.f32 %v3667
  %v3732 = vcvt.s32.f32 %v3668
  %v3733 = vcvt.s32.f32 %v3669
  %v3734 = vcvt.s32.f32 %v3670
  %v3735 = vcvt.s32.f32 %v3671
  %v3736 = vcvt.s32.f32 %v3672
  %vm3737 = vcmp.lt.s32.totalorder %v37, 511
  %vm3738 = vcmp.lt.s32.totalorder %v38, 511
  %vm3739 = vcmp.lt.s32.totalorder %v39, 511
  %vm3740 = vcmp.lt.s32.totalorder %v40, 511
  %vm3741 = vcmp.lt.s32.totalorder %v41, 511
  %vm3742 = vcmp.lt.s32.totalorder %v42, 511
  %vm3743 = vcmp.lt.s32.totalorder %v43, 511
  %vm3744 = vcmp.lt.s32.totalorder %v44, 511
  %vm3745 = vcmp.lt.s32.totalorder %v45, 511
  %vm3746 = vcmp.lt.s32.totalorder %v46, 511
  %vm3747 = vcmp.lt.s32.totalorder %v47, 511
  %vm3748 = vcmp.lt.s32.totalorder %v48, 511
  %vm3749 = vcmp.lt.s32.totalorder %v49, 511
  %vm3750 = vcmp.lt.s32.totalorder %v50, 511
  %vm3751 = vcmp.lt.s32.totalorder %v51, 511
  %vm3752 = vcmp.lt.s32.totalorder %v52, 511
  %vm3753 = vcmp.lt.s32.totalorder %v53, 511
  %vm3754 = vcmp.lt.s32.totalorder %v54, 511
  %vm3755 = vcmp.lt.s32.totalorder %v55, 511
  %vm3756 = vcmp.lt.s32.totalorder %v56, 511
  %vm3757 = vcmp.lt.s32.totalorder %v57, 511
  %vm3758 = vcmp.lt.s32.totalorder %v58, 511
  %vm3759 = vcmp.lt.s32.totalorder %v59, 511
  %vm3760 = vcmp.lt.s32.totalorder %v60, 511
  %vm3761 = vcmp.lt.s32.totalorder %v61, 511
  %vm3762 = vcmp.lt.s32.totalorder %v62, 511
  %vm3763 = vcmp.lt.s32.totalorder %v63, 511
  %vm3764 = vcmp.lt.s32.totalorder %v64, 511
  %vm3765 = vcmp.lt.s32.totalorder %v65, 511
  %vm3766 = vcmp.lt.s32.totalorder %v66, 511
  %vm3767 = vcmp.lt.s32.totalorder %v67, 511
  %vm3768 = vcmp.lt.s32.totalorder %v68, 511
  %vm3769 = vcmp.lt.s32.totalorder %v69, 511
  %vm3770 = vcmp.lt.s32.totalorder %v70, 511
  %vm3771 = vcmp.lt.s32.totalorder %v71, 511
  %vm3772 = vcmp.lt.s32.totalorder %v72, 511
  %vm3773 = vcmp.lt.s32.totalorder %v73, 511
  %vm3774 = vcmp.lt.s32.totalorder %v74, 511
  %vm3775 = vcmp.lt.s32.totalorder %v75, 511
  %vm3776 = vcmp.lt.s32.totalorder %v76, 511
  %vm3777 = vcmp.lt.s32.totalorder %v77, 511
  %vm3778 = vcmp.lt.s32.totalorder %v78, 511
  %vm3779 = vcmp.lt.s32.totalorder %v79, 511
  %vm3780 = vcmp.lt.s32.totalorder %v80, 511
  %vm3781 = vcmp.lt.s32.totalorder %v81, 511
  %vm3782 = vcmp.lt.s32.totalorder %v82, 511
  %vm3783 = vcmp.lt.s32.totalorder %v83, 511
  %vm3784 = vcmp.lt.s32.totalorder %v84, 511
  %vm3785 = vcmp.lt.s32.totalorder %v85, 511
  %vm3786 = vcmp.lt.s32.totalorder %v86, 511
  %vm3787 = vcmp.lt.s32.totalorder %v87, 511
  %vm3788 = vcmp.lt.s32.totalorder %v88, 511
  %vm3789 = vcmp.lt.s32.totalorder %v89, 511
  %vm3790 = vcmp.lt.s32.totalorder %v90, 511
  %vm3791 = vcmp.lt.s32.totalorder %v91, 511
  %vm3792 = vcmp.lt.s32.totalorder %v92, 511
  %vm3793 = vcmp.lt.s32.totalorder %v93, 511
  %vm3794 = vcmp.lt.s32.totalorder %v94, 511
  %vm3795 = vcmp.lt.s32.totalorder %v95, 511
  %vm3796 = vcmp.lt.s32.totalorder %v96, 511
  %vm3797 = vcmp.lt.s32.totalorder %v97, 511
  %vm3798 = vcmp.lt.s32.totalorder %v98, 511
  %vm3799 = vcmp.lt.s32.totalorder %v99, 511
  %vm3800 = vcmp.lt.s32.totalorder %v100, 511
  %v3801 = vsel %vm3737, 1, 0
  %v3802 = vsel %vm3738, 1, 0
  %v3803 = vsel %vm3739, 1, 0
  %v3804 = vsel %vm3740, 1, 0
  %v3805 = vsel %vm3741, 1, 0
  %v3806 = vsel %vm3742, 1, 0
  %v3807 = vsel %vm3743, 1, 0
  %v3808 = vsel %vm3744, 1, 0
  %v3809 = vsel %vm3745, 1, 0
  %v3810 = vsel %vm3746, 1, 0
  %v3811 = vsel %vm3747, 1, 0
  %v3812 = vsel %vm3748, 1, 0
  %v3813 = vsel %vm3749, 1, 0
  %v3814 = vsel %vm3750, 1, 0
  %v3815 = vsel %vm3751, 1, 0
  %v3816 = vsel %vm3752, 1, 0
  %v3817 = vsel %vm3753, 1, 0
  %v3818 = vsel %vm3754, 1, 0
  %v3819 = vsel %vm3755, 1, 0
  %v3820 = vsel %vm3756, 1, 0
  %v3821 = vsel %vm3757, 1, 0
  %v3822 = vsel %vm3758, 1, 0
  %v3823 = vsel %vm3759, 1, 0
  %v3824 = vsel %vm3760, 1, 0
  %v3825 = vsel %vm3761, 1, 0
  %v3826 = vsel %vm3762, 1, 0
  %v3827 = vsel %vm3763, 1, 0
  %v3828 = vsel %vm3764, 1, 0
  %v3829 = vsel %vm3765, 1, 0
  %v3830 = vsel %vm3766, 1, 0
  %v3831 = vsel %vm3767, 1, 0
  %v3832 = vsel %vm3768, 1, 0
  %v3833 = vsel %vm3769, 1, 0
  %v3834 = vsel %vm3770, 1, 0
  %v3835 = vsel %vm3771, 1, 0
  %v3836 = vsel %vm3772, 1, 0
  %v3837 = vsel %vm3773, 1, 0
  %v3838 = vsel %vm3774, 1, 0
  %v3839 = vsel %vm3775, 1, 0
  %v3840 = vsel %vm3776, 1, 0
  %v3841 = vsel %vm3777, 1, 0
  %v3842 = vsel %vm3778, 1, 0
  %v3843 = vsel %vm3779, 1, 0
  %v3844 = vsel %vm3780, 1, 0
  %v3845 = vsel %vm3781, 1, 0
  %v3846 = vsel %vm3782, 1, 0
  %v3847 = vsel %vm3783, 1, 0
  %v3848 = vsel %vm3784, 1, 0
  %v3849 = vsel %vm3785, 1, 0
  %v3850 = vsel %vm3786, 1, 0
  %v3851 = vsel %vm3787, 1, 0
  %v3852 = vsel %vm3788, 1, 0
  %v3853 = vsel %vm3789, 1, 0
  %v3854 = vsel %vm3790, 1, 0
  %v3855 = vsel %vm3791, 1, 0
  %v3856 = vsel %vm3792, 1, 0
  %v3857 = vsel %vm3793, 1, 0
  %v3858 = vsel %vm3794, 1, 0
  %v3859 = vsel %vm3795, 1, 0
  %v3860 = vsel %vm3796, 1, 0
  %v3861 = vsel %vm3797, 1, 0
  %v3862 = vsel %vm3798, 1, 0
  %v3863 = vsel %vm3799, 1, 0
  %v3864 = vsel %vm3800, 1, 0
  %v3865 = vcvt.s32.f32 %v3801
  %v3866 = vcvt.s32.f32 %v3802
  %v3867 = vcvt.s32.f32 %v3803
  %v3868 = vcvt.s32.f32 %v3804
  %v3869 = vcvt.s32.f32 %v3805
  %v3870 = vcvt.s32.f32 %v3806
  %v3871 = vcvt.s32.f32 %v3807
  %v3872 = vcvt.s32.f32 %v3808
  %v3873 = vcvt.s32.f32 %v3809
  %v3874 = vcvt.s32.f32 %v3810
  %v3875 = vcvt.s32.f32 %v3811
  %v3876 = vcvt.s32.f32 %v3812
  %v3877 = vcvt.s32.f32 %v3813
  %v3878 = vcvt.s32.f32 %v3814
  %v3879 = vcvt.s32.f32 %v3815
  %v3880 = vcvt.s32.f32 %v3816
  %v3881 = vcvt.s32.f32 %v3817
  %v3882 = vcvt.s32.f32 %v3818
  %v3883 = vcvt.s32.f32 %v3819
  %v3884 = vcvt.s32.f32 %v3820
  %v3885 = vcvt.s32.f32 %v3821
  %v3886 = vcvt.s32.f32 %v3822
  %v3887 = vcvt.s32.f32 %v3823
  %v3888 = vcvt.s32.f32 %v3824
  %v3889 = vcvt.s32.f32 %v3825
  %v3890 = vcvt.s32.f32 %v3826
  %v3891 = vcvt.s32.f32 %v3827
  %v3892 = vcvt.s32.f32 %v3828
  %v3893 = vcvt.s32.f32 %v3829
  %v3894 = vcvt.s32.f32 %v3830
  %v3895 = vcvt.s32.f32 %v3831
  %v3896 = vcvt.s32.f32 %v3832
  %v3897 = vcvt.s32.f32 %v3833
  %v3898 = vcvt.s32.f32 %v3834
  %v3899 = vcvt.s32.f32 %v3835
  %v3900 = vcvt.s32.f32 %v3836
  %v3901 = vcvt.s32.f32 %v3837
  %v3902 = vcvt.s32.f32 %v3838
  %v3903 = vcvt.s32.f32 %v3839
  %v3904 = vcvt.s32.f32 %v3840
  %v3905 = vcvt.s32.f32 %v3841
  %v3906 = vcvt.s32.f32 %v3842
  %v3907 = vcvt.s32.f32 %v3843
  %v3908 = vcvt.s32.f32 %v3844
  %v3909 = vcvt.s32.f32 %v3845
  %v3910 = vcvt.s32.f32 %v3846
  %v3911 = vcvt.s32.f32 %v3847
  %v3912 = vcvt.s32.f32 %v3848
  %v3913 = vcvt.s32.f32 %v3849
  %v3914 = vcvt.s32.f32 %v3850
  %v3915 = vcvt.s32.f32 %v3851
  %v3916 = vcvt.s32.f32 %v3852
  %v3917 = vcvt.s32.f32 %v3853
  %v3918 = vcvt.s32.f32 %v3854
  %v3919 = vcvt.s32.f32 %v3855
  %v3920 = vcvt.s32.f32 %v3856
  %v3921 = vcvt.s32.f32 %v3857
  %v3922 = vcvt.s32.f32 %v3858
  %v3923 = vcvt.s32.f32 %v3859
  %v3924 = vcvt.s32.f32 %v3860
  %v3925 = vcvt.s32.f32 %v3861
  %v3926 = vcvt.s32.f32 %v3862
  %v3927 = vcvt.s32.f32 %v3863
  %v3928 = vcvt.s32.f32 %v3864
  %v3929 = vld [vmem:[%s7] sm:$0x1]
  %v3931 = vlaneseq
  %v3932 = vshrl.u32 %v3931, 7
  %v3933 = vsub.s32 0, %v3932
  %v3934 = vrot.slane %v3929, %v3933
  %v3936 = vadd.f32 %v3281, %v3934
  %v3937 = vadd.f32 %v3282, %v3934
  %v3938 = vadd.f32 %v3283, %v3934
  %v3939 = vadd.f32 %v3284, %v3934
  %v3940 = vadd.f32 %v3285, %v3934
  %v3941 = vadd.f32 %v3286, %v3934
  %v3942 = vadd.f32 %v3287, %v3934
  %v3943 = vadd.f32 %v3288, %v3934
  %v3944 = vadd.f32 %v3289, %v3934
  %v3945 = vadd.f32 %v3290, %v3934
  %v3946 = vadd.f32 %v3291, %v3934
  %v3947 = vadd.f32 %v3292, %v3934
  %v3948 = vadd.f32 %v3293, %v3934
  %v3949 = vadd.f32 %v3294, %v3934
  %v3950 = vadd.f32 %v3295, %v3934
  %v3951 = vadd.f32 %v3296, %v3934
  %v3952 = vadd.f32 %v3297, %v3934
  %v3953 = vadd.f32 %v3298, %v3934
  %v3954 = vadd.f32 %v3299, %v3934
  %v3955 = vadd.f32 %v3300, %v3934
  %v3956 = vadd.f32 %v3301, %v3934
  %v3957 = vadd.f32 %v3302, %v3934
  %v3958 = vadd.f32 %v3303, %v3934
  %v3959 = vadd.f32 %v3304, %v3934
  %v3960 = vadd.f32 %v3305, %v3934
  %v3961 = vadd.f32 %v3306, %v3934
  %v3962 = vadd.f32 %v3307, %v3934
  %v3963 = vadd.f32 %v3308, %v3934
  %v3964 = vadd.f32 %v3309, %v3934
  %v3965 = vadd.f32 %v3310, %v3934
  %v3966 = vadd.f32 %v3311, %v3934
  %v3967 = vadd.f32 %v3312, %v3934
  %v3968 = vadd.f32 %v3313, %v3934
  %v3969 = vadd.f32 %v3314, %v3934
  %v3970 = vadd.f32 %v3315, %v3934
  %v3971 = vadd.f32 %v3316, %v3934
  %v3972 = vadd.f32 %v3317, %v3934
  %v3973 = vadd.f32 %v3318, %v3934
  %v3974 = vadd.f32 %v3319, %v3934
  %v3975 = vadd.f32 %v3320, %v3934
  %v3976 = vadd.f32 %v3321, %v3934
  %v3977 = vadd.f32 %v3322, %v3934
  %v3978 = vadd.f32 %v3323, %v3934
  %v3979 = vadd.f32 %v3324, %v3934
  %v3980 = vadd.f32 %v3325, %v3934
  %v3981 = vadd.f32 %v3326, %v3934
  %v3982 = vadd.f32 %v3327, %v3934
  %v3983 = vadd.f32 %v3328, %v3934
  %v3984 = vadd.f32 %v3329, %v3934
  %v3985 = vadd.f32 %v3330, %v3934
  %v3986 = vadd.f32 %v3331, %v3934
  %v3987 = vadd.f32 %v3332, %v3934
  %v3988 = vadd.f32 %v3333, %v3934
  %v3989 = vadd.f32 %v3334, %v3934
  %v3990 = vadd.f32 %v3335, %v3934
  %v3991 = vadd.f32 %v3336, %v3934
  %v3992 = vadd.f32 %v3337, %v3934
  %v3993 = vadd.f32 %v3338, %v3934
  %v3994 = vadd.f32 %v3339, %v3934
  %v3995 = vadd.f32 %v3340, %v3934
  %v3996 = vadd.f32 %v3341, %v3934
  %v3997 = vadd.f32 %v3342, %v3934
  %v3998 = vadd.f32 %v3343, %v3934
  %v3999 = vadd.f32 %v3344, %v3934
  %v4000 = vrot.slane %v3081, 7
  %v4001 = vrot.slane %v3082, 7
  %v4002 = vrot.slane %v3083, 7
  %v4003 = vrot.slane %v3084, 7
  %v4004 = vrot.slane %v3085, 7
  %v4005 = vrot.slane %v3086, 7
  %v4006 = vrot.slane %v3087, 7
  %v4007 = vrot.slane %v3088, 7
  %v4008 = vrot.slane %v3089, 7
  %v4009 = vrot.slane %v3090, 7
  %v4010 = vrot.slane %v3091, 7
  %v4011 = vrot.slane %v3092, 7
  %v4012 = vrot.slane %v3093, 7
  %v4013 = vrot.slane %v3094, 7
  %v4014 = vrot.slane %v3095, 7
  %v4015 = vrot.slane %v3096, 7
  %v4016 = vrot.slane %v3097, 7
  %v4017 = vrot.slane %v3098, 7
  %v4018 = vrot.slane %v3099, 7
  %v4019 = vrot.slane %v3100, 7
  %v4020 = vrot.slane %v3101, 7
  %v4021 = vrot.slane %v3102, 7
  %v4022 = vrot.slane %v3103, 7
  %v4023 = vrot.slane %v3104, 7
  %v4024 = vrot.slane %v3105, 7
  %v4025 = vrot.slane %v3106, 7
  %v4026 = vrot.slane %v3107, 7
  %v4027 = vrot.slane %v3108, 7
  %v4028 = vrot.slane %v3109, 7
  %v4029 = vrot.slane %v3110, 7
  %v4030 = vrot.slane %v3111, 7
  %v4031 = vrot.slane %v3112, 7
  %v4032 = vrot.slane %v3113, 7
  %v4033 = vrot.slane %v3114, 7
  %v4034 = vrot.slane %v3115, 7
  %v4035 = vrot.slane %v3116, 7
  %v4036 = vrot.slane %v3117, 7
  %v4037 = vrot.slane %v3118, 7
  %v4038 = vrot.slane %v3119, 7
  %v4039 = vrot.slane %v3120, 7
  %v4040 = vrot.slane %v3121, 7
  %v4041 = vrot.slane %v3122, 7
  %v4042 = vrot.slane %v3123, 7
  %v4043 = vrot.slane %v3124, 7
  %v4044 = vrot.slane %v3125, 7
  %v4045 = vrot.slane %v3126, 7
  %v4046 = vrot.slane %v3127, 7
  %v4047 = vrot.slane %v3128, 7
  %v4048 = vrot.slane %v3129, 7
  %v4049 = vrot.slane %v3130, 7
  %v4050 = vrot.slane %v3131, 7
  %v4051 = vrot.slane %v3132, 7
  %v4052 = vrot.slane %v3133, 7
  %v4053 = vrot.slane %v3134, 7
  %v4054 = vrot.slane %v3135, 7
  %v4055 = vrot.slane %v3136, 7
  %v4056 = vrot.slane %v3137, 7
  %v4057 = vrot.slane %v3138, 7
  %v4058 = vrot.slane %v3139, 7
  %v4059 = vrot.slane %v3140, 7
  %v4060 = vrot.slane %v3141, 7
  %v4061 = vrot.slane %v3142, 7
  %v4062 = vrot.slane %v3143, 7
  %v4063 = vrot.slane %v3144, 7
  %vm4064 = vcmp.lt.s32.totalorder %v37, 1
  %v4065 = vsel %vm4064, %v4062, %v4063
  %v4066 = vsel %vm4064, %v4061, %v4062
  %v4067 = vsel %vm4064, %v4060, %v4061
  %v4068 = vsel %vm4064, %v4059, %v4060
  %v4069 = vsel %vm4064, %v4058, %v4059
  %v4070 = vsel %vm4064, %v4057, %v4058
  %v4071 = vsel %vm4064, %v4056, %v4057
  %v4072 = vsel %vm4064, %v4055, %v4056
  %v4073 = vsel %vm4064, %v4054, %v4055
  %v4074 = vsel %vm4064, %v4053, %v4054
  %v4075 = vsel %vm4064, %v4052, %v4053
  %v4076 = vsel %vm4064, %v4051, %v4052
  %v4077 = vsel %vm4064, %v4050, %v4051
  %v4078 = vsel %vm4064, %v4049, %v4050
  %v4079 = vsel %vm4064, %v4048, %v4049
  %v4080 = vsel %vm4064, %v4047, %v4048
  %v4081 = vsel %vm4064, %v4046, %v4047
  %v4082 = vsel %vm4064, %v4045, %v4046
  %v4083 = vsel %vm4064, %v4044, %v4045
  %v4084 = vsel %vm4064, %v4043, %v4044
  %v4085 = vsel %vm4064, %v4042, %v4043
  %v4086 = vsel %vm4064, %v4041, %v4042
  %v4087 = vsel %vm4064, %v4040, %v4041
  %v4088 = vsel %vm4064, %v4039, %v4040
  %v4089 = vsel %vm4064, %v4038, %v4039
  %v4090 = vsel %vm4064, %v4037, %v4038
  %v4091 = vsel %vm4064, %v4036, %v4037
  %v4092 = vsel %vm4064, %v4035, %v4036
  %v4093 = vsel %vm4064, %v4034, %v4035
  %v4094 = vsel %vm4064, %v4033, %v4034
  %v4095 = vsel %vm4064, %v4032, %v4033
  %v4096 = vsel %vm4064, %v4031, %v4032
  %v4097 = vsel %vm4064, %v4030, %v4031
  %v4098 = vsel %vm4064, %v4029, %v4030
  %v4099 = vsel %vm4064, %v4028, %v4029
  %v4100 = vsel %vm4064, %v4027, %v4028
  %v4101 = vsel %vm4064, %v4026, %v4027
  %v4102 = vsel %vm4064, %v4025, %v4026
  %v4103 = vsel %vm4064, %v4024, %v4025
  %v4104 = vsel %vm4064, %v4023, %v4024
  %v4105 = vsel %vm4064, %v4022, %v4023
  %v4106 = vsel %vm4064, %v4021, %v4022
  %v4107 = vsel %vm4064, %v4020, %v4021
  %v4108 = vsel %vm4064, %v4019, %v4020
  %v4109 = vsel %vm4064, %v4018, %v4019
  %v4110 = vsel %vm4064, %v4017, %v4018
  %v4111 = vsel %vm4064, %v4016, %v4017
  %v4112 = vsel %vm4064, %v4015, %v4016
  %v4113 = vsel %vm4064, %v4014, %v4015
  %v4114 = vsel %vm4064, %v4013, %v4014
  %v4115 = vsel %vm4064, %v4012, %v4013
  %v4116 = vsel %vm4064, %v4011, %v4012
  %v4117 = vsel %vm4064, %v4010, %v4011
  %v4118 = vsel %vm4064, %v4009, %v4010
  %v4119 = vsel %vm4064, %v4008, %v4009
  %v4120 = vsel %vm4064, %v4007, %v4008
  %v4121 = vsel %vm4064, %v4006, %v4007
  %v4122 = vsel %vm4064, %v4005, %v4006
  %v4123 = vsel %vm4064, %v4004, %v4005
  %v4124 = vsel %vm4064, %v4003, %v4004
  %v4125 = vsel %vm4064, %v4002, %v4003
  %v4126 = vsel %vm4064, %v4001, %v4002
  %v4127 = vsel %vm4064, %v4000, %v4001
  %v4128 = vsel %vm4064, %v4063, %v4000
  %v4129 = vmul.f32 %v4128, %v3673
  %v4130 = vmul.f32 %v4127, %v3674
  %v4131 = vmul.f32 %v4126, %v3675
  %v4132 = vmul.f32 %v4125, %v3676
  %v4133 = vmul.f32 %v4124, %v3677
  %v4134 = vmul.f32 %v4123, %v3678
  %v4135 = vmul.f32 %v4122, %v3679
  %v4136 = vmul.f32 %v4121, %v3680
  %v4137 = vmul.f32 %v4120, %v3681
  %v4138 = vmul.f32 %v4119, %v3682
  %v4139 = vmul.f32 %v4118, %v3683
  %v4140 = vmul.f32 %v4117, %v3684
  %v4141 = vmul.f32 %v4116, %v3685
  %v4142 = vmul.f32 %v4115, %v3686
  %v4143 = vmul.f32 %v4114, %v3687
  %v4144 = vmul.f32 %v4113, %v3688
  %v4145 = vmul.f32 %v4112, %v3689
  %v4146 = vmul.f32 %v4111, %v3690
  %v4147 = vmul.f32 %v4110, %v3691
  %v4148 = vmul.f32 %v4109, %v3692
  %v4149 = vmul.f32 %v4108, %v3693
  %v4150 = vmul.f32 %v4107, %v3694
  %v4151 = vmul.f32 %v4106, %v3695
  %v4152 = vmul.f32 %v4105, %v3696
  %v4153 = vmul.f32 %v4104, %v3697
  %v4154 = vmul.f32 %v4103, %v3698
  %v4155 = vmul.f32 %v4102, %v3699
  %v4156 = vmul.f32 %v4101, %v3700
  %v4157 = vmul.f32 %v4100, %v3701
  %v4158 = vmul.f32 %v4099, %v3702
  %v4159 = vmul.f32 %v4098, %v3703
  %v4160 = vmul.f32 %v4097, %v3704
  %v4161 = vmul.f32 %v4096, %v3705
  %v4162 = vmul.f32 %v4095, %v3706
  %v4163 = vmul.f32 %v4094, %v3707
  %v4164 = vmul.f32 %v4093, %v3708
  %v4165 = vmul.f32 %v4092, %v3709
  %v4166 = vmul.f32 %v4091, %v3710
  %v4167 = vmul.f32 %v4090, %v3711
  %v4168 = vmul.f32 %v4089, %v3712
  %v4169 = vmul.f32 %v4088, %v3713
  %v4170 = vmul.f32 %v4087, %v3714
  %v4171 = vmul.f32 %v4086, %v3715
  %v4172 = vmul.f32 %v4085, %v3716
  %v4173 = vmul.f32 %v4084, %v3717
  %v4174 = vmul.f32 %v4083, %v3718
  %v4175 = vmul.f32 %v4082, %v3719
  %v4176 = vmul.f32 %v4081, %v3720
  %v4177 = vmul.f32 %v4080, %v3721
  %v4178 = vmul.f32 %v4079, %v3722
  %v4179 = vmul.f32 %v4078, %v3723
  %v4180 = vmul.f32 %v4077, %v3724
  %v4181 = vmul.f32 %v4076, %v3725
  %v4182 = vmul.f32 %v4075, %v3726
  %v4183 = vmul.f32 %v4074, %v3727
  %v4184 = vmul.f32 %v4073, %v3728
  %v4185 = vmul.f32 %v4072, %v3729
  %v4186 = vmul.f32 %v4071, %v3730
  %v4187 = vmul.f32 %v4070, %v3731
  %v4188 = vmul.f32 %v4069, %v3732
  %v4189 = vmul.f32 %v4068, %v3733
  %v4190 = vmul.f32 %v4067, %v3734
  %v4191 = vmul.f32 %v4066, %v3735
  %v4192 = vmul.f32 %v4065, %v3736
  %v4193 = vadd.f32 %v3936, %v4129
  %v4194 = vadd.f32 %v3937, %v4130
  %v4195 = vadd.f32 %v3938, %v4131
  %v4196 = vadd.f32 %v3939, %v4132
  %v4197 = vadd.f32 %v3940, %v4133
  %v4198 = vadd.f32 %v3941, %v4134
  %v4199 = vadd.f32 %v3942, %v4135
  %v4200 = vadd.f32 %v3943, %v4136
  %v4201 = vadd.f32 %v3944, %v4137
  %v4202 = vadd.f32 %v3945, %v4138
  %v4203 = vadd.f32 %v3946, %v4139
  %v4204 = vadd.f32 %v3947, %v4140
  %v4205 = vadd.f32 %v3948, %v4141
  %v4206 = vadd.f32 %v3949, %v4142
  %v4207 = vadd.f32 %v3950, %v4143
  %v4208 = vadd.f32 %v3951, %v4144
  %v4209 = vadd.f32 %v3952, %v4145
  %v4210 = vadd.f32 %v3953, %v4146
  %v4211 = vadd.f32 %v3954, %v4147
  %v4212 = vadd.f32 %v3955, %v4148
  %v4213 = vadd.f32 %v3956, %v4149
  %v4214 = vadd.f32 %v3957, %v4150
  %v4215 = vadd.f32 %v3958, %v4151
  %v4216 = vadd.f32 %v3959, %v4152
  %v4217 = vadd.f32 %v3960, %v4153
  %v4218 = vadd.f32 %v3961, %v4154
  %v4219 = vadd.f32 %v3962, %v4155
  %v4220 = vadd.f32 %v3963, %v4156
  %v4221 = vadd.f32 %v3964, %v4157
  %v4222 = vadd.f32 %v3965, %v4158
  %v4223 = vadd.f32 %v3966, %v4159
  %v4224 = vadd.f32 %v3967, %v4160
  %v4225 = vadd.f32 %v3968, %v4161
  %v4226 = vadd.f32 %v3969, %v4162
  %v4227 = vadd.f32 %v3970, %v4163
  %v4228 = vadd.f32 %v3971, %v4164
  %v4229 = vadd.f32 %v3972, %v4165
  %v4230 = vadd.f32 %v3973, %v4166
  %v4231 = vadd.f32 %v3974, %v4167
  %v4232 = vadd.f32 %v3975, %v4168
  %v4233 = vadd.f32 %v3976, %v4169
  %v4234 = vadd.f32 %v3977, %v4170
  %v4235 = vadd.f32 %v3978, %v4171
  %v4236 = vadd.f32 %v3979, %v4172
  %v4237 = vadd.f32 %v3980, %v4173
  %v4238 = vadd.f32 %v3981, %v4174
  %v4239 = vadd.f32 %v3982, %v4175
  %v4240 = vadd.f32 %v3983, %v4176
  %v4241 = vadd.f32 %v3984, %v4177
  %v4242 = vadd.f32 %v3985, %v4178
  %v4243 = vadd.f32 %v3986, %v4179
  %v4244 = vadd.f32 %v3987, %v4180
  %v4245 = vadd.f32 %v3988, %v4181
  %v4246 = vadd.f32 %v3989, %v4182
  %v4247 = vadd.f32 %v3990, %v4183
  %v4248 = vadd.f32 %v3991, %v4184
  %v4249 = vadd.f32 %v3992, %v4185
  %v4250 = vadd.f32 %v3993, %v4186
  %v4251 = vadd.f32 %v3994, %v4187
  %v4252 = vadd.f32 %v3995, %v4188
  %v4253 = vadd.f32 %v3996, %v4189
  %v4254 = vadd.f32 %v3997, %v4190
  %v4255 = vadd.f32 %v3998, %v4191
  %v4256 = vadd.f32 %v3999, %v4192
  %v4257 = vrot.slane %v3481, 1
  %v4258 = vrot.slane %v3482, 1
  %v4259 = vrot.slane %v3483, 1
  %v4260 = vrot.slane %v3484, 1
  %v4261 = vrot.slane %v3485, 1
  %v4262 = vrot.slane %v3486, 1
  %v4263 = vrot.slane %v3487, 1
  %v4264 = vrot.slane %v3488, 1
  %v4265 = vrot.slane %v3489, 1
  %v4266 = vrot.slane %v3490, 1
  %v4267 = vrot.slane %v3491, 1
  %v4268 = vrot.slane %v3492, 1
  %v4269 = vrot.slane %v3493, 1
  %v4270 = vrot.slane %v3494, 1
  %v4271 = vrot.slane %v3495, 1
  %v4272 = vrot.slane %v3496, 1
  %v4273 = vrot.slane %v3497, 1
  %v4274 = vrot.slane %v3498, 1
  %v4275 = vrot.slane %v3499, 1
  %v4276 = vrot.slane %v3500, 1
  %v4277 = vrot.slane %v3501, 1
  %v4278 = vrot.slane %v3502, 1
  %v4279 = vrot.slane %v3503, 1
  %v4280 = vrot.slane %v3504, 1
  %v4281 = vrot.slane %v3505, 1
  %v4282 = vrot.slane %v3506, 1
  %v4283 = vrot.slane %v3507, 1
  %v4284 = vrot.slane %v3508, 1
  %v4285 = vrot.slane %v3509, 1
  %v4286 = vrot.slane %v3510, 1
  %v4287 = vrot.slane %v3511, 1
  %v4288 = vrot.slane %v3512, 1
  %v4289 = vrot.slane %v3513, 1
  %v4290 = vrot.slane %v3514, 1
  %v4291 = vrot.slane %v3515, 1
  %v4292 = vrot.slane %v3516, 1
  %v4293 = vrot.slane %v3517, 1
  %v4294 = vrot.slane %v3518, 1
  %v4295 = vrot.slane %v3519, 1
  %v4296 = vrot.slane %v3520, 1
  %v4297 = vrot.slane %v3521, 1
  %v4298 = vrot.slane %v3522, 1
  %v4299 = vrot.slane %v3523, 1
  %v4300 = vrot.slane %v3524, 1
  %v4301 = vrot.slane %v3525, 1
  %v4302 = vrot.slane %v3526, 1
  %v4303 = vrot.slane %v3527, 1
  %v4304 = vrot.slane %v3528, 1
  %v4305 = vrot.slane %v3529, 1
  %v4306 = vrot.slane %v3530, 1
  %v4307 = vrot.slane %v3531, 1
  %v4308 = vrot.slane %v3532, 1
  %v4309 = vrot.slane %v3533, 1
  %v4310 = vrot.slane %v3534, 1
  %v4311 = vrot.slane %v3535, 1
  %v4312 = vrot.slane %v3536, 1
  %v4313 = vrot.slane %v3537, 1
  %v4314 = vrot.slane %v3538, 1
  %v4315 = vrot.slane %v3539, 1
  %v4316 = vrot.slane %v3540, 1
  %v4317 = vrot.slane %v3541, 1
  %v4318 = vrot.slane %v3542, 1
  %v4319 = vrot.slane %v3543, 1
  %v4320 = vrot.slane %v3544, 1
  %vm4321 = vcmp.lt.s32.totalorder %v37, 7
  %v4322 = vsel %vm4321, %v4319, %v4320
  %v4323 = vsel %vm4321, %v4318, %v4319
  %v4324 = vsel %vm4321, %v4317, %v4318
  %v4325 = vsel %vm4321, %v4316, %v4317
  %v4326 = vsel %vm4321, %v4315, %v4316
  %v4327 = vsel %vm4321, %v4314, %v4315
  %v4328 = vsel %vm4321, %v4313, %v4314
  %v4329 = vsel %vm4321, %v4312, %v4313
  %v4330 = vsel %vm4321, %v4311, %v4312
  %v4331 = vsel %vm4321, %v4310, %v4311
  %v4332 = vsel %vm4321, %v4309, %v4310
  %v4333 = vsel %vm4321, %v4308, %v4309
  %v4334 = vsel %vm4321, %v4307, %v4308
  %v4335 = vsel %vm4321, %v4306, %v4307
  %v4336 = vsel %vm4321, %v4305, %v4306
  %v4337 = vsel %vm4321, %v4304, %v4305
  %v4338 = vsel %vm4321, %v4303, %v4304
  %v4339 = vsel %vm4321, %v4302, %v4303
  %v4340 = vsel %vm4321, %v4301, %v4302
  %v4341 = vsel %vm4321, %v4300, %v4301
  %v4342 = vsel %vm4321, %v4299, %v4300
  %v4343 = vsel %vm4321, %v4298, %v4299
  %v4344 = vsel %vm4321, %v4297, %v4298
  %v4345 = vsel %vm4321, %v4296, %v4297
  %v4346 = vsel %vm4321, %v4295, %v4296
  %v4347 = vsel %vm4321, %v4294, %v4295
  %v4348 = vsel %vm4321, %v4293, %v4294
  %v4349 = vsel %vm4321, %v4292, %v4293
  %v4350 = vsel %vm4321, %v4291, %v4292
  %v4351 = vsel %vm4321, %v4290, %v4291
  %v4352 = vsel %vm4321, %v4289, %v4290
  %v4353 = vsel %vm4321, %v4288, %v4289
  %v4354 = vsel %vm4321, %v4287, %v4288
  %v4355 = vsel %vm4321, %v4286, %v4287
  %v4356 = vsel %vm4321, %v4285, %v4286
  %v4357 = vsel %vm4321, %v4284, %v4285
  %v4358 = vsel %vm4321, %v4283, %v4284
  %v4359 = vsel %vm4321, %v4282, %v4283
  %v4360 = vsel %vm4321, %v4281, %v4282
  %v4361 = vsel %vm4321, %v4280, %v4281
  %v4362 = vsel %vm4321, %v4279, %v4280
  %v4363 = vsel %vm4321, %v4278, %v4279
  %v4364 = vsel %vm4321, %v4277, %v4278
  %v4365 = vsel %vm4321, %v4276, %v4277
  %v4366 = vsel %vm4321, %v4275, %v4276
  %v4367 = vsel %vm4321, %v4274, %v4275
  %v4368 = vsel %vm4321, %v4273, %v4274
  %v4369 = vsel %vm4321, %v4272, %v4273
  %v4370 = vsel %vm4321, %v4271, %v4272
  %v4371 = vsel %vm4321, %v4270, %v4271
  %v4372 = vsel %vm4321, %v4269, %v4270
  %v4373 = vsel %vm4321, %v4268, %v4269
  %v4374 = vsel %vm4321, %v4267, %v4268
  %v4375 = vsel %vm4321, %v4266, %v4267
  %v4376 = vsel %vm4321, %v4265, %v4266
  %v4377 = vsel %vm4321, %v4264, %v4265
  %v4378 = vsel %vm4321, %v4263, %v4264
  %v4379 = vsel %vm4321, %v4262, %v4263
  %v4380 = vsel %vm4321, %v4261, %v4262
  %v4381 = vsel %vm4321, %v4260, %v4261
  %v4382 = vsel %vm4321, %v4259, %v4260
  %v4383 = vsel %vm4321, %v4258, %v4259
  %v4384 = vsel %vm4321, %v4257, %v4258
  %v4385 = vsel %vm4321, %v4320, %v4257
  %v4386 = vmul.f32 %v4384, %v3865
  %v4387 = vmul.f32 %v4383, %v3866
  %v4388 = vmul.f32 %v4382, %v3867
  %v4389 = vmul.f32 %v4381, %v3868
  %v4390 = vmul.f32 %v4380, %v3869
  %v4391 = vmul.f32 %v4379, %v3870
  %v4392 = vmul.f32 %v4378, %v3871
  %v4393 = vmul.f32 %v4377, %v3872
  %v4394 = vmul.f32 %v4376, %v3873
  %v4395 = vmul.f32 %v4375, %v3874
  %v4396 = vmul.f32 %v4374, %v3875
  %v4397 = vmul.f32 %v4373, %v3876
  %v4398 = vmul.f32 %v4372, %v3877
  %v4399 = vmul.f32 %v4371, %v3878
  %v4400 = vmul.f32 %v4370, %v3879
  %v4401 = vmul.f32 %v4369, %v3880
  %v4402 = vmul.f32 %v4368, %v3881
  %v4403 = vmul.f32 %v4367, %v3882
  %v4404 = vmul.f32 %v4366, %v3883
  %v4405 = vmul.f32 %v4365, %v3884
  %v4406 = vmul.f32 %v4364, %v3885
  %v4407 = vmul.f32 %v4363, %v3886
  %v4408 = vmul.f32 %v4362, %v3887
  %v4409 = vmul.f32 %v4361, %v3888
  %v4410 = vmul.f32 %v4360, %v3889
  %v4411 = vmul.f32 %v4359, %v3890
  %v4412 = vmul.f32 %v4358, %v3891
  %v4413 = vmul.f32 %v4357, %v3892
  %v4414 = vmul.f32 %v4356, %v3893
  %v4415 = vmul.f32 %v4355, %v3894
  %v4416 = vmul.f32 %v4354, %v3895
  %v4417 = vmul.f32 %v4353, %v3896
  %v4418 = vmul.f32 %v4352, %v3897
  %v4419 = vmul.f32 %v4351, %v3898
  %v4420 = vmul.f32 %v4350, %v3899
  %v4421 = vmul.f32 %v4349, %v3900
  %v4422 = vmul.f32 %v4348, %v3901
  %v4423 = vmul.f32 %v4347, %v3902
  %v4424 = vmul.f32 %v4346, %v3903
  %v4425 = vmul.f32 %v4345, %v3904
  %v4426 = vmul.f32 %v4344, %v3905
  %v4427 = vmul.f32 %v4343, %v3906
  %v4428 = vmul.f32 %v4342, %v3907
  %v4429 = vmul.f32 %v4341, %v3908
  %v4430 = vmul.f32 %v4340, %v3909
  %v4431 = vmul.f32 %v4339, %v3910
  %v4432 = vmul.f32 %v4338, %v3911
  %v4433 = vmul.f32 %v4337, %v3912
  %v4434 = vmul.f32 %v4336, %v3913
  %v4435 = vmul.f32 %v4335, %v3914
  %v4436 = vmul.f32 %v4334, %v3915
  %v4437 = vmul.f32 %v4333, %v3916
  %v4438 = vmul.f32 %v4332, %v3917
  %v4439 = vmul.f32 %v4331, %v3918
  %v4440 = vmul.f32 %v4330, %v3919
  %v4441 = vmul.f32 %v4329, %v3920
  %v4442 = vmul.f32 %v4328, %v3921
  %v4443 = vmul.f32 %v4327, %v3922
  %v4444 = vmul.f32 %v4326, %v3923
  %v4445 = vmul.f32 %v4325, %v3924
  %v4446 = vmul.f32 %v4324, %v3925
  %v4447 = vmul.f32 %v4323, %v3926
  %v4448 = vmul.f32 %v4322, %v3927
  %v4449 = vmul.f32 %v4385, %v3928
  %v4450 = vadd.f32 %v4193, %v4386
  %v4451 = vadd.f32 %v4194, %v4387
  %v4452 = vadd.f32 %v4195, %v4388
  %v4453 = vadd.f32 %v4196, %v4389
  %v4454 = vadd.f32 %v4197, %v4390
  %v4455 = vadd.f32 %v4198, %v4391
  %v4456 = vadd.f32 %v4199, %v4392
  %v4457 = vadd.f32 %v4200, %v4393
  %v4458 = vadd.f32 %v4201, %v4394
  %v4459 = vadd.f32 %v4202, %v4395
  %v4460 = vadd.f32 %v4203, %v4396
  %v4461 = vadd.f32 %v4204, %v4397
  %v4462 = vadd.f32 %v4205, %v4398
  %v4463 = vadd.f32 %v4206, %v4399
  %v4464 = vadd.f32 %v4207, %v4400
  %v4465 = vadd.f32 %v4208, %v4401
  %v4466 = vadd.f32 %v4209, %v4402
  %v4467 = vadd.f32 %v4210, %v4403
  %v4468 = vadd.f32 %v4211, %v4404
  %v4469 = vadd.f32 %v4212, %v4405
  %v4470 = vadd.f32 %v4213, %v4406
  %v4471 = vadd.f32 %v4214, %v4407
  %v4472 = vadd.f32 %v4215, %v4408
  %v4473 = vadd.f32 %v4216, %v4409
  %v4474 = vadd.f32 %v4217, %v4410
  %v4475 = vadd.f32 %v4218, %v4411
  %v4476 = vadd.f32 %v4219, %v4412
  %v4477 = vadd.f32 %v4220, %v4413
  %v4478 = vadd.f32 %v4221, %v4414
  %v4479 = vadd.f32 %v4222, %v4415
  %v4480 = vadd.f32 %v4223, %v4416
  %v4481 = vadd.f32 %v4224, %v4417
  %v4482 = vadd.f32 %v4225, %v4418
  %v4483 = vadd.f32 %v4226, %v4419
  %v4484 = vadd.f32 %v4227, %v4420
  %v4485 = vadd.f32 %v4228, %v4421
  %v4486 = vadd.f32 %v4229, %v4422
  %v4487 = vadd.f32 %v4230, %v4423
  %v4488 = vadd.f32 %v4231, %v4424
  %v4489 = vadd.f32 %v4232, %v4425
  %v4490 = vadd.f32 %v4233, %v4426
  %v4491 = vadd.f32 %v4234, %v4427
  %v4492 = vadd.f32 %v4235, %v4428
  %v4493 = vadd.f32 %v4236, %v4429
  %v4494 = vadd.f32 %v4237, %v4430
  %v4495 = vadd.f32 %v4238, %v4431
  %v4496 = vadd.f32 %v4239, %v4432
  %v4497 = vadd.f32 %v4240, %v4433
  %v4498 = vadd.f32 %v4241, %v4434
  %v4499 = vadd.f32 %v4242, %v4435
  %v4500 = vadd.f32 %v4243, %v4436
  %v4501 = vadd.f32 %v4244, %v4437
  %v4502 = vadd.f32 %v4245, %v4438
  %v4503 = vadd.f32 %v4246, %v4439
  %v4504 = vadd.f32 %v4247, %v4440
  %v4505 = vadd.f32 %v4248, %v4441
  %v4506 = vadd.f32 %v4249, %v4442
  %v4507 = vadd.f32 %v4250, %v4443
  %v4508 = vadd.f32 %v4251, %v4444
  %v4509 = vadd.f32 %v4252, %v4445
  %v4510 = vadd.f32 %v4253, %v4446
  %v4511 = vadd.f32 %v4254, %v4447
  %v4512 = vadd.f32 %v4255, %v4448
  %v4513 = vadd.f32 %v4256, %v4449
  %v4514 = vadd.f32 %v947, %v4450
  %v4515 = vadd.f32 %v948, %v4451
  %v4516 = vadd.f32 %v949, %v4452
  %v4517 = vadd.f32 %v950, %v4453
  %v4518 = vadd.f32 %v951, %v4454
  %v4519 = vadd.f32 %v952, %v4455
  %v4520 = vadd.f32 %v953, %v4456
  %v4521 = vadd.f32 %v954, %v4457
  %v4522 = vadd.f32 %v955, %v4458
  %v4523 = vadd.f32 %v956, %v4459
  %v4524 = vadd.f32 %v957, %v4460
  %v4525 = vadd.f32 %v958, %v4461
  %v4526 = vadd.f32 %v959, %v4462
  %v4527 = vadd.f32 %v960, %v4463
  %v4528 = vadd.f32 %v961, %v4464
  %v4529 = vadd.f32 %v962, %v4465
  %v4530 = vadd.f32 %v963, %v4466
  %v4531 = vadd.f32 %v964, %v4467
  %v4532 = vadd.f32 %v965, %v4468
  %v4533 = vadd.f32 %v966, %v4469
  %v4534 = vadd.f32 %v967, %v4470
  %v4535 = vadd.f32 %v968, %v4471
  %v4536 = vadd.f32 %v969, %v4472
  %v4537 = vadd.f32 %v970, %v4473
  %v4538 = vadd.f32 %v971, %v4474
  %v4539 = vadd.f32 %v972, %v4475
  %v4540 = vadd.f32 %v973, %v4476
  %v4541 = vadd.f32 %v974, %v4477
  %v4542 = vadd.f32 %v975, %v4478
  %v4543 = vadd.f32 %v976, %v4479
  %v4544 = vadd.f32 %v977, %v4480
  %v4545 = vadd.f32 %v978, %v4481
  %v4546 = vadd.f32 %v979, %v4482
  %v4547 = vadd.f32 %v980, %v4483
  %v4548 = vadd.f32 %v981, %v4484
  %v4549 = vadd.f32 %v982, %v4485
  %v4550 = vadd.f32 %v983, %v4486
  %v4551 = vadd.f32 %v984, %v4487
  %v4552 = vadd.f32 %v985, %v4488
  %v4553 = vadd.f32 %v986, %v4489
  %v4554 = vadd.f32 %v987, %v4490
  %v4555 = vadd.f32 %v988, %v4491
  %v4556 = vadd.f32 %v989, %v4492
  %v4557 = vadd.f32 %v990, %v4493
  %v4558 = vadd.f32 %v991, %v4494
  %v4559 = vadd.f32 %v992, %v4495
  %v4560 = vadd.f32 %v993, %v4496
  %v4561 = vadd.f32 %v994, %v4497
  %v4562 = vadd.f32 %v995, %v4498
  %v4563 = vadd.f32 %v996, %v4499
  %v4564 = vadd.f32 %v997, %v4500
  %v4565 = vadd.f32 %v998, %v4501
  %v4566 = vadd.f32 %v999, %v4502
  %v4567 = vadd.f32 %v1000, %v4503
  %v4568 = vadd.f32 %v1001, %v4504
  %v4569 = vadd.f32 %v1002, %v4505
  %v4570 = vadd.f32 %v1003, %v4506
  %v4571 = vadd.f32 %v1004, %v4507
  %v4572 = vadd.f32 %v1005, %v4508
  %v4573 = vadd.f32 %v1006, %v4509
  %v4574 = vadd.f32 %v1007, %v4510
  %v4575 = vadd.f32 %v1008, %v4511
  %v4576 = vadd.f32 %v1009, %v4512
  %v4577 = vadd.f32 %v1010, %v4513
  %v4578 = vmul.f32 %v4514, %v230
  %v4579 = vmul.f32 %v4515, %v231
  %v4580 = vmul.f32 %v4516, %v232
  %v4581 = vmul.f32 %v4517, %v233
  %v4582 = vmul.f32 %v4518, %v234
  %v4583 = vmul.f32 %v4519, %v235
  %v4584 = vmul.f32 %v4520, %v236
  %v4585 = vmul.f32 %v4521, %v237
  %v4586 = vmul.f32 %v4522, %v238
  %v4587 = vmul.f32 %v4523, %v239
  %v4588 = vmul.f32 %v4524, %v240
  %v4589 = vmul.f32 %v4525, %v241
  %v4590 = vmul.f32 %v4526, %v242
  %v4591 = vmul.f32 %v4527, %v243
  %v4592 = vmul.f32 %v4528, %v244
  %v4593 = vmul.f32 %v4529, %v245
  %v4594 = vmul.f32 %v4530, %v246
  %v4595 = vmul.f32 %v4531, %v247
  %v4596 = vmul.f32 %v4532, %v248
  %v4597 = vmul.f32 %v4533, %v249
  %v4598 = vmul.f32 %v4534, %v250
  %v4599 = vmul.f32 %v4535, %v251
  %v4600 = vmul.f32 %v4536, %v252
  %v4601 = vmul.f32 %v4537, %v253
  %v4602 = vmul.f32 %v4538, %v254
  %v4603 = vmul.f32 %v4539, %v255
  %v4604 = vmul.f32 %v4540, %v256
  %v4605 = vmul.f32 %v4541, %v257
  %v4606 = vmul.f32 %v4542, %v258
  %v4607 = vmul.f32 %v4543, %v259
  %v4608 = vmul.f32 %v4544, %v260
  %v4609 = vmul.f32 %v4545, %v261
  %v4610 = vmul.f32 %v4546, %v262
  %v4611 = vmul.f32 %v4547, %v263
  %v4612 = vmul.f32 %v4548, %v264
  %v4613 = vmul.f32 %v4549, %v265
  %v4614 = vmul.f32 %v4550, %v266
  %v4615 = vmul.f32 %v4551, %v267
  %v4616 = vmul.f32 %v4552, %v268
  %v4617 = vmul.f32 %v4553, %v269
  %v4618 = vmul.f32 %v4554, %v270
  %v4619 = vmul.f32 %v4555, %v271
  %v4620 = vmul.f32 %v4556, %v272
  %v4621 = vmul.f32 %v4557, %v273
  %v4622 = vmul.f32 %v4558, %v274
  %v4623 = vmul.f32 %v4559, %v275
  %v4624 = vmul.f32 %v4560, %v276
  %v4625 = vmul.f32 %v4561, %v277
  %v4626 = vmul.f32 %v4562, %v278
  %v4627 = vmul.f32 %v4563, %v279
  %v4628 = vmul.f32 %v4564, %v280
  %v4629 = vmul.f32 %v4565, %v281
  %v4630 = vmul.f32 %v4566, %v282
  %v4631 = vmul.f32 %v4567, %v283
  %v4632 = vmul.f32 %v4568, %v284
  %v4633 = vmul.f32 %v4569, %v285
  %v4634 = vmul.f32 %v4570, %v286
  %v4635 = vmul.f32 %v4571, %v287
  %v4636 = vmul.f32 %v4572, %v288
  %v4637 = vmul.f32 %v4573, %v289
  %v4638 = vmul.f32 %v4574, %v290
  %v4639 = vmul.f32 %v4575, %v291
  %v4640 = vmul.f32 %v4576, %v292
  %v4641 = vmul.f32 %v4577, %v293
  %v4642 = vld [vmem:[%s8] sm:$0xff]
  %v4643 = vld [vmem:[%s8 + $0x8] sm:$0xff]
  %v4644 = vld [vmem:[%s8 + $0x10] sm:$0xff]
  %v4645 = vld [vmem:[%s8 + $0x18] sm:$0xff]
  %v4647 = vsel %vm369, %v4578, 0
  %v4650 = vsel %vm369, %v4579, 0
  %v4653 = vsel %vm369, %v4580, 0
  %v4656 = vsel %vm369, %v4581, 0
  %v4659 = vsel %vm369, %v4582, 0
  %v4662 = vsel %vm369, %v4583, 0
  %v4665 = vsel %vm369, %v4584, 0
  %v4668 = vsel %vm369, %v4585, 0
  %v4671 = vsel %vm369, %v4586, 0
  %v4674 = vsel %vm369, %v4587, 0
  %v4677 = vsel %vm369, %v4588, 0
  %v4680 = vsel %vm369, %v4589, 0
  %v4683 = vsel %vm369, %v4590, 0
  %v4686 = vsel %vm369, %v4591, 0
  %v4689 = vsel %vm369, %v4592, 0
  %v4692 = vsel %vm369, %v4593, 0
  %v4695 = vsel %vm369, %v4594, 0
  %v4698 = vsel %vm369, %v4595, 0
  %v4701 = vsel %vm369, %v4596, 0
  %v4704 = vsel %vm369, %v4597, 0
  %v4707 = vsel %vm369, %v4598, 0
  %v4710 = vsel %vm369, %v4599, 0
  %v4713 = vsel %vm369, %v4600, 0
  %v4716 = vsel %vm369, %v4601, 0
  %v4719 = vsel %vm369, %v4602, 0
  %v4722 = vsel %vm369, %v4603, 0
  %v4725 = vsel %vm369, %v4604, 0
  %v4728 = vsel %vm369, %v4605, 0
  %v4731 = vsel %vm369, %v4606, 0
  %v4734 = vsel %vm369, %v4607, 0
  %v4737 = vsel %vm369, %v4608, 0
  %v4740 = vsel %vm369, %v4609, 0
  %v4743 = vsel %vm369, %v4610, 0
  %v4746 = vsel %vm369, %v4611, 0
  %v4749 = vsel %vm369, %v4612, 0
  %v4752 = vsel %vm369, %v4613, 0
  %v4755 = vsel %vm369, %v4614, 0
  %v4758 = vsel %vm369, %v4615, 0
  %v4761 = vsel %vm369, %v4616, 0
  %v4764 = vsel %vm369, %v4617, 0
  %v4767 = vsel %vm369, %v4618, 0
  %v4770 = vsel %vm369, %v4619, 0
  %v4773 = vsel %vm369, %v4620, 0
  %v4776 = vsel %vm369, %v4621, 0
  %v4779 = vsel %vm369, %v4622, 0
  %v4782 = vsel %vm369, %v4623, 0
  %v4785 = vsel %vm369, %v4624, 0
  %v4788 = vsel %vm369, %v4625, 0
  %v4791 = vsel %vm369, %v4626, 0
  %v4794 = vsel %vm369, %v4627, 0
  %v4797 = vsel %vm369, %v4628, 0
  %v4800 = vsel %vm369, %v4629, 0
  %v4803 = vsel %vm369, %v4630, 0
  %v4806 = vsel %vm369, %v4631, 0
  %v4809 = vsel %vm369, %v4632, 0
  %v4812 = vsel %vm369, %v4633, 0
  %v4815 = vsel %vm369, %v4634, 0
  %v4818 = vsel %vm369, %v4635, 0
  %v4821 = vsel %vm369, %v4636, 0
  %v4824 = vsel %vm369, %v4637, 0
  %v4827 = vsel %vm369, %v4638, 0
  %v4830 = vsel %vm369, %v4639, 0
  %v4833 = vsel %vm369, %v4640, 0
  %v4836 = vsel %vm369, %v4641, 0
  %4838 = vmatprep.subr.mxu0 0.0
  %4839 = vmatpush1.msra.mxu0 %v4642
  %4840 = vmatprep.subr.mxu0 0.0
  %4841 = vmatpush1.msra.mxu0 %v4643
  %4842 = vmatprep.subr.mxu0 0.0
  %4843 = vmatpush1.msra.mxu0 %v4644
  %4844 = vmatprep.subr.mxu0 0.0
  %4845 = vmatpush1.msra.mxu0 %v4645
  %4846 = vmatprep.subr.mxu0 0.0
  %4847 = vmatpush1.msra.mxu0 0.0
  %4848 = vmatprep.subr.mxu0 0.0
  %4849 = vmatpush1.msra.mxu0 0.0
  %4850 = vmatprep.subr.mxu0 0.0
  %4851 = vmatpush1.msra.mxu0 0.0
  %4852 = vmatprep.subr.mxu0 0.0
  %4853 = vmatpush1.msra.mxu0 0.0
  %4854 = vmatprep.subr.mxu0 0.0
  %4855 = vmatpush1.msra.mxu0 0.0
  %4856 = vmatprep.subr.mxu0 0.0
  %4857 = vmatpush1.msra.mxu0 0.0
  %4858 = vmatprep.subr.mxu0 0.0
  %4859 = vmatpush1.msra.mxu0 0.0
  %4860 = vmatprep.subr.mxu0 0.0
  %4861 = vmatpush1.msra.mxu0 0.0
  %4862 = vmatprep.subr.mxu0 0.0
  %4863 = vmatpush1.msra.mxu0 0.0
  %4864 = vmatprep.subr.mxu0 0.0
  %4865 = vmatpush1.msra.mxu0 0.0
  %4866 = vmatprep.subr.mxu0 0.0
  %4867 = vmatpush1.msra.mxu0 0.0
  %4868 = vmatprep.subr.mxu0 0.0
  %4869 = vmatpush1.msra.mxu0 0.0
  %4870 = vmatprep.subr.mxu0 0.0
  %4871 = vmatpush1.msra.mxu0 0.0
  %4872 = vmatprep.subr.mxu0 0.0
  %4873 = vmatpush1.msra.mxu0 0.0
  %4874 = vmatprep.subr.mxu0 0.0
  %4875 = vmatpush1.msra.mxu0 0.0
  %4876 = vmatprep.subr.mxu0 0.0
  %4877 = vmatpush1.msra.mxu0 0.0
  %4878 = vmatprep.subr.mxu0 0.0
  %4879 = vmatpush1.msra.mxu0 0.0
  %4880 = vmatprep.subr.mxu0 0.0
  %4881 = vmatpush1.msra.mxu0 0.0
  %4882 = vmatprep.subr.mxu0 0.0
  %4883 = vmatpush1.msra.mxu0 0.0
  %4884 = vmatprep.subr.mxu0 0.0
  %4885 = vmatpush1.msra.mxu0 0.0
  %4886 = vmatprep.subr.mxu0 0.0
  %4887 = vmatpush1.msra.mxu0 0.0
  %4888 = vmatprep.subr.mxu0 0.0
  %4889 = vmatpush1.msra.mxu0 0.0
  %4890 = vmatprep.subr.mxu0 0.0
  %4891 = vmatpush1.msra.mxu0 0.0
  %4892 = vmatprep.subr.mxu0 0.0
  %4893 = vmatpush1.msra.mxu0 0.0
  %4894 = vmatprep.subr.mxu0 0.0
  %4895 = vmatpush1.msra.mxu0 0.0
  %4896 = vmatprep.subr.mxu0 0.0
  %4897 = vmatpush1.msra.mxu0 0.0
  %4898 = vmatprep.subr.mxu0 0.0
  %4899 = vmatpush1.msra.mxu0 0.0
  %4900 = vmatprep.subr.mxu0 0.0
  %4901 = vmatpush1.msra.mxu0 0.0
  %4902 = vmatprep.mubr.f32.mxu0 0.0
  %4903 = vmatmul.mubr.f32.gmra.mrb[0].mxu0 %v4647
  %v4904 = vpop.f32.mrb[0].mxu0
  %v4905 = vadd.f32 0.0, %v4904
  %v4906 = vpop.f32.mrb[0].mxu0
  %4907 = vmatprep.mubr.f32.mxu0 0.0
  %4908 = vmatmul.mubr.f32.gmra.mrb[0].mxu0 %v4650
  %v4909 = vpop.f32.mrb[0].mxu0
  %v4910 = vadd.f32 0.0, %v4909
  %v4911 = vpop.f32.mrb[0].mxu0
  %4912 = vmatprep.mubr.f32.mxu0 0.0
  %4913 = vmatmul.mubr.f32.gmra.mrb[0].mxu0 %v4653
  %v4914 = vpop.f32.mrb[0].mxu0
  %v4915 = vadd.f32 0.0, %v4914
  %v4916 = vpop.f32.mrb[0].mxu0
  %4917 = vmatprep.mubr.f32.mxu0 0.0
  %4918 = vmatmul.mubr.f32.gmra.mrb[0].mxu0 %v4656
  %v4919 = vpop.f32.mrb[0].mxu0
  %v4920 = vadd.f32 0.0, %v4919
  %v4921 = vpop.f32.mrb[0].mxu0
  %4922 = vmatprep.mubr.f32.mxu0 0.0
  %4923 = vmatmul.mubr.f32.gmra.mrb[0].mxu0 %v4659
  %v4924 = vpop.f32.mrb[0].mxu0
  %v4925 = vadd.f32 0.0, %v4924
  %v4926 = vpop.f32.mrb[0].mxu0
  %4927 = vmatprep.mubr.f32.mxu0 0.0
  %4928 = vmatmul.mubr.f32.gmra.mrb[0].mxu0 %v4662
  %v4929 = vpop.f32.mrb[0].mxu0
  %v4930 = vadd.f32 0.0, %v4929
  %v4931 = vpop.f32.mrb[0].mxu0
  %4932 = vmatprep.mubr.f32.mxu0 0.0
  %4933 = vmatmul.mubr.f32.gmra.mrb[0].mxu0 %v4665
  %v4934 = vpop.f32.mrb[0].mxu0
  %v4935 = vadd.f32 0.0, %v4934
  %v4936 = vpop.f32.mrb[0].mxu0
  %4937 = vmatprep.mubr.f32.mxu0 0.0
  %4938 = vmatmul.mubr.f32.gmra.mrb[0].mxu0 %v4668
  %v4939 = vpop.f32.mrb[0].mxu0
  %v4940 = vadd.f32 0.0, %v4939
  %v4941 = vpop.f32.mrb[0].mxu0
  %4942 = vmatprep.mubr.f32.mxu0 0.0
  %4943 = vmatmul.mubr.f32.gmra.mrb[0].mxu0 %v4671
  %v4944 = vpop.f32.mrb[0].mxu0
  %v4945 = vadd.f32 0.0, %v4944
  %v4946 = vpop.f32.mrb[0].mxu0
  %4947 = vmatprep.mubr.f32.mxu0 0.0
  %4948 = vmatmul.mubr.f32.gmra.mrb[0].mxu0 %v4674
  %v4949 = vpop.f32.mrb[0].mxu0
  %v4950 = vadd.f32 0.0, %v4949
  %v4951 = vpop.f32.mrb[0].mxu0
  %4952 = vmatprep.mubr.f32.mxu0 0.0
  %4953 = vmatmul.mubr.f32.gmra.mrb[0].mxu0 %v4677
  %v4954 = vpop.f32.mrb[0].mxu0
  %v4955 = vadd.f32 0.0, %v4954
  %v4956 = vpop.f32.mrb[0].mxu0
  %4957 = vmatprep.mubr.f32.mxu0 0.0
  %4958 = vmatmul.mubr.f32.gmra.mrb[0].mxu0 %v4680
  %v4959 = vpop.f32.mrb[0].mxu0
  %v4960 = vadd.f32 0.0, %v4959
  %v4961 = vpop.f32.mrb[0].mxu0
  %4962 = vmatprep.mubr.f32.mxu0 0.0
  %4963 = vmatmul.mubr.f32.gmra.mrb[0].mxu0 %v4683
  %v4964 = vpop.f32.mrb[0].mxu0
  %v4965 = vadd.f32 0.0, %v4964
  %v4966 = vpop.f32.mrb[0].mxu0
  %4967 = vmatprep.mubr.f32.mxu0 0.0
  %4968 = vmatmul.mubr.f32.gmra.mrb[0].mxu0 %v4686
  %v4969 = vpop.f32.mrb[0].mxu0
  %v4970 = vadd.f32 0.0, %v4969
  %v4971 = vpop.f32.mrb[0].mxu0
  %4972 = vmatprep.mubr.f32.mxu0 0.0
  %4973 = vmatmul.mubr.f32.gmra.mrb[0].mxu0 %v4689
  %v4974 = vpop.f32.mrb[0].mxu0
  %v4975 = vadd.f32 0.0, %v4974
  %v4976 = vpop.f32.mrb[0].mxu0
  %4977 = vmatprep.mubr.f32.mxu0 0.0
  %4978 = vmatmul.mubr.f32.gmra.mrb[0].mxu0 %v4692
  %v4979 = vpop.f32.mrb[0].mxu0
  %v4980 = vadd.f32 0.0, %v4979
  %v4981 = vpop.f32.mrb[0].mxu0
  %4982 = vmatprep.mubr.f32.mxu0 0.0
  %4983 = vmatmul.mubr.f32.gmra.mrb[0].mxu0 %v4695
  %v4984 = vpop.f32.mrb[0].mxu0
  %v4985 = vadd.f32 0.0, %v4984
  %v4986 = vpop.f32.mrb[0].mxu0
  %4987 = vmatprep.mubr.f32.mxu0 0.0
  %4988 = vmatmul.mubr.f32.gmra.mrb[0].mxu0 %v4698
  %v4989 = vpop.f32.mrb[0].mxu0
  %v4990 = vadd.f32 0.0, %v4989
  %v4991 = vpop.f32.mrb[0].mxu0
  %4992 = vmatprep.mubr.f32.mxu0 0.0
  %4993 = vmatmul.mubr.f32.gmra.mrb[0].mxu0 %v4701
  %v4994 = vpop.f32.mrb[0].mxu0
  %v4995 = vadd.f32 0.0, %v4994
  %v4996 = vpop.f32.mrb[0].mxu0
  %4997 = vmatprep.mubr.f32.mxu0 0.0
  %4998 = vmatmul.mubr.f32.gmra.mrb[0].mxu0 %v4704
  %v4999 = vpop.f32.mrb[0].mxu0
  %v5000 = vadd.f32 0.0, %v4999
  %v5001 = vpop.f32.mrb[0].mxu0
  %5002 = vmatprep.mubr.f32.mxu0 0.0
  %5003 = vmatmul.mubr.f32.gmra.mrb[0].mxu0 %v4707
  %v5004 = vpop.f32.mrb[0].mxu0
  %v5005 = vadd.f32 0.0, %v5004
  %v5006 = vpop.f32.mrb[0].mxu0
  %5007 = vmatprep.mubr.f32.mxu0 0.0
  %5008 = vmatmul.mubr.f32.gmra.mrb[0].mxu0 %v4710
  %v5009 = vpop.f32.mrb[0].mxu0
  %v5010 = vadd.f32 0.0, %v5009
  %v5011 = vpop.f32.mrb[0].mxu0
  %5012 = vmatprep.mubr.f32.mxu0 0.0
  %5013 = vmatmul.mubr.f32.gmra.mrb[0].mxu0 %v4713
  %v5014 = vpop.f32.mrb[0].mxu0
  %v5015 = vadd.f32 0.0, %v5014
  %v5016 = vpop.f32.mrb[0].mxu0
  %5017 = vmatprep.mubr.f32.mxu0 0.0
  %5018 = vmatmul.mubr.f32.gmra.mrb[0].mxu0 %v4716
  %v5019 = vpop.f32.mrb[0].mxu0
  %v5020 = vadd.f32 0.0, %v5019
  %v5021 = vpop.f32.mrb[0].mxu0
  %5022 = vmatprep.mubr.f32.mxu0 0.0
  %5023 = vmatmul.mubr.f32.gmra.mrb[0].mxu0 %v4719
  %v5024 = vpop.f32.mrb[0].mxu0
  %v5025 = vadd.f32 0.0, %v5024
  %v5026 = vpop.f32.mrb[0].mxu0
  %5027 = vmatprep.mubr.f32.mxu0 0.0
  %5028 = vmatmul.mubr.f32.gmra.mrb[0].mxu0 %v4722
  %v5029 = vpop.f32.mrb[0].mxu0
  %v5030 = vadd.f32 0.0, %v5029
  %v5031 = vpop.f32.mrb[0].mxu0
  %5032 = vmatprep.mubr.f32.mxu0 0.0
  %5033 = vmatmul.mubr.f32.gmra.mrb[0].mxu0 %v4725
  %v5034 = vpop.f32.mrb[0].mxu0
  %v5035 = vadd.f32 0.0, %v5034
  %v5036 = vpop.f32.mrb[0].mxu0
  %5037 = vmatprep.mubr.f32.mxu0 0.0
  %5038 = vmatmul.mubr.f32.gmra.mrb[0].mxu0 %v4728
  %v5039 = vpop.f32.mrb[0].mxu0
  %v5040 = vadd.f32 0.0, %v5039
  %v5041 = vpop.f32.mrb[0].mxu0
  %5042 = vmatprep.mubr.f32.mxu0 0.0
  %5043 = vmatmul.mubr.f32.gmra.mrb[0].mxu0 %v4731
  %v5044 = vpop.f32.mrb[0].mxu0
  %v5045 = vadd.f32 0.0, %v5044
  %v5046 = vpop.f32.mrb[0].mxu0
  %5047 = vmatprep.mubr.f32.mxu0 0.0
  %5048 = vmatmul.mubr.f32.gmra.mrb[0].mxu0 %v4734
  %v5049 = vpop.f32.mrb[0].mxu0
  %v5050 = vadd.f32 0.0, %v5049
  %v5051 = vpop.f32.mrb[0].mxu0
  %5052 = vmatprep.mubr.f32.mxu0 0.0
  %5053 = vmatmul.mubr.f32.gmra.mrb[0].mxu0 %v4737
  %v5054 = vpop.f32.mrb[0].mxu0
  %v5055 = vadd.f32 0.0, %v5054
  %v5056 = vpop.f32.mrb[0].mxu0
  %5057 = vmatprep.mubr.f32.mxu0 0.0
  %5058 = vmatmul.mubr.f32.gmra.mrb[0].mxu0 %v4740
  %v5059 = vpop.f32.mrb[0].mxu0
  %v5060 = vadd.f32 0.0, %v5059
  %v5061 = vpop.f32.mrb[0].mxu0
  %5062 = vmatprep.mubr.f32.mxu0 0.0
  %5063 = vmatmul.mubr.f32.gmra.mrb[0].mxu0 %v4743
  %v5064 = vpop.f32.mrb[0].mxu0
  %v5065 = vadd.f32 0.0, %v5064
  %v5066 = vpop.f32.mrb[0].mxu0
  %5067 = vmatprep.mubr.f32.mxu0 0.0
  %5068 = vmatmul.mubr.f32.gmra.mrb[0].mxu0 %v4746
  %v5069 = vpop.f32.mrb[0].mxu0
  %v5070 = vadd.f32 0.0, %v5069
  %v5071 = vpop.f32.mrb[0].mxu0
  %5072 = vmatprep.mubr.f32.mxu0 0.0
  %5073 = vmatmul.mubr.f32.gmra.mrb[0].mxu0 %v4749
  %v5074 = vpop.f32.mrb[0].mxu0
  %v5075 = vadd.f32 0.0, %v5074
  %v5076 = vpop.f32.mrb[0].mxu0
  %5077 = vmatprep.mubr.f32.mxu0 0.0
  %5078 = vmatmul.mubr.f32.gmra.mrb[0].mxu0 %v4752
  %v5079 = vpop.f32.mrb[0].mxu0
  %v5080 = vadd.f32 0.0, %v5079
  %v5081 = vpop.f32.mrb[0].mxu0
  %5082 = vmatprep.mubr.f32.mxu0 0.0
  %5083 = vmatmul.mubr.f32.gmra.mrb[0].mxu0 %v4755
  %v5084 = vpop.f32.mrb[0].mxu0
  %v5085 = vadd.f32 0.0, %v5084
  %v5086 = vpop.f32.mrb[0].mxu0
  %5087 = vmatprep.mubr.f32.mxu0 0.0
  %5088 = vmatmul.mubr.f32.gmra.mrb[0].mxu0 %v4758
  %v5089 = vpop.f32.mrb[0].mxu0
  %v5090 = vadd.f32 0.0, %v5089
  %v5091 = vpop.f32.mrb[0].mxu0
  %5092 = vmatprep.mubr.f32.mxu0 0.0
  %5093 = vmatmul.mubr.f32.gmra.mrb[0].mxu0 %v4761
  %v5094 = vpop.f32.mrb[0].mxu0
  %v5095 = vadd.f32 0.0, %v5094
  %v5096 = vpop.f32.mrb[0].mxu0
  %5097 = vmatprep.mubr.f32.mxu0 0.0
  %5098 = vmatmul.mubr.f32.gmra.mrb[0].mxu0 %v4764
  %v5099 = vpop.f32.mrb[0].mxu0
  %v5100 = vadd.f32 0.0, %v5099
  %v5101 = vpop.f32.mrb[0].mxu0
  %5102 = vmatprep.mubr.f32.mxu0 0.0
  %5103 = vmatmul.mubr.f32.gmra.mrb[0].mxu0 %v4767
  %v5104 = vpop.f32.mrb[0].mxu0
  %v5105 = vadd.f32 0.0, %v5104
  %v5106 = vpop.f32.mrb[0].mxu0
  %5107 = vmatprep.mubr.f32.mxu0 0.0
  %5108 = vmatmul.mubr.f32.gmra.mrb[0].mxu0 %v4770
  %v5109 = vpop.f32.mrb[0].mxu0
  %v5110 = vadd.f32 0.0, %v5109
  %v5111 = vpop.f32.mrb[0].mxu0
  %5112 = vmatprep.mubr.f32.mxu0 0.0
  %5113 = vmatmul.mubr.f32.gmra.mrb[0].mxu0 %v4773
  %v5114 = vpop.f32.mrb[0].mxu0
  %v5115 = vadd.f32 0.0, %v5114
  %v5116 = vpop.f32.mrb[0].mxu0
  %5117 = vmatprep.mubr.f32.mxu0 0.0
  %5118 = vmatmul.mubr.f32.gmra.mrb[0].mxu0 %v4776
  %v5119 = vpop.f32.mrb[0].mxu0
  %v5120 = vadd.f32 0.0, %v5119
  %v5121 = vpop.f32.mrb[0].mxu0
  %5122 = vmatprep.mubr.f32.mxu0 0.0
  %5123 = vmatmul.mubr.f32.gmra.mrb[0].mxu0 %v4779
  %v5124 = vpop.f32.mrb[0].mxu0
  %v5125 = vadd.f32 0.0, %v5124
  %v5126 = vpop.f32.mrb[0].mxu0
  %5127 = vmatprep.mubr.f32.mxu0 0.0
  %5128 = vmatmul.mubr.f32.gmra.mrb[0].mxu0 %v4782
  %v5129 = vpop.f32.mrb[0].mxu0
  %v5130 = vadd.f32 0.0, %v5129
  %v5131 = vpop.f32.mrb[0].mxu0
  %5132 = vmatprep.mubr.f32.mxu0 0.0
  %5133 = vmatmul.mubr.f32.gmra.mrb[0].mxu0 %v4785
  %v5134 = vpop.f32.mrb[0].mxu0
  %v5135 = vadd.f32 0.0, %v5134
  %v5136 = vpop.f32.mrb[0].mxu0
  %5137 = vmatprep.mubr.f32.mxu0 0.0
  %5138 = vmatmul.mubr.f32.gmra.mrb[0].mxu0 %v4788
  %v5139 = vpop.f32.mrb[0].mxu0
  %v5140 = vadd.f32 0.0, %v5139
  %v5141 = vpop.f32.mrb[0].mxu0
  %5142 = vmatprep.mubr.f32.mxu0 0.0
  %5143 = vmatmul.mubr.f32.gmra.mrb[0].mxu0 %v4791
  %v5144 = vpop.f32.mrb[0].mxu0
  %v5145 = vadd.f32 0.0, %v5144
  %v5146 = vpop.f32.mrb[0].mxu0
  %5147 = vmatprep.mubr.f32.mxu0 0.0
  %5148 = vmatmul.mubr.f32.gmra.mrb[0].mxu0 %v4794
  %v5149 = vpop.f32.mrb[0].mxu0
  %v5150 = vadd.f32 0.0, %v5149
  %v5151 = vpop.f32.mrb[0].mxu0
  %5152 = vmatprep.mubr.f32.mxu0 0.0
  %5153 = vmatmul.mubr.f32.gmra.mrb[0].mxu0 %v4797
  %v5154 = vpop.f32.mrb[0].mxu0
  %v5155 = vadd.f32 0.0, %v5154
  %v5156 = vpop.f32.mrb[0].mxu0
  %5157 = vmatprep.mubr.f32.mxu0 0.0
  %5158 = vmatmul.mubr.f32.gmra.mrb[0].mxu0 %v4800
  %v5159 = vpop.f32.mrb[0].mxu0
  %v5160 = vadd.f32 0.0, %v5159
  %v5161 = vpop.f32.mrb[0].mxu0
  %5162 = vmatprep.mubr.f32.mxu0 0.0
  %5163 = vmatmul.mubr.f32.gmra.mrb[0].mxu0 %v4803
  %v5164 = vpop.f32.mrb[0].mxu0
  %v5165 = vadd.f32 0.0, %v5164
  %v5166 = vpop.f32.mrb[0].mxu0
  %5167 = vmatprep.mubr.f32.mxu0 0.0
  %5168 = vmatmul.mubr.f32.gmra.mrb[0].mxu0 %v4806
  %v5169 = vpop.f32.mrb[0].mxu0
  %v5170 = vadd.f32 0.0, %v5169
  %v5171 = vpop.f32.mrb[0].mxu0
  %5172 = vmatprep.mubr.f32.mxu0 0.0
  %5173 = vmatmul.mubr.f32.gmra.mrb[0].mxu0 %v4809
  %v5174 = vpop.f32.mrb[0].mxu0
  %v5175 = vadd.f32 0.0, %v5174
  %v5176 = vpop.f32.mrb[0].mxu0
  %5177 = vmatprep.mubr.f32.mxu0 0.0
  %5178 = vmatmul.mubr.f32.gmra.mrb[0].mxu0 %v4812
  %v5179 = vpop.f32.mrb[0].mxu0
  %v5180 = vadd.f32 0.0, %v5179
  %v5181 = vpop.f32.mrb[0].mxu0
  %5182 = vmatprep.mubr.f32.mxu0 0.0
  %5183 = vmatmul.mubr.f32.gmra.mrb[0].mxu0 %v4815
  %v5184 = vpop.f32.mrb[0].mxu0
  %v5185 = vadd.f32 0.0, %v5184
  %v5186 = vpop.f32.mrb[0].mxu0
  %5187 = vmatprep.mubr.f32.mxu0 0.0
  %5188 = vmatmul.mubr.f32.gmra.mrb[0].mxu0 %v4818
  %v5189 = vpop.f32.mrb[0].mxu0
  %v5190 = vadd.f32 0.0, %v5189
  %v5191 = vpop.f32.mrb[0].mxu0
  %5192 = vmatprep.mubr.f32.mxu0 0.0
  %5193 = vmatmul.mubr.f32.gmra.mrb[0].mxu0 %v4821
  %v5194 = vpop.f32.mrb[0].mxu0
  %v5195 = vadd.f32 0.0, %v5194
  %v5196 = vpop.f32.mrb[0].mxu0
  %5197 = vmatprep.mubr.f32.mxu0 0.0
  %5198 = vmatmul.mubr.f32.gmra.mrb[0].mxu0 %v4824
  %v5199 = vpop.f32.mrb[0].mxu0
  %v5200 = vadd.f32 0.0, %v5199
  %v5201 = vpop.f32.mrb[0].mxu0
  %5202 = vmatprep.mubr.f32.mxu0 0.0
  %5203 = vmatmul.mubr.f32.gmra.mrb[0].mxu0 %v4827
  %v5204 = vpop.f32.mrb[0].mxu0
  %v5205 = vadd.f32 0.0, %v5204
  %v5206 = vpop.f32.mrb[0].mxu0
  %5207 = vmatprep.mubr.f32.mxu0 0.0
  %5208 = vmatmul.mubr.f32.gmra.mrb[0].mxu0 %v4830
  %v5209 = vpop.f32.mrb[0].mxu0
  %v5210 = vadd.f32 0.0, %v5209
  %v5211 = vpop.f32.mrb[0].mxu0
  %5212 = vmatprep.mubr.f32.mxu0 0.0
  %5213 = vmatmul.mubr.f32.gmra.mrb[0].mxu0 %v4833
  %v5214 = vpop.f32.mrb[0].mxu0
  %v5215 = vadd.f32 0.0, %v5214
  %v5216 = vpop.f32.mrb[0].mxu0
  %5217 = vmatprep.mubr.f32.mxu0 0.0
  %5218 = vmatmul.mubr.f32.gmra.mrb[0].mxu0 %v4836
  %v5219 = vpop.f32.mrb[0].mxu0
  %v5220 = vadd.f32 0.0, %v5219
  %v5221 = vpop.f32.mrb[0].mxu0
  %5222 = vdwg.mxu0
  %vm5223 = vcmask 130048
  %5224 = vst.msk [vmem:[%s9] sm:$0xff] %vm5223, %v4905
  %5225 = vst.msk [vmem:[%s9 + $0x8] sm:$0xff] %vm5223, %v4910
  %5226 = vst.msk [vmem:[%s9 + $0x10] sm:$0xff] %vm5223, %v4915
  %5227 = vst.msk [vmem:[%s9 + $0x18] sm:$0xff] %vm5223, %v4920
  %5228 = vst.msk [vmem:[%s9 + $0x20] sm:$0xff] %vm5223, %v4925
  %5229 = vst.msk [vmem:[%s9 + $0x28] sm:$0xff] %vm5223, %v4930
  %5230 = vst.msk [vmem:[%s9 + $0x30] sm:$0xff] %vm5223, %v4935
  %5231 = vst.msk [vmem:[%s9 + $0x38] sm:$0xff] %vm5223, %v4940
  %5232 = vst.msk [vmem:[%s9 + $0x40] sm:$0xff] %vm5223, %v4945
  %5233 = vst.msk [vmem:[%s9 + $0x48] sm:$0xff] %vm5223, %v4950
  %5234 = vst.msk [vmem:[%s9 + $0x50] sm:$0xff] %vm5223, %v4955
  %5235 = vst.msk [vmem:[%s9 + $0x58] sm:$0xff] %vm5223, %v4960
  %5236 = vst.msk [vmem:[%s9 + $0x60] sm:$0xff] %vm5223, %v4965
  %5237 = vst.msk [vmem:[%s9 + $0x68] sm:$0xff] %vm5223, %v4970
  %5238 = vst.msk [vmem:[%s9 + $0x70] sm:$0xff] %vm5223, %v4975
  %5239 = vst.msk [vmem:[%s9 + $0x78] sm:$0xff] %vm5223, %v4980
  %5240 = vst.msk [vmem:[%s9 + $0x80] sm:$0xff] %vm5223, %v4985
  %5241 = vst.msk [vmem:[%s9 + $0x88] sm:$0xff] %vm5223, %v4990
  %5242 = vst.msk [vmem:[%s9 + $0x90] sm:$0xff] %vm5223, %v4995
  %5243 = vst.msk [vmem:[%s9 + $0x98] sm:$0xff] %vm5223, %v5000
  %5244 = vst.msk [vmem:[%s9 + $0xa0] sm:$0xff] %vm5223, %v5005
  %5245 = vst.msk [vmem:[%s9 + $0xa8] sm:$0xff] %vm5223, %v5010
  %5246 = vst.msk [vmem:[%s9 + $0xb0] sm:$0xff] %vm5223, %v5015
  %5247 = vst.msk [vmem:[%s9 + $0xb8] sm:$0xff] %vm5223, %v5020
  %5248 = vst.msk [vmem:[%s9 + $0xc0] sm:$0xff] %vm5223, %v5025
  %5249 = vst.msk [vmem:[%s9 + $0xc8] sm:$0xff] %vm5223, %v5030
  %5250 = vst.msk [vmem:[%s9 + $0xd0] sm:$0xff] %vm5223, %v5035
  %5251 = vst.msk [vmem:[%s9 + $0xd8] sm:$0xff] %vm5223, %v5040
  %5252 = vst.msk [vmem:[%s9 + $0xe0] sm:$0xff] %vm5223, %v5045
  %5253 = vst.msk [vmem:[%s9 + $0xe8] sm:$0xff] %vm5223, %v5050
  %5254 = vst.msk [vmem:[%s9 + $0xf0] sm:$0xff] %vm5223, %v5055
  %5255 = vst.msk [vmem:[%s9 + $0xf8] sm:$0xff] %vm5223, %v5060
  %5256 = vst.msk [vmem:[%s9 + $0x100] sm:$0xff] %vm5223, %v5065
  %5257 = vst.msk [vmem:[%s9 + $0x108] sm:$0xff] %vm5223, %v5070
  %5258 = vst.msk [vmem:[%s9 + $0x110] sm:$0xff] %vm5223, %v5075
  %5259 = vst.msk [vmem:[%s9 + $0x118] sm:$0xff] %vm5223, %v5080
  %5260 = vst.msk [vmem:[%s9 + $0x120] sm:$0xff] %vm5223, %v5085
  %5261 = vst.msk [vmem:[%s9 + $0x128] sm:$0xff] %vm5223, %v5090
  %5262 = vst.msk [vmem:[%s9 + $0x130] sm:$0xff] %vm5223, %v5095
  %5263 = vst.msk [vmem:[%s9 + $0x138] sm:$0xff] %vm5223, %v5100
  %5264 = vst.msk [vmem:[%s9 + $0x140] sm:$0xff] %vm5223, %v5105
  %5265 = vst.msk [vmem:[%s9 + $0x148] sm:$0xff] %vm5223, %v5110
  %5266 = vst.msk [vmem:[%s9 + $0x150] sm:$0xff] %vm5223, %v5115
  %5267 = vst.msk [vmem:[%s9 + $0x158] sm:$0xff] %vm5223, %v5120
  %5268 = vst.msk [vmem:[%s9 + $0x160] sm:$0xff] %vm5223, %v5125
  %5269 = vst.msk [vmem:[%s9 + $0x168] sm:$0xff] %vm5223, %v5130
  %5270 = vst.msk [vmem:[%s9 + $0x170] sm:$0xff] %vm5223, %v5135
  %5271 = vst.msk [vmem:[%s9 + $0x178] sm:$0xff] %vm5223, %v5140
  %5272 = vst.msk [vmem:[%s9 + $0x180] sm:$0xff] %vm5223, %v5145
  %5273 = vst.msk [vmem:[%s9 + $0x188] sm:$0xff] %vm5223, %v5150
  %5274 = vst.msk [vmem:[%s9 + $0x190] sm:$0xff] %vm5223, %v5155
  %5275 = vst.msk [vmem:[%s9 + $0x198] sm:$0xff] %vm5223, %v5160
  %5276 = vst.msk [vmem:[%s9 + $0x1a0] sm:$0xff] %vm5223, %v5165
  %5277 = vst.msk [vmem:[%s9 + $0x1a8] sm:$0xff] %vm5223, %v5170
  %5278 = vst.msk [vmem:[%s9 + $0x1b0] sm:$0xff] %vm5223, %v5175
  %5279 = vst.msk [vmem:[%s9 + $0x1b8] sm:$0xff] %vm5223, %v5180
  %5280 = vst.msk [vmem:[%s9 + $0x1c0] sm:$0xff] %vm5223, %v5185
  %5281 = vst.msk [vmem:[%s9 + $0x1c8] sm:$0xff] %vm5223, %v5190
  %5282 = vst.msk [vmem:[%s9 + $0x1d0] sm:$0xff] %vm5223, %v5195
  %5283 = vst.msk [vmem:[%s9 + $0x1d8] sm:$0xff] %vm5223, %v5200
  %5284 = vst.msk [vmem:[%s9 + $0x1e0] sm:$0xff] %vm5223, %v5205
  %5285 = vst.msk [vmem:[%s9 + $0x1e8] sm:$0xff] %vm5223, %v5210
  %5286 = vst.msk [vmem:[%s9 + $0x1f0] sm:$0xff] %vm5223, %v5215
  %5287 = vst.msk [vmem:[%s9 + $0x1f8] sm:$0xff] %vm5223, %v5220
  // Predicated region
  $region38: #{_forward_static.2} parent=0 // pred_check
    _
  $region39: #{_forward_static.2} parent=0 // pred_check_branch
    %5289 = sbr.rel (0) target = $region41
  $region40: #{_forward_static.2} parent=0 // pred_region
    _
  $region41: #{_forward_static.2} parent=0 // pred_fallthru
    _
  // Predicated region
  $region42: #{_forward_static.2} parent=0 // pred_check
    _
  $region43: #{_forward_static.2} parent=0 // pred_check_branch
    %5291 = sbr.rel (0) target = $region45
  $region44: #{_forward_static.2} parent=0 // pred_region
    _
  $region45: #{_forward_static.2} parent=0 // pred_fallthru
    _
  // Predicated region
  $region46: #{_forward_static.2} parent=0 // pred_check
    _
  $region47: #{_forward_static.2} parent=0 // pred_check_branch
    %5293 = sbr.rel (0) target = $region49
  $region48: #{_forward_static.2} parent=0 // pred_region
    _
  $region49: #{_forward_static.2} parent=0 // pred_fallthru
    _
  // Predicated region
  $region50: #{_forward_static.2} parent=0 // pred_check
    _
  $region51: #{_forward_static.2} parent=0 // pred_check_branch
    %5295 = sbr.rel (0) target = $region53
  $region52: #{_forward_static.2} parent=0 // pred_region
    _
  $region53: #{_forward_static.2} parent=0 // pred_fallthru
    _

// kernel: _forward_static.3
$region0: #{_forward_static.3}
  #allocation0 [shape = 'u32[]', space=smem, size = 0x4, offset = 0x4, fixed_abs, tag = 'smem constant byte address 0x4 - core index']
  #allocation1 [shape = 'u32[144,128]{1,0:T(1,128)}', space=vmem, size = 0x12000, scoped, tag = 'internal scratch']
  #allocation2 [shape = 'f32[512,1]{1,0:T(8,128)}', space=vmem, size = 0x40000, scoped, tag = 'scratch operand']
  #allocation3 [shape = 'f32[512,1]{1,0:T(8,128)}', space=vmem, size = 0x40000, scoped, tag = 'scratch operand']
  #allocation4 [shape = 'f32[512,16]{1,0:T(8,128)}', space=vmem, size = 0x40000, scoped, tag = 'scratch operand']
  #allocation5 [shape = 's32[1]{0}', space=sflag, size = 0x4, scoped, tag = 'scoped memory for _forward_static.3']
  #allocation6 [shape = 's32[1]{0:T(128)S(6)}', space=smem, size = 0x200, scoped, tag = 'prefetched SMEM operand 0']
  %s0 = inlined_call_operand.<no memory space> [shape: s32[1], index: 0, kind: input, shape index: {}]
  %s1 = inlined_call_operand.vmem [shape: f32[1,512], index: 1, kind: input, shape index: {}]
  %s2 = inlined_call_operand.vmem [shape: f32[1,512], index: 2, kind: input, shape index: {}]
  %s3 = inlined_call_operand.vmem [shape: f32[512,16], index: 3, kind: input, shape index: {}]
  %s4 = inlined_call_operand.vmem [shape: f32[1,16], index: 4, kind: input, shape index: {}]
  %s5 = inlined_call_operand.vmem [shape: f32[2048,16], index: 5, kind: output, shape index: {}]
  %s6 = sld [smem:[#allocation0]]
  $region61: #{_forward_static.3} parent=0
    _
  %s8 = ssub.s32 1, %s6
  %s9 = scalar_select 0, %s8, %s6
  %10 = sst [smem:[#allocation6]] %s0
  loop: start=0, step=1, limit=18
  $region2: #{_forward_static.3} parent=0 // loop_pre_header
    _
  $region3: #{_forward_static.3} parent=0 // loop_header
    %s12 = sphi 0, %s16
    %p13 = scmp.ge.s32.totalorder %s12, 18
    %s19 = sphi 0, %s31
    %s20 = sphi 0, %s27
    %s21 = sphi 0, %s19
    %s22 = sphi 0, %s20
    %s23 = sphi 0, %s21
    %s24 = sphi 0, %s22
    %s34 = sphi 0, %s36
    %s37 = sphi 0, %s34
    %s38 = sphi 0, %s37
    %s54 = sphi 0, %s38
    %s60 = sphi 0, %s62
    %s63 = sphi 0, %s60
    %s64 = sphi 0, %s63
    %s80 = sphi 0, %s64
    %s86 = sphi 0, %s88
    %s89 = sphi 0, %s86
    %s90 = sphi 0, %s89
    %s106 = sphi 0, %s90
    %s110 = sphi 0, %s110
    %s112 = sphi 0, %s110
    %s113 = sphi 0, %s112
    %s127 = sphi 0, %s113
    %s133 = sphi 0, %s135
    %s136 = sphi 0, %s133
    %s137 = sphi 0, %s136
    %s153 = sphi 0, %s137
  $region4: #{_forward_static.3} parent=0 // loop_header_branch
    %15 = sbr.rel (%p13) target = $region8
  $region5: #{_forward_static.3} parent=0 // loop_body
    %s17 = ssub.s32 %s12, 1
    %s18 = ssub.s32 %s12, 2
    %s25 = sadd.s32 1, %s20
    %p26 = scmp.ge.s32.totalorder %s25, 4
    %s27 = scalar_select %p26, 0, %s25
    %s28 = sadd.s32 1, %s19
    %s29 = scalar_select %p26, %s28, %s19
    %p30 = scmp.ge.s32.totalorder %s29, 4
    %s31 = scalar_select %p30, 0, %s29
    %s32 = ssub.s32 %s20, %s27
    %p33 = scmp.eq.s32.totalorder %s32, 0
    %s35 = sadd.s32 %s34, 1
    %s36 = scalar_select %p33, %s34, %s35
    %p39 = pneg %p33
    %p40 = scmp.eq.s32.totalorder %s12, 15
    %p41 = por %p39, %p40
    %p42 = scmp.ne.s32.totalorder %s34, %s37
    %p43 = scmp.eq.s32.totalorder %s12, 0
    %p44 = por %p42, %p43
    %p45 = scmp.ne.s32.totalorder %s34, %s37
    %p46 = scmp.eq.s32.totalorder %s17, 15
    %p47 = por %p45, %p46
    %p48 = scmp.ne.s32.totalorder %s37, %s38
    %p49 = scmp.eq.s32.totalorder %s17, 0
    %p50 = por %p48, %p49
    %p51 = scmp.ne.s32.totalorder %s37, %s38
    %p52 = scmp.eq.s32.totalorder %s18, 15
    %p53 = por %p51, %p52
    %p55 = scmp.ne.s32.totalorder %s38, %s54
    %p56 = scmp.eq.s32.totalorder %s18, 0
    %p57 = por %p55, %p56
    %s58 = ssub.s32 %s20, %s27
    %p59 = scmp.eq.s32.totalorder %s58, 0
    %s61 = sadd.s32 %s60, 1
    %s62 = scalar_select %p59, %s60, %s61
    %p65 = pneg %p59
    %p66 = scmp.eq.s32.totalorder %s12, 15
    %p67 = por %p65, %p66
    %p68 = scmp.ne.s32.totalorder %s60, %s63
    %p69 = scmp.eq.s32.totalorder %s12, 0
    %p70 = por %p68, %p69
    %p71 = scmp.ne.s32.totalorder %s60, %s63
    %p72 = scmp.eq.s32.totalorder %s17, 15
    %p73 = por %p71, %p72
    %p74 = scmp.ne.s32.totalorder %s63, %s64
    %p75 = scmp.eq.s32.totalorder %s17, 0
    %p76 = por %p74, %p75
    %p77 = scmp.ne.s32.totalorder %s63, %s64
    %p78 = scmp.eq.s32.totalorder %s18, 15
    %p79 = por %p77, %p78
    %p81 = scmp.ne.s32.totalorder %s64, %s80
    %p82 = scmp.eq.s32.totalorder %s18, 0
    %p83 = por %p81, %p82
    %s84 = ssub.s32 %s20, %s27
    %p85 = scmp.eq.s32.totalorder %s84, 0
    %s87 = sadd.s32 %s86, 1
    %s88 = scalar_select %p85, %s86, %s87
    %p91 = pneg %p85
    %p92 = scmp.eq.s32.totalorder %s12, 15
    %p93 = por %p91, %p92
    %p94 = scmp.ne.s32.totalorder %s86, %s89
    %p95 = scmp.eq.s32.totalorder %s12, 0
    %p96 = por %p94, %p95
    %p97 = scmp.ne.s32.totalorder %s86, %s89
    %p98 = scmp.eq.s32.totalorder %s17, 15
    %p99 = por %p97, %p98
    %p100 = scmp.ne.s32.totalorder %s89, %s90
    %p101 = scmp.eq.s32.totalorder %s17, 0
    %p102 = por %p100, %p101
    %p103 = scmp.ne.s32.totalorder %s89, %s90
    %p104 = scmp.eq.s32.totalorder %s18, 15
    %p105 = por %p103, %p104
    %p107 = scmp.ne.s32.totalorder %s90, %s106
    %p108 = scmp.eq.s32.totalorder %s18, 0
    %p109 = por %p107, %p108
    %s111 = sadd.s32 %s110, 1
    %p114 = scmp.eq.s32.totalorder %s12, 15
    %p115 = scmp.ne.s32.totalorder %s110, %s112
    %p116 = scmp.eq.s32.totalorder %s12, 0
    %p117 = por %p115, %p116
    %p118 = scmp.ne.s32.totalorder %s110, %s112
    %p119 = scmp.eq.s32.totalorder %s17, 15
    %p120 = por %p118, %p119
    %p121 = scmp.ne.s32.totalorder %s112, %s113
    %p122 = scmp.eq.s32.totalorder %s17, 0
    %p123 = por %p121, %p122
    %p124 = scmp.ne.s32.totalorder %s112, %s113
    %p125 = scmp.eq.s32.totalorder %s18, 15
    %p126 = por %p124, %p125
    %p128 = scmp.ne.s32.totalorder %s113, %s127
    %p129 = scmp.eq.s32.totalorder %s18, 0
    %p130 = por %p128, %p129
    %s131 = ssub.s32 %s19, %s31
    %p132 = scmp.eq.s32.totalorder %s131, 0
    %s134 = sadd.s32 %s133, 1
    %s135 = scalar_select %p132, %s133, %s134
    %p138 = pneg %p132
    %p139 = scmp.eq.s32.totalorder %s12, 15
    %p140 = por %p138, %p139
    %p141 = scmp.ne.s32.totalorder %s133, %s136
    %p142 = scmp.eq.s32.totalorder %s12, 0
    %p143 = por %p141, %p142
    %p144 = scmp.ne.s32.totalorder %s133, %s136
    %p145 = scmp.eq.s32.totalorder %s17, 15
    %p146 = por %p144, %p145
    %p147 = scmp.ne.s32.totalorder %s136, %s137
    %p148 = scmp.eq.s32.totalorder %s17, 0
    %p149 = por %p147, %p148
    %p150 = scmp.ne.s32.totalorder %s136, %s137
    %p151 = scmp.eq.s32.totalorder %s18, 15
    %p152 = por %p150, %p151
    %p154 = scmp.ne.s32.totalorder %s137, %s153
    %p155 = scmp.eq.s32.totalorder %s18, 0
    %p156 = por %p154, %p155
    %p157 = scmp.le.s32.totalorder 1, %s12
    %p158 = scmp.lt.s32.totalorder %s12, 17
    %p159 = pnand %p157, %p158
    %p160 = pneg %p159
    // Predicated region
    $region9: #{_forward_static.3} parent=5 // pred_check
      _
    $region10: #{_forward_static.3} parent=5 // pred_check_branch
      %162 = sbr.rel (%p159) target = $region12
    $region11: #{_forward_static.3} parent=5 // pred_region
      %s163 = ssub.s32 %s12, 1
      // Predicated region
      $region13: #{_forward_static.3} parent=11 // pred_check
        %p164 = pneg %p123
      $region14: #{_forward_static.3} parent=11 // pred_check_branch
        %166 = sbr.rel (%p164) target = $region16
      $region15: #{_forward_static.3} parent=11 // pred_region
        _
      $region16: #{_forward_static.3} parent=11 // pred_fallthru
        _
    $region12: #{_forward_static.3} parent=5 // pred_fallthru
      _
    %p167 = scmp.lt.s32.totalorder %s12, 16
    // Predicated region
    $region17: #{_forward_static.3} parent=5 // pred_check
      %p168 = pneg %p167
    $region18: #{_forward_static.3} parent=5 // pred_check_branch
      %170 = sbr.rel (%p168) target = $region20
    $region19: #{_forward_static.3} parent=5 // pred_region
      // Predicated region
      $region21: #{_forward_static.3} parent=19 // pred_check
        %p171 = pneg %p44
      $region22: #{_forward_static.3} parent=19 // pred_check_branch
        %173 = sbr.rel (%p171) target = $region24
      $region23: #{_forward_static.3} parent=19 // pred_region
        %p174 = scmp.lt.s32.totalorder %s20, 3
        %s175 = scalar_select %p174, %s20, 3
        %s176 = scalar_lea.vmem %s1, %s175
      $region24: #{_forward_static.3} parent=19 // pred_fallthru
        _
      // Predicated region
      $region25: #{_forward_static.3} parent=19 // pred_check
        %p177 = pneg %p70
      $region26: #{_forward_static.3} parent=19 // pred_check_branch
        %179 = sbr.rel (%p177) target = $region28
      $region27: #{_forward_static.3} parent=19 // pred_region
        %p180 = scmp.lt.s32.totalorder %s20, 3
        %s181 = scalar_select %p180, %s20, 3
        %s182 = scalar_lea.vmem %s2, %s181
      $region28: #{_forward_static.3} parent=19 // pred_fallthru
        _
      // Predicated region
      $region29: #{_forward_static.3} parent=19 // pred_check
        %p183 = pneg %p96
      $region30: #{_forward_static.3} parent=19 // pred_check_branch
        %185 = sbr.rel (%p183) target = $region32
      $region31: #{_forward_static.3} parent=19 // pred_region
        %s186 = smul.u32 16, %s20
        %p187 = scmp.lt.s32.totalorder %s186, 63
        %s188 = scalar_select %p187, %s186, 63
        %s189 = smul.addr %s188, 8
        %s190 = scalar_lea.vmem %s3, %s189
        %s191 = smul.u32 16, %s20
      $region32: #{_forward_static.3} parent=19 // pred_fallthru
        _
    $region20: #{_forward_static.3} parent=5 // pred_fallthru
      _
    %p192 = scmp.le.s32.totalorder 1, %s12
    %p193 = scmp.lt.s32.totalorder %s12, 17
    %p194 = pnand %p192, %p193
    %p195 = pneg %p194
    // Predicated region
    $region33: #{_forward_static.3} parent=5 // pred_check
      _
    $region34: #{_forward_static.3} parent=5 // pred_check_branch
      %197 = sbr.rel (%p194) target = $region36
    $region35: #{_forward_static.3} parent=5 // pred_region
      %s198 = ssub.s32 %s12, 1
      %p199 = scmp.lt.s32.totalorder %s22, 3
      %s200 = scalar_select %p199, %s22, 3
      %s201 = scalar_lea.vmem %s1, %s200
      %p202 = pneg %p50
      %p203 = pneg %p47
      %p204 = scmp.lt.s32.totalorder %s22, 3
      %s205 = scalar_select %p204, %s22, 3
      %s206 = scalar_lea.vmem %s2, %s205
      %p207 = pneg %p76
      %p208 = pneg %p73
      %s209 = smul.u32 16, %s22
      %p210 = scmp.lt.s32.totalorder %s209, 63
      %s211 = scalar_select %p210, %s209, 63
      %s212 = smul.addr %s211, 8
      %s213 = scalar_lea.vmem %s3, %s212
      %p214 = pneg %p102
      %p215 = pneg %p99
      %p216 = pneg %p123
      %p217 = pneg %p120
      %p218 = pneg %p149
      %p219 = pneg %p146
      %s220 = smul.u32 64, %s21
      %p221 = scmp.lt.s32.totalorder %s220, 255
      %s222 = scalar_select %p221, %s220, 255
      %s223 = smul.addr %s222, 8
      %s224 = scalar_lea.vmem %s5, %s223
      %p225 = scmp.lt.s32.totalorder %s22, 3
      %s226 = scalar_select %p225, %s22, 3
      %s227 = scalar_lea.vmem %s1, %s226
      %p228 = scmp.lt.s32.totalorder %s22, 3
      %s229 = scalar_select %p228, %s22, 3
      %s230 = scalar_lea.vmem %s2, %s229
      %s231 = smul.u32 16, %s22
      %p232 = scmp.lt.s32.totalorder %s231, 63
      %s233 = scalar_select %p232, %s231, 63
      %s234 = smul.addr %s233, 8
      %s235 = scalar_lea.vmem %s3, %s234
      %s236 = smul.u32 16, %s22
      %s237 = smul.u32 64, %s21
      %p238 = scmp.lt.s32.totalorder %s237, 255
      %s239 = scalar_select %p238, %s237, 255
      %s240 = smul.addr %s239, 8
      %s241 = scalar_lea.vmem %s5, %s240
      %s242 = smul.u32 64, %s21
      %p243 = scmp.eq.s32.totalorder %s22, 0
      // Predicated region
      $region37: #{_forward_static.3} parent=35 // pred_check
        %p244 = pneg %p243
      $region38: #{_forward_static.3} parent=35 // pred_check_branch
        %246 = sbr.rel (%p244) target = $region40
      $region39: #{_forward_static.3} parent=35 // pred_region
        %vm247 = vcmask 7168
        %248 = vst.msk [vmem:[#allocation2] sm:$0xff] %vm247, -1e+30
        %249 = vst.msk [vmem:[#allocation2 + $0x8] sm:$0xff] %vm247, -1e+30
        %250 = vst.msk [vmem:[#allocation2 + $0x10] sm:$0xff] %vm247, -1e+30
        %251 = vst.msk [vmem:[#allocation2 + $0x18] sm:$0xff] %vm247, -1e+30
        %252 = vst.msk [vmem:[#allocation2 + $0x20] sm:$0xff] %vm247, -1e+30
        %253 = vst.msk [vmem:[#allocation2 + $0x28] sm:$0xff] %vm247, -1e+30
        %254 = vst.msk [vmem:[#allocation2 + $0x30] sm:$0xff] %vm247, -1e+30
        %255 = vst.msk [vmem:[#allocation2 + $0x38] sm:$0xff] %vm247, -1e+30
        %256 = vst.msk [vmem:[#allocation2 + $0x40] sm:$0xff] %vm247, -1e+30
        %257 = vst.msk [vmem:[#allocation2 + $0x48] sm:$0xff] %vm247, -1e+30
        %258 = vst.msk [vmem:[#allocation2 + $0x50] sm:$0xff] %vm247, -1e+30
        %259 = vst.msk [vmem:[#allocation2 + $0x58] sm:$0xff] %vm247, -1e+30
        %260 = vst.msk [vmem:[#allocation2 + $0x60] sm:$0xff] %vm247, -1e+30
        %261 = vst.msk [vmem:[#allocation2 + $0x68] sm:$0xff] %vm247, -1e+30
        %262 = vst.msk [vmem:[#allocation2 + $0x70] sm:$0xff] %vm247, -1e+30
        %263 = vst.msk [vmem:[#allocation2 + $0x78] sm:$0xff] %vm247, -1e+30
        %264 = vst.msk [vmem:[#allocation2 + $0x80] sm:$0xff] %vm247, -1e+30
        %265 = vst.msk [vmem:[#allocation2 + $0x88] sm:$0xff] %vm247, -1e+30
        %266 = vst.msk [vmem:[#allocation2 + $0x90] sm:$0xff] %vm247, -1e+30
        %267 = vst.msk [vmem:[#allocation2 + $0x98] sm:$0xff] %vm247, -1e+30
        %268 = vst.msk [vmem:[#allocation2 + $0xa0] sm:$0xff] %vm247, -1e+30
        %269 = vst.msk [vmem:[#allocation2 + $0xa8] sm:$0xff] %vm247, -1e+30
        %270 = vst.msk [vmem:[#allocation2 + $0xb0] sm:$0xff] %vm247, -1e+30
        %271 = vst.msk [vmem:[#allocation2 + $0xb8] sm:$0xff] %vm247, -1e+30
        %272 = vst.msk [vmem:[#allocation2 + $0xc0] sm:$0xff] %vm247, -1e+30
        %273 = vst.msk [vmem:[#allocation2 + $0xc8] sm:$0xff] %vm247, -1e+30
        %274 = vst.msk [vmem:[#allocation2 + $0xd0] sm:$0xff] %vm247, -1e+30
        %275 = vst.msk [vmem:[#allocation2 + $0xd8] sm:$0xff] %vm247, -1e+30
        %276 = vst.msk [vmem:[#allocation2 + $0xe0] sm:$0xff] %vm247, -1e+30
        %277 = vst.msk [vmem:[#allocation2 + $0xe8] sm:$0xff] %vm247, -1e+30
        %278 = vst.msk [vmem:[#allocation2 + $0xf0] sm:$0xff] %vm247, -1e+30
        %279 = vst.msk [vmem:[#allocation2 + $0xf8] sm:$0xff] %vm247, -1e+30
        %280 = vst.msk [vmem:[#allocation2 + $0x100] sm:$0xff] %vm247, -1e+30
        %281 = vst.msk [vmem:[#allocation2 + $0x108] sm:$0xff] %vm247, -1e+30
        %282 = vst.msk [vmem:[#allocation2 + $0x110] sm:$0xff] %vm247, -1e+30
        %283 = vst.msk [vmem:[#allocation2 + $0x118] sm:$0xff] %vm247, -1e+30
        %284 = vst.msk [vmem:[#allocation2 + $0x120] sm:$0xff] %vm247, -1e+30
        %285 = vst.msk [vmem:[#allocation2 + $0x128] sm:$0xff] %vm247, -1e+30
        %286 = vst.msk [vmem:[#allocation2 + $0x130] sm:$0xff] %vm247, -1e+30
        %287 = vst.msk [vmem:[#allocation2 + $0x138] sm:$0xff] %vm247, -1e+30
        %288 = vst.msk [vmem:[#allocation2 + $0x140] sm:$0xff] %vm247, -1e+30
        %289 = vst.msk [vmem:[#allocation2 + $0x148] sm:$0xff] %vm247, -1e+30
        %290 = vst.msk [vmem:[#allocation2 + $0x150] sm:$0xff] %vm247, -1e+30
        %291 = vst.msk [vmem:[#allocation2 + $0x158] sm:$0xff] %vm247, -1e+30
        %292 = vst.msk [vmem:[#allocation2 + $0x160] sm:$0xff] %vm247, -1e+30
        %293 = vst.msk [vmem:[#allocation2 + $0x168] sm:$0xff] %vm247, -1e+30
        %294 = vst.msk [vmem:[#allocation2 + $0x170] sm:$0xff] %vm247, -1e+30
        %295 = vst.msk [vmem:[#allocation2 + $0x178] sm:$0xff] %vm247, -1e+30
        %296 = vst.msk [vmem:[#allocation2 + $0x180] sm:$0xff] %vm247, -1e+30
        %297 = vst.msk [vmem:[#allocation2 + $0x188] sm:$0xff] %vm247, -1e+30
        %298 = vst.msk [vmem:[#allocation2 + $0x190] sm:$0xff] %vm247, -1e+30
        %299 = vst.msk [vmem:[#allocation2 + $0x198] sm:$0xff] %vm247, -1e+30
        %300 = vst.msk [vmem:[#allocation2 + $0x1a0] sm:$0xff] %vm247, -1e+30
        %301 = vst.msk [vmem:[#allocation2 + $0x1a8] sm:$0xff] %vm247, -1e+30
        %302 = vst.msk [vmem:[#allocation2 + $0x1b0] sm:$0xff] %vm247, -1e+30
        %303 = vst.msk [vmem:[#allocation2 + $0x1b8] sm:$0xff] %vm247, -1e+30
        %304 = vst.msk [vmem:[#allocation2 + $0x1c0] sm:$0xff] %vm247, -1e+30
        %305 = vst.msk [vmem:[#allocation2 + $0x1c8] sm:$0xff] %vm247, -1e+30
        %306 = vst.msk [vmem:[#allocation2 + $0x1d0] sm:$0xff] %vm247, -1e+30
        %307 = vst.msk [vmem:[#allocation2 + $0x1d8] sm:$0xff] %vm247, -1e+30
        %308 = vst.msk [vmem:[#allocation2 + $0x1e0] sm:$0xff] %vm247, -1e+30
        %309 = vst.msk [vmem:[#allocation2 + $0x1e8] sm:$0xff] %vm247, -1e+30
        %310 = vst.msk [vmem:[#allocation2 + $0x1f0] sm:$0xff] %vm247, -1e+30
        %311 = vst.msk [vmem:[#allocation2 + $0x1f8] sm:$0xff] %vm247, -1e+30
        %312 = vst.msk [vmem:[#allocation3] sm:$0xff] %vm247, 0.0
        %313 = vst.msk [vmem:[#allocation3 + $0x8] sm:$0xff] %vm247, 0.0
        %314 = vst.msk [vmem:[#allocation3 + $0x10] sm:$0xff] %vm247, 0.0
        %315 = vst.msk [vmem:[#allocation3 + $0x18] sm:$0xff] %vm247, 0.0
        %316 = vst.msk [vmem:[#allocation3 + $0x20] sm:$0xff] %vm247, 0.0
        %317 = vst.msk [vmem:[#allocation3 + $0x28] sm:$0xff] %vm247, 0.0
        %318 = vst.msk [vmem:[#allocation3 + $0x30] sm:$0xff] %vm247, 0.0
        %319 = vst.msk [vmem:[#allocation3 + $0x38] sm:$0xff] %vm247, 0.0
        %320 = vst.msk [vmem:[#allocation3 + $0x40] sm:$0xff] %vm247, 0.0
        %321 = vst.msk [vmem:[#allocation3 + $0x48] sm:$0xff] %vm247, 0.0
        %322 = vst.msk [vmem:[#allocation3 + $0x50] sm:$0xff] %vm247, 0.0
        %323 = vst.msk [vmem:[#allocation3 + $0x58] sm:$0xff] %vm247, 0.0
        %324 = vst.msk [vmem:[#allocation3 + $0x60] sm:$0xff] %vm247, 0.0
        %325 = vst.msk [vmem:[#allocation3 + $0x68] sm:$0xff] %vm247, 0.0
        %326 = vst.msk [vmem:[#allocation3 + $0x70] sm:$0xff] %vm247, 0.0
        %327 = vst.msk [vmem:[#allocation3 + $0x78] sm:$0xff] %vm247, 0.0
        %328 = vst.msk [vmem:[#allocation3 + $0x80] sm:$0xff] %vm247, 0.0
        %329 = vst.msk [vmem:[#allocation3 + $0x88] sm:$0xff] %vm247, 0.0
        %330 = vst.msk [vmem:[#allocation3 + $0x90] sm:$0xff] %vm247, 0.0
        %331 = vst.msk [vmem:[#allocation3 + $0x98] sm:$0xff] %vm247, 0.0
        %332 = vst.msk [vmem:[#allocation3 + $0xa0] sm:$0xff] %vm247, 0.0
        %333 = vst.msk [vmem:[#allocation3 + $0xa8] sm:$0xff] %vm247, 0.0
        %334 = vst.msk [vmem:[#allocation3 + $0xb0] sm:$0xff] %vm247, 0.0
        %335 = vst.msk [vmem:[#allocation3 + $0xb8] sm:$0xff] %vm247, 0.0
        %336 = vst.msk [vmem:[#allocation3 + $0xc0] sm:$0xff] %vm247, 0.0
        %337 = vst.msk [vmem:[#allocation3 + $0xc8] sm:$0xff] %vm247, 0.0
        %338 = vst.msk [vmem:[#allocation3 + $0xd0] sm:$0xff] %vm247, 0.0
        %339 = vst.msk [vmem:[#allocation3 + $0xd8] sm:$0xff] %vm247, 0.0
        %340 = vst.msk [vmem:[#allocation3 + $0xe0] sm:$0xff] %vm247, 0.0
        %341 = vst.msk [vmem:[#allocation3 + $0xe8] sm:$0xff] %vm247, 0.0
        %342 = vst.msk [vmem:[#allocation3 + $0xf0] sm:$0xff] %vm247, 0.0
        %343 = vst.msk [vmem:[#allocation3 + $0xf8] sm:$0xff] %vm247, 0.0
        %344 = vst.msk [vmem:[#allocation3 + $0x100] sm:$0xff] %vm247, 0.0
        %345 = vst.msk [vmem:[#allocation3 + $0x108] sm:$0xff] %vm247, 0.0
        %346 = vst.msk [vmem:[#allocation3 + $0x110] sm:$0xff] %vm247, 0.0
        %347 = vst.msk [vmem:[#allocation3 + $0x118] sm:$0xff] %vm247, 0.0
        %348 = vst.msk [vmem:[#allocation3 + $0x120] sm:$0xff] %vm247, 0.0
        %349 = vst.msk [vmem:[#allocation3 + $0x128] sm:$0xff] %vm247, 0.0
        %350 = vst.msk [vmem:[#allocation3 + $0x130] sm:$0xff] %vm247, 0.0
        %351 = vst.msk [vmem:[#allocation3 + $0x138] sm:$0xff] %vm247, 0.0
        %352 = vst.msk [vmem:[#allocation3 + $0x140] sm:$0xff] %vm247, 0.0
        %353 = vst.msk [vmem:[#allocation3 + $0x148] sm:$0xff] %vm247, 0.0
        %354 = vst.msk [vmem:[#allocation3 + $0x150] sm:$0xff] %vm247, 0.0
        %355 = vst.msk [vmem:[#allocation3 + $0x158] sm:$0xff] %vm247, 0.0
        %356 = vst.msk [vmem:[#allocation3 + $0x160] sm:$0xff] %vm247, 0.0
        %357 = vst.msk [vmem:[#allocation3 + $0x168] sm:$0xff] %vm247, 0.0
        %358 = vst.msk [vmem:[#allocation3 + $0x170] sm:$0xff] %vm247, 0.0
        %359 = vst.msk [vmem:[#allocation3 + $0x178] sm:$0xff] %vm247, 0.0
        %360 = vst.msk [vmem:[#allocation3 + $0x180] sm:$0xff] %vm247, 0.0
        %361 = vst.msk [vmem:[#allocation3 + $0x188] sm:$0xff] %vm247, 0.0
        %362 = vst.msk [vmem:[#allocation3 + $0x190] sm:$0xff] %vm247, 0.0
        %363 = vst.msk [vmem:[#allocation3 + $0x198] sm:$0xff] %vm247, 0.0
        %364 = vst.msk [vmem:[#allocation3 + $0x1a0] sm:$0xff] %vm247, 0.0
        %365 = vst.msk [vmem:[#allocation3 + $0x1a8] sm:$0xff] %vm247, 0.0
        %366 = vst.msk [vmem:[#allocation3 + $0x1b0] sm:$0xff] %vm247, 0.0
        %367 = vst.msk [vmem:[#allocation3 + $0x1b8] sm:$0xff] %vm247, 0.0
        %368 = vst.msk [vmem:[#allocation3 + $0x1c0] sm:$0xff] %vm247, 0.0
        %369 = vst.msk [vmem:[#allocation3 + $0x1c8] sm:$0xff] %vm247, 0.0
        %370 = vst.msk [vmem:[#allocation3 + $0x1d0] sm:$0xff] %vm247, 0.0
        %371 = vst.msk [vmem:[#allocation3 + $0x1d8] sm:$0xff] %vm247, 0.0
        %372 = vst.msk [vmem:[#allocation3 + $0x1e0] sm:$0xff] %vm247, 0.0
        %373 = vst.msk [vmem:[#allocation3 + $0x1e8] sm:$0xff] %vm247, 0.0
        %374 = vst.msk [vmem:[#allocation3 + $0x1f0] sm:$0xff] %vm247, 0.0
        %375 = vst.msk [vmem:[#allocation3 + $0x1f8] sm:$0xff] %vm247, 0.0
        %vm376 = vcmask 130048
        %377 = vst.msk [vmem:[#allocation4] sm:$0xff] %vm376, 0.0
        %378 = vst.msk [vmem:[#allocation4 + $0x8] sm:$0xff] %vm376, 0.0
        %379 = vst.msk [vmem:[#allocation4 + $0x10] sm:$0xff] %vm376, 0.0
        %380 = vst.msk [vmem:[#allocation4 + $0x18] sm:$0xff] %vm376, 0.0
        %381 = vst.msk [vmem:[#allocation4 + $0x20] sm:$0xff] %vm376, 0.0
        %382 = vst.msk [vmem:[#allocation4 + $0x28] sm:$0xff] %vm376, 0.0
        %383 = vst.msk [vmem:[#allocation4 + $0x30] sm:$0xff] %vm376, 0.0
        %384 = vst.msk [vmem:[#allocation4 + $0x38] sm:$0xff] %vm376, 0.0
        %385 = vst.msk [vmem:[#allocation4 + $0x40] sm:$0xff] %vm376, 0.0
        %386 = vst.msk [vmem:[#allocation4 + $0x48] sm:$0xff] %vm376, 0.0
        %387 = vst.msk [vmem:[#allocation4 + $0x50] sm:$0xff] %vm376, 0.0
        %388 = vst.msk [vmem:[#allocation4 + $0x58] sm:$0xff] %vm376, 0.0
        %389 = vst.msk [vmem:[#allocation4 + $0x60] sm:$0xff] %vm376, 0.0
        %390 = vst.msk [vmem:[#allocation4 + $0x68] sm:$0xff] %vm376, 0.0
        %391 = vst.msk [vmem:[#allocation4 + $0x70] sm:$0xff] %vm376, 0.0
        %392 = vst.msk [vmem:[#allocation4 + $0x78] sm:$0xff] %vm376, 0.0
        %393 = vst.msk [vmem:[#allocation4 + $0x80] sm:$0xff] %vm376, 0.0
        %394 = vst.msk [vmem:[#allocation4 + $0x88] sm:$0xff] %vm376, 0.0
        %395 = vst.msk [vmem:[#allocation4 + $0x90] sm:$0xff] %vm376, 0.0
        %396 = vst.msk [vmem:[#allocation4 + $0x98] sm:$0xff] %vm376, 0.0
        %397 = vst.msk [vmem:[#allocation4 + $0xa0] sm:$0xff] %vm376, 0.0
        %398 = vst.msk [vmem:[#allocation4 + $0xa8] sm:$0xff] %vm376, 0.0
        %399 = vst.msk [vmem:[#allocation4 + $0xb0] sm:$0xff] %vm376, 0.0
        %400 = vst.msk [vmem:[#allocation4 + $0xb8] sm:$0xff] %vm376, 0.0
        %401 = vst.msk [vmem:[#allocation4 + $0xc0] sm:$0xff] %vm376, 0.0
        %402 = vst.msk [vmem:[#allocation4 + $0xc8] sm:$0xff] %vm376, 0.0
        %403 = vst.msk [vmem:[#allocation4 + $0xd0] sm:$0xff] %vm376, 0.0
        %404 = vst.msk [vmem:[#allocation4 + $0xd8] sm:$0xff] %vm376, 0.0
        %405 = vst.msk [vmem:[#allocation4 + $0xe0] sm:$0xff] %vm376, 0.0
        %406 = vst.msk [vmem:[#allocation4 + $0xe8] sm:$0xff] %vm376, 0.0
        %407 = vst.msk [vmem:[#allocation4 + $0xf0] sm:$0xff] %vm376, 0.0
        %408 = vst.msk [vmem:[#allocation4 + $0xf8] sm:$0xff] %vm376, 0.0
        %409 = vst.msk [vmem:[#allocation4 + $0x100] sm:$0xff] %vm376, 0.0
        %410 = vst.msk [vmem:[#allocation4 + $0x108] sm:$0xff] %vm376, 0.0
        %411 = vst.msk [vmem:[#allocation4 + $0x110] sm:$0xff] %vm376, 0.0
        %412 = vst.msk [vmem:[#allocation4 + $0x118] sm:$0xff] %vm376, 0.0
        %413 = vst.msk [vmem:[#allocation4 + $0x120] sm:$0xff] %vm376, 0.0
        %414 = vst.msk [vmem:[#allocation4 + $0x128] sm:$0xff] %vm376, 0.0
        %415 = vst.msk [vmem:[#allocation4 + $0x130] sm:$0xff] %vm376, 0.0
        %416 = vst.msk [vmem:[#allocation4 + $0x138] sm:$0xff] %vm376, 0.0
        %417 = vst.msk [vmem:[#allocation4 + $0x140] sm:$0xff] %vm376, 0.0
        %418 = vst.msk [vmem:[#allocation4 + $0x148] sm:$0xff] %vm376, 0.0
        %419 = vst.msk [vmem:[#allocation4 + $0x150] sm:$0xff] %vm376, 0.0
        %420 = vst.msk [vmem:[#allocation4 + $0x158] sm:$0xff] %vm376, 0.0
        %421 = vst.msk [vmem:[#allocation4 + $0x160] sm:$0xff] %vm376, 0.0
        %422 = vst.msk [vmem:[#allocation4 + $0x168] sm:$0xff] %vm376, 0.0
        %423 = vst.msk [vmem:[#allocation4 + $0x170] sm:$0xff] %vm376, 0.0
        %424 = vst.msk [vmem:[#allocation4 + $0x178] sm:$0xff] %vm376, 0.0
        %425 = vst.msk [vmem:[#allocation4 + $0x180] sm:$0xff] %vm376, 0.0
        %426 = vst.msk [vmem:[#allocation4 + $0x188] sm:$0xff] %vm376, 0.0
        %427 = vst.msk [vmem:[#allocation4 + $0x190] sm:$0xff] %vm376, 0.0
        %428 = vst.msk [vmem:[#allocation4 + $0x198] sm:$0xff] %vm376, 0.0
        %429 = vst.msk [vmem:[#allocation4 + $0x1a0] sm:$0xff] %vm376, 0.0
        %430 = vst.msk [vmem:[#allocation4 + $0x1a8] sm:$0xff] %vm376, 0.0
        %431 = vst.msk [vmem:[#allocation4 + $0x1b0] sm:$0xff] %vm376, 0.0
        %432 = vst.msk [vmem:[#allocation4 + $0x1b8] sm:$0xff] %vm376, 0.0
        %433 = vst.msk [vmem:[#allocation4 + $0x1c0] sm:$0xff] %vm376, 0.0
        %434 = vst.msk [vmem:[#allocation4 + $0x1c8] sm:$0xff] %vm376, 0.0
        %435 = vst.msk [vmem:[#allocation4 + $0x1d0] sm:$0xff] %vm376, 0.0
        %436 = vst.msk [vmem:[#allocation4 + $0x1d8] sm:$0xff] %vm376, 0.0
        %437 = vst.msk [vmem:[#allocation4 + $0x1e0] sm:$0xff] %vm376, 0.0
        %438 = vst.msk [vmem:[#allocation4 + $0x1e8] sm:$0xff] %vm376, 0.0
        %439 = vst.msk [vmem:[#allocation4 + $0x1f0] sm:$0xff] %vm376, 0.0
        %440 = vst.msk [vmem:[#allocation4 + $0x1f8] sm:$0xff] %vm376, 0.0
      $region40: #{_forward_static.3} parent=35 // pred_fallthru
        _
      %s441 = smul.u32 %s22, 128
      %s442 = sld [smem:[#allocation6]]
      %p443 = scmp.lt.s32.totalorder %s441, %s442
      // Predicated region
      $region41: #{_forward_static.3} parent=35 // pred_check
        %p444 = pneg %p443
      $region42: #{_forward_static.3} parent=35 // pred_check_branch
        %446 = sbr.rel (%p444) target = $region44
      $region43: #{_forward_static.3} parent=35 // pred_region
        %s447 = smul.u32 %s21, 512
        %v448 = vlaneseq
        %v449 = vshrl.u32 %v448, 7
        %v450 = vadd.s32 %v449, 8
        %v451 = vadd.s32 %v449, 16
        %v452 = vadd.s32 %v449, 24
        %v453 = vadd.s32 %v449, 32
        %v454 = vadd.s32 %v449, 40
        %v455 = vadd.s32 %v449, 48
        %v456 = vadd.s32 %v449, 56
        %v457 = vadd.s32 %v449, 64
        %v458 = vadd.s32 %v449, 72
        %v459 = vadd.s32 %v449, 80
        %v460 = vadd.s32 %v449, 88
        %v461 = vadd.s32 %v449, 96
        %v462 = vadd.s32 %v449, 104
        %v463 = vadd.s32 %v449, 112
        %v464 = vadd.s32 %v449, 120
        %v465 = vadd.s32 %v449, 128
        %v466 = vadd.s32 %v449, 136
        %v467 = vadd.s32 %v449, 144
        %v468 = vadd.s32 %v449, 152
        %v469 = vadd.s32 %v449, 160
        %v470 = vadd.s32 %v449, 168
        %v471 = vadd.s32 %v449, 176
        %v472 = vadd.s32 %v449, 184
        %v473 = vadd.s32 %v449, 192
        %v474 = vadd.s32 %v449, 200
        %v475 = vadd.s32 %v449, 208
        %v476 = vadd.s32 %v449, 216
        %v477 = vadd.s32 %v449, 224
        %v478 = vadd.s32 %v449, 232
        %v479 = vadd.s32 %v449, 240
        %v480 = vadd.s32 %v449, 248
        %v481 = vadd.s32 %v449, 256
        %v482 = vadd.s32 %v449, 264
        %v483 = vadd.s32 %v449, 272
        %v484 = vadd.s32 %v449, 280
        %v485 = vadd.s32 %v449, 288
        %v486 = vadd.s32 %v449, 296
        %v487 = vadd.s32 %v449, 304
        %v488 = vadd.s32 %v449, 312
        %v489 = vadd.s32 %v449, 320
        %v490 = vadd.s32 %v449, 328
        %v491 = vadd.s32 %v449, 336
        %v492 = vadd.s32 %v449, 344
        %v493 = vadd.s32 %v449, 352
        %v494 = vadd.s32 %v449, 360
        %v495 = vadd.s32 %v449, 368
        %v496 = vadd.s32 %v449, 376
        %v497 = vadd.s32 %v449, 384
        %v498 = vadd.s32 %v449, 392
        %v499 = vadd.s32 %v449, 400
        %v500 = vadd.s32 %v449, 408
        %v501 = vadd.s32 %v449, 416
        %v502 = vadd.s32 %v449, 424
        %v503 = vadd.s32 %v449, 432
        %v504 = vadd.s32 %v449, 440
        %v505 = vadd.s32 %v449, 448
        %v506 = vadd.s32 %v449, 456
        %v507 = vadd.s32 %v449, 464
        %v508 = vadd.s32 %v449, 472
        %v509 = vadd.s32 %v449, 480
        %v510 = vadd.s32 %v449, 488
        %v511 = vadd.s32 %v449, 496
        %v512 = vadd.s32 %v449, 504
        %v513 = vstv %s447
        %v514 = vadd.s32 %v513, %v449
        %v515 = vadd.s32 %v513, %v450
        %v516 = vadd.s32 %v513, %v451
        %v517 = vadd.s32 %v513, %v452
        %v518 = vadd.s32 %v513, %v453
        %v519 = vadd.s32 %v513, %v454
        %v520 = vadd.s32 %v513, %v455
        %v521 = vadd.s32 %v513, %v456
        %v522 = vadd.s32 %v513, %v457
        %v523 = vadd.s32 %v513, %v458
        %v524 = vadd.s32 %v513, %v459
        %v525 = vadd.s32 %v513, %v460
        %v526 = vadd.s32 %v513, %v461
        %v527 = vadd.s32 %v513, %v462
        %v528 = vadd.s32 %v513, %v463
        %v529 = vadd.s32 %v513, %v464
        %v530 = vadd.s32 %v513, %v465
        %v531 = vadd.s32 %v513, %v466
        %v532 = vadd.s32 %v513, %v467
        %v533 = vadd.s32 %v513, %v468
        %v534 = vadd.s32 %v513, %v469
        %v535 = vadd.s32 %v513, %v470
        %v536 = vadd.s32 %v513, %v471
        %v537 = vadd.s32 %v513, %v472
        %v538 = vadd.s32 %v513, %v473
        %v539 = vadd.s32 %v513, %v474
        %v540 = vadd.s32 %v513, %v475
        %v541 = vadd.s32 %v513, %v476
        %v542 = vadd.s32 %v513, %v477
        %v543 = vadd.s32 %v513, %v478
        %v544 = vadd.s32 %v513, %v479
        %v545 = vadd.s32 %v513, %v480
        %v546 = vadd.s32 %v513, %v481
        %v547 = vadd.s32 %v513, %v482
        %v548 = vadd.s32 %v513, %v483
        %v549 = vadd.s32 %v513, %v484
        %v550 = vadd.s32 %v513, %v485
        %v551 = vadd.s32 %v513, %v486
        %v552 = vadd.s32 %v513, %v487
        %v553 = vadd.s32 %v513, %v488
        %v554 = vadd.s32 %v513, %v489
        %v555 = vadd.s32 %v513, %v490
        %v556 = vadd.s32 %v513, %v491
        %v557 = vadd.s32 %v513, %v492
        %v558 = vadd.s32 %v513, %v493
        %v559 = vadd.s32 %v513, %v494
        %v560 = vadd.s32 %v513, %v495
        %v561 = vadd.s32 %v513, %v496
        %v562 = vadd.s32 %v513, %v497
        %v563 = vadd.s32 %v513, %v498
        %v564 = vadd.s32 %v513, %v499
        %v565 = vadd.s32 %v513, %v500
        %v566 = vadd.s32 %v513, %v501
        %v567 = vadd.s32 %v513, %v502
        %v568 = vadd.s32 %v513, %v503
        %v569 = vadd.s32 %v513, %v504
        %v570 = vadd.s32 %v513, %v505
        %v571 = vadd.s32 %v513, %v506
        %v572 = vadd.s32 %v513, %v507
        %v573 = vadd.s32 %v513, %v508
        %v574 = vadd.s32 %v513, %v509
        %v575 = vadd.s32 %v513, %v510
        %v576 = vadd.s32 %v513, %v511
        %v577 = vadd.s32 %v513, %v512
        %v578 = vcvt.s32.f32 %v514
        %v579 = vcvt.s32.f32 %v515
        %v580 = vcvt.s32.f32 %v516
        %v581 = vcvt.s32.f32 %v517
        %v582 = vcvt.s32.f32 %v518
        %v583 = vcvt.s32.f32 %v519
        %v584 = vcvt.s32.f32 %v520
        %v585 = vcvt.s32.f32 %v521
        %v586 = vcvt.s32.f32 %v522
        %v587 = vcvt.s32.f32 %v523
        %v588 = vcvt.s32.f32 %v524
        %v589 = vcvt.s32.f32 %v525
        %v590 = vcvt.s32.f32 %v526
        %v591 = vcvt.s32.f32 %v527
        %v592 = vcvt.s32.f32 %v528
        %v593 = vcvt.s32.f32 %v529
        %v594 = vcvt.s32.f32 %v530
        %v595 = vcvt.s32.f32 %v531
        %v596 = vcvt.s32.f32 %v532
        %v597 = vcvt.s32.f32 %v533
        %v598 = vcvt.s32.f32 %v534
        %v599 = vcvt.s32.f32 %v535
        %v600 = vcvt.s32.f32 %v536
        %v601 = vcvt.s32.f32 %v537
        %v602 = vcvt.s32.f32 %v538
        %v603 = vcvt.s32.f32 %v539
        %v604 = vcvt.s32.f32 %v540
        %v605 = vcvt.s32.f32 %v541
        %v606 = vcvt.s32.f32 %v542
        %v607 = vcvt.s32.f32 %v543
        %v608 = vcvt.s32.f32 %v544
        %v609 = vcvt.s32.f32 %v545
        %v610 = vcvt.s32.f32 %v546
        %v611 = vcvt.s32.f32 %v547
        %v612 = vcvt.s32.f32 %v548
        %v613 = vcvt.s32.f32 %v549
        %v614 = vcvt.s32.f32 %v550
        %v615 = vcvt.s32.f32 %v551
        %v616 = vcvt.s32.f32 %v552
        %v617 = vcvt.s32.f32 %v553
        %v618 = vcvt.s32.f32 %v554
        %v619 = vcvt.s32.f32 %v555
        %v620 = vcvt.s32.f32 %v556
        %v621 = vcvt.s32.f32 %v557
        %v622 = vcvt.s32.f32 %v558
        %v623 = vcvt.s32.f32 %v559
        %v624 = vcvt.s32.f32 %v560
        %v625 = vcvt.s32.f32 %v561
        %v626 = vcvt.s32.f32 %v562
        %v627 = vcvt.s32.f32 %v563
        %v628 = vcvt.s32.f32 %v564
        %v629 = vcvt.s32.f32 %v565
        %v630 = vcvt.s32.f32 %v566
        %v631 = vcvt.s32.f32 %v567
        %v632 = vcvt.s32.f32 %v568
        %v633 = vcvt.s32.f32 %v569
        %v634 = vcvt.s32.f32 %v570
        %v635 = vcvt.s32.f32 %v571
        %v636 = vcvt.s32.f32 %v572
        %v637 = vcvt.s32.f32 %v573
        %v638 = vcvt.s32.f32 %v574
        %v639 = vcvt.s32.f32 %v575
        %v640 = vcvt.s32.f32 %v576
        %v641 = vcvt.s32.f32 %v577
        %v642 = vld [vmem:[%s227] sm:$0x1]
        %v644 = vlaneseq
        %v645 = vshrl.u32 %v644, 7
        %v646 = vsub.s32 0, %v645
        %v647 = vrot.slane %v642, %v646
        %v649 = vsub.f32 %v578, %v647
        %v650 = vsub.f32 %v579, %v647
        %v651 = vsub.f32 %v580, %v647
        %v652 = vsub.f32 %v581, %v647
        %v653 = vsub.f32 %v582, %v647
        %v654 = vsub.f32 %v583, %v647
        %v655 = vsub.f32 %v584, %v647
        %v656 = vsub.f32 %v585, %v647
        %v657 = vsub.f32 %v586, %v647
        %v658 = vsub.f32 %v587, %v647
        %v659 = vsub.f32 %v588, %v647
        %v660 = vsub.f32 %v589, %v647
        %v661 = vsub.f32 %v590, %v647
        %v662 = vsub.f32 %v591, %v647
        %v663 = vsub.f32 %v592, %v647
        %v664 = vsub.f32 %v593, %v647
        %v665 = vsub.f32 %v594, %v647
        %v666 = vsub.f32 %v595, %v647
        %v667 = vsub.f32 %v596, %v647
        %v668 = vsub.f32 %v597, %v647
        %v669 = vsub.f32 %v598, %v647
        %v670 = vsub.f32 %v599, %v647
        %v671 = vsub.f32 %v600, %v647
        %v672 = vsub.f32 %v601, %v647
        %v673 = vsub.f32 %v602, %v647
        %v674 = vsub.f32 %v603, %v647
        %v675 = vsub.f32 %v604, %v647
        %v676 = vsub.f32 %v605, %v647
        %v677 = vsub.f32 %v606, %v647
        %v678 = vsub.f32 %v607, %v647
        %v679 = vsub.f32 %v608, %v647
        %v680 = vsub.f32 %v609, %v647
        %v681 = vsub.f32 %v610, %v647
        %v682 = vsub.f32 %v611, %v647
        %v683 = vsub.f32 %v612, %v647
        %v684 = vsub.f32 %v613, %v647
        %v685 = vsub.f32 %v614, %v647
        %v686 = vsub.f32 %v615, %v647
        %v687 = vsub.f32 %v616, %v647
        %v688 = vsub.f32 %v617, %v647
        %v689 = vsub.f32 %v618, %v647
        %v690 = vsub.f32 %v619, %v647
        %v691 = vsub.f32 %v620, %v647
        %v692 = vsub.f32 %v621, %v647
        %v693 = vsub.f32 %v622, %v647
        %v694 = vsub.f32 %v623, %v647
        %v695 = vsub.f32 %v624, %v647
        %v696 = vsub.f32 %v625, %v647
        %v697 = vsub.f32 %v626, %v647
        %v698 = vsub.f32 %v627, %v647
        %v699 = vsub.f32 %v628, %v647
        %v700 = vsub.f32 %v629, %v647
        %v701 = vsub.f32 %v630, %v647
        %v702 = vsub.f32 %v631, %v647
        %v703 = vsub.f32 %v632, %v647
        %v704 = vsub.f32 %v633, %v647
        %v705 = vsub.f32 %v634, %v647
        %v706 = vsub.f32 %v635, %v647
        %v707 = vsub.f32 %v636, %v647
        %v708 = vsub.f32 %v637, %v647
        %v709 = vsub.f32 %v638, %v647
        %v710 = vsub.f32 %v639, %v647
        %v711 = vsub.f32 %v640, %v647
        %v712 = vsub.f32 %v641, %v647
        %v713 = vmul.f32 %v649, %v649
        %v714 = vmul.f32 %v650, %v650
        %v715 = vmul.f32 %v651, %v651
        %v716 = vmul.f32 %v652, %v652
        %v717 = vmul.f32 %v653, %v653
        %v718 = vmul.f32 %v654, %v654
        %v719 = vmul.f32 %v655, %v655
        %v720 = vmul.f32 %v656, %v656
        %v721 = vmul.f32 %v657, %v657
        %v722 = vmul.f32 %v658, %v658
        %v723 = vmul.f32 %v659, %v659
        %v724 = vmul.f32 %v660, %v660
        %v725 = vmul.f32 %v661, %v661
        %v726 = vmul.f32 %v662, %v662
        %v727 = vmul.f32 %v663, %v663
        %v728 = vmul.f32 %v664, %v664
        %v729 = vmul.f32 %v665, %v665
        %v730 = vmul.f32 %v666, %v666
        %v731 = vmul.f32 %v667, %v667
        %v732 = vmul.f32 %v668, %v668
        %v733 = vmul.f32 %v669, %v669
        %v734 = vmul.f32 %v670, %v670
        %v735 = vmul.f32 %v671, %v671
        %v736 = vmul.f32 %v672, %v672
        %v737 = vmul.f32 %v673, %v673
        %v738 = vmul.f32 %v674, %v674
        %v739 = vmul.f32 %v675, %v675
        %v740 = vmul.f32 %v676, %v676
        %v741 = vmul.f32 %v677, %v677
        %v742 = vmul.f32 %v678, %v678
        %v743 = vmul.f32 %v679, %v679
        %v744 = vmul.f32 %v680, %v680
        %v745 = vmul.f32 %v681, %v681
        %v746 = vmul.f32 %v682, %v682
        %v747 = vmul.f32 %v683, %v683
        %v748 = vmul.f32 %v684, %v684
        %v749 = vmul.f32 %v685, %v685
        %v750 = vmul.f32 %v686, %v686
        %v751 = vmul.f32 %v687, %v687
        %v752 = vmul.f32 %v688, %v688
        %v753 = vmul.f32 %v689, %v689
        %v754 = vmul.f32 %v690, %v690
        %v755 = vmul.f32 %v691, %v691
        %v756 = vmul.f32 %v692, %v692
        %v757 = vmul.f32 %v693, %v693
        %v758 = vmul.f32 %v694, %v694
        %v759 = vmul.f32 %v695, %v695
        %v760 = vmul.f32 %v696, %v696
        %v761 = vmul.f32 %v697, %v697
        %v762 = vmul.f32 %v698, %v698
        %v763 = vmul.f32 %v699, %v699
        %v764 = vmul.f32 %v700, %v700
        %v765 = vmul.f32 %v701, %v701
        %v766 = vmul.f32 %v702, %v702
        %v767 = vmul.f32 %v703, %v703
        %v768 = vmul.f32 %v704, %v704
        %v769 = vmul.f32 %v705, %v705
        %v770 = vmul.f32 %v706, %v706
        %v771 = vmul.f32 %v707, %v707
        %v772 = vmul.f32 %v708, %v708
        %v773 = vmul.f32 %v709, %v709
        %v774 = vmul.f32 %v710, %v710
        %v775 = vmul.f32 %v711, %v711
        %v776 = vmul.f32 %v712, %v712
        %v777 = vmul.f32 %v713, -0.1
        %v778 = vmul.f32 %v714, -0.1
        %v779 = vmul.f32 %v715, -0.1
        %v780 = vmul.f32 %v716, -0.1
        %v781 = vmul.f32 %v717, -0.1
        %v782 = vmul.f32 %v718, -0.1
        %v783 = vmul.f32 %v719, -0.1
        %v784 = vmul.f32 %v720, -0.1
        %v785 = vmul.f32 %v721, -0.1
        %v786 = vmul.f32 %v722, -0.1
        %v787 = vmul.f32 %v723, -0.1
        %v788 = vmul.f32 %v724, -0.1
        %v789 = vmul.f32 %v725, -0.1
        %v790 = vmul.f32 %v726, -0.1
        %v791 = vmul.f32 %v727, -0.1
        %v792 = vmul.f32 %v728, -0.1
        %v793 = vmul.f32 %v729, -0.1
        %v794 = vmul.f32 %v730, -0.1
        %v795 = vmul.f32 %v731, -0.1
        %v796 = vmul.f32 %v732, -0.1
        %v797 = vmul.f32 %v733, -0.1
        %v798 = vmul.f32 %v734, -0.1
        %v799 = vmul.f32 %v735, -0.1
        %v800 = vmul.f32 %v736, -0.1
        %v801 = vmul.f32 %v737, -0.1
        %v802 = vmul.f32 %v738, -0.1
        %v803 = vmul.f32 %v739, -0.1
        %v804 = vmul.f32 %v740, -0.1
        %v805 = vmul.f32 %v741, -0.1
        %v806 = vmul.f32 %v742, -0.1
        %v807 = vmul.f32 %v743, -0.1
        %v808 = vmul.f32 %v744, -0.1
        %v809 = vmul.f32 %v745, -0.1
        %v810 = vmul.f32 %v746, -0.1
        %v811 = vmul.f32 %v747, -0.1
        %v812 = vmul.f32 %v748, -0.1
        %v813 = vmul.f32 %v749, -0.1
        %v814 = vmul.f32 %v750, -0.1
        %v815 = vmul.f32 %v751, -0.1
        %v816 = vmul.f32 %v752, -0.1
        %v817 = vmul.f32 %v753, -0.1
        %v818 = vmul.f32 %v754, -0.1
        %v819 = vmul.f32 %v755, -0.1
        %v820 = vmul.f32 %v756, -0.1
        %v821 = vmul.f32 %v757, -0.1
        %v822 = vmul.f32 %v758, -0.1
        %v823 = vmul.f32 %v759, -0.1
        %v824 = vmul.f32 %v760, -0.1
        %v825 = vmul.f32 %v761, -0.1
        %v826 = vmul.f32 %v762, -0.1
        %v827 = vmul.f32 %v763, -0.1
        %v828 = vmul.f32 %v764, -0.1
        %v829 = vmul.f32 %v765, -0.1
        %v830 = vmul.f32 %v766, -0.1
        %v831 = vmul.f32 %v767, -0.1
        %v832 = vmul.f32 %v768, -0.1
        %v833 = vmul.f32 %v769, -0.1
        %v834 = vmul.f32 %v770, -0.1
        %v835 = vmul.f32 %v771, -0.1
        %v836 = vmul.f32 %v772, -0.1
        %v837 = vmul.f32 %v773, -0.1
        %v838 = vmul.f32 %v774, -0.1
        %v839 = vmul.f32 %v775, -0.1
        %v840 = vmul.f32 %v776, -0.1
        %v841 = vld [vmem:[%s230] sm:$0x1]
        %vm842 = vcmp.gt.f32.partialorder %v841, 0.5
        %v843 = vsel %vm842, 1, 0
        %v844 = vlaneseq
        %v845 = vshrl.u32 %v844, 7
        %v846 = vsub.s32 0, %v845
        %v847 = vrot.slane %v843, %v846
        %vm848 = vcmp.eq.s32.totalorder %v847, 1
        %v849 = vsel %vm848, %v777, -1e+30
        %v850 = vsel %vm848, %v778, -1e+30
        %v851 = vsel %vm848, %v779, -1e+30
        %v852 = vsel %vm848, %v780, -1e+30
        %v853 = vsel %vm848, %v781, -1e+30
        %v854 = vsel %vm848, %v782, -1e+30
        %v855 = vsel %vm848, %v783, -1e+30
        %v856 = vsel %vm848, %v784, -1e+30
        %v857 = vsel %vm848, %v785, -1e+30
        %v858 = vsel %vm848, %v786, -1e+30
        %v859 = vsel %vm848, %v787, -1e+30
        %v860 = vsel %vm848, %v788, -1e+30
        %v861 = vsel %vm848, %v789, -1e+30
        %v862 = vsel %vm848, %v790, -1e+30
        %v863 = vsel %vm848, %v791, -1e+30
        %v864 = vsel %vm848, %v792, -1e+30
        %v865 = vsel %vm848, %v793, -1e+30
        %v866 = vsel %vm848, %v794, -1e+30
        %v867 = vsel %vm848, %v795, -1e+30
        %v868 = vsel %vm848, %v796, -1e+30
        %v869 = vsel %vm848, %v797, -1e+30
        %v870 = vsel %vm848, %v798, -1e+30
        %v871 = vsel %vm848, %v799, -1e+30
        %v872 = vsel %vm848, %v800, -1e+30
        %v873 = vsel %vm848, %v801, -1e+30
        %v874 = vsel %vm848, %v802, -1e+30
        %v875 = vsel %vm848, %v803, -1e+30
        %v876 = vsel %vm848, %v804, -1e+30
        %v877 = vsel %vm848, %v805, -1e+30
        %v878 = vsel %vm848, %v806, -1e+30
        %v879 = vsel %vm848, %v807, -1e+30
        %v880 = vsel %vm848, %v808, -1e+30
        %v881 = vsel %vm848, %v809, -1e+30
        %v882 = vsel %vm848, %v810, -1e+30
        %v883 = vsel %vm848, %v811, -1e+30
        %v884 = vsel %vm848, %v812, -1e+30
        %v885 = vsel %vm848, %v813, -1e+30
        %v886 = vsel %vm848, %v814, -1e+30
        %v887 = vsel %vm848, %v815, -1e+30
        %v888 = vsel %vm848, %v816, -1e+30
        %v889 = vsel %vm848, %v817, -1e+30
        %v890 = vsel %vm848, %v818, -1e+30
        %v891 = vsel %vm848, %v819, -1e+30
        %v892 = vsel %vm848, %v820, -1e+30
        %v893 = vsel %vm848, %v821, -1e+30
        %v894 = vsel %vm848, %v822, -1e+30
        %v895 = vsel %vm848, %v823, -1e+30
        %v896 = vsel %vm848, %v824, -1e+30
        %v897 = vsel %vm848, %v825, -1e+30
        %v898 = vsel %vm848, %v826, -1e+30
        %v899 = vsel %vm848, %v827, -1e+30
        %v900 = vsel %vm848, %v828, -1e+30
        %v901 = vsel %vm848, %v829, -1e+30
        %v902 = vsel %vm848, %v830, -1e+30
        %v903 = vsel %vm848, %v831, -1e+30
        %v904 = vsel %vm848, %v832, -1e+30
        %v905 = vsel %vm848, %v833, -1e+30
        %v906 = vsel %vm848, %v834, -1e+30
        %v907 = vsel %vm848, %v835, -1e+30
        %v908 = vsel %vm848, %v836, -1e+30
        %v909 = vsel %vm848, %v837, -1e+30
        %v910 = vsel %vm848, %v838, -1e+30
        %v911 = vsel %vm848, %v839, -1e+30
        %v912 = vsel %vm848, %v840, -1e+30
        %v913 = vld [vmem:[#allocation2] sm:$0xff]
        %v914 = vld [vmem:[#allocation2 + $0x8] sm:$0xff]
        %v915 = vld [vmem:[#allocation2 + $0x10] sm:$0xff]
        %v916 = vld [vmem:[#allocation2 + $0x18] sm:$0xff]
        %v917 = vld [vmem:[#allocation2 + $0x20] sm:$0xff]
        %v918 = vld [vmem:[#allocation2 + $0x28] sm:$0xff]
        %v919 = vld [vmem:[#allocation2 + $0x30] sm:$0xff]
        %v920 = vld [vmem:[#allocation2 + $0x38] sm:$0xff]
        %v921 = vld [vmem:[#allocation2 + $0x40] sm:$0xff]
        %v922 = vld [vmem:[#allocation2 + $0x48] sm:$0xff]
        %v923 = vld [vmem:[#allocation2 + $0x50] sm:$0xff]
        %v924 = vld [vmem:[#allocation2 + $0x58] sm:$0xff]
        %v925 = vld [vmem:[#allocation2 + $0x60] sm:$0xff]
        %v926 = vld [vmem:[#allocation2 + $0x68] sm:$0xff]
        %v927 = vld [vmem:[#allocation2 + $0x70] sm:$0xff]
        %v928 = vld [vmem:[#allocation2 + $0x78] sm:$0xff]
        %v929 = vld [vmem:[#allocation2 + $0x80] sm:$0xff]
        %v930 = vld [vmem:[#allocation2 + $0x88] sm:$0xff]
        %v931 = vld [vmem:[#allocation2 + $0x90] sm:$0xff]
        %v932 = vld [vmem:[#allocation2 + $0x98] sm:$0xff]
        %v933 = vld [vmem:[#allocation2 + $0xa0] sm:$0xff]
        %v934 = vld [vmem:[#allocation2 + $0xa8] sm:$0xff]
        %v935 = vld [vmem:[#allocation2 + $0xb0] sm:$0xff]
        %v936 = vld [vmem:[#allocation2 + $0xb8] sm:$0xff]
        %v937 = vld [vmem:[#allocation2 + $0xc0] sm:$0xff]
        %v938 = vld [vmem:[#allocation2 + $0xc8] sm:$0xff]
        %v939 = vld [vmem:[#allocation2 + $0xd0] sm:$0xff]
        %v940 = vld [vmem:[#allocation2 + $0xd8] sm:$0xff]
        %v941 = vld [vmem:[#allocation2 + $0xe0] sm:$0xff]
        %v942 = vld [vmem:[#allocation2 + $0xe8] sm:$0xff]
        %v943 = vld [vmem:[#allocation2 + $0xf0] sm:$0xff]
        %v944 = vld [vmem:[#allocation2 + $0xf8] sm:$0xff]
        %v945 = vld [vmem:[#allocation2 + $0x100] sm:$0xff]
        %v946 = vld [vmem:[#allocation2 + $0x108] sm:$0xff]
        %v947 = vld [vmem:[#allocation2 + $0x110] sm:$0xff]
        %v948 = vld [vmem:[#allocation2 + $0x118] sm:$0xff]
        %v949 = vld [vmem:[#allocation2 + $0x120] sm:$0xff]
        %v950 = vld [vmem:[#allocation2 + $0x128] sm:$0xff]
        %v951 = vld [vmem:[#allocation2 + $0x130] sm:$0xff]
        %v952 = vld [vmem:[#allocation2 + $0x138] sm:$0xff]
        %v953 = vld [vmem:[#allocation2 + $0x140] sm:$0xff]
        %v954 = vld [vmem:[#allocation2 + $0x148] sm:$0xff]
        %v955 = vld [vmem:[#allocation2 + $0x150] sm:$0xff]
        %v956 = vld [vmem:[#allocation2 + $0x158] sm:$0xff]
        %v957 = vld [vmem:[#allocation2 + $0x160] sm:$0xff]
        %v958 = vld [vmem:[#allocation2 + $0x168] sm:$0xff]
        %v959 = vld [vmem:[#allocation2 + $0x170] sm:$0xff]
        %v960 = vld [vmem:[#allocation2 + $0x178] sm:$0xff]
        %v961 = vld [vmem:[#allocation2 + $0x180] sm:$0xff]
        %v962 = vld [vmem:[#allocation2 + $0x188] sm:$0xff]
        %v963 = vld [vmem:[#allocation2 + $0x190] sm:$0xff]
        %v964 = vld [vmem:[#allocation2 + $0x198] sm:$0xff]
        %v965 = vld [vmem:[#allocation2 + $0x1a0] sm:$0xff]
        %v966 = vld [vmem:[#allocation2 + $0x1a8] sm:$0xff]
        %v967 = vld [vmem:[#allocation2 + $0x1b0] sm:$0xff]
        %v968 = vld [vmem:[#allocation2 + $0x1b8] sm:$0xff]
        %v969 = vld [vmem:[#allocation2 + $0x1c0] sm:$0xff]
        %v970 = vld [vmem:[#allocation2 + $0x1c8] sm:$0xff]
        %v971 = vld [vmem:[#allocation2 + $0x1d0] sm:$0xff]
        %v972 = vld [vmem:[#allocation2 + $0x1d8] sm:$0xff]
        %v973 = vld [vmem:[#allocation2 + $0x1e0] sm:$0xff]
        %v974 = vld [vmem:[#allocation2 + $0x1e8] sm:$0xff]
        %v975 = vld [vmem:[#allocation2 + $0x1f0] sm:$0xff]
        %v976 = vld [vmem:[#allocation2 + $0x1f8] sm:$0xff]
        %977 = vmax.xlane.f32.xlu0 %v849
        %v978 = vpop.xlane.xlu0 %977
        %979 = vmax.xlane.f32.xlu0 %v850
        %v980 = vpop.xlane.xlu0 %979
        %981 = vmax.xlane.f32.xlu0 %v851
        %v982 = vpop.xlane.xlu0 %981
        %983 = vmax.xlane.f32.xlu0 %v852
        %v984 = vpop.xlane.xlu0 %983
        %985 = vmax.xlane.f32.xlu0 %v853
        %v986 = vpop.xlane.xlu0 %985
        %987 = vmax.xlane.f32.xlu0 %v854
        %v988 = vpop.xlane.xlu0 %987
        %989 = vmax.xlane.f32.xlu0 %v855
        %v990 = vpop.xlane.xlu0 %989
        %991 = vmax.xlane.f32.xlu0 %v856
        %v992 = vpop.xlane.xlu0 %991
        %993 = vmax.xlane.f32.xlu0 %v857
        %v994 = vpop.xlane.xlu0 %993
        %995 = vmax.xlane.f32.xlu0 %v858
        %v996 = vpop.xlane.xlu0 %995
        %997 = vmax.xlane.f32.xlu0 %v859
        %v998 = vpop.xlane.xlu0 %997
        %999 = vmax.xlane.f32.xlu0 %v860
        %v1000 = vpop.xlane.xlu0 %999
        %1001 = vmax.xlane.f32.xlu0 %v861
        %v1002 = vpop.xlane.xlu0 %1001
        %1003 = vmax.xlane.f32.xlu0 %v862
        %v1004 = vpop.xlane.xlu0 %1003
        %1005 = vmax.xlane.f32.xlu0 %v863
        %v1006 = vpop.xlane.xlu0 %1005
        %1007 = vmax.xlane.f32.xlu0 %v864
        %v1008 = vpop.xlane.xlu0 %1007
        %1009 = vmax.xlane.f32.xlu0 %v865
        %v1010 = vpop.xlane.xlu0 %1009
        %1011 = vmax.xlane.f32.xlu0 %v866
        %v1012 = vpop.xlane.xlu0 %1011
        %1013 = vmax.xlane.f32.xlu0 %v867
        %v1014 = vpop.xlane.xlu0 %1013
        %1015 = vmax.xlane.f32.xlu0 %v868
        %v1016 = vpop.xlane.xlu0 %1015
        %1017 = vmax.xlane.f32.xlu0 %v869
        %v1018 = vpop.xlane.xlu0 %1017
        %1019 = vmax.xlane.f32.xlu0 %v870
        %v1020 = vpop.xlane.xlu0 %1019
        %1021 = vmax.xlane.f32.xlu0 %v871
        %v1022 = vpop.xlane.xlu0 %1021
        %1023 = vmax.xlane.f32.xlu0 %v872
        %v1024 = vpop.xlane.xlu0 %1023
        %1025 = vmax.xlane.f32.xlu0 %v873
        %v1026 = vpop.xlane.xlu0 %1025
        %1027 = vmax.xlane.f32.xlu0 %v874
        %v1028 = vpop.xlane.xlu0 %1027
        %1029 = vmax.xlane.f32.xlu0 %v875
        %v1030 = vpop.xlane.xlu0 %1029
        %1031 = vmax.xlane.f32.xlu0 %v876
        %v1032 = vpop.xlane.xlu0 %1031
        %1033 = vmax.xlane.f32.xlu0 %v877
        %v1034 = vpop.xlane.xlu0 %1033
        %1035 = vmax.xlane.f32.xlu0 %v878
        %v1036 = vpop.xlane.xlu0 %1035
        %1037 = vmax.xlane.f32.xlu0 %v879
        %v1038 = vpop.xlane.xlu0 %1037
        %1039 = vmax.xlane.f32.xlu0 %v880
        %v1040 = vpop.xlane.xlu0 %1039
        %1041 = vmax.xlane.f32.xlu0 %v881
        %v1042 = vpop.xlane.xlu0 %1041
        %1043 = vmax.xlane.f32.xlu0 %v882
        %v1044 = vpop.xlane.xlu0 %1043
        %1045 = vmax.xlane.f32.xlu0 %v883
        %v1046 = vpop.xlane.xlu0 %1045
        %1047 = vmax.xlane.f32.xlu0 %v884
        %v1048 = vpop.xlane.xlu0 %1047
        %1049 = vmax.xlane.f32.xlu0 %v885
        %v1050 = vpop.xlane.xlu0 %1049
        %1051 = vmax.xlane.f32.xlu0 %v886
        %v1052 = vpop.xlane.xlu0 %1051
        %1053 = vmax.xlane.f32.xlu0 %v887
        %v1054 = vpop.xlane.xlu0 %1053
        %1055 = vmax.xlane.f32.xlu0 %v888
        %v1056 = vpop.xlane.xlu0 %1055
        %1057 = vmax.xlane.f32.xlu0 %v889
        %v1058 = vpop.xlane.xlu0 %1057
        %1059 = vmax.xlane.f32.xlu0 %v890
        %v1060 = vpop.xlane.xlu0 %1059
        %1061 = vmax.xlane.f32.xlu0 %v891
        %v1062 = vpop.xlane.xlu0 %1061
        %1063 = vmax.xlane.f32.xlu0 %v892
        %v1064 = vpop.xlane.xlu0 %1063
        %1065 = vmax.xlane.f32.xlu0 %v893
        %v1066 = vpop.xlane.xlu0 %1065
        %1067 = vmax.xlane.f32.xlu0 %v894
        %v1068 = vpop.xlane.xlu0 %1067
        %1069 = vmax.xlane.f32.xlu0 %v895
        %v1070 = vpop.xlane.xlu0 %1069
        %1071 = vmax.xlane.f32.xlu0 %v896
        %v1072 = vpop.xlane.xlu0 %1071
        %1073 = vmax.xlane.f32.xlu0 %v897
        %v1074 = vpop.xlane.xlu0 %1073
        %1075 = vmax.xlane.f32.xlu0 %v898
        %v1076 = vpop.xlane.xlu0 %1075
        %1077 = vmax.xlane.f32.xlu0 %v899
        %v1078 = vpop.xlane.xlu0 %1077
        %1079 = vmax.xlane.f32.xlu0 %v900
        %v1080 = vpop.xlane.xlu0 %1079
        %1081 = vmax.xlane.f32.xlu0 %v901
        %v1082 = vpop.xlane.xlu0 %1081
        %1083 = vmax.xlane.f32.xlu0 %v902
        %v1084 = vpop.xlane.xlu0 %1083
        %1085 = vmax.xlane.f32.xlu0 %v903
        %v1086 = vpop.xlane.xlu0 %1085
        %1087 = vmax.xlane.f32.xlu0 %v904
        %v1088 = vpop.xlane.xlu0 %1087
        %1089 = vmax.xlane.f32.xlu0 %v905
        %v1090 = vpop.xlane.xlu0 %1089
        %1091 = vmax.xlane.f32.xlu0 %v906
        %v1092 = vpop.xlane.xlu0 %1091
        %1093 = vmax.xlane.f32.xlu0 %v907
        %v1094 = vpop.xlane.xlu0 %1093
        %1095 = vmax.xlane.f32.xlu0 %v908
        %v1096 = vpop.xlane.xlu0 %1095
        %1097 = vmax.xlane.f32.xlu0 %v909
        %v1098 = vpop.xlane.xlu0 %1097
        %1099 = vmax.xlane.f32.xlu0 %v910
        %v1100 = vpop.xlane.xlu0 %1099
        %1101 = vmax.xlane.f32.xlu0 %v911
        %v1102 = vpop.xlane.xlu0 %1101
        %1103 = vmax.xlane.f32.xlu0 %v912
        %v1104 = vpop.xlane.xlu0 %1103
        %v1105 = vmax.f32 %v913, %v978
        %v1106 = vmax.f32 %v914, %v980
        %v1107 = vmax.f32 %v915, %v982
        %v1108 = vmax.f32 %v916, %v984
        %v1109 = vmax.f32 %v917, %v986
        %v1110 = vmax.f32 %v918, %v988
        %v1111 = vmax.f32 %v919, %v990
        %v1112 = vmax.f32 %v920, %v992
        %v1113 = vmax.f32 %v921, %v994
        %v1114 = vmax.f32 %v922, %v996
        %v1115 = vmax.f32 %v923, %v998
        %v1116 = vmax.f32 %v924, %v1000
        %v1117 = vmax.f32 %v925, %v1002
        %v1118 = vmax.f32 %v926, %v1004
        %v1119 = vmax.f32 %v927, %v1006
        %v1120 = vmax.f32 %v928, %v1008
        %v1121 = vmax.f32 %v929, %v1010
        %v1122 = vmax.f32 %v930, %v1012
        %v1123 = vmax.f32 %v931, %v1014
        %v1124 = vmax.f32 %v932, %v1016
        %v1125 = vmax.f32 %v933, %v1018
        %v1126 = vmax.f32 %v934, %v1020
        %v1127 = vmax.f32 %v935, %v1022
        %v1128 = vmax.f32 %v936, %v1024
        %v1129 = vmax.f32 %v937, %v1026
        %v1130 = vmax.f32 %v938, %v1028
        %v1131 = vmax.f32 %v939, %v1030
        %v1132 = vmax.f32 %v940, %v1032
        %v1133 = vmax.f32 %v941, %v1034
        %v1134 = vmax.f32 %v942, %v1036
        %v1135 = vmax.f32 %v943, %v1038
        %v1136 = vmax.f32 %v944, %v1040
        %v1137 = vmax.f32 %v945, %v1042
        %v1138 = vmax.f32 %v946, %v1044
        %v1139 = vmax.f32 %v947, %v1046
        %v1140 = vmax.f32 %v948, %v1048
        %v1141 = vmax.f32 %v949, %v1050
        %v1142 = vmax.f32 %v950, %v1052
        %v1143 = vmax.f32 %v951, %v1054
        %v1144 = vmax.f32 %v952, %v1056
        %v1145 = vmax.f32 %v953, %v1058
        %v1146 = vmax.f32 %v954, %v1060
        %v1147 = vmax.f32 %v955, %v1062
        %v1148 = vmax.f32 %v956, %v1064
        %v1149 = vmax.f32 %v957, %v1066
        %v1150 = vmax.f32 %v958, %v1068
        %v1151 = vmax.f32 %v959, %v1070
        %v1152 = vmax.f32 %v960, %v1072
        %v1153 = vmax.f32 %v961, %v1074
        %v1154 = vmax.f32 %v962, %v1076
        %v1155 = vmax.f32 %v963, %v1078
        %v1156 = vmax.f32 %v964, %v1080
        %v1157 = vmax.f32 %v965, %v1082
        %v1158 = vmax.f32 %v966, %v1084
        %v1159 = vmax.f32 %v967, %v1086
        %v1160 = vmax.f32 %v968, %v1088
        %v1161 = vmax.f32 %v969, %v1090
        %v1162 = vmax.f32 %v970, %v1092
        %v1163 = vmax.f32 %v971, %v1094
        %v1164 = vmax.f32 %v972, %v1096
        %v1165 = vmax.f32 %v973, %v1098
        %v1166 = vmax.f32 %v974, %v1100
        %v1167 = vmax.f32 %v975, %v1102
        %v1168 = vmax.f32 %v976, %v1104
        %v1169 = vsub.f32 %v913, %v1105
        %v1170 = vsub.f32 %v914, %v1106
        %v1171 = vsub.f32 %v915, %v1107
        %v1172 = vsub.f32 %v916, %v1108
        %v1173 = vsub.f32 %v917, %v1109
        %v1174 = vsub.f32 %v918, %v1110
        %v1175 = vsub.f32 %v919, %v1111
        %v1176 = vsub.f32 %v920, %v1112
        %v1177 = vsub.f32 %v921, %v1113
        %v1178 = vsub.f32 %v922, %v1114
        %v1179 = vsub.f32 %v923, %v1115
        %v1180 = vsub.f32 %v924, %v1116
        %v1181 = vsub.f32 %v925, %v1117
        %v1182 = vsub.f32 %v926, %v1118
        %v1183 = vsub.f32 %v927, %v1119
        %v1184 = vsub.f32 %v928, %v1120
        %v1185 = vsub.f32 %v929, %v1121
        %v1186 = vsub.f32 %v930, %v1122
        %v1187 = vsub.f32 %v931, %v1123
        %v1188 = vsub.f32 %v932, %v1124
        %v1189 = vsub.f32 %v933, %v1125
        %v1190 = vsub.f32 %v934, %v1126
        %v1191 = vsub.f32 %v935, %v1127
        %v1192 = vsub.f32 %v936, %v1128
        %v1193 = vsub.f32 %v937, %v1129
        %v1194 = vsub.f32 %v938, %v1130
        %v1195 = vsub.f32 %v939, %v1131
        %v1196 = vsub.f32 %v940, %v1132
        %v1197 = vsub.f32 %v941, %v1133
        %v1198 = vsub.f32 %v942, %v1134
        %v1199 = vsub.f32 %v943, %v1135
        %v1200 = vsub.f32 %v944, %v1136
        %v1201 = vsub.f32 %v945, %v1137
        %v1202 = vsub.f32 %v946, %v1138
        %v1203 = vsub.f32 %v947, %v1139
        %v1204 = vsub.f32 %v948, %v1140
        %v1205 = vsub.f32 %v949, %v1141
        %v1206 = vsub.f32 %v950, %v1142
        %v1207 = vsub.f32 %v951, %v1143
        %v1208 = vsub.f32 %v952, %v1144
        %v1209 = vsub.f32 %v953, %v1145
        %v1210 = vsub.f32 %v954, %v1146
        %v1211 = vsub.f32 %v955, %v1147
        %v1212 = vsub.f32 %v956, %v1148
        %v1213 = vsub.f32 %v957, %v1149
        %v1214 = vsub.f32 %v958, %v1150
        %v1215 = vsub.f32 %v959, %v1151
        %v1216 = vsub.f32 %v960, %v1152
        %v1217 = vsub.f32 %v961, %v1153
        %v1218 = vsub.f32 %v962, %v1154
        %v1219 = vsub.f32 %v963, %v1155
        %v1220 = vsub.f32 %v964, %v1156
        %v1221 = vsub.f32 %v965, %v1157
        %v1222 = vsub.f32 %v966, %v1158
        %v1223 = vsub.f32 %v967, %v1159
        %v1224 = vsub.f32 %v968, %v1160
        %v1225 = vsub.f32 %v969, %v1161
        %v1226 = vsub.f32 %v970, %v1162
        %v1227 = vsub.f32 %v971, %v1163
        %v1228 = vsub.f32 %v972, %v1164
        %v1229 = vsub.f32 %v973, %v1165
        %v1230 = vsub.f32 %v974, %v1166
        %v1231 = vsub.f32 %v975, %v1167
        %v1232 = vsub.f32 %v976, %v1168
        %v1233 = vmul.f32 %v1169, 1.442695
        %v1234 = vpow.pop %v1233
        %v1235 = vmul.f32 %v1170, 1.442695
        %v1236 = vpow.pop %v1235
        %v1237 = vmul.f32 %v1171, 1.442695
        %v1238 = vpow.pop %v1237
        %v1239 = vmul.f32 %v1172, 1.442695
        %v1240 = vpow.pop %v1239
        %v1241 = vmul.f32 %v1173, 1.442695
        %v1242 = vpow.pop %v1241
        %v1243 = vmul.f32 %v1174, 1.442695
        %v1244 = vpow.pop %v1243
        %v1245 = vmul.f32 %v1175, 1.442695
        %v1246 = vpow.pop %v1245
        %v1247 = vmul.f32 %v1176, 1.442695
        %v1248 = vpow.pop %v1247
        %v1249 = vmul.f32 %v1177, 1.442695
        %v1250 = vpow.pop %v1249
        %v1251 = vmul.f32 %v1178, 1.442695
        %v1252 = vpow.pop %v1251
        %v1253 = vmul.f32 %v1179, 1.442695
        %v1254 = vpow.pop %v1253
        %v1255 = vmul.f32 %v1180, 1.442695
        %v1256 = vpow.pop %v1255
        %v1257 = vmul.f32 %v1181, 1.442695
        %v1258 = vpow.pop %v1257
        %v1259 = vmul.f32 %v1182, 1.442695
        %v1260 = vpow.pop %v1259
        %v1261 = vmul.f32 %v1183, 1.442695
        %v1262 = vpow.pop %v1261
        %v1263 = vmul.f32 %v1184, 1.442695
        %v1264 = vpow.pop %v1263
        %v1265 = vmul.f32 %v1185, 1.442695
        %v1266 = vpow.pop %v1265
        %v1267 = vmul.f32 %v1186, 1.442695
        %v1268 = vpow.pop %v1267
        %v1269 = vmul.f32 %v1187, 1.442695
        %v1270 = vpow.pop %v1269
        %v1271 = vmul.f32 %v1188, 1.442695
        %v1272 = vpow.pop %v1271
        %v1273 = vmul.f32 %v1189, 1.442695
        %v1274 = vpow.pop %v1273
        %v1275 = vmul.f32 %v1190, 1.442695
        %v1276 = vpow.pop %v1275
        %v1277 = vmul.f32 %v1191, 1.442695
        %v1278 = vpow.pop %v1277
        %v1279 = vmul.f32 %v1192, 1.442695
        %v1280 = vpow.pop %v1279
        %v1281 = vmul.f32 %v1193, 1.442695
        %v1282 = vpow.pop %v1281
        %v1283 = vmul.f32 %v1194, 1.442695
        %v1284 = vpow.pop %v1283
        %v1285 = vmul.f32 %v1195, 1.442695
        %v1286 = vpow.pop %v1285
        %v1287 = vmul.f32 %v1196, 1.442695
        %v1288 = vpow.pop %v1287
        %v1289 = vmul.f32 %v1197, 1.442695
        %v1290 = vpow.pop %v1289
        %v1291 = vmul.f32 %v1198, 1.442695
        %v1292 = vpow.pop %v1291
        %v1293 = vmul.f32 %v1199, 1.442695
        %v1294 = vpow.pop %v1293
        %v1295 = vmul.f32 %v1200, 1.442695
        %v1296 = vpow.pop %v1295
        %v1297 = vmul.f32 %v1201, 1.442695
        %v1298 = vpow.pop %v1297
        %v1299 = vmul.f32 %v1202, 1.442695
        %v1300 = vpow.pop %v1299
        %v1301 = vmul.f32 %v1203, 1.442695
        %v1302 = vpow.pop %v1301
        %v1303 = vmul.f32 %v1204, 1.442695
        %v1304 = vpow.pop %v1303
        %v1305 = vmul.f32 %v1205, 1.442695
        %v1306 = vpow.pop %v1305
        %v1307 = vmul.f32 %v1206, 1.442695
        %v1308 = vpow.pop %v1307
        %v1309 = vmul.f32 %v1207, 1.442695
        %v1310 = vpow.pop %v1309
        %v1311 = vmul.f32 %v1208, 1.442695
        %v1312 = vpow.pop %v1311
        %v1313 = vmul.f32 %v1209, 1.442695
        %v1314 = vpow.pop %v1313
        %v1315 = vmul.f32 %v1210, 1.442695
        %v1316 = vpow.pop %v1315
        %v1317 = vmul.f32 %v1211, 1.442695
        %v1318 = vpow.pop %v1317
        %v1319 = vmul.f32 %v1212, 1.442695
        %v1320 = vpow.pop %v1319
        %v1321 = vmul.f32 %v1213, 1.442695
        %v1322 = vpow.pop %v1321
        %v1323 = vmul.f32 %v1214, 1.442695
        %v1324 = vpow.pop %v1323
        %v1325 = vmul.f32 %v1215, 1.442695
        %v1326 = vpow.pop %v1325
        %v1327 = vmul.f32 %v1216, 1.442695
        %v1328 = vpow.pop %v1327
        %v1329 = vmul.f32 %v1217, 1.442695
        %v1330 = vpow.pop %v1329
        %v1331 = vmul.f32 %v1218, 1.442695
        %v1332 = vpow.pop %v1331
        %v1333 = vmul.f32 %v1219, 1.442695
        %v1334 = vpow.pop %v1333
        %v1335 = vmul.f32 %v1220, 1.442695
        %v1336 = vpow.pop %v1335
        %v1337 = vmul.f32 %v1221, 1.442695
        %v1338 = vpow.pop %v1337
        %v1339 = vmul.f32 %v1222, 1.442695
        %v1340 = vpow.pop %v1339
        %v1341 = vmul.f32 %v1223, 1.442695
        %v1342 = vpow.pop %v1341
        %v1343 = vmul.f32 %v1224, 1.442695
        %v1344 = vpow.pop %v1343
        %v1345 = vmul.f32 %v1225, 1.442695
        %v1346 = vpow.pop %v1345
        %v1347 = vmul.f32 %v1226, 1.442695
        %v1348 = vpow.pop %v1347
        %v1349 = vmul.f32 %v1227, 1.442695
        %v1350 = vpow.pop %v1349
        %v1351 = vmul.f32 %v1228, 1.442695
        %v1352 = vpow.pop %v1351
        %v1353 = vmul.f32 %v1229, 1.442695
        %v1354 = vpow.pop %v1353
        %v1355 = vmul.f32 %v1230, 1.442695
        %v1356 = vpow.pop %v1355
        %v1357 = vmul.f32 %v1231, 1.442695
        %v1358 = vpow.pop %v1357
        %v1359 = vmul.f32 %v1232, 1.442695
        %v1360 = vpow.pop %v1359
        %1362 = vset.pattern.permute.xlu0 0
        %1363 = vperm.xlu0 %1362, %v1105
        %v1364 = vpop.permute.xlu0 %1363
        %1367 = vset.pattern.permute.xlu0 0
        %1368 = vperm.xlu0 %1367, %v1106
        %v1369 = vpop.permute.xlu0 %1368
        %1372 = vset.pattern.permute.xlu0 0
        %1373 = vperm.xlu0 %1372, %v1107
        %v1374 = vpop.permute.xlu0 %1373
        %1377 = vset.pattern.permute.xlu0 0
        %1378 = vperm.xlu0 %1377, %v1108
        %v1379 = vpop.permute.xlu0 %1378
        %1382 = vset.pattern.permute.xlu0 0
        %1383 = vperm.xlu0 %1382, %v1109
        %v1384 = vpop.permute.xlu0 %1383
        %1387 = vset.pattern.permute.xlu0 0
        %1388 = vperm.xlu0 %1387, %v1110
        %v1389 = vpop.permute.xlu0 %1388
        %1392 = vset.pattern.permute.xlu0 0
        %1393 = vperm.xlu0 %1392, %v1111
        %v1394 = vpop.permute.xlu0 %1393
        %1397 = vset.pattern.permute.xlu0 0
        %1398 = vperm.xlu0 %1397, %v1112
        %v1399 = vpop.permute.xlu0 %1398
        %1402 = vset.pattern.permute.xlu0 0
        %1403 = vperm.xlu0 %1402, %v1113
        %v1404 = vpop.permute.xlu0 %1403
        %1407 = vset.pattern.permute.xlu0 0
        %1408 = vperm.xlu0 %1407, %v1114
        %v1409 = vpop.permute.xlu0 %1408
        %1412 = vset.pattern.permute.xlu0 0
        %1413 = vperm.xlu0 %1412, %v1115
        %v1414 = vpop.permute.xlu0 %1413
        %1417 = vset.pattern.permute.xlu0 0
        %1418 = vperm.xlu0 %1417, %v1116
        %v1419 = vpop.permute.xlu0 %1418
        %1422 = vset.pattern.permute.xlu0 0
        %1423 = vperm.xlu0 %1422, %v1117
        %v1424 = vpop.permute.xlu0 %1423
        %1427 = vset.pattern.permute.xlu0 0
        %1428 = vperm.xlu0 %1427, %v1118
        %v1429 = vpop.permute.xlu0 %1428
        %1432 = vset.pattern.permute.xlu0 0
        %1433 = vperm.xlu0 %1432, %v1119
        %v1434 = vpop.permute.xlu0 %1433
        %1437 = vset.pattern.permute.xlu0 0
        %1438 = vperm.xlu0 %1437, %v1120
        %v1439 = vpop.permute.xlu0 %1438
        %1442 = vset.pattern.permute.xlu0 0
        %1443 = vperm.xlu0 %1442, %v1121
        %v1444 = vpop.permute.xlu0 %1443
        %1447 = vset.pattern.permute.xlu0 0
        %1448 = vperm.xlu0 %1447, %v1122
        %v1449 = vpop.permute.xlu0 %1448
        %1452 = vset.pattern.permute.xlu0 0
        %1453 = vperm.xlu0 %1452, %v1123
        %v1454 = vpop.permute.xlu0 %1453
        %1457 = vset.pattern.permute.xlu0 0
        %1458 = vperm.xlu0 %1457, %v1124
        %v1459 = vpop.permute.xlu0 %1458
        %1462 = vset.pattern.permute.xlu0 0
        %1463 = vperm.xlu0 %1462, %v1125
        %v1464 = vpop.permute.xlu0 %1463
        %1467 = vset.pattern.permute.xlu0 0
        %1468 = vperm.xlu0 %1467, %v1126
        %v1469 = vpop.permute.xlu0 %1468
        %1472 = vset.pattern.permute.xlu0 0
        %1473 = vperm.xlu0 %1472, %v1127
        %v1474 = vpop.permute.xlu0 %1473
        %1477 = vset.pattern.permute.xlu0 0
        %1478 = vperm.xlu0 %1477, %v1128
        %v1479 = vpop.permute.xlu0 %1478
        %1482 = vset.pattern.permute.xlu0 0
        %1483 = vperm.xlu0 %1482, %v1129
        %v1484 = vpop.permute.xlu0 %1483
        %1487 = vset.pattern.permute.xlu0 0
        %1488 = vperm.xlu0 %1487, %v1130
        %v1489 = vpop.permute.xlu0 %1488
        %1492 = vset.pattern.permute.xlu0 0
        %1493 = vperm.xlu0 %1492, %v1131
        %v1494 = vpop.permute.xlu0 %1493
        %1497 = vset.pattern.permute.xlu0 0
        %1498 = vperm.xlu0 %1497, %v1132
        %v1499 = vpop.permute.xlu0 %1498
        %1502 = vset.pattern.permute.xlu0 0
        %1503 = vperm.xlu0 %1502, %v1133
        %v1504 = vpop.permute.xlu0 %1503
        %1507 = vset.pattern.permute.xlu0 0
        %1508 = vperm.xlu0 %1507, %v1134
        %v1509 = vpop.permute.xlu0 %1508
        %1512 = vset.pattern.permute.xlu0 0
        %1513 = vperm.xlu0 %1512, %v1135
        %v1514 = vpop.permute.xlu0 %1513
        %1517 = vset.pattern.permute.xlu0 0
        %1518 = vperm.xlu0 %1517, %v1136
        %v1519 = vpop.permute.xlu0 %1518
        %1522 = vset.pattern.permute.xlu0 0
        %1523 = vperm.xlu0 %1522, %v1137
        %v1524 = vpop.permute.xlu0 %1523
        %1527 = vset.pattern.permute.xlu0 0
        %1528 = vperm.xlu0 %1527, %v1138
        %v1529 = vpop.permute.xlu0 %1528
        %1532 = vset.pattern.permute.xlu0 0
        %1533 = vperm.xlu0 %1532, %v1139
        %v1534 = vpop.permute.xlu0 %1533
        %1537 = vset.pattern.permute.xlu0 0
        %1538 = vperm.xlu0 %1537, %v1140
        %v1539 = vpop.permute.xlu0 %1538
        %1542 = vset.pattern.permute.xlu0 0
        %1543 = vperm.xlu0 %1542, %v1141
        %v1544 = vpop.permute.xlu0 %1543
        %1547 = vset.pattern.permute.xlu0 0
        %1548 = vperm.xlu0 %1547, %v1142
        %v1549 = vpop.permute.xlu0 %1548
        %1552 = vset.pattern.permute.xlu0 0
        %1553 = vperm.xlu0 %1552, %v1143
        %v1554 = vpop.permute.xlu0 %1553
        %1557 = vset.pattern.permute.xlu0 0
        %1558 = vperm.xlu0 %1557, %v1144
        %v1559 = vpop.permute.xlu0 %1558
        %1562 = vset.pattern.permute.xlu0 0
        %1563 = vperm.xlu0 %1562, %v1145
        %v1564 = vpop.permute.xlu0 %1563
        %1567 = vset.pattern.permute.xlu0 0
        %1568 = vperm.xlu0 %1567, %v1146
        %v1569 = vpop.permute.xlu0 %1568
        %1572 = vset.pattern.permute.xlu0 0
        %1573 = vperm.xlu0 %1572, %v1147
        %v1574 = vpop.permute.xlu0 %1573
        %1577 = vset.pattern.permute.xlu0 0
        %1578 = vperm.xlu0 %1577, %v1148
        %v1579 = vpop.permute.xlu0 %1578
        %1582 = vset.pattern.permute.xlu0 0
        %1583 = vperm.xlu0 %1582, %v1149
        %v1584 = vpop.permute.xlu0 %1583
        %1587 = vset.pattern.permute.xlu0 0
        %1588 = vperm.xlu0 %1587, %v1150
        %v1589 = vpop.permute.xlu0 %1588
        %1592 = vset.pattern.permute.xlu0 0
        %1593 = vperm.xlu0 %1592, %v1151
        %v1594 = vpop.permute.xlu0 %1593
        %1597 = vset.pattern.permute.xlu0 0
        %1598 = vperm.xlu0 %1597, %v1152
        %v1599 = vpop.permute.xlu0 %1598
        %1602 = vset.pattern.permute.xlu0 0
        %1603 = vperm.xlu0 %1602, %v1153
        %v1604 = vpop.permute.xlu0 %1603
        %1607 = vset.pattern.permute.xlu0 0
        %1608 = vperm.xlu0 %1607, %v1154
        %v1609 = vpop.permute.xlu0 %1608
        %1612 = vset.pattern.permute.xlu0 0
        %1613 = vperm.xlu0 %1612, %v1155
        %v1614 = vpop.permute.xlu0 %1613
        %1617 = vset.pattern.permute.xlu0 0
        %1618 = vperm.xlu0 %1617, %v1156
        %v1619 = vpop.permute.xlu0 %1618
        %1622 = vset.pattern.permute.xlu0 0
        %1623 = vperm.xlu0 %1622, %v1157
        %v1624 = vpop.permute.xlu0 %1623
        %1627 = vset.pattern.permute.xlu0 0
        %1628 = vperm.xlu0 %1627, %v1158
        %v1629 = vpop.permute.xlu0 %1628
        %1632 = vset.pattern.permute.xlu0 0
        %1633 = vperm.xlu0 %1632, %v1159
        %v1634 = vpop.permute.xlu0 %1633
        %1637 = vset.pattern.permute.xlu0 0
        %1638 = vperm.xlu0 %1637, %v1160
        %v1639 = vpop.permute.xlu0 %1638
        %1642 = vset.pattern.permute.xlu0 0
        %1643 = vperm.xlu0 %1642, %v1161
        %v1644 = vpop.permute.xlu0 %1643
        %1647 = vset.pattern.permute.xlu0 0
        %1648 = vperm.xlu0 %1647, %v1162
        %v1649 = vpop.permute.xlu0 %1648
        %1652 = vset.pattern.permute.xlu0 0
        %1653 = vperm.xlu0 %1652, %v1163
        %v1654 = vpop.permute.xlu0 %1653
        %1657 = vset.pattern.permute.xlu0 0
        %1658 = vperm.xlu0 %1657, %v1164
        %v1659 = vpop.permute.xlu0 %1658
        %1662 = vset.pattern.permute.xlu0 0
        %1663 = vperm.xlu0 %1662, %v1165
        %v1664 = vpop.permute.xlu0 %1663
        %1667 = vset.pattern.permute.xlu0 0
        %1668 = vperm.xlu0 %1667, %v1166
        %v1669 = vpop.permute.xlu0 %1668
        %1672 = vset.pattern.permute.xlu0 0
        %1673 = vperm.xlu0 %1672, %v1167
        %v1674 = vpop.permute.xlu0 %1673
        %1677 = vset.pattern.permute.xlu0 0
        %1678 = vperm.xlu0 %1677, %v1168
        %v1679 = vpop.permute.xlu0 %1678
        %v1681 = vsub.f32 %v849, %v1364
        %v1682 = vsub.f32 %v850, %v1369
        %v1683 = vsub.f32 %v851, %v1374
        %v1684 = vsub.f32 %v852, %v1379
        %v1685 = vsub.f32 %v853, %v1384
        %v1686 = vsub.f32 %v854, %v1389
        %v1687 = vsub.f32 %v855, %v1394
        %v1688 = vsub.f32 %v856, %v1399
        %v1689 = vsub.f32 %v857, %v1404
        %v1690 = vsub.f32 %v858, %v1409
        %v1691 = vsub.f32 %v859, %v1414
        %v1692 = vsub.f32 %v860, %v1419
        %v1693 = vsub.f32 %v861, %v1424
        %v1694 = vsub.f32 %v862, %v1429
        %v1695 = vsub.f32 %v863, %v1434
        %v1696 = vsub.f32 %v864, %v1439
        %v1697 = vsub.f32 %v865, %v1444
        %v1698 = vsub.f32 %v866, %v1449
        %v1699 = vsub.f32 %v867, %v1454
        %v1700 = vsub.f32 %v868, %v1459
        %v1701 = vsub.f32 %v869, %v1464
        %v1702 = vsub.f32 %v870, %v1469
        %v1703 = vsub.f32 %v871, %v1474
        %v1704 = vsub.f32 %v872, %v1479
        %v1705 = vsub.f32 %v873, %v1484
        %v1706 = vsub.f32 %v874, %v1489
        %v1707 = vsub.f32 %v875, %v1494
        %v1708 = vsub.f32 %v876, %v1499
        %v1709 = vsub.f32 %v877, %v1504
        %v1710 = vsub.f32 %v878, %v1509
        %v1711 = vsub.f32 %v879, %v1514
        %v1712 = vsub.f32 %v880, %v1519
        %v1713 = vsub.f32 %v881, %v1524
        %v1714 = vsub.f32 %v882, %v1529
        %v1715 = vsub.f32 %v883, %v1534
        %v1716 = vsub.f32 %v884, %v1539
        %v1717 = vsub.f32 %v885, %v1544
        %v1718 = vsub.f32 %v886, %v1549
        %v1719 = vsub.f32 %v887, %v1554
        %v1720 = vsub.f32 %v888, %v1559
        %v1721 = vsub.f32 %v889, %v1564
        %v1722 = vsub.f32 %v890, %v1569
        %v1723 = vsub.f32 %v891, %v1574
        %v1724 = vsub.f32 %v892, %v1579
        %v1725 = vsub.f32 %v893, %v1584
        %v1726 = vsub.f32 %v894, %v1589
        %v1727 = vsub.f32 %v895, %v1594
        %v1728 = vsub.f32 %v896, %v1599
        %v1729 = vsub.f32 %v897, %v1604
        %v1730 = vsub.f32 %v898, %v1609
        %v1731 = vsub.f32 %v899, %v1614
        %v1732 = vsub.f32 %v900, %v1619
        %v1733 = vsub.f32 %v901, %v1624
        %v1734 = vsub.f32 %v902, %v1629
        %v1735 = vsub.f32 %v903, %v1634
        %v1736 = vsub.f32 %v904, %v1639
        %v1737 = vsub.f32 %v905, %v1644
        %v1738 = vsub.f32 %v906, %v1649
        %v1739 = vsub.f32 %v907, %v1654
        %v1740 = vsub.f32 %v908, %v1659
        %v1741 = vsub.f32 %v909, %v1664
        %v1742 = vsub.f32 %v910, %v1669
        %v1743 = vsub.f32 %v911, %v1674
        %v1744 = vsub.f32 %v912, %v1679
        %v1745 = vmul.f32 %v1681, 1.442695
        %v1746 = vpow.pop %v1745
        %v1747 = vmul.f32 %v1682, 1.442695
        %v1748 = vpow.pop %v1747
        %v1749 = vmul.f32 %v1683, 1.442695
        %v1750 = vpow.pop %v1749
        %v1751 = vmul.f32 %v1684, 1.442695
        %v1752 = vpow.pop %v1751
        %v1753 = vmul.f32 %v1685, 1.442695
        %v1754 = vpow.pop %v1753
        %v1755 = vmul.f32 %v1686, 1.442695
        %v1756 = vpow.pop %v1755
        %v1757 = vmul.f32 %v1687, 1.442695
        %v1758 = vpow.pop %v1757
        %v1759 = vmul.f32 %v1688, 1.442695
        %v1760 = vpow.pop %v1759
        %v1761 = vmul.f32 %v1689, 1.442695
        %v1762 = vpow.pop %v1761
        %v1763 = vmul.f32 %v1690, 1.442695
        %v1764 = vpow.pop %v1763
        %v1765 = vmul.f32 %v1691, 1.442695
        %v1766 = vpow.pop %v1765
        %v1767 = vmul.f32 %v1692, 1.442695
        %v1768 = vpow.pop %v1767
        %v1769 = vmul.f32 %v1693, 1.442695
        %v1770 = vpow.pop %v1769
        %v1771 = vmul.f32 %v1694, 1.442695
        %v1772 = vpow.pop %v1771
        %v1773 = vmul.f32 %v1695, 1.442695
        %v1774 = vpow.pop %v1773
        %v1775 = vmul.f32 %v1696, 1.442695
        %v1776 = vpow.pop %v1775
        %v1777 = vmul.f32 %v1697, 1.442695
        %v1778 = vpow.pop %v1777
        %v1779 = vmul.f32 %v1698, 1.442695
        %v1780 = vpow.pop %v1779
        %v1781 = vmul.f32 %v1699, 1.442695
        %v1782 = vpow.pop %v1781
        %v1783 = vmul.f32 %v1700, 1.442695
        %v1784 = vpow.pop %v1783
        %v1785 = vmul.f32 %v1701, 1.442695
        %v1786 = vpow.pop %v1785
        %v1787 = vmul.f32 %v1702, 1.442695
        %v1788 = vpow.pop %v1787
        %v1789 = vmul.f32 %v1703, 1.442695
        %v1790 = vpow.pop %v1789
        %v1791 = vmul.f32 %v1704, 1.442695
        %v1792 = vpow.pop %v1791
        %v1793 = vmul.f32 %v1705, 1.442695
        %v1794 = vpow.pop %v1793
        %v1795 = vmul.f32 %v1706, 1.442695
        %v1796 = vpow.pop %v1795
        %v1797 = vmul.f32 %v1707, 1.442695
        %v1798 = vpow.pop %v1797
        %v1799 = vmul.f32 %v1708, 1.442695
        %v1800 = vpow.pop %v1799
        %v1801 = vmul.f32 %v1709, 1.442695
        %v1802 = vpow.pop %v1801
        %v1803 = vmul.f32 %v1710, 1.442695
        %v1804 = vpow.pop %v1803
        %v1805 = vmul.f32 %v1711, 1.442695
        %v1806 = vpow.pop %v1805
        %v1807 = vmul.f32 %v1712, 1.442695
        %v1808 = vpow.pop %v1807
        %v1809 = vmul.f32 %v1713, 1.442695
        %v1810 = vpow.pop %v1809
        %v1811 = vmul.f32 %v1714, 1.442695
        %v1812 = vpow.pop %v1811
        %v1813 = vmul.f32 %v1715, 1.442695
        %v1814 = vpow.pop %v1813
        %v1815 = vmul.f32 %v1716, 1.442695
        %v1816 = vpow.pop %v1815
        %v1817 = vmul.f32 %v1717, 1.442695
        %v1818 = vpow.pop %v1817
        %v1819 = vmul.f32 %v1718, 1.442695
        %v1820 = vpow.pop %v1819
        %v1821 = vmul.f32 %v1719, 1.442695
        %v1822 = vpow.pop %v1821
        %v1823 = vmul.f32 %v1720, 1.442695
        %v1824 = vpow.pop %v1823
        %v1825 = vmul.f32 %v1721, 1.442695
        %v1826 = vpow.pop %v1825
        %v1827 = vmul.f32 %v1722, 1.442695
        %v1828 = vpow.pop %v1827
        %v1829 = vmul.f32 %v1723, 1.442695
        %v1830 = vpow.pop %v1829
        %v1831 = vmul.f32 %v1724, 1.442695
        %v1832 = vpow.pop %v1831
        %v1833 = vmul.f32 %v1725, 1.442695
        %v1834 = vpow.pop %v1833
        %v1835 = vmul.f32 %v1726, 1.442695
        %v1836 = vpow.pop %v1835
        %v1837 = vmul.f32 %v1727, 1.442695
        %v1838 = vpow.pop %v1837
        %v1839 = vmul.f32 %v1728, 1.442695
        %v1840 = vpow.pop %v1839
        %v1841 = vmul.f32 %v1729, 1.442695
        %v1842 = vpow.pop %v1841
        %v1843 = vmul.f32 %v1730, 1.442695
        %v1844 = vpow.pop %v1843
        %v1845 = vmul.f32 %v1731, 1.442695
        %v1846 = vpow.pop %v1845
        %v1847 = vmul.f32 %v1732, 1.442695
        %v1848 = vpow.pop %v1847
        %v1849 = vmul.f32 %v1733, 1.442695
        %v1850 = vpow.pop %v1849
        %v1851 = vmul.f32 %v1734, 1.442695
        %v1852 = vpow.pop %v1851
        %v1853 = vmul.f32 %v1735, 1.442695
        %v1854 = vpow.pop %v1853
        %v1855 = vmul.f32 %v1736, 1.442695
        %v1856 = vpow.pop %v1855
        %v1857 = vmul.f32 %v1737, 1.442695
        %v1858 = vpow.pop %v1857
        %v1859 = vmul.f32 %v1738, 1.442695
        %v1860 = vpow.pop %v1859
        %v1861 = vmul.f32 %v1739, 1.442695
        %v1862 = vpow.pop %v1861
        %v1863 = vmul.f32 %v1740, 1.442695
        %v1864 = vpow.pop %v1863
        %v1865 = vmul.f32 %v1741, 1.442695
        %v1866 = vpow.pop %v1865
        %v1867 = vmul.f32 %v1742, 1.442695
        %v1868 = vpow.pop %v1867
        %v1869 = vmul.f32 %v1743, 1.442695
        %v1870 = vpow.pop %v1869
        %v1871 = vmul.f32 %v1744, 1.442695
        %v1872 = vpow.pop %v1871
        %v1873 = vld [vmem:[#allocation3] sm:$0xff]
        %v1874 = vld [vmem:[#allocation3 + $0x8] sm:$0xff]
        %v1875 = vld [vmem:[#allocation3 + $0x10] sm:$0xff]
        %v1876 = vld [vmem:[#allocation3 + $0x18] sm:$0xff]
        %v1877 = vld [vmem:[#allocation3 + $0x20] sm:$0xff]
        %v1878 = vld [vmem:[#allocation3 + $0x28] sm:$0xff]
        %v1879 = vld [vmem:[#allocation3 + $0x30] sm:$0xff]
        %v1880 = vld [vmem:[#allocation3 + $0x38] sm:$0xff]
        %v1881 = vld [vmem:[#allocation3 + $0x40] sm:$0xff]
        %v1882 = vld [vmem:[#allocation3 + $0x48] sm:$0xff]
        %v1883 = vld [vmem:[#allocation3 + $0x50] sm:$0xff]
        %v1884 = vld [vmem:[#allocation3 + $0x58] sm:$0xff]
        %v1885 = vld [vmem:[#allocation3 + $0x60] sm:$0xff]
        %v1886 = vld [vmem:[#allocation3 + $0x68] sm:$0xff]
        %v1887 = vld [vmem:[#allocation3 + $0x70] sm:$0xff]
        %v1888 = vld [vmem:[#allocation3 + $0x78] sm:$0xff]
        %v1889 = vld [vmem:[#allocation3 + $0x80] sm:$0xff]
        %v1890 = vld [vmem:[#allocation3 + $0x88] sm:$0xff]
        %v1891 = vld [vmem:[#allocation3 + $0x90] sm:$0xff]
        %v1892 = vld [vmem:[#allocation3 + $0x98] sm:$0xff]
        %v1893 = vld [vmem:[#allocation3 + $0xa0] sm:$0xff]
        %v1894 = vld [vmem:[#allocation3 + $0xa8] sm:$0xff]
        %v1895 = vld [vmem:[#allocation3 + $0xb0] sm:$0xff]
        %v1896 = vld [vmem:[#allocation3 + $0xb8] sm:$0xff]
        %v1897 = vld [vmem:[#allocation3 + $0xc0] sm:$0xff]
        %v1898 = vld [vmem:[#allocation3 + $0xc8] sm:$0xff]
        %v1899 = vld [vmem:[#allocation3 + $0xd0] sm:$0xff]
        %v1900 = vld [vmem:[#allocation3 + $0xd8] sm:$0xff]
        %v1901 = vld [vmem:[#allocation3 + $0xe0] sm:$0xff]
        %v1902 = vld [vmem:[#allocation3 + $0xe8] sm:$0xff]
        %v1903 = vld [vmem:[#allocation3 + $0xf0] sm:$0xff]
        %v1904 = vld [vmem:[#allocation3 + $0xf8] sm:$0xff]
        %v1905 = vld [vmem:[#allocation3 + $0x100] sm:$0xff]
        %v1906 = vld [vmem:[#allocation3 + $0x108] sm:$0xff]
        %v1907 = vld [vmem:[#allocation3 + $0x110] sm:$0xff]
        %v1908 = vld [vmem:[#allocation3 + $0x118] sm:$0xff]
        %v1909 = vld [vmem:[#allocation3 + $0x120] sm:$0xff]
        %v1910 = vld [vmem:[#allocation3 + $0x128] sm:$0xff]
        %v1911 = vld [vmem:[#allocation3 + $0x130] sm:$0xff]
        %v1912 = vld [vmem:[#allocation3 + $0x138] sm:$0xff]
        %v1913 = vld [vmem:[#allocation3 + $0x140] sm:$0xff]
        %v1914 = vld [vmem:[#allocation3 + $0x148] sm:$0xff]
        %v1915 = vld [vmem:[#allocation3 + $0x150] sm:$0xff]
        %v1916 = vld [vmem:[#allocation3 + $0x158] sm:$0xff]
        %v1917 = vld [vmem:[#allocation3 + $0x160] sm:$0xff]
        %v1918 = vld [vmem:[#allocation3 + $0x168] sm:$0xff]
        %v1919 = vld [vmem:[#allocation3 + $0x170] sm:$0xff]
        %v1920 = vld [vmem:[#allocation3 + $0x178] sm:$0xff]
        %v1921 = vld [vmem:[#allocation3 + $0x180] sm:$0xff]
        %v1922 = vld [vmem:[#allocation3 + $0x188] sm:$0xff]
        %v1923 = vld [vmem:[#allocation3 + $0x190] sm:$0xff]
        %v1924 = vld [vmem:[#allocation3 + $0x198] sm:$0xff]
        %v1925 = vld [vmem:[#allocation3 + $0x1a0] sm:$0xff]
        %v1926 = vld [vmem:[#allocation3 + $0x1a8] sm:$0xff]
        %v1927 = vld [vmem:[#allocation3 + $0x1b0] sm:$0xff]
        %v1928 = vld [vmem:[#allocation3 + $0x1b8] sm:$0xff]
        %v1929 = vld [vmem:[#allocation3 + $0x1c0] sm:$0xff]
        %v1930 = vld [vmem:[#allocation3 + $0x1c8] sm:$0xff]
        %v1931 = vld [vmem:[#allocation3 + $0x1d0] sm:$0xff]
        %v1932 = vld [vmem:[#allocation3 + $0x1d8] sm:$0xff]
        %v1933 = vld [vmem:[#allocation3 + $0x1e0] sm:$0xff]
        %v1934 = vld [vmem:[#allocation3 + $0x1e8] sm:$0xff]
        %v1935 = vld [vmem:[#allocation3 + $0x1f0] sm:$0xff]
        %v1936 = vld [vmem:[#allocation3 + $0x1f8] sm:$0xff]
        %v1937 = vmul.f32 %v1234, %v1873
        %v1938 = vmul.f32 %v1236, %v1874
        %v1939 = vmul.f32 %v1238, %v1875
        %v1940 = vmul.f32 %v1240, %v1876
        %v1941 = vmul.f32 %v1242, %v1877
        %v1942 = vmul.f32 %v1244, %v1878
        %v1943 = vmul.f32 %v1246, %v1879
        %v1944 = vmul.f32 %v1248, %v1880
        %v1945 = vmul.f32 %v1250, %v1881
        %v1946 = vmul.f32 %v1252, %v1882
        %v1947 = vmul.f32 %v1254, %v1883
        %v1948 = vmul.f32 %v1256, %v1884
        %v1949 = vmul.f32 %v1258, %v1885
        %v1950 = vmul.f32 %v1260, %v1886
        %v1951 = vmul.f32 %v1262, %v1887
        %v1952 = vmul.f32 %v1264, %v1888
        %v1953 = vmul.f32 %v1266, %v1889
        %v1954 = vmul.f32 %v1268, %v1890
        %v1955 = vmul.f32 %v1270, %v1891
        %v1956 = vmul.f32 %v1272, %v1892
        %v1957 = vmul.f32 %v1274, %v1893
        %v1958 = vmul.f32 %v1276, %v1894
        %v1959 = vmul.f32 %v1278, %v1895
        %v1960 = vmul.f32 %v1280, %v1896
        %v1961 = vmul.f32 %v1282, %v1897
        %v1962 = vmul.f32 %v1284, %v1898
        %v1963 = vmul.f32 %v1286, %v1899
        %v1964 = vmul.f32 %v1288, %v1900
        %v1965 = vmul.f32 %v1290, %v1901
        %v1966 = vmul.f32 %v1292, %v1902
        %v1967 = vmul.f32 %v1294, %v1903
        %v1968 = vmul.f32 %v1296, %v1904
        %v1969 = vmul.f32 %v1298, %v1905
        %v1970 = vmul.f32 %v1300, %v1906
        %v1971 = vmul.f32 %v1302, %v1907
        %v1972 = vmul.f32 %v1304, %v1908
        %v1973 = vmul.f32 %v1306, %v1909
        %v1974 = vmul.f32 %v1308, %v1910
        %v1975 = vmul.f32 %v1310, %v1911
        %v1976 = vmul.f32 %v1312, %v1912
        %v1977 = vmul.f32 %v1314, %v1913
        %v1978 = vmul.f32 %v1316, %v1914
        %v1979 = vmul.f32 %v1318, %v1915
        %v1980 = vmul.f32 %v1320, %v1916
        %v1981 = vmul.f32 %v1322, %v1917
        %v1982 = vmul.f32 %v1324, %v1918
        %v1983 = vmul.f32 %v1326, %v1919
        %v1984 = vmul.f32 %v1328, %v1920
        %v1985 = vmul.f32 %v1330, %v1921
        %v1986 = vmul.f32 %v1332, %v1922
        %v1987 = vmul.f32 %v1334, %v1923
        %v1988 = vmul.f32 %v1336, %v1924
        %v1989 = vmul.f32 %v1338, %v1925
        %v1990 = vmul.f32 %v1340, %v1926
        %v1991 = vmul.f32 %v1342, %v1927
        %v1992 = vmul.f32 %v1344, %v1928
        %v1993 = vmul.f32 %v1346, %v1929
        %v1994 = vmul.f32 %v1348, %v1930
        %v1995 = vmul.f32 %v1350, %v1931
        %v1996 = vmul.f32 %v1352, %v1932
        %v1997 = vmul.f32 %v1354, %v1933
        %v1998 = vmul.f32 %v1356, %v1934
        %v1999 = vmul.f32 %v1358, %v1935
        %v2000 = vmul.f32 %v1360, %v1936
        %2001 = vadd.xlane.f32.xlu0 %v1746
        %v2002 = vpop.xlane.xlu0 %2001
        %2003 = vadd.xlane.f32.xlu0 %v1748
        %v2004 = vpop.xlane.xlu0 %2003
        %2005 = vadd.xlane.f32.xlu0 %v1750
        %v2006 = vpop.xlane.xlu0 %2005
        %2007 = vadd.xlane.f32.xlu0 %v1752
        %v2008 = vpop.xlane.xlu0 %2007
        %2009 = vadd.xlane.f32.xlu0 %v1754
        %v2010 = vpop.xlane.xlu0 %2009
        %2011 = vadd.xlane.f32.xlu0 %v1756
        %v2012 = vpop.xlane.xlu0 %2011
        %2013 = vadd.xlane.f32.xlu0 %v1758
        %v2014 = vpop.xlane.xlu0 %2013
        %2015 = vadd.xlane.f32.xlu0 %v1760
        %v2016 = vpop.xlane.xlu0 %2015
        %2017 = vadd.xlane.f32.xlu0 %v1762
        %v2018 = vpop.xlane.xlu0 %2017
        %2019 = vadd.xlane.f32.xlu0 %v1764
        %v2020 = vpop.xlane.xlu0 %2019
        %2021 = vadd.xlane.f32.xlu0 %v1766
        %v2022 = vpop.xlane.xlu0 %2021
        %2023 = vadd.xlane.f32.xlu0 %v1768
        %v2024 = vpop.xlane.xlu0 %2023
        %2025 = vadd.xlane.f32.xlu0 %v1770
        %v2026 = vpop.xlane.xlu0 %2025
        %2027 = vadd.xlane.f32.xlu0 %v1772
        %v2028 = vpop.xlane.xlu0 %2027
        %2029 = vadd.xlane.f32.xlu0 %v1774
        %v2030 = vpop.xlane.xlu0 %2029
        %2031 = vadd.xlane.f32.xlu0 %v1776
        %v2032 = vpop.xlane.xlu0 %2031
        %2033 = vadd.xlane.f32.xlu0 %v1778
        %v2034 = vpop.xlane.xlu0 %2033
        %2035 = vadd.xlane.f32.xlu0 %v1780
        %v2036 = vpop.xlane.xlu0 %2035
        %2037 = vadd.xlane.f32.xlu0 %v1782
        %v2038 = vpop.xlane.xlu0 %2037
        %2039 = vadd.xlane.f32.xlu0 %v1784
        %v2040 = vpop.xlane.xlu0 %2039
        %2041 = vadd.xlane.f32.xlu0 %v1786
        %v2042 = vpop.xlane.xlu0 %2041
        %2043 = vadd.xlane.f32.xlu0 %v1788
        %v2044 = vpop.xlane.xlu0 %2043
        %2045 = vadd.xlane.f32.xlu0 %v1790
        %v2046 = vpop.xlane.xlu0 %2045
        %2047 = vadd.xlane.f32.xlu0 %v1792
        %v2048 = vpop.xlane.xlu0 %2047
        %2049 = vadd.xlane.f32.xlu0 %v1794
        %v2050 = vpop.xlane.xlu0 %2049
        %2051 = vadd.xlane.f32.xlu0 %v1796
        %v2052 = vpop.xlane.xlu0 %2051
        %2053 = vadd.xlane.f32.xlu0 %v1798
        %v2054 = vpop.xlane.xlu0 %2053
        %2055 = vadd.xlane.f32.xlu0 %v1800
        %v2056 = vpop.xlane.xlu0 %2055
        %2057 = vadd.xlane.f32.xlu0 %v1802
        %v2058 = vpop.xlane.xlu0 %2057
        %2059 = vadd.xlane.f32.xlu0 %v1804
        %v2060 = vpop.xlane.xlu0 %2059
        %2061 = vadd.xlane.f32.xlu0 %v1806
        %v2062 = vpop.xlane.xlu0 %2061
        %2063 = vadd.xlane.f32.xlu0 %v1808
        %v2064 = vpop.xlane.xlu0 %2063
        %2065 = vadd.xlane.f32.xlu0 %v1810
        %v2066 = vpop.xlane.xlu0 %2065
        %2067 = vadd.xlane.f32.xlu0 %v1812
        %v2068 = vpop.xlane.xlu0 %2067
        %2069 = vadd.xlane.f32.xlu0 %v1814
        %v2070 = vpop.xlane.xlu0 %2069
        %2071 = vadd.xlane.f32.xlu0 %v1816
        %v2072 = vpop.xlane.xlu0 %2071
        %2073 = vadd.xlane.f32.xlu0 %v1818
        %v2074 = vpop.xlane.xlu0 %2073
        %2075 = vadd.xlane.f32.xlu0 %v1820
        %v2076 = vpop.xlane.xlu0 %2075
        %2077 = vadd.xlane.f32.xlu0 %v1822
        %v2078 = vpop.xlane.xlu0 %2077
        %2079 = vadd.xlane.f32.xlu0 %v1824
        %v2080 = vpop.xlane.xlu0 %2079
        %2081 = vadd.xlane.f32.xlu0 %v1826
        %v2082 = vpop.xlane.xlu0 %2081
        %2083 = vadd.xlane.f32.xlu0 %v1828
        %v2084 = vpop.xlane.xlu0 %2083
        %2085 = vadd.xlane.f32.xlu0 %v1830
        %v2086 = vpop.xlane.xlu0 %2085
        %2087 = vadd.xlane.f32.xlu0 %v1832
        %v2088 = vpop.xlane.xlu0 %2087
        %2089 = vadd.xlane.f32.xlu0 %v1834
        %v2090 = vpop.xlane.xlu0 %2089
        %2091 = vadd.xlane.f32.xlu0 %v1836
        %v2092 = vpop.xlane.xlu0 %2091
        %2093 = vadd.xlane.f32.xlu0 %v1838
        %v2094 = vpop.xlane.xlu0 %2093
        %2095 = vadd.xlane.f32.xlu0 %v1840
        %v2096 = vpop.xlane.xlu0 %2095
        %2097 = vadd.xlane.f32.xlu0 %v1842
        %v2098 = vpop.xlane.xlu0 %2097
        %2099 = vadd.xlane.f32.xlu0 %v1844
        %v2100 = vpop.xlane.xlu0 %2099
        %2101 = vadd.xlane.f32.xlu0 %v1846
        %v2102 = vpop.xlane.xlu0 %2101
        %2103 = vadd.xlane.f32.xlu0 %v1848
        %v2104 = vpop.xlane.xlu0 %2103
        %2105 = vadd.xlane.f32.xlu0 %v1850
        %v2106 = vpop.xlane.xlu0 %2105
        %2107 = vadd.xlane.f32.xlu0 %v1852
        %v2108 = vpop.xlane.xlu0 %2107
        %2109 = vadd.xlane.f32.xlu0 %v1854
        %v2110 = vpop.xlane.xlu0 %2109
        %2111 = vadd.xlane.f32.xlu0 %v1856
        %v2112 = vpop.xlane.xlu0 %2111
        %2113 = vadd.xlane.f32.xlu0 %v1858
        %v2114 = vpop.xlane.xlu0 %2113
        %2115 = vadd.xlane.f32.xlu0 %v1860
        %v2116 = vpop.xlane.xlu0 %2115
        %2117 = vadd.xlane.f32.xlu0 %v1862
        %v2118 = vpop.xlane.xlu0 %2117
        %2119 = vadd.xlane.f32.xlu0 %v1864
        %v2120 = vpop.xlane.xlu0 %2119
        %2121 = vadd.xlane.f32.xlu0 %v1866
        %v2122 = vpop.xlane.xlu0 %2121
        %2123 = vadd.xlane.f32.xlu0 %v1868
        %v2124 = vpop.xlane.xlu0 %2123
        %2125 = vadd.xlane.f32.xlu0 %v1870
        %v2126 = vpop.xlane.xlu0 %2125
        %2127 = vadd.xlane.f32.xlu0 %v1872
        %v2128 = vpop.xlane.xlu0 %2127
        %v2129 = vadd.f32 %v1937, %v2002
        %v2130 = vadd.f32 %v1938, %v2004
        %v2131 = vadd.f32 %v1939, %v2006
        %v2132 = vadd.f32 %v1940, %v2008
        %v2133 = vadd.f32 %v1941, %v2010
        %v2134 = vadd.f32 %v1942, %v2012
        %v2135 = vadd.f32 %v1943, %v2014
        %v2136 = vadd.f32 %v1944, %v2016
        %v2137 = vadd.f32 %v1945, %v2018
        %v2138 = vadd.f32 %v1946, %v2020
        %v2139 = vadd.f32 %v1947, %v2022
        %v2140 = vadd.f32 %v1948, %v2024
        %v2141 = vadd.f32 %v1949, %v2026
        %v2142 = vadd.f32 %v1950, %v2028
        %v2143 = vadd.f32 %v1951, %v2030
        %v2144 = vadd.f32 %v1952, %v2032
        %v2145 = vadd.f32 %v1953, %v2034
        %v2146 = vadd.f32 %v1954, %v2036
        %v2147 = vadd.f32 %v1955, %v2038
        %v2148 = vadd.f32 %v1956, %v2040
        %v2149 = vadd.f32 %v1957, %v2042
        %v2150 = vadd.f32 %v1958, %v2044
        %v2151 = vadd.f32 %v1959, %v2046
        %v2152 = vadd.f32 %v1960, %v2048
        %v2153 = vadd.f32 %v1961, %v2050
        %v2154 = vadd.f32 %v1962, %v2052
        %v2155 = vadd.f32 %v1963, %v2054
        %v2156 = vadd.f32 %v1964, %v2056
        %v2157 = vadd.f32 %v1965, %v2058
        %v2158 = vadd.f32 %v1966, %v2060
        %v2159 = vadd.f32 %v1967, %v2062
        %v2160 = vadd.f32 %v1968, %v2064
        %v2161 = vadd.f32 %v1969, %v2066
        %v2162 = vadd.f32 %v1970, %v2068
        %v2163 = vadd.f32 %v1971, %v2070
        %v2164 = vadd.f32 %v1972, %v2072
        %v2165 = vadd.f32 %v1973, %v2074
        %v2166 = vadd.f32 %v1974, %v2076
        %v2167 = vadd.f32 %v1975, %v2078
        %v2168 = vadd.f32 %v1976, %v2080
        %v2169 = vadd.f32 %v1977, %v2082
        %v2170 = vadd.f32 %v1978, %v2084
        %v2171 = vadd.f32 %v1979, %v2086
        %v2172 = vadd.f32 %v1980, %v2088
        %v2173 = vadd.f32 %v1981, %v2090
        %v2174 = vadd.f32 %v1982, %v2092
        %v2175 = vadd.f32 %v1983, %v2094
        %v2176 = vadd.f32 %v1984, %v2096
        %v2177 = vadd.f32 %v1985, %v2098
        %v2178 = vadd.f32 %v1986, %v2100
        %v2179 = vadd.f32 %v1987, %v2102
        %v2180 = vadd.f32 %v1988, %v2104
        %v2181 = vadd.f32 %v1989, %v2106
        %v2182 = vadd.f32 %v1990, %v2108
        %v2183 = vadd.f32 %v1991, %v2110
        %v2184 = vadd.f32 %v1992, %v2112
        %v2185 = vadd.f32 %v1993, %v2114
        %v2186 = vadd.f32 %v1994, %v2116
        %v2187 = vadd.f32 %v1995, %v2118
        %v2188 = vadd.f32 %v1996, %v2120
        %v2189 = vadd.f32 %v1997, %v2122
        %v2190 = vadd.f32 %v1998, %v2124
        %v2191 = vadd.f32 %v1999, %v2126
        %v2192 = vadd.f32 %v2000, %v2128
        %vm2193 = vcmask 7168
        %2194 = vst.msk [vmem:[#allocation3] sm:$0xff] %vm2193, %v2129
        %2195 = vst.msk [vmem:[#allocation3 + $0x8] sm:$0xff] %vm2193, %v2130
        %2196 = vst.msk [vmem:[#allocation3 + $0x10] sm:$0xff] %vm2193, %v2131
        %2197 = vst.msk [vmem:[#allocation3 + $0x18] sm:$0xff] %vm2193, %v2132
        %2198 = vst.msk [vmem:[#allocation3 + $0x20] sm:$0xff] %vm2193, %v2133
        %2199 = vst.msk [vmem:[#allocation3 + $0x28] sm:$0xff] %vm2193, %v2134
        %2200 = vst.msk [vmem:[#allocation3 + $0x30] sm:$0xff] %vm2193, %v2135
        %2201 = vst.msk [vmem:[#allocation3 + $0x38] sm:$0xff] %vm2193, %v2136
        %2202 = vst.msk [vmem:[#allocation3 + $0x40] sm:$0xff] %vm2193, %v2137
        %2203 = vst.msk [vmem:[#allocation3 + $0x48] sm:$0xff] %vm2193, %v2138
        %2204 = vst.msk [vmem:[#allocation3 + $0x50] sm:$0xff] %vm2193, %v2139
        %2205 = vst.msk [vmem:[#allocation3 + $0x58] sm:$0xff] %vm2193, %v2140
        %2206 = vst.msk [vmem:[#allocation3 + $0x60] sm:$0xff] %vm2193, %v2141
        %2207 = vst.msk [vmem:[#allocation3 + $0x68] sm:$0xff] %vm2193, %v2142
        %2208 = vst.msk [vmem:[#allocation3 + $0x70] sm:$0xff] %vm2193, %v2143
        %2209 = vst.msk [vmem:[#allocation3 + $0x78] sm:$0xff] %vm2193, %v2144
        %2210 = vst.msk [vmem:[#allocation3 + $0x80] sm:$0xff] %vm2193, %v2145
        %2211 = vst.msk [vmem:[#allocation3 + $0x88] sm:$0xff] %vm2193, %v2146
        %2212 = vst.msk [vmem:[#allocation3 + $0x90] sm:$0xff] %vm2193, %v2147
        %2213 = vst.msk [vmem:[#allocation3 + $0x98] sm:$0xff] %vm2193, %v2148
        %2214 = vst.msk [vmem:[#allocation3 + $0xa0] sm:$0xff] %vm2193, %v2149
        %2215 = vst.msk [vmem:[#allocation3 + $0xa8] sm:$0xff] %vm2193, %v2150
        %2216 = vst.msk [vmem:[#allocation3 + $0xb0] sm:$0xff] %vm2193, %v2151
        %2217 = vst.msk [vmem:[#allocation3 + $0xb8] sm:$0xff] %vm2193, %v2152
        %2218 = vst.msk [vmem:[#allocation3 + $0xc0] sm:$0xff] %vm2193, %v2153
        %2219 = vst.msk [vmem:[#allocation3 + $0xc8] sm:$0xff] %vm2193, %v2154
        %2220 = vst.msk [vmem:[#allocation3 + $0xd0] sm:$0xff] %vm2193, %v2155
        %2221 = vst.msk [vmem:[#allocation3 + $0xd8] sm:$0xff] %vm2193, %v2156
        %2222 = vst.msk [vmem:[#allocation3 + $0xe0] sm:$0xff] %vm2193, %v2157
        %2223 = vst.msk [vmem:[#allocation3 + $0xe8] sm:$0xff] %vm2193, %v2158
        %2224 = vst.msk [vmem:[#allocation3 + $0xf0] sm:$0xff] %vm2193, %v2159
        %2225 = vst.msk [vmem:[#allocation3 + $0xf8] sm:$0xff] %vm2193, %v2160
        %2226 = vst.msk [vmem:[#allocation3 + $0x100] sm:$0xff] %vm2193, %v2161
        %2227 = vst.msk [vmem:[#allocation3 + $0x108] sm:$0xff] %vm2193, %v2162
        %2228 = vst.msk [vmem:[#allocation3 + $0x110] sm:$0xff] %vm2193, %v2163
        %2229 = vst.msk [vmem:[#allocation3 + $0x118] sm:$0xff] %vm2193, %v2164
        %2230 = vst.msk [vmem:[#allocation3 + $0x120] sm:$0xff] %vm2193, %v2165
        %2231 = vst.msk [vmem:[#allocation3 + $0x128] sm:$0xff] %vm2193, %v2166
        %2232 = vst.msk [vmem:[#allocation3 + $0x130] sm:$0xff] %vm2193, %v2167
        %2233 = vst.msk [vmem:[#allocation3 + $0x138] sm:$0xff] %vm2193, %v2168
        %2234 = vst.msk [vmem:[#allocation3 + $0x140] sm:$0xff] %vm2193, %v2169
        %2235 = vst.msk [vmem:[#allocation3 + $0x148] sm:$0xff] %vm2193, %v2170
        %2236 = vst.msk [vmem:[#allocation3 + $0x150] sm:$0xff] %vm2193, %v2171
        %2237 = vst.msk [vmem:[#allocation3 + $0x158] sm:$0xff] %vm2193, %v2172
        %2238 = vst.msk [vmem:[#allocation3 + $0x160] sm:$0xff] %vm2193, %v2173
        %2239 = vst.msk [vmem:[#allocation3 + $0x168] sm:$0xff] %vm2193, %v2174
        %2240 = vst.msk [vmem:[#allocation3 + $0x170] sm:$0xff] %vm2193, %v2175
        %2241 = vst.msk [vmem:[#allocation3 + $0x178] sm:$0xff] %vm2193, %v2176
        %2242 = vst.msk [vmem:[#allocation3 + $0x180] sm:$0xff] %vm2193, %v2177
        %2243 = vst.msk [vmem:[#allocation3 + $0x188] sm:$0xff] %vm2193, %v2178
        %2244 = vst.msk [vmem:[#allocation3 + $0x190] sm:$0xff] %vm2193, %v2179
        %2245 = vst.msk [vmem:[#allocation3 + $0x198] sm:$0xff] %vm2193, %v2180
        %2246 = vst.msk [vmem:[#allocation3 + $0x1a0] sm:$0xff] %vm2193, %v2181
        %2247 = vst.msk [vmem:[#allocation3 + $0x1a8] sm:$0xff] %vm2193, %v2182
        %2248 = vst.msk [vmem:[#allocation3 + $0x1b0] sm:$0xff] %vm2193, %v2183
        %2249 = vst.msk [vmem:[#allocation3 + $0x1b8] sm:$0xff] %vm2193, %v2184
        %2250 = vst.msk [vmem:[#allocation3 + $0x1c0] sm:$0xff] %vm2193, %v2185
        %2251 = vst.msk [vmem:[#allocation3 + $0x1c8] sm:$0xff] %vm2193, %v2186
        %2252 = vst.msk [vmem:[#allocation3 + $0x1d0] sm:$0xff] %vm2193, %v2187
        %2253 = vst.msk [vmem:[#allocation3 + $0x1d8] sm:$0xff] %vm2193, %v2188
        %2254 = vst.msk [vmem:[#allocation3 + $0x1e0] sm:$0xff] %vm2193, %v2189
        %2255 = vst.msk [vmem:[#allocation3 + $0x1e8] sm:$0xff] %vm2193, %v2190
        %2256 = vst.msk [vmem:[#allocation3 + $0x1f0] sm:$0xff] %vm2193, %v2191
        %2257 = vst.msk [vmem:[#allocation3 + $0x1f8] sm:$0xff] %vm2193, %v2192
        %v2258 = vld [vmem:[#allocation4] sm:$0xff]
        %v2259 = vld [vmem:[#allocation4 + $0x8] sm:$0xff]
        %v2260 = vld [vmem:[#allocation4 + $0x10] sm:$0xff]
        %v2261 = vld [vmem:[#allocation4 + $0x18] sm:$0xff]
        %v2262 = vld [vmem:[#allocation4 + $0x20] sm:$0xff]
        %v2263 = vld [vmem:[#allocation4 + $0x28] sm:$0xff]
        %v2264 = vld [vmem:[#allocation4 + $0x30] sm:$0xff]
        %v2265 = vld [vmem:[#allocation4 + $0x38] sm:$0xff]
        %v2266 = vld [vmem:[#allocation4 + $0x40] sm:$0xff]
        %v2267 = vld [vmem:[#allocation4 + $0x48] sm:$0xff]
        %v2268 = vld [vmem:[#allocation4 + $0x50] sm:$0xff]
        %v2269 = vld [vmem:[#allocation4 + $0x58] sm:$0xff]
        %v2270 = vld [vmem:[#allocation4 + $0x60] sm:$0xff]
        %v2271 = vld [vmem:[#allocation4 + $0x68] sm:$0xff]
        %v2272 = vld [vmem:[#allocation4 + $0x70] sm:$0xff]
        %v2273 = vld [vmem:[#allocation4 + $0x78] sm:$0xff]
        %v2274 = vld [vmem:[#allocation4 + $0x80] sm:$0xff]
        %v2275 = vld [vmem:[#allocation4 + $0x88] sm:$0xff]
        %v2276 = vld [vmem:[#allocation4 + $0x90] sm:$0xff]
        %v2277 = vld [vmem:[#allocation4 + $0x98] sm:$0xff]
        %v2278 = vld [vmem:[#allocation4 + $0xa0] sm:$0xff]
        %v2279 = vld [vmem:[#allocation4 + $0xa8] sm:$0xff]
        %v2280 = vld [vmem:[#allocation4 + $0xb0] sm:$0xff]
        %v2281 = vld [vmem:[#allocation4 + $0xb8] sm:$0xff]
        %v2282 = vld [vmem:[#allocation4 + $0xc0] sm:$0xff]
        %v2283 = vld [vmem:[#allocation4 + $0xc8] sm:$0xff]
        %v2284 = vld [vmem:[#allocation4 + $0xd0] sm:$0xff]
        %v2285 = vld [vmem:[#allocation4 + $0xd8] sm:$0xff]
        %v2286 = vld [vmem:[#allocation4 + $0xe0] sm:$0xff]
        %v2287 = vld [vmem:[#allocation4 + $0xe8] sm:$0xff]
        %v2288 = vld [vmem:[#allocation4 + $0xf0] sm:$0xff]
        %v2289 = vld [vmem:[#allocation4 + $0xf8] sm:$0xff]
        %v2290 = vld [vmem:[#allocation4 + $0x100] sm:$0xff]
        %v2291 = vld [vmem:[#allocation4 + $0x108] sm:$0xff]
        %v2292 = vld [vmem:[#allocation4 + $0x110] sm:$0xff]
        %v2293 = vld [vmem:[#allocation4 + $0x118] sm:$0xff]
        %v2294 = vld [vmem:[#allocation4 + $0x120] sm:$0xff]
        %v2295 = vld [vmem:[#allocation4 + $0x128] sm:$0xff]
        %v2296 = vld [vmem:[#allocation4 + $0x130] sm:$0xff]
        %v2297 = vld [vmem:[#allocation4 + $0x138] sm:$0xff]
        %v2298 = vld [vmem:[#allocation4 + $0x140] sm:$0xff]
        %v2299 = vld [vmem:[#allocation4 + $0x148] sm:$0xff]
        %v2300 = vld [vmem:[#allocation4 + $0x150] sm:$0xff]
        %v2301 = vld [vmem:[#allocation4 + $0x158] sm:$0xff]
        %v2302 = vld [vmem:[#allocation4 + $0x160] sm:$0xff]
        %v2303 = vld [vmem:[#allocation4 + $0x168] sm:$0xff]
        %v2304 = vld [vmem:[#allocation4 + $0x170] sm:$0xff]
        %v2305 = vld [vmem:[#allocation4 + $0x178] sm:$0xff]
        %v2306 = vld [vmem:[#allocation4 + $0x180] sm:$0xff]
        %v2307 = vld [vmem:[#allocation4 + $0x188] sm:$0xff]
        %v2308 = vld [vmem:[#allocation4 + $0x190] sm:$0xff]
        %v2309 = vld [vmem:[#allocation4 + $0x198] sm:$0xff]
        %v2310 = vld [vmem:[#allocation4 + $0x1a0] sm:$0xff]
        %v2311 = vld [vmem:[#allocation4 + $0x1a8] sm:$0xff]
        %v2312 = vld [vmem:[#allocation4 + $0x1b0] sm:$0xff]
        %v2313 = vld [vmem:[#allocation4 + $0x1b8] sm:$0xff]
        %v2314 = vld [vmem:[#allocation4 + $0x1c0] sm:$0xff]
        %v2315 = vld [vmem:[#allocation4 + $0x1c8] sm:$0xff]
        %v2316 = vld [vmem:[#allocation4 + $0x1d0] sm:$0xff]
        %v2317 = vld [vmem:[#allocation4 + $0x1d8] sm:$0xff]
        %v2318 = vld [vmem:[#allocation4 + $0x1e0] sm:$0xff]
        %v2319 = vld [vmem:[#allocation4 + $0x1e8] sm:$0xff]
        %v2320 = vld [vmem:[#allocation4 + $0x1f0] sm:$0xff]
        %v2321 = vld [vmem:[#allocation4 + $0x1f8] sm:$0xff]
        %2323 = vset.pattern.permute.xlu0 0
        %2324 = vperm.xlu0 %2323, %v1234
        %v2325 = vpop.permute.xlu0 %2324
        %2328 = vset.pattern.permute.xlu0 0
        %2329 = vperm.xlu0 %2328, %v1236
        %v2330 = vpop.permute.xlu0 %2329
        %2333 = vset.pattern.permute.xlu0 0
        %2334 = vperm.xlu0 %2333, %v1238
        %v2335 = vpop.permute.xlu0 %2334
        %2338 = vset.pattern.permute.xlu0 0
        %2339 = vperm.xlu0 %2338, %v1240
        %v2340 = vpop.permute.xlu0 %2339
        %2343 = vset.pattern.permute.xlu0 0
        %2344 = vperm.xlu0 %2343, %v1242
        %v2345 = vpop.permute.xlu0 %2344
        %2348 = vset.pattern.permute.xlu0 0
        %2349 = vperm.xlu0 %2348, %v1244
        %v2350 = vpop.permute.xlu0 %2349
        %2353 = vset.pattern.permute.xlu0 0
        %2354 = vperm.xlu0 %2353, %v1246
        %v2355 = vpop.permute.xlu0 %2354
        %2358 = vset.pattern.permute.xlu0 0
        %2359 = vperm.xlu0 %2358, %v1248
        %v2360 = vpop.permute.xlu0 %2359
        %2363 = vset.pattern.permute.xlu0 0
        %2364 = vperm.xlu0 %2363, %v1250
        %v2365 = vpop.permute.xlu0 %2364
        %2368 = vset.pattern.permute.xlu0 0
        %2369 = vperm.xlu0 %2368, %v1252
        %v2370 = vpop.permute.xlu0 %2369
        %2373 = vset.pattern.permute.xlu0 0
        %2374 = vperm.xlu0 %2373, %v1254
        %v2375 = vpop.permute.xlu0 %2374
        %2378 = vset.pattern.permute.xlu0 0
        %2379 = vperm.xlu0 %2378, %v1256
        %v2380 = vpop.permute.xlu0 %2379
        %2383 = vset.pattern.permute.xlu0 0
        %2384 = vperm.xlu0 %2383, %v1258
        %v2385 = vpop.permute.xlu0 %2384
        %2388 = vset.pattern.permute.xlu0 0
        %2389 = vperm.xlu0 %2388, %v1260
        %v2390 = vpop.permute.xlu0 %2389
        %2393 = vset.pattern.permute.xlu0 0
        %2394 = vperm.xlu0 %2393, %v1262
        %v2395 = vpop.permute.xlu0 %2394
        %2398 = vset.pattern.permute.xlu0 0
        %2399 = vperm.xlu0 %2398, %v1264
        %v2400 = vpop.permute.xlu0 %2399
        %2403 = vset.pattern.permute.xlu0 0
        %2404 = vperm.xlu0 %2403, %v1266
        %v2405 = vpop.permute.xlu0 %2404
        %2408 = vset.pattern.permute.xlu0 0
        %2409 = vperm.xlu0 %2408, %v1268
        %v2410 = vpop.permute.xlu0 %2409
        %2413 = vset.pattern.permute.xlu0 0
        %2414 = vperm.xlu0 %2413, %v1270
        %v2415 = vpop.permute.xlu0 %2414
        %2418 = vset.pattern.permute.xlu0 0
        %2419 = vperm.xlu0 %2418, %v1272
        %v2420 = vpop.permute.xlu0 %2419
        %2423 = vset.pattern.permute.xlu0 0
        %2424 = vperm.xlu0 %2423, %v1274
        %v2425 = vpop.permute.xlu0 %2424
        %2428 = vset.pattern.permute.xlu0 0
        %2429 = vperm.xlu0 %2428, %v1276
        %v2430 = vpop.permute.xlu0 %2429
        %2433 = vset.pattern.permute.xlu0 0
        %2434 = vperm.xlu0 %2433, %v1278
        %v2435 = vpop.permute.xlu0 %2434
        %2438 = vset.pattern.permute.xlu0 0
        %2439 = vperm.xlu0 %2438, %v1280
        %v2440 = vpop.permute.xlu0 %2439
        %2443 = vset.pattern.permute.xlu0 0
        %2444 = vperm.xlu0 %2443, %v1282
        %v2445 = vpop.permute.xlu0 %2444
        %2448 = vset.pattern.permute.xlu0 0
        %2449 = vperm.xlu0 %2448, %v1284
        %v2450 = vpop.permute.xlu0 %2449
        %2453 = vset.pattern.permute.xlu0 0
        %2454 = vperm.xlu0 %2453, %v1286
        %v2455 = vpop.permute.xlu0 %2454
        %2458 = vset.pattern.permute.xlu0 0
        %2459 = vperm.xlu0 %2458, %v1288
        %v2460 = vpop.permute.xlu0 %2459
        %2463 = vset.pattern.permute.xlu0 0
        %2464 = vperm.xlu0 %2463, %v1290
        %v2465 = vpop.permute.xlu0 %2464
        %2468 = vset.pattern.permute.xlu0 0
        %2469 = vperm.xlu0 %2468, %v1292
        %v2470 = vpop.permute.xlu0 %2469
        %2473 = vset.pattern.permute.xlu0 0
        %2474 = vperm.xlu0 %2473, %v1294
        %v2475 = vpop.permute.xlu0 %2474
        %2478 = vset.pattern.permute.xlu0 0
        %2479 = vperm.xlu0 %2478, %v1296
        %v2480 = vpop.permute.xlu0 %2479
        %2483 = vset.pattern.permute.xlu0 0
        %2484 = vperm.xlu0 %2483, %v1298
        %v2485 = vpop.permute.xlu0 %2484
        %2488 = vset.pattern.permute.xlu0 0
        %2489 = vperm.xlu0 %2488, %v1300
        %v2490 = vpop.permute.xlu0 %2489
        %2493 = vset.pattern.permute.xlu0 0
        %2494 = vperm.xlu0 %2493, %v1302
        %v2495 = vpop.permute.xlu0 %2494
        %2498 = vset.pattern.permute.xlu0 0
        %2499 = vperm.xlu0 %2498, %v1304
        %v2500 = vpop.permute.xlu0 %2499
        %2503 = vset.pattern.permute.xlu0 0
        %2504 = vperm.xlu0 %2503, %v1306
        %v2505 = vpop.permute.xlu0 %2504
        %2508 = vset.pattern.permute.xlu0 0
        %2509 = vperm.xlu0 %2508, %v1308
        %v2510 = vpop.permute.xlu0 %2509
        %2513 = vset.pattern.permute.xlu0 0
        %2514 = vperm.xlu0 %2513, %v1310
        %v2515 = vpop.permute.xlu0 %2514
        %2518 = vset.pattern.permute.xlu0 0
        %2519 = vperm.xlu0 %2518, %v1312
        %v2520 = vpop.permute.xlu0 %2519
        %2523 = vset.pattern.permute.xlu0 0
        %2524 = vperm.xlu0 %2523, %v1314
        %v2525 = vpop.permute.xlu0 %2524
        %2528 = vset.pattern.permute.xlu0 0
        %2529 = vperm.xlu0 %2528, %v1316
        %v2530 = vpop.permute.xlu0 %2529
        %2533 = vset.pattern.permute.xlu0 0
        %2534 = vperm.xlu0 %2533, %v1318
        %v2535 = vpop.permute.xlu0 %2534
        %2538 = vset.pattern.permute.xlu0 0
        %2539 = vperm.xlu0 %2538, %v1320
        %v2540 = vpop.permute.xlu0 %2539
        %2543 = vset.pattern.permute.xlu0 0
        %2544 = vperm.xlu0 %2543, %v1322
        %v2545 = vpop.permute.xlu0 %2544
        %2548 = vset.pattern.permute.xlu0 0
        %2549 = vperm.xlu0 %2548, %v1324
        %v2550 = vpop.permute.xlu0 %2549
        %2553 = vset.pattern.permute.xlu0 0
        %2554 = vperm.xlu0 %2553, %v1326
        %v2555 = vpop.permute.xlu0 %2554
        %2558 = vset.pattern.permute.xlu0 0
        %2559 = vperm.xlu0 %2558, %v1328
        %v2560 = vpop.permute.xlu0 %2559
        %2563 = vset.pattern.permute.xlu0 0
        %2564 = vperm.xlu0 %2563, %v1330
        %v2565 = vpop.permute.xlu0 %2564
        %2568 = vset.pattern.permute.xlu0 0
        %2569 = vperm.xlu0 %2568, %v1332
        %v2570 = vpop.permute.xlu0 %2569
        %2573 = vset.pattern.permute.xlu0 0
        %2574 = vperm.xlu0 %2573, %v1334
        %v2575 = vpop.permute.xlu0 %2574
        %2578 = vset.pattern.permute.xlu0 0
        %2579 = vperm.xlu0 %2578, %v1336
        %v2580 = vpop.permute.xlu0 %2579
        %2583 = vset.pattern.permute.xlu0 0
        %2584 = vperm.xlu0 %2583, %v1338
        %v2585 = vpop.permute.xlu0 %2584
        %2588 = vset.pattern.permute.xlu0 0
        %2589 = vperm.xlu0 %2588, %v1340
        %v2590 = vpop.permute.xlu0 %2589
        %2593 = vset.pattern.permute.xlu0 0
        %2594 = vperm.xlu0 %2593, %v1342
        %v2595 = vpop.permute.xlu0 %2594
        %2598 = vset.pattern.permute.xlu0 0
        %2599 = vperm.xlu0 %2598, %v1344
        %v2600 = vpop.permute.xlu0 %2599
        %2603 = vset.pattern.permute.xlu0 0
        %2604 = vperm.xlu0 %2603, %v1346
        %v2605 = vpop.permute.xlu0 %2604
        %2608 = vset.pattern.permute.xlu0 0
        %2609 = vperm.xlu0 %2608, %v1348
        %v2610 = vpop.permute.xlu0 %2609
        %2613 = vset.pattern.permute.xlu0 0
        %2614 = vperm.xlu0 %2613, %v1350
        %v2615 = vpop.permute.xlu0 %2614
        %2618 = vset.pattern.permute.xlu0 0
        %2619 = vperm.xlu0 %2618, %v1352
        %v2620 = vpop.permute.xlu0 %2619
        %2623 = vset.pattern.permute.xlu0 0
        %2624 = vperm.xlu0 %2623, %v1354
        %v2625 = vpop.permute.xlu0 %2624
        %2628 = vset.pattern.permute.xlu0 0
        %2629 = vperm.xlu0 %2628, %v1356
        %v2630 = vpop.permute.xlu0 %2629
        %2633 = vset.pattern.permute.xlu0 0
        %2634 = vperm.xlu0 %2633, %v1358
        %v2635 = vpop.permute.xlu0 %2634
        %2638 = vset.pattern.permute.xlu0 0
        %2639 = vperm.xlu0 %2638, %v1360
        %v2640 = vpop.permute.xlu0 %2639
        %v2642 = vmul.f32 %v2325, %v2258
        %v2643 = vmul.f32 %v2330, %v2259
        %v2644 = vmul.f32 %v2335, %v2260
        %v2645 = vmul.f32 %v2340, %v2261
        %v2646 = vmul.f32 %v2345, %v2262
        %v2647 = vmul.f32 %v2350, %v2263
        %v2648 = vmul.f32 %v2355, %v2264
        %v2649 = vmul.f32 %v2360, %v2265
        %v2650 = vmul.f32 %v2365, %v2266
        %v2651 = vmul.f32 %v2370, %v2267
        %v2652 = vmul.f32 %v2375, %v2268
        %v2653 = vmul.f32 %v2380, %v2269
        %v2654 = vmul.f32 %v2385, %v2270
        %v2655 = vmul.f32 %v2390, %v2271
        %v2656 = vmul.f32 %v2395, %v2272
        %v2657 = vmul.f32 %v2400, %v2273
        %v2658 = vmul.f32 %v2405, %v2274
        %v2659 = vmul.f32 %v2410, %v2275
        %v2660 = vmul.f32 %v2415, %v2276
        %v2661 = vmul.f32 %v2420, %v2277
        %v2662 = vmul.f32 %v2425, %v2278
        %v2663 = vmul.f32 %v2430, %v2279
        %v2664 = vmul.f32 %v2435, %v2280
        %v2665 = vmul.f32 %v2440, %v2281
        %v2666 = vmul.f32 %v2445, %v2282
        %v2667 = vmul.f32 %v2450, %v2283
        %v2668 = vmul.f32 %v2455, %v2284
        %v2669 = vmul.f32 %v2460, %v2285
        %v2670 = vmul.f32 %v2465, %v2286
        %v2671 = vmul.f32 %v2470, %v2287
        %v2672 = vmul.f32 %v2475, %v2288
        %v2673 = vmul.f32 %v2480, %v2289
        %v2674 = vmul.f32 %v2485, %v2290
        %v2675 = vmul.f32 %v2490, %v2291
        %v2676 = vmul.f32 %v2495, %v2292
        %v2677 = vmul.f32 %v2500, %v2293
        %v2678 = vmul.f32 %v2505, %v2294
        %v2679 = vmul.f32 %v2510, %v2295
        %v2680 = vmul.f32 %v2515, %v2296
        %v2681 = vmul.f32 %v2520, %v2297
        %v2682 = vmul.f32 %v2525, %v2298
        %v2683 = vmul.f32 %v2530, %v2299
        %v2684 = vmul.f32 %v2535, %v2300
        %v2685 = vmul.f32 %v2540, %v2301
        %v2686 = vmul.f32 %v2545, %v2302
        %v2687 = vmul.f32 %v2550, %v2303
        %v2688 = vmul.f32 %v2555, %v2304
        %v2689 = vmul.f32 %v2560, %v2305
        %v2690 = vmul.f32 %v2565, %v2306
        %v2691 = vmul.f32 %v2570, %v2307
        %v2692 = vmul.f32 %v2575, %v2308
        %v2693 = vmul.f32 %v2580, %v2309
        %v2694 = vmul.f32 %v2585, %v2310
        %v2695 = vmul.f32 %v2590, %v2311
        %v2696 = vmul.f32 %v2595, %v2312
        %v2697 = vmul.f32 %v2600, %v2313
        %v2698 = vmul.f32 %v2605, %v2314
        %v2699 = vmul.f32 %v2610, %v2315
        %v2700 = vmul.f32 %v2615, %v2316
        %v2701 = vmul.f32 %v2620, %v2317
        %v2702 = vmul.f32 %v2625, %v2318
        %v2703 = vmul.f32 %v2630, %v2319
        %v2704 = vmul.f32 %v2635, %v2320
        %v2705 = vmul.f32 %v2640, %v2321
        %v2706 = vld [vmem:[%s235] sm:$0xff]
        %v2707 = vld [vmem:[%s235 + $0x8] sm:$0xff]
        %v2708 = vld [vmem:[%s235 + $0x10] sm:$0xff]
        %v2709 = vld [vmem:[%s235 + $0x18] sm:$0xff]
        %v2710 = vld [vmem:[%s235 + $0x20] sm:$0xff]
        %v2711 = vld [vmem:[%s235 + $0x28] sm:$0xff]
        %v2712 = vld [vmem:[%s235 + $0x30] sm:$0xff]
        %v2713 = vld [vmem:[%s235 + $0x38] sm:$0xff]
        %v2714 = vld [vmem:[%s235 + $0x40] sm:$0xff]
        %v2715 = vld [vmem:[%s235 + $0x48] sm:$0xff]
        %v2716 = vld [vmem:[%s235 + $0x50] sm:$0xff]
        %v2717 = vld [vmem:[%s235 + $0x58] sm:$0xff]
        %v2718 = vld [vmem:[%s235 + $0x60] sm:$0xff]
        %v2719 = vld [vmem:[%s235 + $0x68] sm:$0xff]
        %v2720 = vld [vmem:[%s235 + $0x70] sm:$0xff]
        %v2721 = vld [vmem:[%s235 + $0x78] sm:$0xff]
        %2722 = vmatprep.subr.mxu0 0.0
        %2723 = vmatpush1.msra.mxu0 %v2706
        %2724 = vmatprep.subr.mxu0 0.0
        %2725 = vmatpush1.msra.mxu0 %v2707
        %2726 = vmatprep.subr.mxu0 0.0
        %2727 = vmatpush1.msra.mxu0 %v2708
        %2728 = vmatprep.subr.mxu0 0.0
        %2729 = vmatpush1.msra.mxu0 %v2709
        %2730 = vmatprep.subr.mxu0 0.0
        %2731 = vmatpush1.msra.mxu0 %v2710
        %2732 = vmatprep.subr.mxu0 0.0
        %2733 = vmatpush1.msra.mxu0 %v2711
        %2734 = vmatprep.subr.mxu0 0.0
        %2735 = vmatpush1.msra.mxu0 %v2712
        %2736 = vmatprep.subr.mxu0 0.0
        %2737 = vmatpush1.msra.mxu0 %v2713
        %2738 = vmatprep.subr.mxu0 0.0
        %2739 = vmatpush1.msra.mxu0 %v2714
        %2740 = vmatprep.subr.mxu0 0.0
        %2741 = vmatpush1.msra.mxu0 %v2715
        %2742 = vmatprep.subr.mxu0 0.0
        %2743 = vmatpush1.msra.mxu0 %v2716
        %2744 = vmatprep.subr.mxu0 0.0
        %2745 = vmatpush1.msra.mxu0 %v2717
        %2746 = vmatprep.subr.mxu0 0.0
        %2747 = vmatpush1.msra.mxu0 %v2718
        %2748 = vmatprep.subr.mxu0 0.0
        %2749 = vmatpush1.msra.mxu0 %v2719
        %2750 = vmatprep.subr.mxu0 0.0
        %2751 = vmatpush1.msra.mxu0 %v2720
        %2752 = vmatprep.subr.mxu0 0.0
        %2753 = vmatpush1.msra.mxu0 %v2721
        %2754 = vmatprep.subr.mxu0 0.0
        %2755 = vmatpush1.msra.mxu0 0.0
        %2756 = vmatprep.subr.mxu0 0.0
        %2757 = vmatpush1.msra.mxu0 0.0
        %2758 = vmatprep.subr.mxu0 0.0
        %2759 = vmatpush1.msra.mxu0 0.0
        %2760 = vmatprep.subr.mxu0 0.0
        %2761 = vmatpush1.msra.mxu0 0.0
        %2762 = vmatprep.subr.mxu0 0.0
        %2763 = vmatpush1.msra.mxu0 0.0
        %2764 = vmatprep.subr.mxu0 0.0
        %2765 = vmatpush1.msra.mxu0 0.0
        %2766 = vmatprep.subr.mxu0 0.0
        %2767 = vmatpush1.msra.mxu0 0.0
        %2768 = vmatprep.subr.mxu0 0.0
        %2769 = vmatpush1.msra.mxu0 0.0
        %2770 = vmatprep.subr.mxu0 0.0
        %2771 = vmatpush1.msra.mxu0 0.0
        %2772 = vmatprep.subr.mxu0 0.0
        %2773 = vmatpush1.msra.mxu0 0.0
        %2774 = vmatprep.subr.mxu0 0.0
        %2775 = vmatpush1.msra.mxu0 0.0
        %2776 = vmatprep.subr.mxu0 0.0
        %2777 = vmatpush1.msra.mxu0 0.0
        %2778 = vmatprep.subr.mxu0 0.0
        %2779 = vmatpush1.msra.mxu0 0.0
        %2780 = vmatprep.subr.mxu0 0.0
        %2781 = vmatpush1.msra.mxu0 0.0
        %2782 = vmatprep.subr.mxu0 0.0
        %2783 = vmatpush1.msra.mxu0 0.0
        %2784 = vmatprep.subr.mxu0 0.0
        %2785 = vmatpush1.msra.mxu0 0.0
        %2786 = vmatprep.mubr.f32.mxu0 0.0
        %2787 = vmatmul.mubr.f32.gmra.mrb[0].mxu0 %v1746
        %v2788 = vpop.f32.mrb[0].mxu0
        %v2789 = vadd.f32 0.0, %v2788
        %v2790 = vpop.f32.mrb[0].mxu0
        %2791 = vmatprep.mubr.f32.mxu0 0.0
        %2792 = vmatmul.mubr.f32.gmra.mrb[0].mxu0 %v1748
        %v2793 = vpop.f32.mrb[0].mxu0
        %v2794 = vadd.f32 0.0, %v2793
        %v2795 = vpop.f32.mrb[0].mxu0
        %2796 = vmatprep.mubr.f32.mxu0 0.0
        %2797 = vmatmul.mubr.f32.gmra.mrb[0].mxu0 %v1750
        %v2798 = vpop.f32.mrb[0].mxu0
        %v2799 = vadd.f32 0.0, %v2798
        %v2800 = vpop.f32.mrb[0].mxu0
        %2801 = vmatprep.mubr.f32.mxu0 0.0
        %2802 = vmatmul.mubr.f32.gmra.mrb[0].mxu0 %v1752
        %v2803 = vpop.f32.mrb[0].mxu0
        %v2804 = vadd.f32 0.0, %v2803
        %v2805 = vpop.f32.mrb[0].mxu0
        %2806 = vmatprep.mubr.f32.mxu0 0.0
        %2807 = vmatmul.mubr.f32.gmra.mrb[0].mxu0 %v1754
        %v2808 = vpop.f32.mrb[0].mxu0
        %v2809 = vadd.f32 0.0, %v2808
        %v2810 = vpop.f32.mrb[0].mxu0
        %2811 = vmatprep.mubr.f32.mxu0 0.0
        %2812 = vmatmul.mubr.f32.gmra.mrb[0].mxu0 %v1756
        %v2813 = vpop.f32.mrb[0].mxu0
        %v2814 = vadd.f32 0.0, %v2813
        %v2815 = vpop.f32.mrb[0].mxu0
        %2816 = vmatprep.mubr.f32.mxu0 0.0
        %2817 = vmatmul.mubr.f32.gmra.mrb[0].mxu0 %v1758
        %v2818 = vpop.f32.mrb[0].mxu0
        %v2819 = vadd.f32 0.0, %v2818
        %v2820 = vpop.f32.mrb[0].mxu0
        %2821 = vmatprep.mubr.f32.mxu0 0.0
        %2822 = vmatmul.mubr.f32.gmra.mrb[0].mxu0 %v1760
        %v2823 = vpop.f32.mrb[0].mxu0
        %v2824 = vadd.f32 0.0, %v2823
        %v2825 = vpop.f32.mrb[0].mxu0
        %2826 = vmatprep.mubr.f32.mxu0 0.0
        %2827 = vmatmul.mubr.f32.gmra.mrb[0].mxu0 %v1762
        %v2828 = vpop.f32.mrb[0].mxu0
        %v2829 = vadd.f32 0.0, %v2828
        %v2830 = vpop.f32.mrb[0].mxu0
        %2831 = vmatprep.mubr.f32.mxu0 0.0
        %2832 = vmatmul.mubr.f32.gmra.mrb[0].mxu0 %v1764
        %v2833 = vpop.f32.mrb[0].mxu0
        %v2834 = vadd.f32 0.0, %v2833
        %v2835 = vpop.f32.mrb[0].mxu0
        %2836 = vmatprep.mubr.f32.mxu0 0.0
        %2837 = vmatmul.mubr.f32.gmra.mrb[0].mxu0 %v1766
        %v2838 = vpop.f32.mrb[0].mxu0
        %v2839 = vadd.f32 0.0, %v2838
        %v2840 = vpop.f32.mrb[0].mxu0
        %2841 = vmatprep.mubr.f32.mxu0 0.0
        %2842 = vmatmul.mubr.f32.gmra.mrb[0].mxu0 %v1768
        %v2843 = vpop.f32.mrb[0].mxu0
        %v2844 = vadd.f32 0.0, %v2843
        %v2845 = vpop.f32.mrb[0].mxu0
        %2846 = vmatprep.mubr.f32.mxu0 0.0
        %2847 = vmatmul.mubr.f32.gmra.mrb[0].mxu0 %v1770
        %v2848 = vpop.f32.mrb[0].mxu0
        %v2849 = vadd.f32 0.0, %v2848
        %v2850 = vpop.f32.mrb[0].mxu0
        %2851 = vmatprep.mubr.f32.mxu0 0.0
        %2852 = vmatmul.mubr.f32.gmra.mrb[0].mxu0 %v1772
        %v2853 = vpop.f32.mrb[0].mxu0
        %v2854 = vadd.f32 0.0, %v2853
        %v2855 = vpop.f32.mrb[0].mxu0
        %2856 = vmatprep.mubr.f32.mxu0 0.0
        %2857 = vmatmul.mubr.f32.gmra.mrb[0].mxu0 %v1774
        %v2858 = vpop.f32.mrb[0].mxu0
        %v2859 = vadd.f32 0.0, %v2858
        %v2860 = vpop.f32.mrb[0].mxu0
        %2861 = vmatprep.mubr.f32.mxu0 0.0
        %2862 = vmatmul.mubr.f32.gmra.mrb[0].mxu0 %v1776
        %v2863 = vpop.f32.mrb[0].mxu0
        %v2864 = vadd.f32 0.0, %v2863
        %v2865 = vpop.f32.mrb[0].mxu0
        %2866 = vmatprep.mubr.f32.mxu0 0.0
        %2867 = vmatmul.mubr.f32.gmra.mrb[0].mxu0 %v1778
        %v2868 = vpop.f32.mrb[0].mxu0
        %v2869 = vadd.f32 0.0, %v2868
        %v2870 = vpop.f32.mrb[0].mxu0
        %2871 = vmatprep.mubr.f32.mxu0 0.0
        %2872 = vmatmul.mubr.f32.gmra.mrb[0].mxu0 %v1780
        %v2873 = vpop.f32.mrb[0].mxu0
        %v2874 = vadd.f32 0.0, %v2873
        %v2875 = vpop.f32.mrb[0].mxu0
        %2876 = vmatprep.mubr.f32.mxu0 0.0
        %2877 = vmatmul.mubr.f32.gmra.mrb[0].mxu0 %v1782
        %v2878 = vpop.f32.mrb[0].mxu0
        %v2879 = vadd.f32 0.0, %v2878
        %v2880 = vpop.f32.mrb[0].mxu0
        %2881 = vmatprep.mubr.f32.mxu0 0.0
        %2882 = vmatmul.mubr.f32.gmra.mrb[0].mxu0 %v1784
        %v2883 = vpop.f32.mrb[0].mxu0
        %v2884 = vadd.f32 0.0, %v2883
        %v2885 = vpop.f32.mrb[0].mxu0
        %2886 = vmatprep.mubr.f32.mxu0 0.0
        %2887 = vmatmul.mubr.f32.gmra.mrb[0].mxu0 %v1786
        %v2888 = vpop.f32.mrb[0].mxu0
        %v2889 = vadd.f32 0.0, %v2888
        %v2890 = vpop.f32.mrb[0].mxu0
        %2891 = vmatprep.mubr.f32.mxu0 0.0
        %2892 = vmatmul.mubr.f32.gmra.mrb[0].mxu0 %v1788
        %v2893 = vpop.f32.mrb[0].mxu0
        %v2894 = vadd.f32 0.0, %v2893
        %v2895 = vpop.f32.mrb[0].mxu0
        %2896 = vmatprep.mubr.f32.mxu0 0.0
        %2897 = vmatmul.mubr.f32.gmra.mrb[0].mxu0 %v1790
        %v2898 = vpop.f32.mrb[0].mxu0
        %v2899 = vadd.f32 0.0, %v2898
        %v2900 = vpop.f32.mrb[0].mxu0
        %2901 = vmatprep.mubr.f32.mxu0 0.0
        %2902 = vmatmul.mubr.f32.gmra.mrb[0].mxu0 %v1792
        %v2903 = vpop.f32.mrb[0].mxu0
        %v2904 = vadd.f32 0.0, %v2903
        %v2905 = vpop.f32.mrb[0].mxu0
        %2906 = vmatprep.mubr.f32.mxu0 0.0
        %2907 = vmatmul.mubr.f32.gmra.mrb[0].mxu0 %v1794
        %v2908 = vpop.f32.mrb[0].mxu0
        %v2909 = vadd.f32 0.0, %v2908
        %v2910 = vpop.f32.mrb[0].mxu0
        %2911 = vmatprep.mubr.f32.mxu0 0.0
        %2912 = vmatmul.mubr.f32.gmra.mrb[0].mxu0 %v1796
        %v2913 = vpop.f32.mrb[0].mxu0
        %v2914 = vadd.f32 0.0, %v2913
        %v2915 = vpop.f32.mrb[0].mxu0
        %2916 = vmatprep.mubr.f32.mxu0 0.0
        %2917 = vmatmul.mubr.f32.gmra.mrb[0].mxu0 %v1798
        %v2918 = vpop.f32.mrb[0].mxu0
        %v2919 = vadd.f32 0.0, %v2918
        %v2920 = vpop.f32.mrb[0].mxu0
        %2921 = vmatprep.mubr.f32.mxu0 0.0
        %2922 = vmatmul.mubr.f32.gmra.mrb[0].mxu0 %v1800
        %v2923 = vpop.f32.mrb[0].mxu0
        %v2924 = vadd.f32 0.0, %v2923
        %v2925 = vpop.f32.mrb[0].mxu0
        %2926 = vmatprep.mubr.f32.mxu0 0.0
        %2927 = vmatmul.mubr.f32.gmra.mrb[0].mxu0 %v1802
        %v2928 = vpop.f32.mrb[0].mxu0
        %v2929 = vadd.f32 0.0, %v2928
        %v2930 = vpop.f32.mrb[0].mxu0
        %2931 = vmatprep.mubr.f32.mxu0 0.0
        %2932 = vmatmul.mubr.f32.gmra.mrb[0].mxu0 %v1804
        %v2933 = vpop.f32.mrb[0].mxu0
        %v2934 = vadd.f32 0.0, %v2933
        %v2935 = vpop.f32.mrb[0].mxu0
        %2936 = vmatprep.mubr.f32.mxu0 0.0
        %2937 = vmatmul.mubr.f32.gmra.mrb[0].mxu0 %v1806
        %v2938 = vpop.f32.mrb[0].mxu0
        %v2939 = vadd.f32 0.0, %v2938
        %v2940 = vpop.f32.mrb[0].mxu0
        %2941 = vmatprep.mubr.f32.mxu0 0.0
        %2942 = vmatmul.mubr.f32.gmra.mrb[0].mxu0 %v1808
        %v2943 = vpop.f32.mrb[0].mxu0
        %v2944 = vadd.f32 0.0, %v2943
        %v2945 = vpop.f32.mrb[0].mxu0
        %2946 = vmatprep.mubr.f32.mxu0 0.0
        %2947 = vmatmul.mubr.f32.gmra.mrb[0].mxu0 %v1810
        %v2948 = vpop.f32.mrb[0].mxu0
        %v2949 = vadd.f32 0.0, %v2948
        %v2950 = vpop.f32.mrb[0].mxu0
        %2951 = vmatprep.mubr.f32.mxu0 0.0
        %2952 = vmatmul.mubr.f32.gmra.mrb[0].mxu0 %v1812
        %v2953 = vpop.f32.mrb[0].mxu0
        %v2954 = vadd.f32 0.0, %v2953
        %v2955 = vpop.f32.mrb[0].mxu0
        %2956 = vmatprep.mubr.f32.mxu0 0.0
        %2957 = vmatmul.mubr.f32.gmra.mrb[0].mxu0 %v1814
        %v2958 = vpop.f32.mrb[0].mxu0
        %v2959 = vadd.f32 0.0, %v2958
        %v2960 = vpop.f32.mrb[0].mxu0
        %2961 = vmatprep.mubr.f32.mxu0 0.0
        %2962 = vmatmul.mubr.f32.gmra.mrb[0].mxu0 %v1816
        %v2963 = vpop.f32.mrb[0].mxu0
        %v2964 = vadd.f32 0.0, %v2963
        %v2965 = vpop.f32.mrb[0].mxu0
        %2966 = vmatprep.mubr.f32.mxu0 0.0
        %2967 = vmatmul.mubr.f32.gmra.mrb[0].mxu0 %v1818
        %v2968 = vpop.f32.mrb[0].mxu0
        %v2969 = vadd.f32 0.0, %v2968
        %v2970 = vpop.f32.mrb[0].mxu0
        %2971 = vmatprep.mubr.f32.mxu0 0.0
        %2972 = vmatmul.mubr.f32.gmra.mrb[0].mxu0 %v1820
        %v2973 = vpop.f32.mrb[0].mxu0
        %v2974 = vadd.f32 0.0, %v2973
        %v2975 = vpop.f32.mrb[0].mxu0
        %2976 = vmatprep.mubr.f32.mxu0 0.0
        %2977 = vmatmul.mubr.f32.gmra.mrb[0].mxu0 %v1822
        %v2978 = vpop.f32.mrb[0].mxu0
        %v2979 = vadd.f32 0.0, %v2978
        %v2980 = vpop.f32.mrb[0].mxu0
        %2981 = vmatprep.mubr.f32.mxu0 0.0
        %2982 = vmatmul.mubr.f32.gmra.mrb[0].mxu0 %v1824
        %v2983 = vpop.f32.mrb[0].mxu0
        %v2984 = vadd.f32 0.0, %v2983
        %v2985 = vpop.f32.mrb[0].mxu0
        %2986 = vmatprep.mubr.f32.mxu0 0.0
        %2987 = vmatmul.mubr.f32.gmra.mrb[0].mxu0 %v1826
        %v2988 = vpop.f32.mrb[0].mxu0
        %v2989 = vadd.f32 0.0, %v2988
        %v2990 = vpop.f32.mrb[0].mxu0
        %2991 = vmatprep.mubr.f32.mxu0 0.0
        %2992 = vmatmul.mubr.f32.gmra.mrb[0].mxu0 %v1828
        %v2993 = vpop.f32.mrb[0].mxu0
        %v2994 = vadd.f32 0.0, %v2993
        %v2995 = vpop.f32.mrb[0].mxu0
        %2996 = vmatprep.mubr.f32.mxu0 0.0
        %2997 = vmatmul.mubr.f32.gmra.mrb[0].mxu0 %v1830
        %v2998 = vpop.f32.mrb[0].mxu0
        %v2999 = vadd.f32 0.0, %v2998
        %v3000 = vpop.f32.mrb[0].mxu0
        %3001 = vmatprep.mubr.f32.mxu0 0.0
        %3002 = vmatmul.mubr.f32.gmra.mrb[0].mxu0 %v1832
        %v3003 = vpop.f32.mrb[0].mxu0
        %v3004 = vadd.f32 0.0, %v3003
        %v3005 = vpop.f32.mrb[0].mxu0
        %3006 = vmatprep.mubr.f32.mxu0 0.0
        %3007 = vmatmul.mubr.f32.gmra.mrb[0].mxu0 %v1834
        %v3008 = vpop.f32.mrb[0].mxu0
        %v3009 = vadd.f32 0.0, %v3008
        %v3010 = vpop.f32.mrb[0].mxu0
        %3011 = vmatprep.mubr.f32.mxu0 0.0
        %3012 = vmatmul.mubr.f32.gmra.mrb[0].mxu0 %v1836
        %v3013 = vpop.f32.mrb[0].mxu0
        %v3014 = vadd.f32 0.0, %v3013
        %v3015 = vpop.f32.mrb[0].mxu0
        %3016 = vmatprep.mubr.f32.mxu0 0.0
        %3017 = vmatmul.mubr.f32.gmra.mrb[0].mxu0 %v1838
        %v3018 = vpop.f32.mrb[0].mxu0
        %v3019 = vadd.f32 0.0, %v3018
        %v3020 = vpop.f32.mrb[0].mxu0
        %3021 = vmatprep.mubr.f32.mxu0 0.0
        %3022 = vmatmul.mubr.f32.gmra.mrb[0].mxu0 %v1840
        %v3023 = vpop.f32.mrb[0].mxu0
        %v3024 = vadd.f32 0.0, %v3023
        %v3025 = vpop.f32.mrb[0].mxu0
        %3026 = vmatprep.mubr.f32.mxu0 0.0
        %3027 = vmatmul.mubr.f32.gmra.mrb[0].mxu0 %v1842
        %v3028 = vpop.f32.mrb[0].mxu0
        %v3029 = vadd.f32 0.0, %v3028
        %v3030 = vpop.f32.mrb[0].mxu0
        %3031 = vmatprep.mubr.f32.mxu0 0.0
        %3032 = vmatmul.mubr.f32.gmra.mrb[0].mxu0 %v1844
        %v3033 = vpop.f32.mrb[0].mxu0
        %v3034 = vadd.f32 0.0, %v3033
        %v3035 = vpop.f32.mrb[0].mxu0
        %3036 = vmatprep.mubr.f32.mxu0 0.0
        %3037 = vmatmul.mubr.f32.gmra.mrb[0].mxu0 %v1846
        %v3038 = vpop.f32.mrb[0].mxu0
        %v3039 = vadd.f32 0.0, %v3038
        %v3040 = vpop.f32.mrb[0].mxu0
        %3041 = vmatprep.mubr.f32.mxu0 0.0
        %3042 = vmatmul.mubr.f32.gmra.mrb[0].mxu0 %v1848
        %v3043 = vpop.f32.mrb[0].mxu0
        %v3044 = vadd.f32 0.0, %v3043
        %v3045 = vpop.f32.mrb[0].mxu0
        %3046 = vmatprep.mubr.f32.mxu0 0.0
        %3047 = vmatmul.mubr.f32.gmra.mrb[0].mxu0 %v1850
        %v3048 = vpop.f32.mrb[0].mxu0
        %v3049 = vadd.f32 0.0, %v3048
        %v3050 = vpop.f32.mrb[0].mxu0
        %3051 = vmatprep.mubr.f32.mxu0 0.0
        %3052 = vmatmul.mubr.f32.gmra.mrb[0].mxu0 %v1852
        %v3053 = vpop.f32.mrb[0].mxu0
        %v3054 = vadd.f32 0.0, %v3053
        %v3055 = vpop.f32.mrb[0].mxu0
        %3056 = vmatprep.mubr.f32.mxu0 0.0
        %3057 = vmatmul.mubr.f32.gmra.mrb[0].mxu0 %v1854
        %v3058 = vpop.f32.mrb[0].mxu0
        %v3059 = vadd.f32 0.0, %v3058
        %v3060 = vpop.f32.mrb[0].mxu0
        %3061 = vmatprep.mubr.f32.mxu0 0.0
        %3062 = vmatmul.mubr.f32.gmra.mrb[0].mxu0 %v1856
        %v3063 = vpop.f32.mrb[0].mxu0
        %v3064 = vadd.f32 0.0, %v3063
        %v3065 = vpop.f32.mrb[0].mxu0
        %3066 = vmatprep.mubr.f32.mxu0 0.0
        %3067 = vmatmul.mubr.f32.gmra.mrb[0].mxu0 %v1858
        %v3068 = vpop.f32.mrb[0].mxu0
        %v3069 = vadd.f32 0.0, %v3068
        %v3070 = vpop.f32.mrb[0].mxu0
        %3071 = vmatprep.mubr.f32.mxu0 0.0
        %3072 = vmatmul.mubr.f32.gmra.mrb[0].mxu0 %v1860
        %v3073 = vpop.f32.mrb[0].mxu0
        %v3074 = vadd.f32 0.0, %v3073
        %v3075 = vpop.f32.mrb[0].mxu0
        %3076 = vmatprep.mubr.f32.mxu0 0.0
        %3077 = vmatmul.mubr.f32.gmra.mrb[0].mxu0 %v1862
        %v3078 = vpop.f32.mrb[0].mxu0
        %v3079 = vadd.f32 0.0, %v3078
        %v3080 = vpop.f32.mrb[0].mxu0
        %3081 = vmatprep.mubr.f32.mxu0 0.0
        %3082 = vmatmul.mubr.f32.gmra.mrb[0].mxu0 %v1864
        %v3083 = vpop.f32.mrb[0].mxu0
        %v3084 = vadd.f32 0.0, %v3083
        %v3085 = vpop.f32.mrb[0].mxu0
        %3086 = vmatprep.mubr.f32.mxu0 0.0
        %3087 = vmatmul.mubr.f32.gmra.mrb[0].mxu0 %v1866
        %v3088 = vpop.f32.mrb[0].mxu0
        %v3089 = vadd.f32 0.0, %v3088
        %v3090 = vpop.f32.mrb[0].mxu0
        %3091 = vmatprep.mubr.f32.mxu0 0.0
        %3092 = vmatmul.mubr.f32.gmra.mrb[0].mxu0 %v1868
        %v3093 = vpop.f32.mrb[0].mxu0
        %v3094 = vadd.f32 0.0, %v3093
        %v3095 = vpop.f32.mrb[0].mxu0
        %3096 = vmatprep.mubr.f32.mxu0 0.0
        %3097 = vmatmul.mubr.f32.gmra.mrb[0].mxu0 %v1870
        %v3098 = vpop.f32.mrb[0].mxu0
        %v3099 = vadd.f32 0.0, %v3098
        %v3100 = vpop.f32.mrb[0].mxu0
        %3101 = vmatprep.mubr.f32.mxu0 0.0
        %3102 = vmatmul.mubr.f32.gmra.mrb[0].mxu0 %v1872
        %v3103 = vpop.f32.mrb[0].mxu0
        %v3104 = vadd.f32 0.0, %v3103
        %v3105 = vpop.f32.mrb[0].mxu0
        %3106 = vdwg.mxu0
        %v3107 = vadd.f32 %v2642, %v2789
        %v3108 = vadd.f32 %v2643, %v2794
        %v3109 = vadd.f32 %v2644, %v2799
        %v3110 = vadd.f32 %v2645, %v2804
        %v3111 = vadd.f32 %v2646, %v2809
        %v3112 = vadd.f32 %v2647, %v2814
        %v3113 = vadd.f32 %v2648, %v2819
        %v3114 = vadd.f32 %v2649, %v2824
        %v3115 = vadd.f32 %v2650, %v2829
        %v3116 = vadd.f32 %v2651, %v2834
        %v3117 = vadd.f32 %v2652, %v2839
        %v3118 = vadd.f32 %v2653, %v2844
        %v3119 = vadd.f32 %v2654, %v2849
        %v3120 = vadd.f32 %v2655, %v2854
        %v3121 = vadd.f32 %v2656, %v2859
        %v3122 = vadd.f32 %v2657, %v2864
        %v3123 = vadd.f32 %v2658, %v2869
        %v3124 = vadd.f32 %v2659, %v2874
        %v3125 = vadd.f32 %v2660, %v2879
        %v3126 = vadd.f32 %v2661, %v2884
        %v3127 = vadd.f32 %v2662, %v2889
        %v3128 = vadd.f32 %v2663, %v2894
        %v3129 = vadd.f32 %v2664, %v2899
        %v3130 = vadd.f32 %v2665, %v2904
        %v3131 = vadd.f32 %v2666, %v2909
        %v3132 = vadd.f32 %v2667, %v2914
        %v3133 = vadd.f32 %v2668, %v2919
        %v3134 = vadd.f32 %v2669, %v2924
        %v3135 = vadd.f32 %v2670, %v2929
        %v3136 = vadd.f32 %v2671, %v2934
        %v3137 = vadd.f32 %v2672, %v2939
        %v3138 = vadd.f32 %v2673, %v2944
        %v3139 = vadd.f32 %v2674, %v2949
        %v3140 = vadd.f32 %v2675, %v2954
        %v3141 = vadd.f32 %v2676, %v2959
        %v3142 = vadd.f32 %v2677, %v2964
        %v3143 = vadd.f32 %v2678, %v2969
        %v3144 = vadd.f32 %v2679, %v2974
        %v3145 = vadd.f32 %v2680, %v2979
        %v3146 = vadd.f32 %v2681, %v2984
        %v3147 = vadd.f32 %v2682, %v2989
        %v3148 = vadd.f32 %v2683, %v2994
        %v3149 = vadd.f32 %v2684, %v2999
        %v3150 = vadd.f32 %v2685, %v3004
        %v3151 = vadd.f32 %v2686, %v3009
        %v3152 = vadd.f32 %v2687, %v3014
        %v3153 = vadd.f32 %v2688, %v3019
        %v3154 = vadd.f32 %v2689, %v3024
        %v3155 = vadd.f32 %v2690, %v3029
        %v3156 = vadd.f32 %v2691, %v3034
        %v3157 = vadd.f32 %v2692, %v3039
        %v3158 = vadd.f32 %v2693, %v3044
        %v3159 = vadd.f32 %v2694, %v3049
        %v3160 = vadd.f32 %v2695, %v3054
        %v3161 = vadd.f32 %v2696, %v3059
        %v3162 = vadd.f32 %v2697, %v3064
        %v3163 = vadd.f32 %v2698, %v3069
        %v3164 = vadd.f32 %v2699, %v3074
        %v3165 = vadd.f32 %v2700, %v3079
        %v3166 = vadd.f32 %v2701, %v3084
        %v3167 = vadd.f32 %v2702, %v3089
        %v3168 = vadd.f32 %v2703, %v3094
        %v3169 = vadd.f32 %v2704, %v3099
        %v3170 = vadd.f32 %v2705, %v3104
        %vm3171 = vcmask 130048
        %3172 = vst.msk [vmem:[#allocation4] sm:$0xff] %vm3171, %v3107
        %3173 = vst.msk [vmem:[#allocation4 + $0x8] sm:$0xff] %vm3171, %v3108
        %3174 = vst.msk [vmem:[#allocation4 + $0x10] sm:$0xff] %vm3171, %v3109
        %3175 = vst.msk [vmem:[#allocation4 + $0x18] sm:$0xff] %vm3171, %v3110
        %3176 = vst.msk [vmem:[#allocation4 + $0x20] sm:$0xff] %vm3171, %v3111
        %3177 = vst.msk [vmem:[#allocation4 + $0x28] sm:$0xff] %vm3171, %v3112
        %3178 = vst.msk [vmem:[#allocation4 + $0x30] sm:$0xff] %vm3171, %v3113
        %3179 = vst.msk [vmem:[#allocation4 + $0x38] sm:$0xff] %vm3171, %v3114
        %3180 = vst.msk [vmem:[#allocation4 + $0x40] sm:$0xff] %vm3171, %v3115
        %3181 = vst.msk [vmem:[#allocation4 + $0x48] sm:$0xff] %vm3171, %v3116
        %3182 = vst.msk [vmem:[#allocation4 + $0x50] sm:$0xff] %vm3171, %v3117
        %3183 = vst.msk [vmem:[#allocation4 + $0x58] sm:$0xff] %vm3171, %v3118
        %3184 = vst.msk [vmem:[#allocation4 + $0x60] sm:$0xff] %vm3171, %v3119
        %3185 = vst.msk [vmem:[#allocation4 + $0x68] sm:$0xff] %vm3171, %v3120
        %3186 = vst.msk [vmem:[#allocation4 + $0x70] sm:$0xff] %vm3171, %v3121
        %3187 = vst.msk [vmem:[#allocation4 + $0x78] sm:$0xff] %vm3171, %v3122
        %3188 = vst.msk [vmem:[#allocation4 + $0x80] sm:$0xff] %vm3171, %v3123
        %3189 = vst.msk [vmem:[#allocation4 + $0x88] sm:$0xff] %vm3171, %v3124
        %3190 = vst.msk [vmem:[#allocation4 + $0x90] sm:$0xff] %vm3171, %v3125
        %3191 = vst.msk [vmem:[#allocation4 + $0x98] sm:$0xff] %vm3171, %v3126
        %3192 = vst.msk [vmem:[#allocation4 + $0xa0] sm:$0xff] %vm3171, %v3127
        %3193 = vst.msk [vmem:[#allocation4 + $0xa8] sm:$0xff] %vm3171, %v3128
        %3194 = vst.msk [vmem:[#allocation4 + $0xb0] sm:$0xff] %vm3171, %v3129
        %3195 = vst.msk [vmem:[#allocation4 + $0xb8] sm:$0xff] %vm3171, %v3130
        %3196 = vst.msk [vmem:[#allocation4 + $0xc0] sm:$0xff] %vm3171, %v3131
        %3197 = vst.msk [vmem:[#allocation4 + $0xc8] sm:$0xff] %vm3171, %v3132
        %3198 = vst.msk [vmem:[#allocation4 + $0xd0] sm:$0xff] %vm3171, %v3133
        %3199 = vst.msk [vmem:[#allocation4 + $0xd8] sm:$0xff] %vm3171, %v3134
        %3200 = vst.msk [vmem:[#allocation4 + $0xe0] sm:$0xff] %vm3171, %v3135
        %3201 = vst.msk [vmem:[#allocation4 + $0xe8] sm:$0xff] %vm3171, %v3136
        %3202 = vst.msk [vmem:[#allocation4 + $0xf0] sm:$0xff] %vm3171, %v3137
        %3203 = vst.msk [vmem:[#allocation4 + $0xf8] sm:$0xff] %vm3171, %v3138
        %3204 = vst.msk [vmem:[#allocation4 + $0x100] sm:$0xff] %vm3171, %v3139
        %3205 = vst.msk [vmem:[#allocation4 + $0x108] sm:$0xff] %vm3171, %v3140
        %3206 = vst.msk [vmem:[#allocation4 + $0x110] sm:$0xff] %vm3171, %v3141
        %3207 = vst.msk [vmem:[#allocation4 + $0x118] sm:$0xff] %vm3171, %v3142
        %3208 = vst.msk [vmem:[#allocation4 + $0x120] sm:$0xff] %vm3171, %v3143
        %3209 = vst.msk [vmem:[#allocation4 + $0x128] sm:$0xff] %vm3171, %v3144
        %3210 = vst.msk [vmem:[#allocation4 + $0x130] sm:$0xff] %vm3171, %v3145
        %3211 = vst.msk [vmem:[#allocation4 + $0x138] sm:$0xff] %vm3171, %v3146
        %3212 = vst.msk [vmem:[#allocation4 + $0x140] sm:$0xff] %vm3171, %v3147
        %3213 = vst.msk [vmem:[#allocation4 + $0x148] sm:$0xff] %vm3171, %v3148
        %3214 = vst.msk [vmem:[#allocation4 + $0x150] sm:$0xff] %vm3171, %v3149
        %3215 = vst.msk [vmem:[#allocation4 + $0x158] sm:$0xff] %vm3171, %v3150
        %3216 = vst.msk [vmem:[#allocation4 + $0x160] sm:$0xff] %vm3171, %v3151
        %3217 = vst.msk [vmem:[#allocation4 + $0x168] sm:$0xff] %vm3171, %v3152
        %3218 = vst.msk [vmem:[#allocation4 + $0x170] sm:$0xff] %vm3171, %v3153
        %3219 = vst.msk [vmem:[#allocation4 + $0x178] sm:$0xff] %vm3171, %v3154
        %3220 = vst.msk [vmem:[#allocation4 + $0x180] sm:$0xff] %vm3171, %v3155
        %3221 = vst.msk [vmem:[#allocation4 + $0x188] sm:$0xff] %vm3171, %v3156
        %3222 = vst.msk [vmem:[#allocation4 + $0x190] sm:$0xff] %vm3171, %v3157
        %3223 = vst.msk [vmem:[#allocation4 + $0x198] sm:$0xff] %vm3171, %v3158
        %3224 = vst.msk [vmem:[#allocation4 + $0x1a0] sm:$0xff] %vm3171, %v3159
        %3225 = vst.msk [vmem:[#allocation4 + $0x1a8] sm:$0xff] %vm3171, %v3160
        %3226 = vst.msk [vmem:[#allocation4 + $0x1b0] sm:$0xff] %vm3171, %v3161
        %3227 = vst.msk [vmem:[#allocation4 + $0x1b8] sm:$0xff] %vm3171, %v3162
        %3228 = vst.msk [vmem:[#allocation4 + $0x1c0] sm:$0xff] %vm3171, %v3163
        %3229 = vst.msk [vmem:[#allocation4 + $0x1c8] sm:$0xff] %vm3171, %v3164
        %3230 = vst.msk [vmem:[#allocation4 + $0x1d0] sm:$0xff] %vm3171, %v3165
        %3231 = vst.msk [vmem:[#allocation4 + $0x1d8] sm:$0xff] %vm3171, %v3166
        %3232 = vst.msk [vmem:[#allocation4 + $0x1e0] sm:$0xff] %vm3171, %v3167
        %3233 = vst.msk [vmem:[#allocation4 + $0x1e8] sm:$0xff] %vm3171, %v3168
        %3234 = vst.msk [vmem:[#allocation4 + $0x1f0] sm:$0xff] %vm3171, %v3169
        %3235 = vst.msk [vmem:[#allocation4 + $0x1f8] sm:$0xff] %vm3171, %v3170
        %3236 = vst.msk [vmem:[#allocation2] sm:$0xff] %vm2193, %v1105
        %3237 = vst.msk [vmem:[#allocation2 + $0x8] sm:$0xff] %vm2193, %v1106
        %3238 = vst.msk [vmem:[#allocation2 + $0x10] sm:$0xff] %vm2193, %v1107
        %3239 = vst.msk [vmem:[#allocation2 + $0x18] sm:$0xff] %vm2193, %v1108
        %3240 = vst.msk [vmem:[#allocation2 + $0x20] sm:$0xff] %vm2193, %v1109
        %3241 = vst.msk [vmem:[#allocation2 + $0x28] sm:$0xff] %vm2193, %v1110
        %3242 = vst.msk [vmem:[#allocation2 + $0x30] sm:$0xff] %vm2193, %v1111
        %3243 = vst.msk [vmem:[#allocation2 + $0x38] sm:$0xff] %vm2193, %v1112
        %3244 = vst.msk [vmem:[#allocation2 + $0x40] sm:$0xff] %vm2193, %v1113
        %3245 = vst.msk [vmem:[#allocation2 + $0x48] sm:$0xff] %vm2193, %v1114
        %3246 = vst.msk [vmem:[#allocation2 + $0x50] sm:$0xff] %vm2193, %v1115
        %3247 = vst.msk [vmem:[#allocation2 + $0x58] sm:$0xff] %vm2193, %v1116
        %3248 = vst.msk [vmem:[#allocation2 + $0x60] sm:$0xff] %vm2193, %v1117
        %3249 = vst.msk [vmem:[#allocation2 + $0x68] sm:$0xff] %vm2193, %v1118
        %3250 = vst.msk [vmem:[#allocation2 + $0x70] sm:$0xff] %vm2193, %v1119
        %3251 = vst.msk [vmem:[#allocation2 + $0x78] sm:$0xff] %vm2193, %v1120
        %3252 = vst.msk [vmem:[#allocation2 + $0x80] sm:$0xff] %vm2193, %v1121
        %3253 = vst.msk [vmem:[#allocation2 + $0x88] sm:$0xff] %vm2193, %v1122
        %3254 = vst.msk [vmem:[#allocation2 + $0x90] sm:$0xff] %vm2193, %v1123
        %3255 = vst.msk [vmem:[#allocation2 + $0x98] sm:$0xff] %vm2193, %v1124
        %3256 = vst.msk [vmem:[#allocation2 + $0xa0] sm:$0xff] %vm2193, %v1125
        %3257 = vst.msk [vmem:[#allocation2 + $0xa8] sm:$0xff] %vm2193, %v1126
        %3258 = vst.msk [vmem:[#allocation2 + $0xb0] sm:$0xff] %vm2193, %v1127
        %3259 = vst.msk [vmem:[#allocation2 + $0xb8] sm:$0xff] %vm2193, %v1128
        %3260 = vst.msk [vmem:[#allocation2 + $0xc0] sm:$0xff] %vm2193, %v1129
        %3261 = vst.msk [vmem:[#allocation2 + $0xc8] sm:$0xff] %vm2193, %v1130
        %3262 = vst.msk [vmem:[#allocation2 + $0xd0] sm:$0xff] %vm2193, %v1131
        %3263 = vst.msk [vmem:[#allocation2 + $0xd8] sm:$0xff] %vm2193, %v1132
        %3264 = vst.msk [vmem:[#allocation2 + $0xe0] sm:$0xff] %vm2193, %v1133
        %3265 = vst.msk [vmem:[#allocation2 + $0xe8] sm:$0xff] %vm2193, %v1134
        %3266 = vst.msk [vmem:[#allocation2 + $0xf0] sm:$0xff] %vm2193, %v1135
        %3267 = vst.msk [vmem:[#allocation2 + $0xf8] sm:$0xff] %vm2193, %v1136
        %3268 = vst.msk [vmem:[#allocation2 + $0x100] sm:$0xff] %vm2193, %v1137
        %3269 = vst.msk [vmem:[#allocation2 + $0x108] sm:$0xff] %vm2193, %v1138
        %3270 = vst.msk [vmem:[#allocation2 + $0x110] sm:$0xff] %vm2193, %v1139
        %3271 = vst.msk [vmem:[#allocation2 + $0x118] sm:$0xff] %vm2193, %v1140
        %3272 = vst.msk [vmem:[#allocation2 + $0x120] sm:$0xff] %vm2193, %v1141
        %3273 = vst.msk [vmem:[#allocation2 + $0x128] sm:$0xff] %vm2193, %v1142
        %3274 = vst.msk [vmem:[#allocation2 + $0x130] sm:$0xff] %vm2193, %v1143
        %3275 = vst.msk [vmem:[#allocation2 + $0x138] sm:$0xff] %vm2193, %v1144
        %3276 = vst.msk [vmem:[#allocation2 + $0x140] sm:$0xff] %vm2193, %v1145
        %3277 = vst.msk [vmem:[#allocation2 + $0x148] sm:$0xff] %vm2193, %v1146
        %3278 = vst.msk [vmem:[#allocation2 + $0x150] sm:$0xff] %vm2193, %v1147
        %3279 = vst.msk [vmem:[#allocation2 + $0x158] sm:$0xff] %vm2193, %v1148
        %3280 = vst.msk [vmem:[#allocation2 + $0x160] sm:$0xff] %vm2193, %v1149
        %3281 = vst.msk [vmem:[#allocation2 + $0x168] sm:$0xff] %vm2193, %v1150
        %3282 = vst.msk [vmem:[#allocation2 + $0x170] sm:$0xff] %vm2193, %v1151
        %3283 = vst.msk [vmem:[#allocation2 + $0x178] sm:$0xff] %vm2193, %v1152
        %3284 = vst.msk [vmem:[#allocation2 + $0x180] sm:$0xff] %vm2193, %v1153
        %3285 = vst.msk [vmem:[#allocation2 + $0x188] sm:$0xff] %vm2193, %v1154
        %3286 = vst.msk [vmem:[#allocation2 + $0x190] sm:$0xff] %vm2193, %v1155
        %3287 = vst.msk [vmem:[#allocation2 + $0x198] sm:$0xff] %vm2193, %v1156
        %3288 = vst.msk [vmem:[#allocation2 + $0x1a0] sm:$0xff] %vm2193, %v1157
        %3289 = vst.msk [vmem:[#allocation2 + $0x1a8] sm:$0xff] %vm2193, %v1158
        %3290 = vst.msk [vmem:[#allocation2 + $0x1b0] sm:$0xff] %vm2193, %v1159
        %3291 = vst.msk [vmem:[#allocation2 + $0x1b8] sm:$0xff] %vm2193, %v1160
        %3292 = vst.msk [vmem:[#allocation2 + $0x1c0] sm:$0xff] %vm2193, %v1161
        %3293 = vst.msk [vmem:[#allocation2 + $0x1c8] sm:$0xff] %vm2193, %v1162
        %3294 = vst.msk [vmem:[#allocation2 + $0x1d0] sm:$0xff] %vm2193, %v1163
        %3295 = vst.msk [vmem:[#allocation2 + $0x1d8] sm:$0xff] %vm2193, %v1164
        %3296 = vst.msk [vmem:[#allocation2 + $0x1e0] sm:$0xff] %vm2193, %v1165
        %3297 = vst.msk [vmem:[#allocation2 + $0x1e8] sm:$0xff] %vm2193, %v1166
        %3298 = vst.msk [vmem:[#allocation2 + $0x1f0] sm:$0xff] %vm2193, %v1167
        %3299 = vst.msk [vmem:[#allocation2 + $0x1f8] sm:$0xff] %vm2193, %v1168
      $region44: #{_forward_static.3} parent=35 // pred_fallthru
        _
      %p3300 = scmp.eq.s32.totalorder %s22, 3
      // Predicated region
      $region45: #{_forward_static.3} parent=35 // pred_check
        %p3301 = pneg %p3300
      $region46: #{_forward_static.3} parent=35 // pred_check_branch
        %3303 = sbr.rel (%p3301) target = $region48
      $region47: #{_forward_static.3} parent=35 // pred_region
        %v3304 = vld [vmem:[#allocation3] sm:$0xff]
        %v3305 = vld [vmem:[#allocation3 + $0x8] sm:$0xff]
        %v3306 = vld [vmem:[#allocation3 + $0x10] sm:$0xff]
        %v3307 = vld [vmem:[#allocation3 + $0x18] sm:$0xff]
        %v3308 = vld [vmem:[#allocation3 + $0x20] sm:$0xff]
        %v3309 = vld [vmem:[#allocation3 + $0x28] sm:$0xff]
        %v3310 = vld [vmem:[#allocation3 + $0x30] sm:$0xff]
        %v3311 = vld [vmem:[#allocation3 + $0x38] sm:$0xff]
        %v3312 = vld [vmem:[#allocation3 + $0x40] sm:$0xff]
        %v3313 = vld [vmem:[#allocation3 + $0x48] sm:$0xff]
        %v3314 = vld [vmem:[#allocation3 + $0x50] sm:$0xff]
        %v3315 = vld [vmem:[#allocation3 + $0x58] sm:$0xff]
        %v3316 = vld [vmem:[#allocation3 + $0x60] sm:$0xff]
        %v3317 = vld [vmem:[#allocation3 + $0x68] sm:$0xff]
        %v3318 = vld [vmem:[#allocation3 + $0x70] sm:$0xff]
        %v3319 = vld [vmem:[#allocation3 + $0x78] sm:$0xff]
        %v3320 = vld [vmem:[#allocation3 + $0x80] sm:$0xff]
        %v3321 = vld [vmem:[#allocation3 + $0x88] sm:$0xff]
        %v3322 = vld [vmem:[#allocation3 + $0x90] sm:$0xff]
        %v3323 = vld [vmem:[#allocation3 + $0x98] sm:$0xff]
        %v3324 = vld [vmem:[#allocation3 + $0xa0] sm:$0xff]
        %v3325 = vld [vmem:[#allocation3 + $0xa8] sm:$0xff]
        %v3326 = vld [vmem:[#allocation3 + $0xb0] sm:$0xff]
        %v3327 = vld [vmem:[#allocation3 + $0xb8] sm:$0xff]
        %v3328 = vld [vmem:[#allocation3 + $0xc0] sm:$0xff]
        %v3329 = vld [vmem:[#allocation3 + $0xc8] sm:$0xff]
        %v3330 = vld [vmem:[#allocation3 + $0xd0] sm:$0xff]
        %v3331 = vld [vmem:[#allocation3 + $0xd8] sm:$0xff]
        %v3332 = vld [vmem:[#allocation3 + $0xe0] sm:$0xff]
        %v3333 = vld [vmem:[#allocation3 + $0xe8] sm:$0xff]
        %v3334 = vld [vmem:[#allocation3 + $0xf0] sm:$0xff]
        %v3335 = vld [vmem:[#allocation3 + $0xf8] sm:$0xff]
        %v3336 = vld [vmem:[#allocation3 + $0x100] sm:$0xff]
        %v3337 = vld [vmem:[#allocation3 + $0x108] sm:$0xff]
        %v3338 = vld [vmem:[#allocation3 + $0x110] sm:$0xff]
        %v3339 = vld [vmem:[#allocation3 + $0x118] sm:$0xff]
        %v3340 = vld [vmem:[#allocation3 + $0x120] sm:$0xff]
        %v3341 = vld [vmem:[#allocation3 + $0x128] sm:$0xff]
        %v3342 = vld [vmem:[#allocation3 + $0x130] sm:$0xff]
        %v3343 = vld [vmem:[#allocation3 + $0x138] sm:$0xff]
        %v3344 = vld [vmem:[#allocation3 + $0x140] sm:$0xff]
        %v3345 = vld [vmem:[#allocation3 + $0x148] sm:$0xff]
        %v3346 = vld [vmem:[#allocation3 + $0x150] sm:$0xff]
        %v3347 = vld [vmem:[#allocation3 + $0x158] sm:$0xff]
        %v3348 = vld [vmem:[#allocation3 + $0x160] sm:$0xff]
        %v3349 = vld [vmem:[#allocation3 + $0x168] sm:$0xff]
        %v3350 = vld [vmem:[#allocation3 + $0x170] sm:$0xff]
        %v3351 = vld [vmem:[#allocation3 + $0x178] sm:$0xff]
        %v3352 = vld [vmem:[#allocation3 + $0x180] sm:$0xff]
        %v3353 = vld [vmem:[#allocation3 + $0x188] sm:$0xff]
        %v3354 = vld [vmem:[#allocation3 + $0x190] sm:$0xff]
        %v3355 = vld [vmem:[#allocation3 + $0x198] sm:$0xff]
        %v3356 = vld [vmem:[#allocation3 + $0x1a0] sm:$0xff]
        %v3357 = vld [vmem:[#allocation3 + $0x1a8] sm:$0xff]
        %v3358 = vld [vmem:[#allocation3 + $0x1b0] sm:$0xff]
        %v3359 = vld [vmem:[#allocation3 + $0x1b8] sm:$0xff]
        %v3360 = vld [vmem:[#allocation3 + $0x1c0] sm:$0xff]
        %v3361 = vld [vmem:[#allocation3 + $0x1c8] sm:$0xff]
        %v3362 = vld [vmem:[#allocation3 + $0x1d0] sm:$0xff]
        %v3363 = vld [vmem:[#allocation3 + $0x1d8] sm:$0xff]
        %v3364 = vld [vmem:[#allocation3 + $0x1e0] sm:$0xff]
        %v3365 = vld [vmem:[#allocation3 + $0x1e8] sm:$0xff]
        %v3366 = vld [vmem:[#allocation3 + $0x1f0] sm:$0xff]
        %v3367 = vld [vmem:[#allocation3 + $0x1f8] sm:$0xff]
        %v3368 = vmax.f32 %v3304, 1e-20
        %v3369 = vmax.f32 %v3305, 1e-20
        %v3370 = vmax.f32 %v3306, 1e-20
        %v3371 = vmax.f32 %v3307, 1e-20
        %v3372 = vmax.f32 %v3308, 1e-20
        %v3373 = vmax.f32 %v3309, 1e-20
        %v3374 = vmax.f32 %v3310, 1e-20
        %v3375 = vmax.f32 %v3311, 1e-20
        %v3376 = vmax.f32 %v3312, 1e-20
        %v3377 = vmax.f32 %v3313, 1e-20
        %v3378 = vmax.f32 %v3314, 1e-20
        %v3379 = vmax.f32 %v3315, 1e-20
        %v3380 = vmax.f32 %v3316, 1e-20
        %v3381 = vmax.f32 %v3317, 1e-20
        %v3382 = vmax.f32 %v3318, 1e-20
        %v3383 = vmax.f32 %v3319, 1e-20
        %v3384 = vmax.f32 %v3320, 1e-20
        %v3385 = vmax.f32 %v3321, 1e-20
        %v3386 = vmax.f32 %v3322, 1e-20
        %v3387 = vmax.f32 %v3323, 1e-20
        %v3388 = vmax.f32 %v3324, 1e-20
        %v3389 = vmax.f32 %v3325, 1e-20
        %v3390 = vmax.f32 %v3326, 1e-20
        %v3391 = vmax.f32 %v3327, 1e-20
        %v3392 = vmax.f32 %v3328, 1e-20
        %v3393 = vmax.f32 %v3329, 1e-20
        %v3394 = vmax.f32 %v3330, 1e-20
        %v3395 = vmax.f32 %v3331, 1e-20
        %v3396 = vmax.f32 %v3332, 1e-20
        %v3397 = vmax.f32 %v3333, 1e-20
        %v3398 = vmax.f32 %v3334, 1e-20
        %v3399 = vmax.f32 %v3335, 1e-20
        %v3400 = vmax.f32 %v3336, 1e-20
        %v3401 = vmax.f32 %v3337, 1e-20
        %v3402 = vmax.f32 %v3338, 1e-20
        %v3403 = vmax.f32 %v3339, 1e-20
        %v3404 = vmax.f32 %v3340, 1e-20
        %v3405 = vmax.f32 %v3341, 1e-20
        %v3406 = vmax.f32 %v3342, 1e-20
        %v3407 = vmax.f32 %v3343, 1e-20
        %v3408 = vmax.f32 %v3344, 1e-20
        %v3409 = vmax.f32 %v3345, 1e-20
        %v3410 = vmax.f32 %v3346, 1e-20
        %v3411 = vmax.f32 %v3347, 1e-20
        %v3412 = vmax.f32 %v3348, 1e-20
        %v3413 = vmax.f32 %v3349, 1e-20
        %v3414 = vmax.f32 %v3350, 1e-20
        %v3415 = vmax.f32 %v3351, 1e-20
        %v3416 = vmax.f32 %v3352, 1e-20
        %v3417 = vmax.f32 %v3353, 1e-20
        %v3418 = vmax.f32 %v3354, 1e-20
        %v3419 = vmax.f32 %v3355, 1e-20
        %v3420 = vmax.f32 %v3356, 1e-20
        %v3421 = vmax.f32 %v3357, 1e-20
        %v3422 = vmax.f32 %v3358, 1e-20
        %v3423 = vmax.f32 %v3359, 1e-20
        %v3424 = vmax.f32 %v3360, 1e-20
        %v3425 = vmax.f32 %v3361, 1e-20
        %v3426 = vmax.f32 %v3362, 1e-20
        %v3427 = vmax.f32 %v3363, 1e-20
        %v3428 = vmax.f32 %v3364, 1e-20
        %v3429 = vmax.f32 %v3365, 1e-20
        %v3430 = vmax.f32 %v3366, 1e-20
        %v3431 = vmax.f32 %v3367, 1e-20
        %v3432 = vld [vmem:[#allocation4] sm:$0xff]
        %v3433 = vld [vmem:[#allocation4 + $0x8] sm:$0xff]
        %v3434 = vld [vmem:[#allocation4 + $0x10] sm:$0xff]
        %v3435 = vld [vmem:[#allocation4 + $0x18] sm:$0xff]
        %v3436 = vld [vmem:[#allocation4 + $0x20] sm:$0xff]
        %v3437 = vld [vmem:[#allocation4 + $0x28] sm:$0xff]
        %v3438 = vld [vmem:[#allocation4 + $0x30] sm:$0xff]
        %v3439 = vld [vmem:[#allocation4 + $0x38] sm:$0xff]
        %v3440 = vld [vmem:[#allocation4 + $0x40] sm:$0xff]
        %v3441 = vld [vmem:[#allocation4 + $0x48] sm:$0xff]
        %v3442 = vld [vmem:[#allocation4 + $0x50] sm:$0xff]
        %v3443 = vld [vmem:[#allocation4 + $0x58] sm:$0xff]
        %v3444 = vld [vmem:[#allocation4 + $0x60] sm:$0xff]
        %v3445 = vld [vmem:[#allocation4 + $0x68] sm:$0xff]
        %v3446 = vld [vmem:[#allocation4 + $0x70] sm:$0xff]
        %v3447 = vld [vmem:[#allocation4 + $0x78] sm:$0xff]
        %v3448 = vld [vmem:[#allocation4 + $0x80] sm:$0xff]
        %v3449 = vld [vmem:[#allocation4 + $0x88] sm:$0xff]
        %v3450 = vld [vmem:[#allocation4 + $0x90] sm:$0xff]
        %v3451 = vld [vmem:[#allocation4 + $0x98] sm:$0xff]
        %v3452 = vld [vmem:[#allocation4 + $0xa0] sm:$0xff]
        %v3453 = vld [vmem:[#allocation4 + $0xa8] sm:$0xff]
        %v3454 = vld [vmem:[#allocation4 + $0xb0] sm:$0xff]
        %v3455 = vld [vmem:[#allocation4 + $0xb8] sm:$0xff]
        %v3456 = vld [vmem:[#allocation4 + $0xc0] sm:$0xff]
        %v3457 = vld [vmem:[#allocation4 + $0xc8] sm:$0xff]
        %v3458 = vld [vmem:[#allocation4 + $0xd0] sm:$0xff]
        %v3459 = vld [vmem:[#allocation4 + $0xd8] sm:$0xff]
        %v3460 = vld [vmem:[#allocation4 + $0xe0] sm:$0xff]
        %v3461 = vld [vmem:[#allocation4 + $0xe8] sm:$0xff]
        %v3462 = vld [vmem:[#allocation4 + $0xf0] sm:$0xff]
        %v3463 = vld [vmem:[#allocation4 + $0xf8] sm:$0xff]
        %v3464 = vld [vmem:[#allocation4 + $0x100] sm:$0xff]
        %v3465 = vld [vmem:[#allocation4 + $0x108] sm:$0xff]
        %v3466 = vld [vmem:[#allocation4 + $0x110] sm:$0xff]
        %v3467 = vld [vmem:[#allocation4 + $0x118] sm:$0xff]
        %v3468 = vld [vmem:[#allocation4 + $0x120] sm:$0xff]
        %v3469 = vld [vmem:[#allocation4 + $0x128] sm:$0xff]
        %v3470 = vld [vmem:[#allocation4 + $0x130] sm:$0xff]
        %v3471 = vld [vmem:[#allocation4 + $0x138] sm:$0xff]
        %v3472 = vld [vmem:[#allocation4 + $0x140] sm:$0xff]
        %v3473 = vld [vmem:[#allocation4 + $0x148] sm:$0xff]
        %v3474 = vld [vmem:[#allocation4 + $0x150] sm:$0xff]
        %v3475 = vld [vmem:[#allocation4 + $0x158] sm:$0xff]
        %v3476 = vld [vmem:[#allocation4 + $0x160] sm:$0xff]
        %v3477 = vld [vmem:[#allocation4 + $0x168] sm:$0xff]
        %v3478 = vld [vmem:[#allocation4 + $0x170] sm:$0xff]
        %v3479 = vld [vmem:[#allocation4 + $0x178] sm:$0xff]
        %v3480 = vld [vmem:[#allocation4 + $0x180] sm:$0xff]
        %v3481 = vld [vmem:[#allocation4 + $0x188] sm:$0xff]
        %v3482 = vld [vmem:[#allocation4 + $0x190] sm:$0xff]
        %v3483 = vld [vmem:[#allocation4 + $0x198] sm:$0xff]
        %v3484 = vld [vmem:[#allocation4 + $0x1a0] sm:$0xff]
        %v3485 = vld [vmem:[#allocation4 + $0x1a8] sm:$0xff]
        %v3486 = vld [vmem:[#allocation4 + $0x1b0] sm:$0xff]
        %v3487 = vld [vmem:[#allocation4 + $0x1b8] sm:$0xff]
        %v3488 = vld [vmem:[#allocation4 + $0x1c0] sm:$0xff]
        %v3489 = vld [vmem:[#allocation4 + $0x1c8] sm:$0xff]
        %v3490 = vld [vmem:[#allocation4 + $0x1d0] sm:$0xff]
        %v3491 = vld [vmem:[#allocation4 + $0x1d8] sm:$0xff]
        %v3492 = vld [vmem:[#allocation4 + $0x1e0] sm:$0xff]
        %v3493 = vld [vmem:[#allocation4 + $0x1e8] sm:$0xff]
        %v3494 = vld [vmem:[#allocation4 + $0x1f0] sm:$0xff]
        %v3495 = vld [vmem:[#allocation4 + $0x1f8] sm:$0xff]
        %v3496 = vrcp.pop %v3368
        %v3497 = vrcp.pop %v3369
        %v3498 = vrcp.pop %v3370
        %v3499 = vrcp.pop %v3371
        %v3500 = vrcp.pop %v3372
        %v3501 = vrcp.pop %v3373
        %v3502 = vrcp.pop %v3374
        %v3503 = vrcp.pop %v3375
        %v3504 = vrcp.pop %v3376
        %v3505 = vrcp.pop %v3377
        %v3506 = vrcp.pop %v3378
        %v3507 = vrcp.pop %v3379
        %v3508 = vrcp.pop %v3380
        %v3509 = vrcp.pop %v3381
        %v3510 = vrcp.pop %v3382
        %v3511 = vrcp.pop %v3383
        %v3512 = vrcp.pop %v3384
        %v3513 = vrcp.pop %v3385
        %v3514 = vrcp.pop %v3386
        %v3515 = vrcp.pop %v3387
        %v3516 = vrcp.pop %v3388
        %v3517 = vrcp.pop %v3389
        %v3518 = vrcp.pop %v3390
        %v3519 = vrcp.pop %v3391
        %v3520 = vrcp.pop %v3392
        %v3521 = vrcp.pop %v3393
        %v3522 = vrcp.pop %v3394
        %v3523 = vrcp.pop %v3395
        %v3524 = vrcp.pop %v3396
        %v3525 = vrcp.pop %v3397
        %v3526 = vrcp.pop %v3398
        %v3527 = vrcp.pop %v3399
        %v3528 = vrcp.pop %v3400
        %v3529 = vrcp.pop %v3401
        %v3530 = vrcp.pop %v3402
        %v3531 = vrcp.pop %v3403
        %v3532 = vrcp.pop %v3404
        %v3533 = vrcp.pop %v3405
        %v3534 = vrcp.pop %v3406
        %v3535 = vrcp.pop %v3407
        %v3536 = vrcp.pop %v3408
        %v3537 = vrcp.pop %v3409
        %v3538 = vrcp.pop %v3410
        %v3539 = vrcp.pop %v3411
        %v3540 = vrcp.pop %v3412
        %v3541 = vrcp.pop %v3413
        %v3542 = vrcp.pop %v3414
        %v3543 = vrcp.pop %v3415
        %v3544 = vrcp.pop %v3416
        %v3545 = vrcp.pop %v3417
        %v3546 = vrcp.pop %v3418
        %v3547 = vrcp.pop %v3419
        %v3548 = vrcp.pop %v3420
        %v3549 = vrcp.pop %v3421
        %v3550 = vrcp.pop %v3422
        %v3551 = vrcp.pop %v3423
        %v3552 = vrcp.pop %v3424
        %v3553 = vrcp.pop %v3425
        %v3554 = vrcp.pop %v3426
        %v3555 = vrcp.pop %v3427
        %v3556 = vrcp.pop %v3428
        %v3557 = vrcp.pop %v3429
        %v3558 = vrcp.pop %v3430
        %v3559 = vrcp.pop %v3431
        %3561 = vset.pattern.permute.xlu0 0
        %3562 = vperm.xlu0 %3561, %v3496
        %v3563 = vpop.permute.xlu0 %3562
        %3566 = vset.pattern.permute.xlu0 0
        %3567 = vperm.xlu0 %3566, %v3497
        %v3568 = vpop.permute.xlu0 %3567
        %3571 = vset.pattern.permute.xlu0 0
        %3572 = vperm.xlu0 %3571, %v3498
        %v3573 = vpop.permute.xlu0 %3572
        %3576 = vset.pattern.permute.xlu0 0
        %3577 = vperm.xlu0 %3576, %v3499
        %v3578 = vpop.permute.xlu0 %3577
        %3581 = vset.pattern.permute.xlu0 0
        %3582 = vperm.xlu0 %3581, %v3500
        %v3583 = vpop.permute.xlu0 %3582
        %3586 = vset.pattern.permute.xlu0 0
        %3587 = vperm.xlu0 %3586, %v3501
        %v3588 = vpop.permute.xlu0 %3587
        %3591 = vset.pattern.permute.xlu0 0
        %3592 = vperm.xlu0 %3591, %v3502
        %v3593 = vpop.permute.xlu0 %3592
        %3596 = vset.pattern.permute.xlu0 0
        %3597 = vperm.xlu0 %3596, %v3503
        %v3598 = vpop.permute.xlu0 %3597
        %3601 = vset.pattern.permute.xlu0 0
        %3602 = vperm.xlu0 %3601, %v3504
        %v3603 = vpop.permute.xlu0 %3602
        %3606 = vset.pattern.permute.xlu0 0
        %3607 = vperm.xlu0 %3606, %v3505
        %v3608 = vpop.permute.xlu0 %3607
        %3611 = vset.pattern.permute.xlu0 0
        %3612 = vperm.xlu0 %3611, %v3506
        %v3613 = vpop.permute.xlu0 %3612
        %3616 = vset.pattern.permute.xlu0 0
        %3617 = vperm.xlu0 %3616, %v3507
        %v3618 = vpop.permute.xlu0 %3617
        %3621 = vset.pattern.permute.xlu0 0
        %3622 = vperm.xlu0 %3621, %v3508
        %v3623 = vpop.permute.xlu0 %3622
        %3626 = vset.pattern.permute.xlu0 0
        %3627 = vperm.xlu0 %3626, %v3509
        %v3628 = vpop.permute.xlu0 %3627
        %3631 = vset.pattern.permute.xlu0 0
        %3632 = vperm.xlu0 %3631, %v3510
        %v3633 = vpop.permute.xlu0 %3632
        %3636 = vset.pattern.permute.xlu0 0
        %3637 = vperm.xlu0 %3636, %v3511
        %v3638 = vpop.permute.xlu0 %3637
        %3641 = vset.pattern.permute.xlu0 0
        %3642 = vperm.xlu0 %3641, %v3512
        %v3643 = vpop.permute.xlu0 %3642
        %3646 = vset.pattern.permute.xlu0 0
        %3647 = vperm.xlu0 %3646, %v3513
        %v3648 = vpop.permute.xlu0 %3647
        %3651 = vset.pattern.permute.xlu0 0
        %3652 = vperm.xlu0 %3651, %v3514
        %v3653 = vpop.permute.xlu0 %3652
        %3656 = vset.pattern.permute.xlu0 0
        %3657 = vperm.xlu0 %3656, %v3515
        %v3658 = vpop.permute.xlu0 %3657
        %3661 = vset.pattern.permute.xlu0 0
        %3662 = vperm.xlu0 %3661, %v3516
        %v3663 = vpop.permute.xlu0 %3662
        %3666 = vset.pattern.permute.xlu0 0
        %3667 = vperm.xlu0 %3666, %v3517
        %v3668 = vpop.permute.xlu0 %3667
        %3671 = vset.pattern.permute.xlu0 0
        %3672 = vperm.xlu0 %3671, %v3518
        %v3673 = vpop.permute.xlu0 %3672
        %3676 = vset.pattern.permute.xlu0 0
        %3677 = vperm.xlu0 %3676, %v3519
        %v3678 = vpop.permute.xlu0 %3677
        %3681 = vset.pattern.permute.xlu0 0
        %3682 = vperm.xlu0 %3681, %v3520
        %v3683 = vpop.permute.xlu0 %3682
        %3686 = vset.pattern.permute.xlu0 0
        %3687 = vperm.xlu0 %3686, %v3521
        %v3688 = vpop.permute.xlu0 %3687
        %3691 = vset.pattern.permute.xlu0 0
        %3692 = vperm.xlu0 %3691, %v3522
        %v3693 = vpop.permute.xlu0 %3692
        %3696 = vset.pattern.permute.xlu0 0
        %3697 = vperm.xlu0 %3696, %v3523
        %v3698 = vpop.permute.xlu0 %3697
        %3701 = vset.pattern.permute.xlu0 0
        %3702 = vperm.xlu0 %3701, %v3524
        %v3703 = vpop.permute.xlu0 %3702
        %3706 = vset.pattern.permute.xlu0 0
        %3707 = vperm.xlu0 %3706, %v3525
        %v3708 = vpop.permute.xlu0 %3707
        %3711 = vset.pattern.permute.xlu0 0
        %3712 = vperm.xlu0 %3711, %v3526
        %v3713 = vpop.permute.xlu0 %3712
        %3716 = vset.pattern.permute.xlu0 0
        %3717 = vperm.xlu0 %3716, %v3527
        %v3718 = vpop.permute.xlu0 %3717
        %3721 = vset.pattern.permute.xlu0 0
        %3722 = vperm.xlu0 %3721, %v3528
        %v3723 = vpop.permute.xlu0 %3722
        %3726 = vset.pattern.permute.xlu0 0
        %3727 = vperm.xlu0 %3726, %v3529
        %v3728 = vpop.permute.xlu0 %3727
        %3731 = vset.pattern.permute.xlu0 0
        %3732 = vperm.xlu0 %3731, %v3530
        %v3733 = vpop.permute.xlu0 %3732
        %3736 = vset.pattern.permute.xlu0 0
        %3737 = vperm.xlu0 %3736, %v3531
        %v3738 = vpop.permute.xlu0 %3737
        %3741 = vset.pattern.permute.xlu0 0
        %3742 = vperm.xlu0 %3741, %v3532
        %v3743 = vpop.permute.xlu0 %3742
        %3746 = vset.pattern.permute.xlu0 0
        %3747 = vperm.xlu0 %3746, %v3533
        %v3748 = vpop.permute.xlu0 %3747
        %3751 = vset.pattern.permute.xlu0 0
        %3752 = vperm.xlu0 %3751, %v3534
        %v3753 = vpop.permute.xlu0 %3752
        %3756 = vset.pattern.permute.xlu0 0
        %3757 = vperm.xlu0 %3756, %v3535
        %v3758 = vpop.permute.xlu0 %3757
        %3761 = vset.pattern.permute.xlu0 0
        %3762 = vperm.xlu0 %3761, %v3536
        %v3763 = vpop.permute.xlu0 %3762
        %3766 = vset.pattern.permute.xlu0 0
        %3767 = vperm.xlu0 %3766, %v3537
        %v3768 = vpop.permute.xlu0 %3767
        %3771 = vset.pattern.permute.xlu0 0
        %3772 = vperm.xlu0 %3771, %v3538
        %v3773 = vpop.permute.xlu0 %3772
        %3776 = vset.pattern.permute.xlu0 0
        %3777 = vperm.xlu0 %3776, %v3539
        %v3778 = vpop.permute.xlu0 %3777
        %3781 = vset.pattern.permute.xlu0 0
        %3782 = vperm.xlu0 %3781, %v3540
        %v3783 = vpop.permute.xlu0 %3782
        %3786 = vset.pattern.permute.xlu0 0
        %3787 = vperm.xlu0 %3786, %v3541
        %v3788 = vpop.permute.xlu0 %3787
        %3791 = vset.pattern.permute.xlu0 0
        %3792 = vperm.xlu0 %3791, %v3542
        %v3793 = vpop.permute.xlu0 %3792
        %3796 = vset.pattern.permute.xlu0 0
        %3797 = vperm.xlu0 %3796, %v3543
        %v3798 = vpop.permute.xlu0 %3797
        %3801 = vset.pattern.permute.xlu0 0
        %3802 = vperm.xlu0 %3801, %v3544
        %v3803 = vpop.permute.xlu0 %3802
        %3806 = vset.pattern.permute.xlu0 0
        %3807 = vperm.xlu0 %3806, %v3545
        %v3808 = vpop.permute.xlu0 %3807
        %3811 = vset.pattern.permute.xlu0 0
        %3812 = vperm.xlu0 %3811, %v3546
        %v3813 = vpop.permute.xlu0 %3812
        %3816 = vset.pattern.permute.xlu0 0
        %3817 = vperm.xlu0 %3816, %v3547
        %v3818 = vpop.permute.xlu0 %3817
        %3821 = vset.pattern.permute.xlu0 0
        %3822 = vperm.xlu0 %3821, %v3548
        %v3823 = vpop.permute.xlu0 %3822
        %3826 = vset.pattern.permute.xlu0 0
        %3827 = vperm.xlu0 %3826, %v3549
        %v3828 = vpop.permute.xlu0 %3827
        %3831 = vset.pattern.permute.xlu0 0
        %3832 = vperm.xlu0 %3831, %v3550
        %v3833 = vpop.permute.xlu0 %3832
        %3836 = vset.pattern.permute.xlu0 0
        %3837 = vperm.xlu0 %3836, %v3551
        %v3838 = vpop.permute.xlu0 %3837
        %3841 = vset.pattern.permute.xlu0 0
        %3842 = vperm.xlu0 %3841, %v3552
        %v3843 = vpop.permute.xlu0 %3842
        %3846 = vset.pattern.permute.xlu0 0
        %3847 = vperm.xlu0 %3846, %v3553
        %v3848 = vpop.permute.xlu0 %3847
        %3851 = vset.pattern.permute.xlu0 0
        %3852 = vperm.xlu0 %3851, %v3554
        %v3853 = vpop.permute.xlu0 %3852
        %3856 = vset.pattern.permute.xlu0 0
        %3857 = vperm.xlu0 %3856, %v3555
        %v3858 = vpop.permute.xlu0 %3857
        %3861 = vset.pattern.permute.xlu0 0
        %3862 = vperm.xlu0 %3861, %v3556
        %v3863 = vpop.permute.xlu0 %3862
        %3866 = vset.pattern.permute.xlu0 0
        %3867 = vperm.xlu0 %3866, %v3557
        %v3868 = vpop.permute.xlu0 %3867
        %3871 = vset.pattern.permute.xlu0 0
        %3872 = vperm.xlu0 %3871, %v3558
        %v3873 = vpop.permute.xlu0 %3872
        %3876 = vset.pattern.permute.xlu0 0
        %3877 = vperm.xlu0 %3876, %v3559
        %v3878 = vpop.permute.xlu0 %3877
        %v3880 = vmul.f32 %v3432, %v3563
        %v3881 = vmul.f32 %v3433, %v3568
        %v3882 = vmul.f32 %v3434, %v3573
        %v3883 = vmul.f32 %v3435, %v3578
        %v3884 = vmul.f32 %v3436, %v3583
        %v3885 = vmul.f32 %v3437, %v3588
        %v3886 = vmul.f32 %v3438, %v3593
        %v3887 = vmul.f32 %v3439, %v3598
        %v3888 = vmul.f32 %v3440, %v3603
        %v3889 = vmul.f32 %v3441, %v3608
        %v3890 = vmul.f32 %v3442, %v3613
        %v3891 = vmul.f32 %v3443, %v3618
        %v3892 = vmul.f32 %v3444, %v3623
        %v3893 = vmul.f32 %v3445, %v3628
        %v3894 = vmul.f32 %v3446, %v3633
        %v3895 = vmul.f32 %v3447, %v3638
        %v3896 = vmul.f32 %v3448, %v3643
        %v3897 = vmul.f32 %v3449, %v3648
        %v3898 = vmul.f32 %v3450, %v3653
        %v3899 = vmul.f32 %v3451, %v3658
        %v3900 = vmul.f32 %v3452, %v3663
        %v3901 = vmul.f32 %v3453, %v3668
        %v3902 = vmul.f32 %v3454, %v3673
        %v3903 = vmul.f32 %v3455, %v3678
        %v3904 = vmul.f32 %v3456, %v3683
        %v3905 = vmul.f32 %v3457, %v3688
        %v3906 = vmul.f32 %v3458, %v3693
        %v3907 = vmul.f32 %v3459, %v3698
        %v3908 = vmul.f32 %v3460, %v3703
        %v3909 = vmul.f32 %v3461, %v3708
        %v3910 = vmul.f32 %v3462, %v3713
        %v3911 = vmul.f32 %v3463, %v3718
        %v3912 = vmul.f32 %v3464, %v3723
        %v3913 = vmul.f32 %v3465, %v3728
        %v3914 = vmul.f32 %v3466, %v3733
        %v3915 = vmul.f32 %v3467, %v3738
        %v3916 = vmul.f32 %v3468, %v3743
        %v3917 = vmul.f32 %v3469, %v3748
        %v3918 = vmul.f32 %v3470, %v3753
        %v3919 = vmul.f32 %v3471, %v3758
        %v3920 = vmul.f32 %v3472, %v3763
        %v3921 = vmul.f32 %v3473, %v3768
        %v3922 = vmul.f32 %v3474, %v3773
        %v3923 = vmul.f32 %v3475, %v3778
        %v3924 = vmul.f32 %v3476, %v3783
        %v3925 = vmul.f32 %v3477, %v3788
        %v3926 = vmul.f32 %v3478, %v3793
        %v3927 = vmul.f32 %v3479, %v3798
        %v3928 = vmul.f32 %v3480, %v3803
        %v3929 = vmul.f32 %v3481, %v3808
        %v3930 = vmul.f32 %v3482, %v3813
        %v3931 = vmul.f32 %v3483, %v3818
        %v3932 = vmul.f32 %v3484, %v3823
        %v3933 = vmul.f32 %v3485, %v3828
        %v3934 = vmul.f32 %v3486, %v3833
        %v3935 = vmul.f32 %v3487, %v3838
        %v3936 = vmul.f32 %v3488, %v3843
        %v3937 = vmul.f32 %v3489, %v3848
        %v3938 = vmul.f32 %v3490, %v3853
        %v3939 = vmul.f32 %v3491, %v3858
        %v3940 = vmul.f32 %v3492, %v3863
        %v3941 = vmul.f32 %v3493, %v3868
        %v3942 = vmul.f32 %v3494, %v3873
        %v3943 = vmul.f32 %v3495, %v3878
        %v3944 = vld [vmem:[%s4] sm:$0x1]
        %v3946 = vlaneseq
        %v3947 = vshrl.u32 %v3946, 7
        %v3948 = vsub.s32 0, %v3947
        %v3949 = vrot.slane %v3944, %v3948
        %v3951 = vadd.f32 %v3880, %v3949
        %v3952 = vadd.f32 %v3881, %v3949
        %v3953 = vadd.f32 %v3882, %v3949
        %v3954 = vadd.f32 %v3883, %v3949
        %v3955 = vadd.f32 %v3884, %v3949
        %v3956 = vadd.f32 %v3885, %v3949
        %v3957 = vadd.f32 %v3886, %v3949
        %v3958 = vadd.f32 %v3887, %v3949
        %v3959 = vadd.f32 %v3888, %v3949
        %v3960 = vadd.f32 %v3889, %v3949
        %v3961 = vadd.f32 %v3890, %v3949
        %v3962 = vadd.f32 %v3891, %v3949
        %v3963 = vadd.f32 %v3892, %v3949
        %v3964 = vadd.f32 %v3893, %v3949
        %v3965 = vadd.f32 %v3894, %v3949
        %v3966 = vadd.f32 %v3895, %v3949
        %v3967 = vadd.f32 %v3896, %v3949
        %v3968 = vadd.f32 %v3897, %v3949
        %v3969 = vadd.f32 %v3898, %v3949
        %v3970 = vadd.f32 %v3899, %v3949
        %v3971 = vadd.f32 %v3900, %v3949
        %v3972 = vadd.f32 %v3901, %v3949
        %v3973 = vadd.f32 %v3902, %v3949
        %v3974 = vadd.f32 %v3903, %v3949
        %v3975 = vadd.f32 %v3904, %v3949
        %v3976 = vadd.f32 %v3905, %v3949
        %v3977 = vadd.f32 %v3906, %v3949
        %v3978 = vadd.f32 %v3907, %v3949
        %v3979 = vadd.f32 %v3908, %v3949
        %v3980 = vadd.f32 %v3909, %v3949
        %v3981 = vadd.f32 %v3910, %v3949
        %v3982 = vadd.f32 %v3911, %v3949
        %v3983 = vadd.f32 %v3912, %v3949
        %v3984 = vadd.f32 %v3913, %v3949
        %v3985 = vadd.f32 %v3914, %v3949
        %v3986 = vadd.f32 %v3915, %v3949
        %v3987 = vadd.f32 %v3916, %v3949
        %v3988 = vadd.f32 %v3917, %v3949
        %v3989 = vadd.f32 %v3918, %v3949
        %v3990 = vadd.f32 %v3919, %v3949
        %v3991 = vadd.f32 %v3920, %v3949
        %v3992 = vadd.f32 %v3921, %v3949
        %v3993 = vadd.f32 %v3922, %v3949
        %v3994 = vadd.f32 %v3923, %v3949
        %v3995 = vadd.f32 %v3924, %v3949
        %v3996 = vadd.f32 %v3925, %v3949
        %v3997 = vadd.f32 %v3926, %v3949
        %v3998 = vadd.f32 %v3927, %v3949
        %v3999 = vadd.f32 %v3928, %v3949
        %v4000 = vadd.f32 %v3929, %v3949
        %v4001 = vadd.f32 %v3930, %v3949
        %v4002 = vadd.f32 %v3931, %v3949
        %v4003 = vadd.f32 %v3932, %v3949
        %v4004 = vadd.f32 %v3933, %v3949
        %v4005 = vadd.f32 %v3934, %v3949
        %v4006 = vadd.f32 %v3935, %v3949
        %v4007 = vadd.f32 %v3936, %v3949
        %v4008 = vadd.f32 %v3937, %v3949
        %v4009 = vadd.f32 %v3938, %v3949
        %v4010 = vadd.f32 %v3939, %v3949
        %v4011 = vadd.f32 %v3940, %v3949
        %v4012 = vadd.f32 %v3941, %v3949
        %v4013 = vadd.f32 %v3942, %v3949
        %v4014 = vadd.f32 %v3943, %v3949
        %vm4015 = vcmask 130048
        %4016 = vst.msk [vmem:[%s241] sm:$0xff] %vm4015, %v3951
        %4017 = vst.msk [vmem:[%s241 + $0x8] sm:$0xff] %vm4015, %v3952
        %4018 = vst.msk [vmem:[%s241 + $0x10] sm:$0xff] %vm4015, %v3953
        %4019 = vst.msk [vmem:[%s241 + $0x18] sm:$0xff] %vm4015, %v3954
        %4020 = vst.msk [vmem:[%s241 + $0x20] sm:$0xff] %vm4015, %v3955
        %4021 = vst.msk [vmem:[%s241 + $0x28] sm:$0xff] %vm4015, %v3956
        %4022 = vst.msk [vmem:[%s241 + $0x30] sm:$0xff] %vm4015, %v3957
        %4023 = vst.msk [vmem:[%s241 + $0x38] sm:$0xff] %vm4015, %v3958
        %4024 = vst.msk [vmem:[%s241 + $0x40] sm:$0xff] %vm4015, %v3959
        %4025 = vst.msk [vmem:[%s241 + $0x48] sm:$0xff] %vm4015, %v3960
        %4026 = vst.msk [vmem:[%s241 + $0x50] sm:$0xff] %vm4015, %v3961
        %4027 = vst.msk [vmem:[%s241 + $0x58] sm:$0xff] %vm4015, %v3962
        %4028 = vst.msk [vmem:[%s241 + $0x60] sm:$0xff] %vm4015, %v3963
        %4029 = vst.msk [vmem:[%s241 + $0x68] sm:$0xff] %vm4015, %v3964
        %4030 = vst.msk [vmem:[%s241 + $0x70] sm:$0xff] %vm4015, %v3965
        %4031 = vst.msk [vmem:[%s241 + $0x78] sm:$0xff] %vm4015, %v3966
        %4032 = vst.msk [vmem:[%s241 + $0x80] sm:$0xff] %vm4015, %v3967
        %4033 = vst.msk [vmem:[%s241 + $0x88] sm:$0xff] %vm4015, %v3968
        %4034 = vst.msk [vmem:[%s241 + $0x90] sm:$0xff] %vm4015, %v3969
        %4035 = vst.msk [vmem:[%s241 + $0x98] sm:$0xff] %vm4015, %v3970
        %4036 = vst.msk [vmem:[%s241 + $0xa0] sm:$0xff] %vm4015, %v3971
        %4037 = vst.msk [vmem:[%s241 + $0xa8] sm:$0xff] %vm4015, %v3972
        %4038 = vst.msk [vmem:[%s241 + $0xb0] sm:$0xff] %vm4015, %v3973
        %4039 = vst.msk [vmem:[%s241 + $0xb8] sm:$0xff] %vm4015, %v3974
        %4040 = vst.msk [vmem:[%s241 + $0xc0] sm:$0xff] %vm4015, %v3975
        %4041 = vst.msk [vmem:[%s241 + $0xc8] sm:$0xff] %vm4015, %v3976
        %4042 = vst.msk [vmem:[%s241 + $0xd0] sm:$0xff] %vm4015, %v3977
        %4043 = vst.msk [vmem:[%s241 + $0xd8] sm:$0xff] %vm4015, %v3978
        %4044 = vst.msk [vmem:[%s241 + $0xe0] sm:$0xff] %vm4015, %v3979
        %4045 = vst.msk [vmem:[%s241 + $0xe8] sm:$0xff] %vm4015, %v3980
        %4046 = vst.msk [vmem:[%s241 + $0xf0] sm:$0xff] %vm4015, %v3981
        %4047 = vst.msk [vmem:[%s241 + $0xf8] sm:$0xff] %vm4015, %v3982
        %4048 = vst.msk [vmem:[%s241 + $0x100] sm:$0xff] %vm4015, %v3983
        %4049 = vst.msk [vmem:[%s241 + $0x108] sm:$0xff] %vm4015, %v3984
        %4050 = vst.msk [vmem:[%s241 + $0x110] sm:$0xff] %vm4015, %v3985
        %4051 = vst.msk [vmem:[%s241 + $0x118] sm:$0xff] %vm4015, %v3986
        %4052 = vst.msk [vmem:[%s241 + $0x120] sm:$0xff] %vm4015, %v3987
        %4053 = vst.msk [vmem:[%s241 + $0x128] sm:$0xff] %vm4015, %v3988
        %4054 = vst.msk [vmem:[%s241 + $0x130] sm:$0xff] %vm4015, %v3989
        %4055 = vst.msk [vmem:[%s241 + $0x138] sm:$0xff] %vm4015, %v3990
        %4056 = vst.msk [vmem:[%s241 + $0x140] sm:$0xff] %vm4015, %v3991
        %4057 = vst.msk [vmem:[%s241 + $0x148] sm:$0xff] %vm4015, %v3992
        %4058 = vst.msk [vmem:[%s241 + $0x150] sm:$0xff] %vm4015, %v3993
        %4059 = vst.msk [vmem:[%s241 + $0x158] sm:$0xff] %vm4015, %v3994
        %4060 = vst.msk [vmem:[%s241 + $0x160] sm:$0xff] %vm4015, %v3995
        %4061 = vst.msk [vmem:[%s241 + $0x168] sm:$0xff] %vm4015, %v3996
        %4062 = vst.msk [vmem:[%s241 + $0x170] sm:$0xff] %vm4015, %v3997
        %4063 = vst.msk [vmem:[%s241 + $0x178] sm:$0xff] %vm4015, %v3998
        %4064 = vst.msk [vmem:[%s241 + $0x180] sm:$0xff] %vm4015, %v3999
        %4065 = vst.msk [vmem:[%s241 + $0x188] sm:$0xff] %vm4015, %v4000
        %4066 = vst.msk [vmem:[%s241 + $0x190] sm:$0xff] %vm4015, %v4001
        %4067 = vst.msk [vmem:[%s241 + $0x198] sm:$0xff] %vm4015, %v4002
        %4068 = vst.msk [vmem:[%s241 + $0x1a0] sm:$0xff] %vm4015, %v4003
        %4069 = vst.msk [vmem:[%s241 + $0x1a8] sm:$0xff] %vm4015, %v4004
        %4070 = vst.msk [vmem:[%s241 + $0x1b0] sm:$0xff] %vm4015, %v4005
        %4071 = vst.msk [vmem:[%s241 + $0x1b8] sm:$0xff] %vm4015, %v4006
        %4072 = vst.msk [vmem:[%s241 + $0x1c0] sm:$0xff] %vm4015, %v4007
        %4073 = vst.msk [vmem:[%s241 + $0x1c8] sm:$0xff] %vm4015, %v4008
        %4074 = vst.msk [vmem:[%s241 + $0x1d0] sm:$0xff] %vm4015, %v4009
        %4075 = vst.msk [vmem:[%s241 + $0x1d8] sm:$0xff] %vm4015, %v4010
        %4076 = vst.msk [vmem:[%s241 + $0x1e0] sm:$0xff] %vm4015, %v4011
        %4077 = vst.msk [vmem:[%s241 + $0x1e8] sm:$0xff] %vm4015, %v4012
        %4078 = vst.msk [vmem:[%s241 + $0x1f0] sm:$0xff] %vm4015, %v4013
        %4079 = vst.msk [vmem:[%s241 + $0x1f8] sm:$0xff] %vm4015, %v4014
      $region48: #{_forward_static.3} parent=35 // pred_fallthru
        _
      %s4080 = smul.u32 64, %s21
      %p4081 = scmp.lt.s32.totalorder %s4080, 255
      %s4082 = scalar_select %p4081, %s4080, 255
      %s4083 = smul.addr %s4082, 8
      %s4084 = scalar_lea.vmem %s5, %s4083
      // Predicated region
      $region49: #{_forward_static.3} parent=35 // pred_check
        %p4085 = pneg %p146
      $region50: #{_forward_static.3} parent=35 // pred_check_branch
        %4087 = sbr.rel (%p4085) target = $region52
      $region51: #{_forward_static.3} parent=35 // pred_region
        %s4088 = smul.u32 64, %s21
      $region52: #{_forward_static.3} parent=35 // pred_fallthru
        _
    $region36: #{_forward_static.3} parent=5 // pred_fallthru
      _
    %p4089 = scmp.le.s32.totalorder 2, %s12
    // Predicated region
    $region53: #{_forward_static.3} parent=5 // pred_check
      %p4090 = pneg %p4089
    $region54: #{_forward_static.3} parent=5 // pred_check_branch
      %4092 = sbr.rel (%p4090) target = $region56
    $region55: #{_forward_static.3} parent=5 // pred_region
      %s4093 = ssub.s32 %s12, 2
      // Predicated region
      $region57: #{_forward_static.3} parent=55 // pred_check
        %p4094 = pneg %p152
      $region58: #{_forward_static.3} parent=55 // pred_check_branch
        %4096 = sbr.rel (%p4094) target = $region60
      $region59: #{_forward_static.3} parent=55 // pred_region
        %s4097 = smul.u32 64, %s23
        %p4098 = scmp.lt.s32.totalorder %s4097, 255
        %s4099 = scalar_select %p4098, %s4097, 255
        %s4100 = smul.addr %s4099, 8
        %s4101 = scalar_lea.vmem %s5, %s4100
      $region60: #{_forward_static.3} parent=55 // pred_fallthru
        _
    $region56: #{_forward_static.3} parent=5 // pred_fallthru
      _
  $region6: #{_forward_static.3} parent=0 // loop_footer
    %s16 = sadd.s32 1, %s12
  $region7: #{_forward_static.3} parent=0 // loop_footer_branch
    %11 = sbr.rel target = $region3
  $region8: #{_forward_static.3} parent=0 // loop_exit
    _

</llo_original>
